<compile_context>
chip_gen: v7x
topology: tpu7x:2x2x1
jax: 0.10.0
libtpu: 0.0.40
codegen_flags: <defaults>
</compile_context>

<pallas_src>
import jax
import jax.numpy as jnp
from jax.experimental import pallas as pl
from jax.experimental.pallas import tpu as pltpu

K = 15      # conv kernel width
PAD = 7     # (K - 1) // 2
EPS = 1e-5  # nn.BatchNorm2d default eps


def _make_dense_block_kernel(cins, grow, NHW, W, matmul_dtype):
    """Fused DenseBlock kernel for a fixed (static) layer configuration."""
    L = len(cins)
    C0 = cins[0]
    inv_cnt = 1.0 / float(NHW)   # BN statistics count = N*H*W per channel

    def kernel(*refs):
        x_ref, colmod_ref = refs[0], refs[1]
        p_refs = refs[2:2 + 4 * L]
        out_ref = refs[2 + 4 * L]

        # Raw input occupies output channels [0, C0): no separate scratch copy.
        out_ref[0:C0, :] = x_ref[...].astype(out_ref.dtype)

        # Per-position index within a W-row (precomputed in the wrapper).
        colmod = colmod_ref[...]                              # (1, NHW) int32

        for l in range(L):                                    # static unroll
            cin = cins[l]
            gamma = p_refs[4 * l + 0][...]                    # (cin, 1)
            beta = p_refs[4 * l + 1][...]                     # (cin, 1)
            w_ref = p_refs[4 * l + 2]                         # (K, grow, cin) ref
            bias = p_refs[4 * l + 3][...]                     # (grow, 1)

            cur = out_ref[0:cin, :].astype(jnp.float32)       # (cin, NHW)

            # --- BatchNorm (training-mode batch stats, single pass) + ReLU ---
            s = jnp.sum(cur, axis=1, keepdims=True)
            ss = jnp.sum(cur * cur, axis=1, keepdims=True)
            mean = s * inv_cnt
            var = jnp.maximum(ss * inv_cnt - mean * mean, 0.0)
            scale = gamma * jax.lax.rsqrt(var + EPS)          # (cin, 1)
            shift = beta - mean * scale
            y = jnp.maximum(cur * scale + shift, 0.0).astype(matmul_dtype)

            # --- (1,15) "same" conv: K per-tap MXU matmuls into one f32 acc ---
            acc = jnp.zeros((grow, NHW), jnp.float32)
            for k in range(K):                                # static unroll
                off = k - PAD
                wk = w_ref[k].astype(matmul_dtype)            # (grow, cin)
                # yk[:, s] = y[:, s + off]   (lane rotation; wrap is masked below)
                yk = y if off == 0 else jnp.roll(y, -off, axis=1)
                p = jax.lax.dot_general(
                    wk, yk, (((1,), (0,)), ((), ())),
                    preferred_element_type=jnp.float32)       # (grow, NHW)
                if off == 0:
                    acc = acc + p
                else:
                    # Zero contributions that crossed a W-row boundary -- this IS
                    # the conv's zero padding, applied after the matmul on the
                    # small (grow, NHW) result instead of via a padded buffer.
                    valid = jnp.logical_and(colmod + off >= 0, colmod + off < W)
                    acc = acc + jnp.where(valid, p, 0.0)

            # DenseNet "concat": just write the new channels in place.
            out_ref[cin:cin + grow, :] = (acc + bias).astype(out_ref.dtype)

    return kernel


def dense_block_forward(x_nchw, params, *, matmul_dtype=jnp.bfloat16):
    """Pallas DenseBlock forward.

    x_nchw: (N, C, H, W); params: list of (gamma, beta, w_kio, bias) with
    w_kio of shape (K, cin, grow) (HWIO minus the size-1 H axis).
    """
    N, C0, H, W = x_nchw.shape
    L = len(params)
    grow = params[0][2].shape[2]
    cins = tuple(C0 + l * grow for l in range(L))
    ctot = C0 + L * grow
    NHW = N * H * W

    # NCHW -> (C, N*H*W): channels on sublanes, flat spatial (lane-dense) on lanes.
    x_k = jnp.transpose(x_nchw, (1, 0, 2, 3)).reshape(C0, NHW)
    # Index within each W-row for every flattened spatial position.
    colmod = (jnp.arange(NHW, dtype=jnp.int32) % W).reshape(1, NHW)

    flat_params = []
    in_specs = [
        pl.BlockSpec((C0, NHW), lambda i: (0, 0)),
        pl.BlockSpec((1, NHW), lambda i: (0, 0)),
    ]
    for l, (gamma, beta, w_kio, bias) in enumerate(params):
        cin = cins[l]
        flat_params += [
            gamma.reshape(cin, 1).astype(jnp.float32),
            beta.reshape(cin, 1).astype(jnp.float32),
            # (K, cin, grow) -> (K, grow, cin): per-tap slabs for the transposed matmul.
            jnp.transpose(w_kio, (0, 2, 1)).astype(jnp.float32),
            bias.reshape(grow, 1).astype(jnp.float32),
        ]
        in_specs += [
            pl.BlockSpec((cin, 1), lambda i: (0, 0)),
            pl.BlockSpec((cin, 1), lambda i: (0, 0)),
            pl.BlockSpec((K, grow, cin), lambda i: (0, 0, 0)),
            pl.BlockSpec((grow, 1), lambda i: (0, 0)),
        ]

    out = pl.pallas_call(
        _make_dense_block_kernel(cins, grow, NHW, W, matmul_dtype),
        out_shape=jax.ShapeDtypeStruct((ctot, NHW), x_nchw.dtype),
        grid=(1,),
        in_specs=in_specs,
        out_specs=pl.BlockSpec((ctot, NHW), lambda i: (0, 0)),
        compiler_params=pltpu.CompilerParams(
            dimension_semantics=("arbitrary",),
            # Fits v7x's 64 MiB with headroom; well under v5e/v6e physical.
            vmem_limit_bytes=48 * 1024 * 1024),
    )(x_k, colmod, *flat_params)

    # (C_total, N*H*W) -> NCHW
    return jnp.transpose(out.reshape(ctot, N, H, W), (1, 0, 2, 3))


# ---------------- pure-JAX reference (for correctness check) ----------------
def _basic_block_ref(x_nhwc, gamma, beta, w_kio, bias, matmul_dtype):
    mean = jnp.mean(x_nhwc, axis=(0, 1, 2))
    var = jnp.mean(jnp.square(x_nhwc - mean), axis=(0, 1, 2))
    y = jnp.maximum((x_nhwc - mean) / jnp.sqrt(var + EPS) * gamma + beta, 0.0)
    out = jax.lax.conv_general_dilated(
        y.astype(matmul_dtype), w_kio[None].astype(matmul_dtype),   # HWIO = (1,K,Cin,Cout)
        window_strides=(1, 1), padding=((0, 0), (PAD, PAD)),
        dimension_numbers=("NHWC", "HWIO", "NHWC"),
        preferred_element_type=jnp.float32)
    return out + bias


def dense_block_ref(x_nchw, params, matmul_dtype=jnp.float32):
    x = jnp.transpose(x_nchw, (0, 2, 3, 1))
    for gamma, beta, w_kio, bias in params:
        out = _basic_block_ref(x, gamma, beta, w_kio, bias, matmul_dtype)
        x = jnp.concatenate([x, out], axis=-1)
    return jnp.transpose(x, (0, 3, 1, 2))


if __name__ == "__main__":
    nb_layers, in_planes, grow_rate = 3, 4, 4
    N, H, W = 2, 8, 16

    key = jax.random.PRNGKey(0)
    key, kx = jax.random.split(key)
    x_nchw = jax.random.normal(kx, (N, in_planes, H, W), jnp.float32)

    # Deterministic parameter init (shapes follow the module's __init__).
    params = []
    cin = in_planes
    for _ in range(nb_layers):
        key, kg, kb, kw, kc = jax.random.split(key, 5)
        gamma = 1.0 + 0.1 * jax.random.normal(kg, (cin,), jnp.float32)
        beta = 0.1 * jax.random.normal(kb, (cin,), jnp.float32)
        w = jax.random.normal(kw, (K, cin, grow_rate), jnp.float32) / jnp.sqrt(K * cin)
        b = 0.1 * jax.random.normal(kc, (grow_rate,), jnp.float32)
        params.append((gamma, beta, w, b))
        cin += grow_rate

    ctot = in_planes + nb_layers * grow_rate

    # 1) Exact-precision check: f32 MXU operands vs. the pure-JAX f32 reference.
    fwd_f32 = jax.jit(lambda x, p: dense_block_forward(x, p, matmul_dtype=jnp.float32))
    out_f32 = jax.block_until_ready(fwd_f32(x_nchw, params))
    assert out_f32.shape == (N, ctot, H, W), out_f32.shape
    ref_f32 = dense_block_ref(x_nchw, params, jnp.float32)
    err_f32 = float(jnp.max(jnp.abs(out_f32 - ref_f32)))
    assert err_f32 < 2e-3, f"f32 mismatch vs reference: {err_f32}"

    # 2) Default perf configuration: bf16 MXU operands, f32 accumulation
    #    (v6e / v7x bf16 MXU path), compared against a matched bf16-operand ref.
    fwd_bf16 = jax.jit(lambda x, p: dense_block_forward(x, p))
    out_bf16 = jax.block_until_ready(fwd_bf16(x_nchw, params))
    assert out_bf16.shape == (N, ctot, H, W), out_bf16.shape
    ref_bf16 = dense_block_ref(x_nchw, params, jnp.bfloat16)
    err_bf16 = float(jnp.max(jnp.abs(out_bf16 - ref_bf16)))
    assert err_bf16 < 2e-2, f"bf16 mismatch vs bf16 reference: {err_bf16}"

    print("KERNEL_OK")
</pallas_src>

<mosaic_0001>
module attributes {stable_mosaic.version = 11 : i64} {
  func.func @kernel(%arg0: i32, %arg1: memref<4x256xf32, #tpu.memory_space<vmem>>, %arg2: memref<1x256xi32, #tpu.memory_space<vmem>>, %arg3: memref<4x1xf32, #tpu.memory_space<vmem>>, %arg4: memref<4x1xf32, #tpu.memory_space<vmem>>, %arg5: memref<15x4x4xf32, #tpu.memory_space<vmem>>, %arg6: memref<4x1xf32, #tpu.memory_space<vmem>>, %arg7: memref<8x1xf32, #tpu.memory_space<vmem>>, %arg8: memref<8x1xf32, #tpu.memory_space<vmem>>, %arg9: memref<15x4x8xf32, #tpu.memory_space<vmem>>, %arg10: memref<4x1xf32, #tpu.memory_space<vmem>>, %arg11: memref<12x1xf32, #tpu.memory_space<vmem>>, %arg12: memref<12x1xf32, #tpu.memory_space<vmem>>, %arg13: memref<15x4x12xf32, #tpu.memory_space<vmem>>, %arg14: memref<4x1xf32, #tpu.memory_space<vmem>>, %arg15: memref<16x256xf32, #tpu.memory_space<vmem>>) attributes {dimension_semantics = [#tpu.dimension_semantics<arbitrary>], iteration_bounds = array<i64: 1>, scalar_prefetch = 0 : i64, scratch_operands = 0 : i64, tpu.core_type = #tpu.core_type<tc>, window_params = [{pipeline_mode = #tpu.pipeline_mode<synchronous>, transform_indices = @transform_0, window_bounds = array<i64: 4, 256>}, {pipeline_mode = #tpu.pipeline_mode<synchronous>, transform_indices = @transform_1, window_bounds = array<i64: 1, 256>}, {pipeline_mode = #tpu.pipeline_mode<synchronous>, transform_indices = @transform_2, window_bounds = array<i64: 4, 1>}, {pipeline_mode = #tpu.pipeline_mode<synchronous>, transform_indices = @transform_3, window_bounds = array<i64: 4, 1>}, {pipeline_mode = #tpu.pipeline_mode<synchronous>, transform_indices = @transform_4, window_bounds = array<i64: 15, 4, 4>}, {pipeline_mode = #tpu.pipeline_mode<synchronous>, transform_indices = @transform_5, window_bounds = array<i64: 4, 1>}, {pipeline_mode = #tpu.pipeline_mode<synchronous>, transform_indices = @transform_6, window_bounds = array<i64: 8, 1>}, {pipeline_mode = #tpu.pipeline_mode<synchronous>, transform_indices = @transform_7, window_bounds = array<i64: 8, 1>}, {pipeline_mode = #tpu.pipeline_mode<synchronous>, transform_indices = @transform_8, window_bounds = array<i64: 15, 4, 8>}, {pipeline_mode = #tpu.pipeline_mode<synchronous>, transform_indices = @transform_9, window_bounds = array<i64: 4, 1>}, {pipeline_mode = #tpu.pipeline_mode<synchronous>, transform_indices = @transform_10, window_bounds = array<i64: 12, 1>}, {pipeline_mode = #tpu.pipeline_mode<synchronous>, transform_indices = @transform_11, window_bounds = array<i64: 12, 1>}, {pipeline_mode = #tpu.pipeline_mode<synchronous>, transform_indices = @transform_12, window_bounds = array<i64: 15, 4, 12>}, {pipeline_mode = #tpu.pipeline_mode<synchronous>, transform_indices = @transform_13, window_bounds = array<i64: 4, 1>}, {pipeline_mode = #tpu.pipeline_mode<synchronous>, transform_indices = @transform_14, window_bounds = array<i64: 16, 256>}]} {
    %c0 = arith.constant 0 : index
    %c0_0 = arith.constant 0 : index
    %0 = vector.load %arg1[%c0, %c0_0] : memref<4x256xf32, #tpu.memory_space<vmem>>, vector<4x256xf32>
    %c0_1 = arith.constant 0 : index
    %c0_2 = arith.constant 0 : index
    %1 = vector.load %arg15[%c0_1, %c0_2] : memref<16x256xf32, #tpu.memory_space<vmem>>, vector<4x256xf32>
    tpu.vector_store %arg15[%c0_1, %c0_2], %0 {strides = array<i32>} : memref<16x256xf32, #tpu.memory_space<vmem>>, vector<4x256xf32>,
    %c0_3 = arith.constant 0 : index
    %c0_4 = arith.constant 0 : index
    %2 = vector.load %arg2[%c0_3, %c0_4] : memref<1x256xi32, #tpu.memory_space<vmem>>, vector<1x256xi32>
    %c0_5 = arith.constant 0 : index
    %c0_6 = arith.constant 0 : index
    %3 = vector.load %arg3[%c0_5, %c0_6] : memref<4x1xf32, #tpu.memory_space<vmem>>, vector<4x1xf32>
    %c0_7 = arith.constant 0 : index
    %c0_8 = arith.constant 0 : index
    %4 = vector.load %arg4[%c0_7, %c0_8] : memref<4x1xf32, #tpu.memory_space<vmem>>, vector<4x1xf32>
    %c0_9 = arith.constant 0 : index
    %c0_10 = arith.constant 0 : index
    %5 = vector.load %arg6[%c0_9, %c0_10] : memref<4x1xf32, #tpu.memory_space<vmem>>, vector<4x1xf32>
    %c0_11 = arith.constant 0 : index
    %c0_12 = arith.constant 0 : index
    %6 = vector.load %arg15[%c0_11, %c0_12] : memref<16x256xf32, #tpu.memory_space<vmem>>, vector<4x256xf32>
    %cst = arith.constant dense<0.000000e+00> : vector<4xf32>
    %7 = vector.multi_reduction <add>, %6, %cst [1] : vector<4x256xf32> to vector<4xf32>
    %8 = vector.shape_cast %7 : vector<4xf32> to vector<4x1xf32>
    %9 = arith.mulf %6, %6 : vector<4x256xf32>
    %cst_13 = arith.constant dense<0.000000e+00> : vector<4xf32>
    %10 = vector.multi_reduction <add>, %9, %cst_13 [1] : vector<4x256xf32> to vector<4xf32>
    %11 = vector.shape_cast %10 : vector<4xf32> to vector<4x1xf32>
    %cst_14 = arith.constant 3.906250e-03 : f32
    %12 = vector.broadcast %cst_14 : f32 to vector<4x1xf32>
    %13 = arith.mulf %8, %12 : vector<4x1xf32>
    %cst_15 = arith.constant 3.906250e-03 : f32
    %14 = vector.broadcast %cst_15 : f32 to vector<4x1xf32>
    %15 = arith.mulf %11, %14 : vector<4x1xf32>
    %16 = arith.mulf %13, %13 : vector<4x1xf32>
    %17 = arith.subf %15, %16 : vector<4x1xf32>
    %cst_16 = arith.constant 0.000000e+00 : f32
    %18 = vector.broadcast %cst_16 : f32 to vector<4x1xf32>
    %19 = arith.maximumf %17, %18 : vector<4x1xf32>
    %cst_17 = arith.constant 9.99999974E-6 : f32
    %20 = vector.broadcast %cst_17 : f32 to vector<4x1xf32>
    %21 = arith.addf %19, %20 : vector<4x1xf32>
    %22 = math.rsqrt %21 : vector<4x1xf32>
    %23 = arith.mulf %3, %22 : vector<4x1xf32>
    %24 = arith.mulf %13, %23 : vector<4x1xf32>
    %25 = arith.subf %4, %24 : vector<4x1xf32>
    %26 = vector.broadcast %23 : vector<4x1xf32> to vector<4x256xf32>
    %27 = arith.mulf %6, %26 : vector<4x256xf32>
    %28 = vector.broadcast %25 : vector<4x1xf32> to vector<4x256xf32>
    %29 = arith.addf %27, %28 : vector<4x256xf32>
    %cst_18 = arith.constant 0.000000e+00 : f32
    %30 = vector.broadcast %cst_18 : f32 to vector<4x256xf32>
    %31 = arith.maximumf %29, %30 : vector<4x256xf32>
    %cst_19 = arith.constant 0.000000e+00 : f32
    %32 = vector.broadcast %cst_19 : f32 to vector<4x256xf32>
    %c0_20 = arith.constant 0 : index
    %c0_21 = arith.constant 0 : index
    %c0_22 = arith.constant 0 : index
    %33 = vector.load %arg5[%c0_20, %c0_21, %c0_22] : memref<15x4x4xf32, #tpu.memory_space<vmem>>, vector<1x4x4xf32>
    %34 = vector.shape_cast %33 : vector<1x4x4xf32> to vector<4x4xf32>
    %35 = vector.extract_strided_slice %31 {offsets = [0, 249], sizes = [4, 7], strides = [1, 1]} : vector<4x256xf32> to vector<4x7xf32>
    %36 = vector.extract_strided_slice %31 {offsets = [0, 0], sizes = [4, 249], strides = [1, 1]} : vector<4x256xf32> to vector<4x249xf32>
    %37 = tpu.concatenate %35, %36 in 1 : vector<4x7xf32>, vector<4x249xf32> -> vector<4x256xf32>
    %cst_23 = arith.constant dense<0.000000e+00> : vector<4x256xf32>
    %38 = tpu.matmul %34, %37, %cst_23 {dimension_numbers = #tpu.dot_dimension_numbers<[1], [0], [0], [1], [0, 0, 1, 1], [], []>} : vector<4x4xf32>, vector<4x256xf32>, vector<4x256xf32> -> vector<4x256xf32>
    %c-7_i32 = arith.constant -7 : i32
    %39 = vector.broadcast %c-7_i32 : i32 to vector<1x256xi32>
    %40 = arith.addi %2, %39 : vector<1x256xi32>
    %c0_i32 = arith.constant 0 : i32
    %41 = vector.broadcast %c0_i32 : i32 to vector<1x256xi32>
    %42 = arith.cmpi sge, %40, %41 : vector<1x256xi32>
    %c-7_i32_24 = arith.constant -7 : i32
    %43 = vector.broadcast %c-7_i32_24 : i32 to vector<1x256xi32>
    %44 = arith.addi %2, %43 : vector<1x256xi32>
    %c16_i32 = arith.constant 16 : i32
    %45 = vector.broadcast %c16_i32 : i32 to vector<1x256xi32>
    %46 = arith.cmpi slt, %44, %45 : vector<1x256xi32>
    %47 = arith.andi %42, %46 : vector<1x256xi1>
    %cst_25 = arith.constant 0.000000e+00 : f32
    %48 = vector.shape_cast %47 : vector<1x256xi1> to vector<1x256xi1>
    %49 = vector.broadcast %48 : vector<1x256xi1> to vector<4x256xi1>
    %50 = vector.broadcast %cst_25 : f32 to vector<4x256xf32>
    %51 = arith.select %49, %38, %50 : vector<4x256xi1>, vector<4x256xf32>
    %52 = arith.addf %32, %51 : vector<4x256xf32>
    %c1 = arith.constant 1 : index
    %c0_26 = arith.constant 0 : index
    %c0_27 = arith.constant 0 : index
    %53 = vector.load %arg5[%c1, %c0_26, %c0_27] : memref<15x4x4xf32, #tpu.memory_space<vmem>>, vector<1x4x4xf32>
    %54 = vector.shape_cast %53 : vector<1x4x4xf32> to vector<4x4xf32>
    %55 = vector.extract_strided_slice %31 {offsets = [0, 250], sizes = [4, 6], strides = [1, 1]} : vector<4x256xf32> to vector<4x6xf32>
    %56 = vector.extract_strided_slice %31 {offsets = [0, 0], sizes = [4, 250], strides = [1, 1]} : vector<4x256xf32> to vector<4x250xf32>
    %57 = tpu.concatenate %55, %56 in 1 : vector<4x6xf32>, vector<4x250xf32> -> vector<4x256xf32>
    %cst_28 = arith.constant dense<0.000000e+00> : vector<4x256xf32>
    %58 = tpu.matmul %54, %57, %cst_28 {dimension_numbers = #tpu.dot_dimension_numbers<[1], [0], [0], [1], [0, 0, 1, 1], [], []>} : vector<4x4xf32>, vector<4x256xf32>, vector<4x256xf32> -> vector<4x256xf32>
    %c-6_i32 = arith.constant -6 : i32
    %59 = vector.broadcast %c-6_i32 : i32 to vector<1x256xi32>
    %60 = arith.addi %2, %59 : vector<1x256xi32>
    %c0_i32_29 = arith.constant 0 : i32
    %61 = vector.broadcast %c0_i32_29 : i32 to vector<1x256xi32>
    %62 = arith.cmpi sge, %60, %61 : vector<1x256xi32>
    %c-6_i32_30 = arith.constant -6 : i32
    %63 = vector.broadcast %c-6_i32_30 : i32 to vector<1x256xi32>
    %64 = arith.addi %2, %63 : vector<1x256xi32>
    %c16_i32_31 = arith.constant 16 : i32
    %65 = vector.broadcast %c16_i32_31 : i32 to vector<1x256xi32>
    %66 = arith.cmpi slt, %64, %65 : vector<1x256xi32>
    %67 = arith.andi %62, %66 : vector<1x256xi1>
    %cst_32 = arith.constant 0.000000e+00 : f32
    %68 = vector.shape_cast %67 : vector<1x256xi1> to vector<1x256xi1>
    %69 = vector.broadcast %68 : vector<1x256xi1> to vector<4x256xi1>
    %70 = vector.broadcast %cst_32 : f32 to vector<4x256xf32>
    %71 = arith.select %69, %58, %70 : vector<4x256xi1>, vector<4x256xf32>
    %72 = arith.addf %52, %71 : vector<4x256xf32>
    %c2 = arith.constant 2 : index
    %c0_33 = arith.constant 0 : index
    %c0_34 = arith.constant 0 : index
    %73 = vector.load %arg5[%c2, %c0_33, %c0_34] : memref<15x4x4xf32, #tpu.memory_space<vmem>>, vector<1x4x4xf32>
    %74 = vector.shape_cast %73 : vector<1x4x4xf32> to vector<4x4xf32>
    %75 = vector.extract_strided_slice %31 {offsets = [0, 251], sizes = [4, 5], strides = [1, 1]} : vector<4x256xf32> to vector<4x5xf32>
    %76 = vector.extract_strided_slice %31 {offsets = [0, 0], sizes = [4, 251], strides = [1, 1]} : vector<4x256xf32> to vector<4x251xf32>
    %77 = tpu.concatenate %75, %76 in 1 : vector<4x5xf32>, vector<4x251xf32> -> vector<4x256xf32>
    %cst_35 = arith.constant dense<0.000000e+00> : vector<4x256xf32>
    %78 = tpu.matmul %74, %77, %cst_35 {dimension_numbers = #tpu.dot_dimension_numbers<[1], [0], [0], [1], [0, 0, 1, 1], [], []>} : vector<4x4xf32>, vector<4x256xf32>, vector<4x256xf32> -> vector<4x256xf32>
    %c-5_i32 = arith.constant -5 : i32
    %79 = vector.broadcast %c-5_i32 : i32 to vector<1x256xi32>
    %80 = arith.addi %2, %79 : vector<1x256xi32>
    %c0_i32_36 = arith.constant 0 : i32
    %81 = vector.broadcast %c0_i32_36 : i32 to vector<1x256xi32>
    %82 = arith.cmpi sge, %80, %81 : vector<1x256xi32>
    %c-5_i32_37 = arith.constant -5 : i32
    %83 = vector.broadcast %c-5_i32_37 : i32 to vector<1x256xi32>
    %84 = arith.addi %2, %83 : vector<1x256xi32>
    %c16_i32_38 = arith.constant 16 : i32
    %85 = vector.broadcast %c16_i32_38 : i32 to vector<1x256xi32>
    %86 = arith.cmpi slt, %84, %85 : vector<1x256xi32>
    %87 = arith.andi %82, %86 : vector<1x256xi1>
    %cst_39 = arith.constant 0.000000e+00 : f32
    %88 = vector.shape_cast %87 : vector<1x256xi1> to vector<1x256xi1>
    %89 = vector.broadcast %88 : vector<1x256xi1> to vector<4x256xi1>
    %90 = vector.broadcast %cst_39 : f32 to vector<4x256xf32>
    %91 = arith.select %89, %78, %90 : vector<4x256xi1>, vector<4x256xf32>
    %92 = arith.addf %72, %91 : vector<4x256xf32>
    %c3 = arith.constant 3 : index
    %c0_40 = arith.constant 0 : index
    %c0_41 = arith.constant 0 : index
    %93 = vector.load %arg5[%c3, %c0_40, %c0_41] : memref<15x4x4xf32, #tpu.memory_space<vmem>>, vector<1x4x4xf32>
    %94 = vector.shape_cast %93 : vector<1x4x4xf32> to vector<4x4xf32>
    %95 = vector.extract_strided_slice %31 {offsets = [0, 252], sizes = [4, 4], strides = [1, 1]} : vector<4x256xf32> to vector<4x4xf32>
    %96 = vector.extract_strided_slice %31 {offsets = [0, 0], sizes = [4, 252], strides = [1, 1]} : vector<4x256xf32> to vector<4x252xf32>
    %97 = tpu.concatenate %95, %96 in 1 : vector<4x4xf32>, vector<4x252xf32> -> vector<4x256xf32>
    %cst_42 = arith.constant dense<0.000000e+00> : vector<4x256xf32>
    %98 = tpu.matmul %94, %97, %cst_42 {dimension_numbers = #tpu.dot_dimension_numbers<[1], [0], [0], [1], [0, 0, 1, 1], [], []>} : vector<4x4xf32>, vector<4x256xf32>, vector<4x256xf32> -> vector<4x256xf32>
    %c-4_i32 = arith.constant -4 : i32
    %99 = vector.broadcast %c-4_i32 : i32 to vector<1x256xi32>
    %100 = arith.addi %2, %99 : vector<1x256xi32>
    %c0_i32_43 = arith.constant 0 : i32
    %101 = vector.broadcast %c0_i32_43 : i32 to vector<1x256xi32>
    %102 = arith.cmpi sge, %100, %101 : vector<1x256xi32>
    %c-4_i32_44 = arith.constant -4 : i32
    %103 = vector.broadcast %c-4_i32_44 : i32 to vector<1x256xi32>
    %104 = arith.addi %2, %103 : vector<1x256xi32>
    %c16_i32_45 = arith.constant 16 : i32
    %105 = vector.broadcast %c16_i32_45 : i32 to vector<1x256xi32>
    %106 = arith.cmpi slt, %104, %105 : vector<1x256xi32>
    %107 = arith.andi %102, %106 : vector<1x256xi1>
    %cst_46 = arith.constant 0.000000e+00 : f32
    %108 = vector.shape_cast %107 : vector<1x256xi1> to vector<1x256xi1>
    %109 = vector.broadcast %108 : vector<1x256xi1> to vector<4x256xi1>
    %110 = vector.broadcast %cst_46 : f32 to vector<4x256xf32>
    %111 = arith.select %109, %98, %110 : vector<4x256xi1>, vector<4x256xf32>
    %112 = arith.addf %92, %111 : vector<4x256xf32>
    %c4 = arith.constant 4 : index
    %c0_47 = arith.constant 0 : index
    %c0_48 = arith.constant 0 : index
    %113 = vector.load %arg5[%c4, %c0_47, %c0_48] : memref<15x4x4xf32, #tpu.memory_space<vmem>>, vector<1x4x4xf32>
    %114 = vector.shape_cast %113 : vector<1x4x4xf32> to vector<4x4xf32>
    %115 = vector.extract_strided_slice %31 {offsets = [0, 253], sizes = [4, 3], strides = [1, 1]} : vector<4x256xf32> to vector<4x3xf32>
    %116 = vector.extract_strided_slice %31 {offsets = [0, 0], sizes = [4, 253], strides = [1, 1]} : vector<4x256xf32> to vector<4x253xf32>
    %117 = tpu.concatenate %115, %116 in 1 : vector<4x3xf32>, vector<4x253xf32> -> vector<4x256xf32>
    %cst_49 = arith.constant dense<0.000000e+00> : vector<4x256xf32>
    %118 = tpu.matmul %114, %117, %cst_49 {dimension_numbers = #tpu.dot_dimension_numbers<[1], [0], [0], [1], [0, 0, 1, 1], [], []>} : vector<4x4xf32>, vector<4x256xf32>, vector<4x256xf32> -> vector<4x256xf32>
    %c-3_i32 = arith.constant -3 : i32
    %119 = vector.broadcast %c-3_i32 : i32 to vector<1x256xi32>
    %120 = arith.addi %2, %119 : vector<1x256xi32>
    %c0_i32_50 = arith.constant 0 : i32
    %121 = vector.broadcast %c0_i32_50 : i32 to vector<1x256xi32>
    %122 = arith.cmpi sge, %120, %121 : vector<1x256xi32>
    %c-3_i32_51 = arith.constant -3 : i32
    %123 = vector.broadcast %c-3_i32_51 : i32 to vector<1x256xi32>
    %124 = arith.addi %2, %123 : vector<1x256xi32>
    %c16_i32_52 = arith.constant 16 : i32
    %125 = vector.broadcast %c16_i32_52 : i32 to vector<1x256xi32>
    %126 = arith.cmpi slt, %124, %125 : vector<1x256xi32>
    %127 = arith.andi %122, %126 : vector<1x256xi1>
    %cst_53 = arith.constant 0.000000e+00 : f32
    %128 = vector.shape_cast %127 : vector<1x256xi1> to vector<1x256xi1>
    %129 = vector.broadcast %128 : vector<1x256xi1> to vector<4x256xi1>
    %130 = vector.broadcast %cst_53 : f32 to vector<4x256xf32>
    %131 = arith.select %129, %118, %130 : vector<4x256xi1>, vector<4x256xf32>
    %132 = arith.addf %112, %131 : vector<4x256xf32>
    %c5 = arith.constant 5 : index
    %c0_54 = arith.constant 0 : index
    %c0_55 = arith.constant 0 : index
    %133 = vector.load %arg5[%c5, %c0_54, %c0_55] : memref<15x4x4xf32, #tpu.memory_space<vmem>>, vector<1x4x4xf32>
    %134 = vector.shape_cast %133 : vector<1x4x4xf32> to vector<4x4xf32>
    %135 = vector.extract_strided_slice %31 {offsets = [0, 254], sizes = [4, 2], strides = [1, 1]} : vector<4x256xf32> to vector<4x2xf32>
    %136 = vector.extract_strided_slice %31 {offsets = [0, 0], sizes = [4, 254], strides = [1, 1]} : vector<4x256xf32> to vector<4x254xf32>
    %137 = tpu.concatenate %135, %136 in 1 : vector<4x2xf32>, vector<4x254xf32> -> vector<4x256xf32>
    %cst_56 = arith.constant dense<0.000000e+00> : vector<4x256xf32>
    %138 = tpu.matmul %134, %137, %cst_56 {dimension_numbers = #tpu.dot_dimension_numbers<[1], [0], [0], [1], [0, 0, 1, 1], [], []>} : vector<4x4xf32>, vector<4x256xf32>, vector<4x256xf32> -> vector<4x256xf32>
    %c-2_i32 = arith.constant -2 : i32
    %139 = vector.broadcast %c-2_i32 : i32 to vector<1x256xi32>
    %140 = arith.addi %2, %139 : vector<1x256xi32>
    %c0_i32_57 = arith.constant 0 : i32
    %141 = vector.broadcast %c0_i32_57 : i32 to vector<1x256xi32>
    %142 = arith.cmpi sge, %140, %141 : vector<1x256xi32>
    %c-2_i32_58 = arith.constant -2 : i32
    %143 = vector.broadcast %c-2_i32_58 : i32 to vector<1x256xi32>
    %144 = arith.addi %2, %143 : vector<1x256xi32>
    %c16_i32_59 = arith.constant 16 : i32
    %145 = vector.broadcast %c16_i32_59 : i32 to vector<1x256xi32>
    %146 = arith.cmpi slt, %144, %145 : vector<1x256xi32>
    %147 = arith.andi %142, %146 : vector<1x256xi1>
    %cst_60 = arith.constant 0.000000e+00 : f32
    %148 = vector.shape_cast %147 : vector<1x256xi1> to vector<1x256xi1>
    %149 = vector.broadcast %148 : vector<1x256xi1> to vector<4x256xi1>
    %150 = vector.broadcast %cst_60 : f32 to vector<4x256xf32>
    %151 = arith.select %149, %138, %150 : vector<4x256xi1>, vector<4x256xf32>
    %152 = arith.addf %132, %151 : vector<4x256xf32>
    %c6 = arith.constant 6 : index
    %c0_61 = arith.constant 0 : index
    %c0_62 = arith.constant 0 : index
    %153 = vector.load %arg5[%c6, %c0_61, %c0_62] : memref<15x4x4xf32, #tpu.memory_space<vmem>>, vector<1x4x4xf32>
    %154 = vector.shape_cast %153 : vector<1x4x4xf32> to vector<4x4xf32>
    %155 = vector.extract_strided_slice %31 {offsets = [0, 255], sizes = [4, 1], strides = [1, 1]} : vector<4x256xf32> to vector<4x1xf32>
    %156 = vector.extract_strided_slice %31 {offsets = [0, 0], sizes = [4, 255], strides = [1, 1]} : vector<4x256xf32> to vector<4x255xf32>
    %157 = tpu.concatenate %155, %156 in 1 : vector<4x1xf32>, vector<4x255xf32> -> vector<4x256xf32>
    %cst_63 = arith.constant dense<0.000000e+00> : vector<4x256xf32>
    %158 = tpu.matmul %154, %157, %cst_63 {dimension_numbers = #tpu.dot_dimension_numbers<[1], [0], [0], [1], [0, 0, 1, 1], [], []>} : vector<4x4xf32>, vector<4x256xf32>, vector<4x256xf32> -> vector<4x256xf32>
    %c-1_i32 = arith.constant -1 : i32
    %159 = vector.broadcast %c-1_i32 : i32 to vector<1x256xi32>
    %160 = arith.addi %2, %159 : vector<1x256xi32>
    %c0_i32_64 = arith.constant 0 : i32
    %161 = vector.broadcast %c0_i32_64 : i32 to vector<1x256xi32>
    %162 = arith.cmpi sge, %160, %161 : vector<1x256xi32>
    %c-1_i32_65 = arith.constant -1 : i32
    %163 = vector.broadcast %c-1_i32_65 : i32 to vector<1x256xi32>
    %164 = arith.addi %2, %163 : vector<1x256xi32>
    %c16_i32_66 = arith.constant 16 : i32
    %165 = vector.broadcast %c16_i32_66 : i32 to vector<1x256xi32>
    %166 = arith.cmpi slt, %164, %165 : vector<1x256xi32>
    %167 = arith.andi %162, %166 : vector<1x256xi1>
    %cst_67 = arith.constant 0.000000e+00 : f32
    %168 = vector.shape_cast %167 : vector<1x256xi1> to vector<1x256xi1>
    %169 = vector.broadcast %168 : vector<1x256xi1> to vector<4x256xi1>
    %170 = vector.broadcast %cst_67 : f32 to vector<4x256xf32>
    %171 = arith.select %169, %158, %170 : vector<4x256xi1>, vector<4x256xf32>
    %172 = arith.addf %152, %171 : vector<4x256xf32>
    %c7 = arith.constant 7 : index
    %c0_68 = arith.constant 0 : index
    %c0_69 = arith.constant 0 : index
    %173 = vector.load %arg5[%c7, %c0_68, %c0_69] : memref<15x4x4xf32, #tpu.memory_space<vmem>>, vector<1x4x4xf32>
    %174 = vector.shape_cast %173 : vector<1x4x4xf32> to vector<4x4xf32>
    %cst_70 = arith.constant dense<0.000000e+00> : vector<4x256xf32>
    %175 = tpu.matmul %174, %31, %cst_70 {dimension_numbers = #tpu.dot_dimension_numbers<[1], [0], [0], [1], [0, 0, 1, 1], [], []>} : vector<4x4xf32>, vector<4x256xf32>, vector<4x256xf32> -> vector<4x256xf32>
    %176 = arith.addf %172, %175 : vector<4x256xf32>
    %c8 = arith.constant 8 : index
    %c0_71 = arith.constant 0 : index
    %c0_72 = arith.constant 0 : index
    %177 = vector.load %arg5[%c8, %c0_71, %c0_72] : memref<15x4x4xf32, #tpu.memory_space<vmem>>, vector<1x4x4xf32>
    %178 = vector.shape_cast %177 : vector<1x4x4xf32> to vector<4x4xf32>
    %179 = vector.extract_strided_slice %31 {offsets = [0, 1], sizes = [4, 255], strides = [1, 1]} : vector<4x256xf32> to vector<4x255xf32>
    %180 = vector.extract_strided_slice %31 {offsets = [0, 0], sizes = [4, 1], strides = [1, 1]} : vector<4x256xf32> to vector<4x1xf32>
    %181 = tpu.concatenate %179, %180 in 1 : vector<4x255xf32>, vector<4x1xf32> -> vector<4x256xf32>
    %cst_73 = arith.constant dense<0.000000e+00> : vector<4x256xf32>
    %182 = tpu.matmul %178, %181, %cst_73 {dimension_numbers = #tpu.dot_dimension_numbers<[1], [0], [0], [1], [0, 0, 1, 1], [], []>} : vector<4x4xf32>, vector<4x256xf32>, vector<4x256xf32> -> vector<4x256xf32>
    %c1_i32 = arith.constant 1 : i32
    %183 = vector.broadcast %c1_i32 : i32 to vector<1x256xi32>
    %184 = arith.addi %2, %183 : vector<1x256xi32>
    %c0_i32_74 = arith.constant 0 : i32
    %185 = vector.broadcast %c0_i32_74 : i32 to vector<1x256xi32>
    %186 = arith.cmpi sge, %184, %185 : vector<1x256xi32>
    %c1_i32_75 = arith.constant 1 : i32
    %187 = vector.broadcast %c1_i32_75 : i32 to vector<1x256xi32>
    %188 = arith.addi %2, %187 : vector<1x256xi32>
    %c16_i32_76 = arith.constant 16 : i32
    %189 = vector.broadcast %c16_i32_76 : i32 to vector<1x256xi32>
    %190 = arith.cmpi slt, %188, %189 : vector<1x256xi32>
    %191 = arith.andi %186, %190 : vector<1x256xi1>
    %cst_77 = arith.constant 0.000000e+00 : f32
    %192 = vector.shape_cast %191 : vector<1x256xi1> to vector<1x256xi1>
    %193 = vector.broadcast %192 : vector<1x256xi1> to vector<4x256xi1>
    %194 = vector.broadcast %cst_77 : f32 to vector<4x256xf32>
    %195 = arith.select %193, %182, %194 : vector<4x256xi1>, vector<4x256xf32>
    %196 = arith.addf %176, %195 : vector<4x256xf32>
    %c9 = arith.constant 9 : index
    %c0_78 = arith.constant 0 : index
    %c0_79 = arith.constant 0 : index
    %197 = vector.load %arg5[%c9, %c0_78, %c0_79] : memref<15x4x4xf32, #tpu.memory_space<vmem>>, vector<1x4x4xf32>
    %198 = vector.shape_cast %197 : vector<1x4x4xf32> to vector<4x4xf32>
    %199 = vector.extract_strided_slice %31 {offsets = [0, 2], sizes = [4, 254], strides = [1, 1]} : vector<4x256xf32> to vector<4x254xf32>
    %200 = vector.extract_strided_slice %31 {offsets = [0, 0], sizes = [4, 2], strides = [1, 1]} : vector<4x256xf32> to vector<4x2xf32>
    %201 = tpu.concatenate %199, %200 in 1 : vector<4x254xf32>, vector<4x2xf32> -> vector<4x256xf32>
    %cst_80 = arith.constant dense<0.000000e+00> : vector<4x256xf32>
    %202 = tpu.matmul %198, %201, %cst_80 {dimension_numbers = #tpu.dot_dimension_numbers<[1], [0], [0], [1], [0, 0, 1, 1], [], []>} : vector<4x4xf32>, vector<4x256xf32>, vector<4x256xf32> -> vector<4x256xf32>
    %c2_i32 = arith.constant 2 : i32
    %203 = vector.broadcast %c2_i32 : i32 to vector<1x256xi32>
    %204 = arith.addi %2, %203 : vector<1x256xi32>
    %c0_i32_81 = arith.constant 0 : i32
    %205 = vector.broadcast %c0_i32_81 : i32 to vector<1x256xi32>
    %206 = arith.cmpi sge, %204, %205 : vector<1x256xi32>
    %c2_i32_82 = arith.constant 2 : i32
    %207 = vector.broadcast %c2_i32_82 : i32 to vector<1x256xi32>
    %208 = arith.addi %2, %207 : vector<1x256xi32>
    %c16_i32_83 = arith.constant 16 : i32
    %209 = vector.broadcast %c16_i32_83 : i32 to vector<1x256xi32>
    %210 = arith.cmpi slt, %208, %209 : vector<1x256xi32>
    %211 = arith.andi %206, %210 : vector<1x256xi1>
    %cst_84 = arith.constant 0.000000e+00 : f32
    %212 = vector.shape_cast %211 : vector<1x256xi1> to vector<1x256xi1>
    %213 = vector.broadcast %212 : vector<1x256xi1> to vector<4x256xi1>
    %214 = vector.broadcast %cst_84 : f32 to vector<4x256xf32>
    %215 = arith.select %213, %202, %214 : vector<4x256xi1>, vector<4x256xf32>
    %216 = arith.addf %196, %215 : vector<4x256xf32>
    %c10 = arith.constant 10 : index
    %c0_85 = arith.constant 0 : index
    %c0_86 = arith.constant 0 : index
    %217 = vector.load %arg5[%c10, %c0_85, %c0_86] : memref<15x4x4xf32, #tpu.memory_space<vmem>>, vector<1x4x4xf32>
    %218 = vector.shape_cast %217 : vector<1x4x4xf32> to vector<4x4xf32>
    %219 = vector.extract_strided_slice %31 {offsets = [0, 3], sizes = [4, 253], strides = [1, 1]} : vector<4x256xf32> to vector<4x253xf32>
    %220 = vector.extract_strided_slice %31 {offsets = [0, 0], sizes = [4, 3], strides = [1, 1]} : vector<4x256xf32> to vector<4x3xf32>
    %221 = tpu.concatenate %219, %220 in 1 : vector<4x253xf32>, vector<4x3xf32> -> vector<4x256xf32>
    %cst_87 = arith.constant dense<0.000000e+00> : vector<4x256xf32>
    %222 = tpu.matmul %218, %221, %cst_87 {dimension_numbers = #tpu.dot_dimension_numbers<[1], [0], [0], [1], [0, 0, 1, 1], [], []>} : vector<4x4xf32>, vector<4x256xf32>, vector<4x256xf32> -> vector<4x256xf32>
    %c3_i32 = arith.constant 3 : i32
    %223 = vector.broadcast %c3_i32 : i32 to vector<1x256xi32>
    %224 = arith.addi %2, %223 : vector<1x256xi32>
    %c0_i32_88 = arith.constant 0 : i32
    %225 = vector.broadcast %c0_i32_88 : i32 to vector<1x256xi32>
    %226 = arith.cmpi sge, %224, %225 : vector<1x256xi32>
    %c3_i32_89 = arith.constant 3 : i32
    %227 = vector.broadcast %c3_i32_89 : i32 to vector<1x256xi32>
    %228 = arith.addi %2, %227 : vector<1x256xi32>
    %c16_i32_90 = arith.constant 16 : i32
    %229 = vector.broadcast %c16_i32_90 : i32 to vector<1x256xi32>
    %230 = arith.cmpi slt, %228, %229 : vector<1x256xi32>
    %231 = arith.andi %226, %230 : vector<1x256xi1>
    %cst_91 = arith.constant 0.000000e+00 : f32
    %232 = vector.shape_cast %231 : vector<1x256xi1> to vector<1x256xi1>
    %233 = vector.broadcast %232 : vector<1x256xi1> to vector<4x256xi1>
    %234 = vector.broadcast %cst_91 : f32 to vector<4x256xf32>
    %235 = arith.select %233, %222, %234 : vector<4x256xi1>, vector<4x256xf32>
    %236 = arith.addf %216, %235 : vector<4x256xf32>
    %c11 = arith.constant 11 : index
    %c0_92 = arith.constant 0 : index
    %c0_93 = arith.constant 0 : index
    %237 = vector.load %arg5[%c11, %c0_92, %c0_93] : memref<15x4x4xf32, #tpu.memory_space<vmem>>, vector<1x4x4xf32>
    %238 = vector.shape_cast %237 : vector<1x4x4xf32> to vector<4x4xf32>
    %239 = vector.extract_strided_slice %31 {offsets = [0, 4], sizes = [4, 252], strides = [1, 1]} : vector<4x256xf32> to vector<4x252xf32>
    %240 = vector.extract_strided_slice %31 {offsets = [0, 0], sizes = [4, 4], strides = [1, 1]} : vector<4x256xf32> to vector<4x4xf32>
    %241 = tpu.concatenate %239, %240 in 1 : vector<4x252xf32>, vector<4x4xf32> -> vector<4x256xf32>
    %cst_94 = arith.constant dense<0.000000e+00> : vector<4x256xf32>
    %242 = tpu.matmul %238, %241, %cst_94 {dimension_numbers = #tpu.dot_dimension_numbers<[1], [0], [0], [1], [0, 0, 1, 1], [], []>} : vector<4x4xf32>, vector<4x256xf32>, vector<4x256xf32> -> vector<4x256xf32>
    %c4_i32 = arith.constant 4 : i32
    %243 = vector.broadcast %c4_i32 : i32 to vector<1x256xi32>
    %244 = arith.addi %2, %243 : vector<1x256xi32>
    %c0_i32_95 = arith.constant 0 : i32
    %245 = vector.broadcast %c0_i32_95 : i32 to vector<1x256xi32>
    %246 = arith.cmpi sge, %244, %245 : vector<1x256xi32>
    %c4_i32_96 = arith.constant 4 : i32
    %247 = vector.broadcast %c4_i32_96 : i32 to vector<1x256xi32>
    %248 = arith.addi %2, %247 : vector<1x256xi32>
    %c16_i32_97 = arith.constant 16 : i32
    %249 = vector.broadcast %c16_i32_97 : i32 to vector<1x256xi32>
    %250 = arith.cmpi slt, %248, %249 : vector<1x256xi32>
    %251 = arith.andi %246, %250 : vector<1x256xi1>
    %cst_98 = arith.constant 0.000000e+00 : f32
    %252 = vector.shape_cast %251 : vector<1x256xi1> to vector<1x256xi1>
    %253 = vector.broadcast %252 : vector<1x256xi1> to vector<4x256xi1>
    %254 = vector.broadcast %cst_98 : f32 to vector<4x256xf32>
    %255 = arith.select %253, %242, %254 : vector<4x256xi1>, vector<4x256xf32>
    %256 = arith.addf %236, %255 : vector<4x256xf32>
    %c12 = arith.constant 12 : index
    %c0_99 = arith.constant 0 : index
    %c0_100 = arith.constant 0 : index
    %257 = vector.load %arg5[%c12, %c0_99, %c0_100] : memref<15x4x4xf32, #tpu.memory_space<vmem>>, vector<1x4x4xf32>
    %258 = vector.shape_cast %257 : vector<1x4x4xf32> to vector<4x4xf32>
    %259 = vector.extract_strided_slice %31 {offsets = [0, 5], sizes = [4, 251], strides = [1, 1]} : vector<4x256xf32> to vector<4x251xf32>
    %260 = vector.extract_strided_slice %31 {offsets = [0, 0], sizes = [4, 5], strides = [1, 1]} : vector<4x256xf32> to vector<4x5xf32>
    %261 = tpu.concatenate %259, %260 in 1 : vector<4x251xf32>, vector<4x5xf32> -> vector<4x256xf32>
    %cst_101 = arith.constant dense<0.000000e+00> : vector<4x256xf32>
    %262 = tpu.matmul %258, %261, %cst_101 {dimension_numbers = #tpu.dot_dimension_numbers<[1], [0], [0], [1], [0, 0, 1, 1], [], []>} : vector<4x4xf32>, vector<4x256xf32>, vector<4x256xf32> -> vector<4x256xf32>
    %c5_i32 = arith.constant 5 : i32
    %263 = vector.broadcast %c5_i32 : i32 to vector<1x256xi32>
    %264 = arith.addi %2, %263 : vector<1x256xi32>
    %c0_i32_102 = arith.constant 0 : i32
    %265 = vector.broadcast %c0_i32_102 : i32 to vector<1x256xi32>
    %266 = arith.cmpi sge, %264, %265 : vector<1x256xi32>
    %c5_i32_103 = arith.constant 5 : i32
    %267 = vector.broadcast %c5_i32_103 : i32 to vector<1x256xi32>
    %268 = arith.addi %2, %267 : vector<1x256xi32>
    %c16_i32_104 = arith.constant 16 : i32
    %269 = vector.broadcast %c16_i32_104 : i32 to vector<1x256xi32>
    %270 = arith.cmpi slt, %268, %269 : vector<1x256xi32>
    %271 = arith.andi %266, %270 : vector<1x256xi1>
    %cst_105 = arith.constant 0.000000e+00 : f32
    %272 = vector.shape_cast %271 : vector<1x256xi1> to vector<1x256xi1>
    %273 = vector.broadcast %272 : vector<1x256xi1> to vector<4x256xi1>
    %274 = vector.broadcast %cst_105 : f32 to vector<4x256xf32>
    %275 = arith.select %273, %262, %274 : vector<4x256xi1>, vector<4x256xf32>
    %276 = arith.addf %256, %275 : vector<4x256xf32>
    %c13 = arith.constant 13 : index
    %c0_106 = arith.constant 0 : index
    %c0_107 = arith.constant 0 : index
    %277 = vector.load %arg5[%c13, %c0_106, %c0_107] : memref<15x4x4xf32, #tpu.memory_space<vmem>>, vector<1x4x4xf32>
    %278 = vector.shape_cast %277 : vector<1x4x4xf32> to vector<4x4xf32>
    %279 = vector.extract_strided_slice %31 {offsets = [0, 6], sizes = [4, 250], strides = [1, 1]} : vector<4x256xf32> to vector<4x250xf32>
    %280 = vector.extract_strided_slice %31 {offsets = [0, 0], sizes = [4, 6], strides = [1, 1]} : vector<4x256xf32> to vector<4x6xf32>
    %281 = tpu.concatenate %279, %280 in 1 : vector<4x250xf32>, vector<4x6xf32> -> vector<4x256xf32>
    %cst_108 = arith.constant dense<0.000000e+00> : vector<4x256xf32>
    %282 = tpu.matmul %278, %281, %cst_108 {dimension_numbers = #tpu.dot_dimension_numbers<[1], [0], [0], [1], [0, 0, 1, 1], [], []>} : vector<4x4xf32>, vector<4x256xf32>, vector<4x256xf32> -> vector<4x256xf32>
    %c6_i32 = arith.constant 6 : i32
    %283 = vector.broadcast %c6_i32 : i32 to vector<1x256xi32>
    %284 = arith.addi %2, %283 : vector<1x256xi32>
    %c0_i32_109 = arith.constant 0 : i32
    %285 = vector.broadcast %c0_i32_109 : i32 to vector<1x256xi32>
    %286 = arith.cmpi sge, %284, %285 : vector<1x256xi32>
    %c6_i32_110 = arith.constant 6 : i32
    %287 = vector.broadcast %c6_i32_110 : i32 to vector<1x256xi32>
    %288 = arith.addi %2, %287 : vector<1x256xi32>
    %c16_i32_111 = arith.constant 16 : i32
    %289 = vector.broadcast %c16_i32_111 : i32 to vector<1x256xi32>
    %290 = arith.cmpi slt, %288, %289 : vector<1x256xi32>
    %291 = arith.andi %286, %290 : vector<1x256xi1>
    %cst_112 = arith.constant 0.000000e+00 : f32
    %292 = vector.shape_cast %291 : vector<1x256xi1> to vector<1x256xi1>
    %293 = vector.broadcast %292 : vector<1x256xi1> to vector<4x256xi1>
    %294 = vector.broadcast %cst_112 : f32 to vector<4x256xf32>
    %295 = arith.select %293, %282, %294 : vector<4x256xi1>, vector<4x256xf32>
    %296 = arith.addf %276, %295 : vector<4x256xf32>
    %c14 = arith.constant 14 : index
    %c0_113 = arith.constant 0 : index
    %c0_114 = arith.constant 0 : index
    %297 = vector.load %arg5[%c14, %c0_113, %c0_114] : memref<15x4x4xf32, #tpu.memory_space<vmem>>, vector<1x4x4xf32>
    %298 = vector.shape_cast %297 : vector<1x4x4xf32> to vector<4x4xf32>
    %299 = vector.extract_strided_slice %31 {offsets = [0, 7], sizes = [4, 249], strides = [1, 1]} : vector<4x256xf32> to vector<4x249xf32>
    %300 = vector.extract_strided_slice %31 {offsets = [0, 0], sizes = [4, 7], strides = [1, 1]} : vector<4x256xf32> to vector<4x7xf32>
    %301 = tpu.concatenate %299, %300 in 1 : vector<4x249xf32>, vector<4x7xf32> -> vector<4x256xf32>
    %cst_115 = arith.constant dense<0.000000e+00> : vector<4x256xf32>
    %302 = tpu.matmul %298, %301, %cst_115 {dimension_numbers = #tpu.dot_dimension_numbers<[1], [0], [0], [1], [0, 0, 1, 1], [], []>} : vector<4x4xf32>, vector<4x256xf32>, vector<4x256xf32> -> vector<4x256xf32>
    %c7_i32 = arith.constant 7 : i32
    %303 = vector.broadcast %c7_i32 : i32 to vector<1x256xi32>
    %304 = arith.addi %2, %303 : vector<1x256xi32>
    %c0_i32_116 = arith.constant 0 : i32
    %305 = vector.broadcast %c0_i32_116 : i32 to vector<1x256xi32>
    %306 = arith.cmpi sge, %304, %305 : vector<1x256xi32>
    %c7_i32_117 = arith.constant 7 : i32
    %307 = vector.broadcast %c7_i32_117 : i32 to vector<1x256xi32>
    %308 = arith.addi %2, %307 : vector<1x256xi32>
    %c16_i32_118 = arith.constant 16 : i32
    %309 = vector.broadcast %c16_i32_118 : i32 to vector<1x256xi32>
    %310 = arith.cmpi slt, %308, %309 : vector<1x256xi32>
    %311 = arith.andi %306, %310 : vector<1x256xi1>
    %cst_119 = arith.constant 0.000000e+00 : f32
    %312 = vector.shape_cast %311 : vector<1x256xi1> to vector<1x256xi1>
    %313 = vector.broadcast %312 : vector<1x256xi1> to vector<4x256xi1>
    %314 = vector.broadcast %cst_119 : f32 to vector<4x256xf32>
    %315 = arith.select %313, %302, %314 : vector<4x256xi1>, vector<4x256xf32>
    %316 = arith.addf %296, %315 : vector<4x256xf32>
    %317 = vector.broadcast %5 : vector<4x1xf32> to vector<4x256xf32>
    %318 = arith.addf %316, %317 : vector<4x256xf32>
    %c4_120 = arith.constant 4 : index
    %c0_121 = arith.constant 0 : index
    %319 = vector.load %arg15[%c4_120, %c0_121] : memref<16x256xf32, #tpu.memory_space<vmem>>, vector<4x256xf32>
    tpu.vector_store %arg15[%c4_120, %c0_121], %318 {strides = array<i32>} : memref<16x256xf32, #tpu.memory_space<vmem>>, vector<4x256xf32>,
    %c0_122 = arith.constant 0 : index
    %c0_123 = arith.constant 0 : index
    %320 = vector.load %arg7[%c0_122, %c0_123] : memref<8x1xf32, #tpu.memory_space<vmem>>, vector<8x1xf32>
    %c0_124 = arith.constant 0 : index
    %c0_125 = arith.constant 0 : index
    %321 = vector.load %arg8[%c0_124, %c0_125] : memref<8x1xf32, #tpu.memory_space<vmem>>, vector<8x1xf32>
    %c0_126 = arith.constant 0 : index
    %c0_127 = arith.constant 0 : index
    %322 = vector.load %arg10[%c0_126, %c0_127] : memref<4x1xf32, #tpu.memory_space<vmem>>, vector<4x1xf32>
    %c0_128 = arith.constant 0 : index
    %c0_129 = arith.constant 0 : index
    %323 = vector.load %arg15[%c0_128, %c0_129] : memref<16x256xf32, #tpu.memory_space<vmem>>, vector<8x256xf32>
    %cst_130 = arith.constant dense<0.000000e+00> : vector<8xf32>
    %324 = vector.multi_reduction <add>, %323, %cst_130 [1] : vector<8x256xf32> to vector<8xf32>
    %325 = vector.shape_cast %324 : vector<8xf32> to vector<8x1xf32>
    %326 = arith.mulf %323, %323 : vector<8x256xf32>
    %cst_131 = arith.constant dense<0.000000e+00> : vector<8xf32>
    %327 = vector.multi_reduction <add>, %326, %cst_131 [1] : vector<8x256xf32> to vector<8xf32>
    %328 = vector.shape_cast %327 : vector<8xf32> to vector<8x1xf32>
    %cst_132 = arith.constant 3.906250e-03 : f32
    %329 = vector.broadcast %cst_132 : f32 to vector<8x1xf32>
    %330 = arith.mulf %325, %329 : vector<8x1xf32>
    %cst_133 = arith.constant 3.906250e-03 : f32
    %331 = vector.broadcast %cst_133 : f32 to vector<8x1xf32>
    %332 = arith.mulf %328, %331 : vector<8x1xf32>
    %333 = arith.mulf %330, %330 : vector<8x1xf32>
    %334 = arith.subf %332, %333 : vector<8x1xf32>
    %cst_134 = arith.constant 0.000000e+00 : f32
    %335 = vector.broadcast %cst_134 : f32 to vector<8x1xf32>
    %336 = arith.maximumf %334, %335 : vector<8x1xf32>
    %cst_135 = arith.constant 9.99999974E-6 : f32
    %337 = vector.broadcast %cst_135 : f32 to vector<8x1xf32>
    %338 = arith.addf %336, %337 : vector<8x1xf32>
    %339 = math.rsqrt %338 : vector<8x1xf32>
    %340 = arith.mulf %320, %339 : vector<8x1xf32>
    %341 = arith.mulf %330, %340 : vector<8x1xf32>
    %342 = arith.subf %321, %341 : vector<8x1xf32>
    %343 = vector.broadcast %340 : vector<8x1xf32> to vector<8x256xf32>
    %344 = arith.mulf %323, %343 : vector<8x256xf32>
    %345 = vector.broadcast %342 : vector<8x1xf32> to vector<8x256xf32>
    %346 = arith.addf %344, %345 : vector<8x256xf32>
    %cst_136 = arith.constant 0.000000e+00 : f32
    %347 = vector.broadcast %cst_136 : f32 to vector<8x256xf32>
    %348 = arith.maximumf %346, %347 : vector<8x256xf32>
    %cst_137 = arith.constant 0.000000e+00 : f32
    %349 = vector.broadcast %cst_137 : f32 to vector<4x256xf32>
    %c0_138 = arith.constant 0 : index
    %c0_139 = arith.constant 0 : index
    %c0_140 = arith.constant 0 : index
    %350 = vector.load %arg9[%c0_138, %c0_139, %c0_140] : memref<15x4x8xf32, #tpu.memory_space<vmem>>, vector<1x4x8xf32>
    %351 = vector.shape_cast %350 : vector<1x4x8xf32> to vector<4x8xf32>
    %352 = vector.extract_strided_slice %348 {offsets = [0, 249], sizes = [8, 7], strides = [1, 1]} : vector<8x256xf32> to vector<8x7xf32>
    %353 = vector.extract_strided_slice %348 {offsets = [0, 0], sizes = [8, 249], strides = [1, 1]} : vector<8x256xf32> to vector<8x249xf32>
    %354 = tpu.concatenate %352, %353 in 1 : vector<8x7xf32>, vector<8x249xf32> -> vector<8x256xf32>
    %cst_141 = arith.constant dense<0.000000e+00> : vector<4x256xf32>
    %355 = tpu.matmul %351, %354, %cst_141 {dimension_numbers = #tpu.dot_dimension_numbers<[1], [0], [0], [1], [0, 0, 1, 1], [], []>} : vector<4x8xf32>, vector<8x256xf32>, vector<4x256xf32> -> vector<4x256xf32>
    %c-7_i32_142 = arith.constant -7 : i32
    %356 = vector.broadcast %c-7_i32_142 : i32 to vector<1x256xi32>
    %357 = arith.addi %2, %356 : vector<1x256xi32>
    %c0_i32_143 = arith.constant 0 : i32
    %358 = vector.broadcast %c0_i32_143 : i32 to vector<1x256xi32>
    %359 = arith.cmpi sge, %357, %358 : vector<1x256xi32>
    %c-7_i32_144 = arith.constant -7 : i32
    %360 = vector.broadcast %c-7_i32_144 : i32 to vector<1x256xi32>
    %361 = arith.addi %2, %360 : vector<1x256xi32>
    %c16_i32_145 = arith.constant 16 : i32
    %362 = vector.broadcast %c16_i32_145 : i32 to vector<1x256xi32>
    %363 = arith.cmpi slt, %361, %362 : vector<1x256xi32>
    %364 = arith.andi %359, %363 : vector<1x256xi1>
    %cst_146 = arith.constant 0.000000e+00 : f32
    %365 = vector.shape_cast %364 : vector<1x256xi1> to vector<1x256xi1>
    %366 = vector.broadcast %365 : vector<1x256xi1> to vector<4x256xi1>
    %367 = vector.broadcast %cst_146 : f32 to vector<4x256xf32>
    %368 = arith.select %366, %355, %367 : vector<4x256xi1>, vector<4x256xf32>
    %369 = arith.addf %349, %368 : vector<4x256xf32>
    %c1_147 = arith.constant 1 : index
    %c0_148 = arith.constant 0 : index
    %c0_149 = arith.constant 0 : index
    %370 = vector.load %arg9[%c1_147, %c0_148, %c0_149] : memref<15x4x8xf32, #tpu.memory_space<vmem>>, vector<1x4x8xf32>
    %371 = vector.shape_cast %370 : vector<1x4x8xf32> to vector<4x8xf32>
    %372 = vector.extract_strided_slice %348 {offsets = [0, 250], sizes = [8, 6], strides = [1, 1]} : vector<8x256xf32> to vector<8x6xf32>
    %373 = vector.extract_strided_slice %348 {offsets = [0, 0], sizes = [8, 250], strides = [1, 1]} : vector<8x256xf32> to vector<8x250xf32>
    %374 = tpu.concatenate %372, %373 in 1 : vector<8x6xf32>, vector<8x250xf32> -> vector<8x256xf32>
    %cst_150 = arith.constant dense<0.000000e+00> : vector<4x256xf32>
    %375 = tpu.matmul %371, %374, %cst_150 {dimension_numbers = #tpu.dot_dimension_numbers<[1], [0], [0], [1], [0, 0, 1, 1], [], []>} : vector<4x8xf32>, vector<8x256xf32>, vector<4x256xf32> -> vector<4x256xf32>
    %c-6_i32_151 = arith.constant -6 : i32
    %376 = vector.broadcast %c-6_i32_151 : i32 to vector<1x256xi32>
    %377 = arith.addi %2, %376 : vector<1x256xi32>
    %c0_i32_152 = arith.constant 0 : i32
    %378 = vector.broadcast %c0_i32_152 : i32 to vector<1x256xi32>
    %379 = arith.cmpi sge, %377, %378 : vector<1x256xi32>
    %c-6_i32_153 = arith.constant -6 : i32
    %380 = vector.broadcast %c-6_i32_153 : i32 to vector<1x256xi32>
    %381 = arith.addi %2, %380 : vector<1x256xi32>
    %c16_i32_154 = arith.constant 16 : i32
    %382 = vector.broadcast %c16_i32_154 : i32 to vector<1x256xi32>
    %383 = arith.cmpi slt, %381, %382 : vector<1x256xi32>
    %384 = arith.andi %379, %383 : vector<1x256xi1>
    %cst_155 = arith.constant 0.000000e+00 : f32
    %385 = vector.shape_cast %384 : vector<1x256xi1> to vector<1x256xi1>
    %386 = vector.broadcast %385 : vector<1x256xi1> to vector<4x256xi1>
    %387 = vector.broadcast %cst_155 : f32 to vector<4x256xf32>
    %388 = arith.select %386, %375, %387 : vector<4x256xi1>, vector<4x256xf32>
    %389 = arith.addf %369, %388 : vector<4x256xf32>
    %c2_156 = arith.constant 2 : index
    %c0_157 = arith.constant 0 : index
    %c0_158 = arith.constant 0 : index
    %390 = vector.load %arg9[%c2_156, %c0_157, %c0_158] : memref<15x4x8xf32, #tpu.memory_space<vmem>>, vector<1x4x8xf32>
    %391 = vector.shape_cast %390 : vector<1x4x8xf32> to vector<4x8xf32>
    %392 = vector.extract_strided_slice %348 {offsets = [0, 251], sizes = [8, 5], strides = [1, 1]} : vector<8x256xf32> to vector<8x5xf32>
    %393 = vector.extract_strided_slice %348 {offsets = [0, 0], sizes = [8, 251], strides = [1, 1]} : vector<8x256xf32> to vector<8x251xf32>
    %394 = tpu.concatenate %392, %393 in 1 : vector<8x5xf32>, vector<8x251xf32> -> vector<8x256xf32>
    %cst_159 = arith.constant dense<0.000000e+00> : vector<4x256xf32>
    %395 = tpu.matmul %391, %394, %cst_159 {dimension_numbers = #tpu.dot_dimension_numbers<[1], [0], [0], [1], [0, 0, 1, 1], [], []>} : vector<4x8xf32>, vector<8x256xf32>, vector<4x256xf32> -> vector<4x256xf32>
    %c-5_i32_160 = arith.constant -5 : i32
    %396 = vector.broadcast %c-5_i32_160 : i32 to vector<1x256xi32>
    %397 = arith.addi %2, %396 : vector<1x256xi32>
    %c0_i32_161 = arith.constant 0 : i32
    %398 = vector.broadcast %c0_i32_161 : i32 to vector<1x256xi32>
    %399 = arith.cmpi sge, %397, %398 : vector<1x256xi32>
    %c-5_i32_162 = arith.constant -5 : i32
    %400 = vector.broadcast %c-5_i32_162 : i32 to vector<1x256xi32>
    %401 = arith.addi %2, %400 : vector<1x256xi32>
    %c16_i32_163 = arith.constant 16 : i32
    %402 = vector.broadcast %c16_i32_163 : i32 to vector<1x256xi32>
    %403 = arith.cmpi slt, %401, %402 : vector<1x256xi32>
    %404 = arith.andi %399, %403 : vector<1x256xi1>
    %cst_164 = arith.constant 0.000000e+00 : f32
    %405 = vector.shape_cast %404 : vector<1x256xi1> to vector<1x256xi1>
    %406 = vector.broadcast %405 : vector<1x256xi1> to vector<4x256xi1>
    %407 = vector.broadcast %cst_164 : f32 to vector<4x256xf32>
    %408 = arith.select %406, %395, %407 : vector<4x256xi1>, vector<4x256xf32>
    %409 = arith.addf %389, %408 : vector<4x256xf32>
    %c3_165 = arith.constant 3 : index
    %c0_166 = arith.constant 0 : index
    %c0_167 = arith.constant 0 : index
    %410 = vector.load %arg9[%c3_165, %c0_166, %c0_167] : memref<15x4x8xf32, #tpu.memory_space<vmem>>, vector<1x4x8xf32>
    %411 = vector.shape_cast %410 : vector<1x4x8xf32> to vector<4x8xf32>
    %412 = vector.extract_strided_slice %348 {offsets = [0, 252], sizes = [8, 4], strides = [1, 1]} : vector<8x256xf32> to vector<8x4xf32>
    %413 = vector.extract_strided_slice %348 {offsets = [0, 0], sizes = [8, 252], strides = [1, 1]} : vector<8x256xf32> to vector<8x252xf32>
    %414 = tpu.concatenate %412, %413 in 1 : vector<8x4xf32>, vector<8x252xf32> -> vector<8x256xf32>
    %cst_168 = arith.constant dense<0.000000e+00> : vector<4x256xf32>
    %415 = tpu.matmul %411, %414, %cst_168 {dimension_numbers = #tpu.dot_dimension_numbers<[1], [0], [0], [1], [0, 0, 1, 1], [], []>} : vector<4x8xf32>, vector<8x256xf32>, vector<4x256xf32> -> vector<4x256xf32>
    %c-4_i32_169 = arith.constant -4 : i32
    %416 = vector.broadcast %c-4_i32_169 : i32 to vector<1x256xi32>
    %417 = arith.addi %2, %416 : vector<1x256xi32>
    %c0_i32_170 = arith.constant 0 : i32
    %418 = vector.broadcast %c0_i32_170 : i32 to vector<1x256xi32>
    %419 = arith.cmpi sge, %417, %418 : vector<1x256xi32>
    %c-4_i32_171 = arith.constant -4 : i32
    %420 = vector.broadcast %c-4_i32_171 : i32 to vector<1x256xi32>
    %421 = arith.addi %2, %420 : vector<1x256xi32>
    %c16_i32_172 = arith.constant 16 : i32
    %422 = vector.broadcast %c16_i32_172 : i32 to vector<1x256xi32>
    %423 = arith.cmpi slt, %421, %422 : vector<1x256xi32>
    %424 = arith.andi %419, %423 : vector<1x256xi1>
    %cst_173 = arith.constant 0.000000e+00 : f32
    %425 = vector.shape_cast %424 : vector<1x256xi1> to vector<1x256xi1>
    %426 = vector.broadcast %425 : vector<1x256xi1> to vector<4x256xi1>
    %427 = vector.broadcast %cst_173 : f32 to vector<4x256xf32>
    %428 = arith.select %426, %415, %427 : vector<4x256xi1>, vector<4x256xf32>
    %429 = arith.addf %409, %428 : vector<4x256xf32>
    %c4_174 = arith.constant 4 : index
    %c0_175 = arith.constant 0 : index
    %c0_176 = arith.constant 0 : index
    %430 = vector.load %arg9[%c4_174, %c0_175, %c0_176] : memref<15x4x8xf32, #tpu.memory_space<vmem>>, vector<1x4x8xf32>
    %431 = vector.shape_cast %430 : vector<1x4x8xf32> to vector<4x8xf32>
    %432 = vector.extract_strided_slice %348 {offsets = [0, 253], sizes = [8, 3], strides = [1, 1]} : vector<8x256xf32> to vector<8x3xf32>
    %433 = vector.extract_strided_slice %348 {offsets = [0, 0], sizes = [8, 253], strides = [1, 1]} : vector<8x256xf32> to vector<8x253xf32>
    %434 = tpu.concatenate %432, %433 in 1 : vector<8x3xf32>, vector<8x253xf32> -> vector<8x256xf32>
    %cst_177 = arith.constant dense<0.000000e+00> : vector<4x256xf32>
    %435 = tpu.matmul %431, %434, %cst_177 {dimension_numbers = #tpu.dot_dimension_numbers<[1], [0], [0], [1], [0, 0, 1, 1], [], []>} : vector<4x8xf32>, vector<8x256xf32>, vector<4x256xf32> -> vector<4x256xf32>
    %c-3_i32_178 = arith.constant -3 : i32
    %436 = vector.broadcast %c-3_i32_178 : i32 to vector<1x256xi32>
    %437 = arith.addi %2, %436 : vector<1x256xi32>
    %c0_i32_179 = arith.constant 0 : i32
    %438 = vector.broadcast %c0_i32_179 : i32 to vector<1x256xi32>
    %439 = arith.cmpi sge, %437, %438 : vector<1x256xi32>
    %c-3_i32_180 = arith.constant -3 : i32
    %440 = vector.broadcast %c-3_i32_180 : i32 to vector<1x256xi32>
    %441 = arith.addi %2, %440 : vector<1x256xi32>
    %c16_i32_181 = arith.constant 16 : i32
    %442 = vector.broadcast %c16_i32_181 : i32 to vector<1x256xi32>
    %443 = arith.cmpi slt, %441, %442 : vector<1x256xi32>
    %444 = arith.andi %439, %443 : vector<1x256xi1>
    %cst_182 = arith.constant 0.000000e+00 : f32
    %445 = vector.shape_cast %444 : vector<1x256xi1> to vector<1x256xi1>
    %446 = vector.broadcast %445 : vector<1x256xi1> to vector<4x256xi1>
    %447 = vector.broadcast %cst_182 : f32 to vector<4x256xf32>
    %448 = arith.select %446, %435, %447 : vector<4x256xi1>, vector<4x256xf32>
    %449 = arith.addf %429, %448 : vector<4x256xf32>
    %c5_183 = arith.constant 5 : index
    %c0_184 = arith.constant 0 : index
    %c0_185 = arith.constant 0 : index
    %450 = vector.load %arg9[%c5_183, %c0_184, %c0_185] : memref<15x4x8xf32, #tpu.memory_space<vmem>>, vector<1x4x8xf32>
    %451 = vector.shape_cast %450 : vector<1x4x8xf32> to vector<4x8xf32>
    %452 = vector.extract_strided_slice %348 {offsets = [0, 254], sizes = [8, 2], strides = [1, 1]} : vector<8x256xf32> to vector<8x2xf32>
    %453 = vector.extract_strided_slice %348 {offsets = [0, 0], sizes = [8, 254], strides = [1, 1]} : vector<8x256xf32> to vector<8x254xf32>
    %454 = tpu.concatenate %452, %453 in 1 : vector<8x2xf32>, vector<8x254xf32> -> vector<8x256xf32>
    %cst_186 = arith.constant dense<0.000000e+00> : vector<4x256xf32>
    %455 = tpu.matmul %451, %454, %cst_186 {dimension_numbers = #tpu.dot_dimension_numbers<[1], [0], [0], [1], [0, 0, 1, 1], [], []>} : vector<4x8xf32>, vector<8x256xf32>, vector<4x256xf32> -> vector<4x256xf32>
    %c-2_i32_187 = arith.constant -2 : i32
    %456 = vector.broadcast %c-2_i32_187 : i32 to vector<1x256xi32>
    %457 = arith.addi %2, %456 : vector<1x256xi32>
    %c0_i32_188 = arith.constant 0 : i32
    %458 = vector.broadcast %c0_i32_188 : i32 to vector<1x256xi32>
    %459 = arith.cmpi sge, %457, %458 : vector<1x256xi32>
    %c-2_i32_189 = arith.constant -2 : i32
    %460 = vector.broadcast %c-2_i32_189 : i32 to vector<1x256xi32>
    %461 = arith.addi %2, %460 : vector<1x256xi32>
    %c16_i32_190 = arith.constant 16 : i32
    %462 = vector.broadcast %c16_i32_190 : i32 to vector<1x256xi32>
    %463 = arith.cmpi slt, %461, %462 : vector<1x256xi32>
    %464 = arith.andi %459, %463 : vector<1x256xi1>
    %cst_191 = arith.constant 0.000000e+00 : f32
    %465 = vector.shape_cast %464 : vector<1x256xi1> to vector<1x256xi1>
    %466 = vector.broadcast %465 : vector<1x256xi1> to vector<4x256xi1>
    %467 = vector.broadcast %cst_191 : f32 to vector<4x256xf32>
    %468 = arith.select %466, %455, %467 : vector<4x256xi1>, vector<4x256xf32>
    %469 = arith.addf %449, %468 : vector<4x256xf32>
    %c6_192 = arith.constant 6 : index
    %c0_193 = arith.constant 0 : index
    %c0_194 = arith.constant 0 : index
    %470 = vector.load %arg9[%c6_192, %c0_193, %c0_194] : memref<15x4x8xf32, #tpu.memory_space<vmem>>, vector<1x4x8xf32>
    %471 = vector.shape_cast %470 : vector<1x4x8xf32> to vector<4x8xf32>
    %472 = vector.extract_strided_slice %348 {offsets = [0, 255], sizes = [8, 1], strides = [1, 1]} : vector<8x256xf32> to vector<8x1xf32>
    %473 = vector.extract_strided_slice %348 {offsets = [0, 0], sizes = [8, 255], strides = [1, 1]} : vector<8x256xf32> to vector<8x255xf32>
    %474 = tpu.concatenate %472, %473 in 1 : vector<8x1xf32>, vector<8x255xf32> -> vector<8x256xf32>
    %cst_195 = arith.constant dense<0.000000e+00> : vector<4x256xf32>
    %475 = tpu.matmul %471, %474, %cst_195 {dimension_numbers = #tpu.dot_dimension_numbers<[1], [0], [0], [1], [0, 0, 1, 1], [], []>} : vector<4x8xf32>, vector<8x256xf32>, vector<4x256xf32> -> vector<4x256xf32>
    %c-1_i32_196 = arith.constant -1 : i32
    %476 = vector.broadcast %c-1_i32_196 : i32 to vector<1x256xi32>
    %477 = arith.addi %2, %476 : vector<1x256xi32>
    %c0_i32_197 = arith.constant 0 : i32
    %478 = vector.broadcast %c0_i32_197 : i32 to vector<1x256xi32>
    %479 = arith.cmpi sge, %477, %478 : vector<1x256xi32>
    %c-1_i32_198 = arith.constant -1 : i32
    %480 = vector.broadcast %c-1_i32_198 : i32 to vector<1x256xi32>
    %481 = arith.addi %2, %480 : vector<1x256xi32>
    %c16_i32_199 = arith.constant 16 : i32
    %482 = vector.broadcast %c16_i32_199 : i32 to vector<1x256xi32>
    %483 = arith.cmpi slt, %481, %482 : vector<1x256xi32>
    %484 = arith.andi %479, %483 : vector<1x256xi1>
    %cst_200 = arith.constant 0.000000e+00 : f32
    %485 = vector.shape_cast %484 : vector<1x256xi1> to vector<1x256xi1>
    %486 = vector.broadcast %485 : vector<1x256xi1> to vector<4x256xi1>
    %487 = vector.broadcast %cst_200 : f32 to vector<4x256xf32>
    %488 = arith.select %486, %475, %487 : vector<4x256xi1>, vector<4x256xf32>
    %489 = arith.addf %469, %488 : vector<4x256xf32>
    %c7_201 = arith.constant 7 : index
    %c0_202 = arith.constant 0 : index
    %c0_203 = arith.constant 0 : index
    %490 = vector.load %arg9[%c7_201, %c0_202, %c0_203] : memref<15x4x8xf32, #tpu.memory_space<vmem>>, vector<1x4x8xf32>
    %491 = vector.shape_cast %490 : vector<1x4x8xf32> to vector<4x8xf32>
    %cst_204 = arith.constant dense<0.000000e+00> : vector<4x256xf32>
    %492 = tpu.matmul %491, %348, %cst_204 {dimension_numbers = #tpu.dot_dimension_numbers<[1], [0], [0], [1], [0, 0, 1, 1], [], []>} : vector<4x8xf32>, vector<8x256xf32>, vector<4x256xf32> -> vector<4x256xf32>
    %493 = arith.addf %489, %492 : vector<4x256xf32>
    %c8_205 = arith.constant 8 : index
    %c0_206 = arith.constant 0 : index
    %c0_207 = arith.constant 0 : index
    %494 = vector.load %arg9[%c8_205, %c0_206, %c0_207] : memref<15x4x8xf32, #tpu.memory_space<vmem>>, vector<1x4x8xf32>
    %495 = vector.shape_cast %494 : vector<1x4x8xf32> to vector<4x8xf32>
    %496 = vector.extract_strided_slice %348 {offsets = [0, 1], sizes = [8, 255], strides = [1, 1]} : vector<8x256xf32> to vector<8x255xf32>
    %497 = vector.extract_strided_slice %348 {offsets = [0, 0], sizes = [8, 1], strides = [1, 1]} : vector<8x256xf32> to vector<8x1xf32>
    %498 = tpu.concatenate %496, %497 in 1 : vector<8x255xf32>, vector<8x1xf32> -> vector<8x256xf32>
    %cst_208 = arith.constant dense<0.000000e+00> : vector<4x256xf32>
    %499 = tpu.matmul %495, %498, %cst_208 {dimension_numbers = #tpu.dot_dimension_numbers<[1], [0], [0], [1], [0, 0, 1, 1], [], []>} : vector<4x8xf32>, vector<8x256xf32>, vector<4x256xf32> -> vector<4x256xf32>
    %c1_i32_209 = arith.constant 1 : i32
    %500 = vector.broadcast %c1_i32_209 : i32 to vector<1x256xi32>
    %501 = arith.addi %2, %500 : vector<1x256xi32>
    %c0_i32_210 = arith.constant 0 : i32
    %502 = vector.broadcast %c0_i32_210 : i32 to vector<1x256xi32>
    %503 = arith.cmpi sge, %501, %502 : vector<1x256xi32>
    %c1_i32_211 = arith.constant 1 : i32
    %504 = vector.broadcast %c1_i32_211 : i32 to vector<1x256xi32>
    %505 = arith.addi %2, %504 : vector<1x256xi32>
    %c16_i32_212 = arith.constant 16 : i32
    %506 = vector.broadcast %c16_i32_212 : i32 to vector<1x256xi32>
    %507 = arith.cmpi slt, %505, %506 : vector<1x256xi32>
    %508 = arith.andi %503, %507 : vector<1x256xi1>
    %cst_213 = arith.constant 0.000000e+00 : f32
    %509 = vector.shape_cast %508 : vector<1x256xi1> to vector<1x256xi1>
    %510 = vector.broadcast %509 : vector<1x256xi1> to vector<4x256xi1>
    %511 = vector.broadcast %cst_213 : f32 to vector<4x256xf32>
    %512 = arith.select %510, %499, %511 : vector<4x256xi1>, vector<4x256xf32>
    %513 = arith.addf %493, %512 : vector<4x256xf32>
    %c9_214 = arith.constant 9 : index
    %c0_215 = arith.constant 0 : index
    %c0_216 = arith.constant 0 : index
    %514 = vector.load %arg9[%c9_214, %c0_215, %c0_216] : memref<15x4x8xf32, #tpu.memory_space<vmem>>, vector<1x4x8xf32>
    %515 = vector.shape_cast %514 : vector<1x4x8xf32> to vector<4x8xf32>
    %516 = vector.extract_strided_slice %348 {offsets = [0, 2], sizes = [8, 254], strides = [1, 1]} : vector<8x256xf32> to vector<8x254xf32>
    %517 = vector.extract_strided_slice %348 {offsets = [0, 0], sizes = [8, 2], strides = [1, 1]} : vector<8x256xf32> to vector<8x2xf32>
    %518 = tpu.concatenate %516, %517 in 1 : vector<8x254xf32>, vector<8x2xf32> -> vector<8x256xf32>
    %cst_217 = arith.constant dense<0.000000e+00> : vector<4x256xf32>
    %519 = tpu.matmul %515, %518, %cst_217 {dimension_numbers = #tpu.dot_dimension_numbers<[1], [0], [0], [1], [0, 0, 1, 1], [], []>} : vector<4x8xf32>, vector<8x256xf32>, vector<4x256xf32> -> vector<4x256xf32>
    %c2_i32_218 = arith.constant 2 : i32
    %520 = vector.broadcast %c2_i32_218 : i32 to vector<1x256xi32>
    %521 = arith.addi %2, %520 : vector<1x256xi32>
    %c0_i32_219 = arith.constant 0 : i32
    %522 = vector.broadcast %c0_i32_219 : i32 to vector<1x256xi32>
    %523 = arith.cmpi sge, %521, %522 : vector<1x256xi32>
    %c2_i32_220 = arith.constant 2 : i32
    %524 = vector.broadcast %c2_i32_220 : i32 to vector<1x256xi32>
    %525 = arith.addi %2, %524 : vector<1x256xi32>
    %c16_i32_221 = arith.constant 16 : i32
    %526 = vector.broadcast %c16_i32_221 : i32 to vector<1x256xi32>
    %527 = arith.cmpi slt, %525, %526 : vector<1x256xi32>
    %528 = arith.andi %523, %527 : vector<1x256xi1>
    %cst_222 = arith.constant 0.000000e+00 : f32
    %529 = vector.shape_cast %528 : vector<1x256xi1> to vector<1x256xi1>
    %530 = vector.broadcast %529 : vector<1x256xi1> to vector<4x256xi1>
    %531 = vector.broadcast %cst_222 : f32 to vector<4x256xf32>
    %532 = arith.select %530, %519, %531 : vector<4x256xi1>, vector<4x256xf32>
    %533 = arith.addf %513, %532 : vector<4x256xf32>
    %c10_223 = arith.constant 10 : index
    %c0_224 = arith.constant 0 : index
    %c0_225 = arith.constant 0 : index
    %534 = vector.load %arg9[%c10_223, %c0_224, %c0_225] : memref<15x4x8xf32, #tpu.memory_space<vmem>>, vector<1x4x8xf32>
    %535 = vector.shape_cast %534 : vector<1x4x8xf32> to vector<4x8xf32>
    %536 = vector.extract_strided_slice %348 {offsets = [0, 3], sizes = [8, 253], strides = [1, 1]} : vector<8x256xf32> to vector<8x253xf32>
    %537 = vector.extract_strided_slice %348 {offsets = [0, 0], sizes = [8, 3], strides = [1, 1]} : vector<8x256xf32> to vector<8x3xf32>
    %538 = tpu.concatenate %536, %537 in 1 : vector<8x253xf32>, vector<8x3xf32> -> vector<8x256xf32>
    %cst_226 = arith.constant dense<0.000000e+00> : vector<4x256xf32>
    %539 = tpu.matmul %535, %538, %cst_226 {dimension_numbers = #tpu.dot_dimension_numbers<[1], [0], [0], [1], [0, 0, 1, 1], [], []>} : vector<4x8xf32>, vector<8x256xf32>, vector<4x256xf32> -> vector<4x256xf32>
    %c3_i32_227 = arith.constant 3 : i32
    %540 = vector.broadcast %c3_i32_227 : i32 to vector<1x256xi32>
    %541 = arith.addi %2, %540 : vector<1x256xi32>
    %c0_i32_228 = arith.constant 0 : i32
    %542 = vector.broadcast %c0_i32_228 : i32 to vector<1x256xi32>
    %543 = arith.cmpi sge, %541, %542 : vector<1x256xi32>
    %c3_i32_229 = arith.constant 3 : i32
    %544 = vector.broadcast %c3_i32_229 : i32 to vector<1x256xi32>
    %545 = arith.addi %2, %544 : vector<1x256xi32>
    %c16_i32_230 = arith.constant 16 : i32
    %546 = vector.broadcast %c16_i32_230 : i32 to vector<1x256xi32>
    %547 = arith.cmpi slt, %545, %546 : vector<1x256xi32>
    %548 = arith.andi %543, %547 : vector<1x256xi1>
    %cst_231 = arith.constant 0.000000e+00 : f32
    %549 = vector.shape_cast %548 : vector<1x256xi1> to vector<1x256xi1>
    %550 = vector.broadcast %549 : vector<1x256xi1> to vector<4x256xi1>
    %551 = vector.broadcast %cst_231 : f32 to vector<4x256xf32>
    %552 = arith.select %550, %539, %551 : vector<4x256xi1>, vector<4x256xf32>
    %553 = arith.addf %533, %552 : vector<4x256xf32>
    %c11_232 = arith.constant 11 : index
    %c0_233 = arith.constant 0 : index
    %c0_234 = arith.constant 0 : index
    %554 = vector.load %arg9[%c11_232, %c0_233, %c0_234] : memref<15x4x8xf32, #tpu.memory_space<vmem>>, vector<1x4x8xf32>
    %555 = vector.shape_cast %554 : vector<1x4x8xf32> to vector<4x8xf32>
    %556 = vector.extract_strided_slice %348 {offsets = [0, 4], sizes = [8, 252], strides = [1, 1]} : vector<8x256xf32> to vector<8x252xf32>
    %557 = vector.extract_strided_slice %348 {offsets = [0, 0], sizes = [8, 4], strides = [1, 1]} : vector<8x256xf32> to vector<8x4xf32>
    %558 = tpu.concatenate %556, %557 in 1 : vector<8x252xf32>, vector<8x4xf32> -> vector<8x256xf32>
    %cst_235 = arith.constant dense<0.000000e+00> : vector<4x256xf32>
    %559 = tpu.matmul %555, %558, %cst_235 {dimension_numbers = #tpu.dot_dimension_numbers<[1], [0], [0], [1], [0, 0, 1, 1], [], []>} : vector<4x8xf32>, vector<8x256xf32>, vector<4x256xf32> -> vector<4x256xf32>
    %c4_i32_236 = arith.constant 4 : i32
    %560 = vector.broadcast %c4_i32_236 : i32 to vector<1x256xi32>
    %561 = arith.addi %2, %560 : vector<1x256xi32>
    %c0_i32_237 = arith.constant 0 : i32
    %562 = vector.broadcast %c0_i32_237 : i32 to vector<1x256xi32>
    %563 = arith.cmpi sge, %561, %562 : vector<1x256xi32>
    %c4_i32_238 = arith.constant 4 : i32
    %564 = vector.broadcast %c4_i32_238 : i32 to vector<1x256xi32>
    %565 = arith.addi %2, %564 : vector<1x256xi32>
    %c16_i32_239 = arith.constant 16 : i32
    %566 = vector.broadcast %c16_i32_239 : i32 to vector<1x256xi32>
    %567 = arith.cmpi slt, %565, %566 : vector<1x256xi32>
    %568 = arith.andi %563, %567 : vector<1x256xi1>
    %cst_240 = arith.constant 0.000000e+00 : f32
    %569 = vector.shape_cast %568 : vector<1x256xi1> to vector<1x256xi1>
    %570 = vector.broadcast %569 : vector<1x256xi1> to vector<4x256xi1>
    %571 = vector.broadcast %cst_240 : f32 to vector<4x256xf32>
    %572 = arith.select %570, %559, %571 : vector<4x256xi1>, vector<4x256xf32>
    %573 = arith.addf %553, %572 : vector<4x256xf32>
    %c12_241 = arith.constant 12 : index
    %c0_242 = arith.constant 0 : index
    %c0_243 = arith.constant 0 : index
    %574 = vector.load %arg9[%c12_241, %c0_242, %c0_243] : memref<15x4x8xf32, #tpu.memory_space<vmem>>, vector<1x4x8xf32>
    %575 = vector.shape_cast %574 : vector<1x4x8xf32> to vector<4x8xf32>
    %576 = vector.extract_strided_slice %348 {offsets = [0, 5], sizes = [8, 251], strides = [1, 1]} : vector<8x256xf32> to vector<8x251xf32>
    %577 = vector.extract_strided_slice %348 {offsets = [0, 0], sizes = [8, 5], strides = [1, 1]} : vector<8x256xf32> to vector<8x5xf32>
    %578 = tpu.concatenate %576, %577 in 1 : vector<8x251xf32>, vector<8x5xf32> -> vector<8x256xf32>
    %cst_244 = arith.constant dense<0.000000e+00> : vector<4x256xf32>
    %579 = tpu.matmul %575, %578, %cst_244 {dimension_numbers = #tpu.dot_dimension_numbers<[1], [0], [0], [1], [0, 0, 1, 1], [], []>} : vector<4x8xf32>, vector<8x256xf32>, vector<4x256xf32> -> vector<4x256xf32>
    %c5_i32_245 = arith.constant 5 : i32
    %580 = vector.broadcast %c5_i32_245 : i32 to vector<1x256xi32>
    %581 = arith.addi %2, %580 : vector<1x256xi32>
    %c0_i32_246 = arith.constant 0 : i32
    %582 = vector.broadcast %c0_i32_246 : i32 to vector<1x256xi32>
    %583 = arith.cmpi sge, %581, %582 : vector<1x256xi32>
    %c5_i32_247 = arith.constant 5 : i32
    %584 = vector.broadcast %c5_i32_247 : i32 to vector<1x256xi32>
    %585 = arith.addi %2, %584 : vector<1x256xi32>
    %c16_i32_248 = arith.constant 16 : i32
    %586 = vector.broadcast %c16_i32_248 : i32 to vector<1x256xi32>
    %587 = arith.cmpi slt, %585, %586 : vector<1x256xi32>
    %588 = arith.andi %583, %587 : vector<1x256xi1>
    %cst_249 = arith.constant 0.000000e+00 : f32
    %589 = vector.shape_cast %588 : vector<1x256xi1> to vector<1x256xi1>
    %590 = vector.broadcast %589 : vector<1x256xi1> to vector<4x256xi1>
    %591 = vector.broadcast %cst_249 : f32 to vector<4x256xf32>
    %592 = arith.select %590, %579, %591 : vector<4x256xi1>, vector<4x256xf32>
    %593 = arith.addf %573, %592 : vector<4x256xf32>
    %c13_250 = arith.constant 13 : index
    %c0_251 = arith.constant 0 : index
    %c0_252 = arith.constant 0 : index
    %594 = vector.load %arg9[%c13_250, %c0_251, %c0_252] : memref<15x4x8xf32, #tpu.memory_space<vmem>>, vector<1x4x8xf32>
    %595 = vector.shape_cast %594 : vector<1x4x8xf32> to vector<4x8xf32>
    %596 = vector.extract_strided_slice %348 {offsets = [0, 6], sizes = [8, 250], strides = [1, 1]} : vector<8x256xf32> to vector<8x250xf32>
    %597 = vector.extract_strided_slice %348 {offsets = [0, 0], sizes = [8, 6], strides = [1, 1]} : vector<8x256xf32> to vector<8x6xf32>
    %598 = tpu.concatenate %596, %597 in 1 : vector<8x250xf32>, vector<8x6xf32> -> vector<8x256xf32>
    %cst_253 = arith.constant dense<0.000000e+00> : vector<4x256xf32>
    %599 = tpu.matmul %595, %598, %cst_253 {dimension_numbers = #tpu.dot_dimension_numbers<[1], [0], [0], [1], [0, 0, 1, 1], [], []>} : vector<4x8xf32>, vector<8x256xf32>, vector<4x256xf32> -> vector<4x256xf32>
    %c6_i32_254 = arith.constant 6 : i32
    %600 = vector.broadcast %c6_i32_254 : i32 to vector<1x256xi32>
    %601 = arith.addi %2, %600 : vector<1x256xi32>
    %c0_i32_255 = arith.constant 0 : i32
    %602 = vector.broadcast %c0_i32_255 : i32 to vector<1x256xi32>
    %603 = arith.cmpi sge, %601, %602 : vector<1x256xi32>
    %c6_i32_256 = arith.constant 6 : i32
    %604 = vector.broadcast %c6_i32_256 : i32 to vector<1x256xi32>
    %605 = arith.addi %2, %604 : vector<1x256xi32>
    %c16_i32_257 = arith.constant 16 : i32
    %606 = vector.broadcast %c16_i32_257 : i32 to vector<1x256xi32>
    %607 = arith.cmpi slt, %605, %606 : vector<1x256xi32>
    %608 = arith.andi %603, %607 : vector<1x256xi1>
    %cst_258 = arith.constant 0.000000e+00 : f32
    %609 = vector.shape_cast %608 : vector<1x256xi1> to vector<1x256xi1>
    %610 = vector.broadcast %609 : vector<1x256xi1> to vector<4x256xi1>
    %611 = vector.broadcast %cst_258 : f32 to vector<4x256xf32>
    %612 = arith.select %610, %599, %611 : vector<4x256xi1>, vector<4x256xf32>
    %613 = arith.addf %593, %612 : vector<4x256xf32>
    %c14_259 = arith.constant 14 : index
    %c0_260 = arith.constant 0 : index
    %c0_261 = arith.constant 0 : index
    %614 = vector.load %arg9[%c14_259, %c0_260, %c0_261] : memref<15x4x8xf32, #tpu.memory_space<vmem>>, vector<1x4x8xf32>
    %615 = vector.shape_cast %614 : vector<1x4x8xf32> to vector<4x8xf32>
    %616 = vector.extract_strided_slice %348 {offsets = [0, 7], sizes = [8, 249], strides = [1, 1]} : vector<8x256xf32> to vector<8x249xf32>
    %617 = vector.extract_strided_slice %348 {offsets = [0, 0], sizes = [8, 7], strides = [1, 1]} : vector<8x256xf32> to vector<8x7xf32>
    %618 = tpu.concatenate %616, %617 in 1 : vector<8x249xf32>, vector<8x7xf32> -> vector<8x256xf32>
    %cst_262 = arith.constant dense<0.000000e+00> : vector<4x256xf32>
    %619 = tpu.matmul %615, %618, %cst_262 {dimension_numbers = #tpu.dot_dimension_numbers<[1], [0], [0], [1], [0, 0, 1, 1], [], []>} : vector<4x8xf32>, vector<8x256xf32>, vector<4x256xf32> -> vector<4x256xf32>
    %c7_i32_263 = arith.constant 7 : i32
    %620 = vector.broadcast %c7_i32_263 : i32 to vector<1x256xi32>
    %621 = arith.addi %2, %620 : vector<1x256xi32>
    %c0_i32_264 = arith.constant 0 : i32
    %622 = vector.broadcast %c0_i32_264 : i32 to vector<1x256xi32>
    %623 = arith.cmpi sge, %621, %622 : vector<1x256xi32>
    %c7_i32_265 = arith.constant 7 : i32
    %624 = vector.broadcast %c7_i32_265 : i32 to vector<1x256xi32>
    %625 = arith.addi %2, %624 : vector<1x256xi32>
    %c16_i32_266 = arith.constant 16 : i32
    %626 = vector.broadcast %c16_i32_266 : i32 to vector<1x256xi32>
    %627 = arith.cmpi slt, %625, %626 : vector<1x256xi32>
    %628 = arith.andi %623, %627 : vector<1x256xi1>
    %cst_267 = arith.constant 0.000000e+00 : f32
    %629 = vector.shape_cast %628 : vector<1x256xi1> to vector<1x256xi1>
    %630 = vector.broadcast %629 : vector<1x256xi1> to vector<4x256xi1>
    %631 = vector.broadcast %cst_267 : f32 to vector<4x256xf32>
    %632 = arith.select %630, %619, %631 : vector<4x256xi1>, vector<4x256xf32>
    %633 = arith.addf %613, %632 : vector<4x256xf32>
    %634 = vector.broadcast %322 : vector<4x1xf32> to vector<4x256xf32>
    %635 = arith.addf %633, %634 : vector<4x256xf32>
    %c8_268 = arith.constant 8 : index
    %c0_269 = arith.constant 0 : index
    %636 = vector.load %arg15[%c8_268, %c0_269] : memref<16x256xf32, #tpu.memory_space<vmem>>, vector<4x256xf32>
    tpu.vector_store %arg15[%c8_268, %c0_269], %635 {strides = array<i32>} : memref<16x256xf32, #tpu.memory_space<vmem>>, vector<4x256xf32>,
    %c0_270 = arith.constant 0 : index
    %c0_271 = arith.constant 0 : index
    %637 = vector.load %arg11[%c0_270, %c0_271] : memref<12x1xf32, #tpu.memory_space<vmem>>, vector<12x1xf32>
    %c0_272 = arith.constant 0 : index
    %c0_273 = arith.constant 0 : index
    %638 = vector.load %arg12[%c0_272, %c0_273] : memref<12x1xf32, #tpu.memory_space<vmem>>, vector<12x1xf32>
    %c0_274 = arith.constant 0 : index
    %c0_275 = arith.constant 0 : index
    %639 = vector.load %arg14[%c0_274, %c0_275] : memref<4x1xf32, #tpu.memory_space<vmem>>, vector<4x1xf32>
    %c0_276 = arith.constant 0 : index
    %c0_277 = arith.constant 0 : index
    %640 = vector.load %arg15[%c0_276, %c0_277] : memref<16x256xf32, #tpu.memory_space<vmem>>, vector<12x256xf32>
    %cst_278 = arith.constant dense<0.000000e+00> : vector<12xf32>
    %641 = vector.multi_reduction <add>, %640, %cst_278 [1] : vector<12x256xf32> to vector<12xf32>
    %642 = vector.shape_cast %641 : vector<12xf32> to vector<12x1xf32>
    %643 = arith.mulf %640, %640 : vector<12x256xf32>
    %cst_279 = arith.constant dense<0.000000e+00> : vector<12xf32>
    %644 = vector.multi_reduction <add>, %643, %cst_279 [1] : vector<12x256xf32> to vector<12xf32>
    %645 = vector.shape_cast %644 : vector<12xf32> to vector<12x1xf32>
    %cst_280 = arith.constant 3.906250e-03 : f32
    %646 = vector.broadcast %cst_280 : f32 to vector<12x1xf32>
    %647 = arith.mulf %642, %646 : vector<12x1xf32>
    %cst_281 = arith.constant 3.906250e-03 : f32
    %648 = vector.broadcast %cst_281 : f32 to vector<12x1xf32>
    %649 = arith.mulf %645, %648 : vector<12x1xf32>
    %650 = arith.mulf %647, %647 : vector<12x1xf32>
    %651 = arith.subf %649, %650 : vector<12x1xf32>
    %cst_282 = arith.constant 0.000000e+00 : f32
    %652 = vector.broadcast %cst_282 : f32 to vector<12x1xf32>
    %653 = arith.maximumf %651, %652 : vector<12x1xf32>
    %cst_283 = arith.constant 9.99999974E-6 : f32
    %654 = vector.broadcast %cst_283 : f32 to vector<12x1xf32>
    %655 = arith.addf %653, %654 : vector<12x1xf32>
    %656 = math.rsqrt %655 : vector<12x1xf32>
    %657 = arith.mulf %637, %656 : vector<12x1xf32>
    %658 = arith.mulf %647, %657 : vector<12x1xf32>
    %659 = arith.subf %638, %658 : vector<12x1xf32>
    %660 = vector.broadcast %657 : vector<12x1xf32> to vector<12x256xf32>
    %661 = arith.mulf %640, %660 : vector<12x256xf32>
    %662 = vector.broadcast %659 : vector<12x1xf32> to vector<12x256xf32>
    %663 = arith.addf %661, %662 : vector<12x256xf32>
    %cst_284 = arith.constant 0.000000e+00 : f32
    %664 = vector.broadcast %cst_284 : f32 to vector<12x256xf32>
    %665 = arith.maximumf %663, %664 : vector<12x256xf32>
    %cst_285 = arith.constant 0.000000e+00 : f32
    %666 = vector.broadcast %cst_285 : f32 to vector<4x256xf32>
    %c0_286 = arith.constant 0 : index
    %c0_287 = arith.constant 0 : index
    %c0_288 = arith.constant 0 : index
    %667 = vector.load %arg13[%c0_286, %c0_287, %c0_288] : memref<15x4x12xf32, #tpu.memory_space<vmem>>, vector<1x4x12xf32>
    %668 = vector.shape_cast %667 : vector<1x4x12xf32> to vector<4x12xf32>
    %669 = vector.extract_strided_slice %665 {offsets = [0, 249], sizes = [12, 7], strides = [1, 1]} : vector<12x256xf32> to vector<12x7xf32>
    %670 = vector.extract_strided_slice %665 {offsets = [0, 0], sizes = [12, 249], strides = [1, 1]} : vector<12x256xf32> to vector<12x249xf32>
    %671 = tpu.concatenate %669, %670 in 1 : vector<12x7xf32>, vector<12x249xf32> -> vector<12x256xf32>
    %cst_289 = arith.constant dense<0.000000e+00> : vector<4x256xf32>
    %672 = tpu.matmul %668, %671, %cst_289 {dimension_numbers = #tpu.dot_dimension_numbers<[1], [0], [0], [1], [0, 0, 1, 1], [], []>} : vector<4x12xf32>, vector<12x256xf32>, vector<4x256xf32> -> vector<4x256xf32>
    %c-7_i32_290 = arith.constant -7 : i32
    %673 = vector.broadcast %c-7_i32_290 : i32 to vector<1x256xi32>
    %674 = arith.addi %2, %673 : vector<1x256xi32>
    %c0_i32_291 = arith.constant 0 : i32
    %675 = vector.broadcast %c0_i32_291 : i32 to vector<1x256xi32>
    %676 = arith.cmpi sge, %674, %675 : vector<1x256xi32>
    %c-7_i32_292 = arith.constant -7 : i32
    %677 = vector.broadcast %c-7_i32_292 : i32 to vector<1x256xi32>
    %678 = arith.addi %2, %677 : vector<1x256xi32>
    %c16_i32_293 = arith.constant 16 : i32
    %679 = vector.broadcast %c16_i32_293 : i32 to vector<1x256xi32>
    %680 = arith.cmpi slt, %678, %679 : vector<1x256xi32>
    %681 = arith.andi %676, %680 : vector<1x256xi1>
    %cst_294 = arith.constant 0.000000e+00 : f32
    %682 = vector.shape_cast %681 : vector<1x256xi1> to vector<1x256xi1>
    %683 = vector.broadcast %682 : vector<1x256xi1> to vector<4x256xi1>
    %684 = vector.broadcast %cst_294 : f32 to vector<4x256xf32>
    %685 = arith.select %683, %672, %684 : vector<4x256xi1>, vector<4x256xf32>
    %686 = arith.addf %666, %685 : vector<4x256xf32>
    %c1_295 = arith.constant 1 : index
    %c0_296 = arith.constant 0 : index
    %c0_297 = arith.constant 0 : index
    %687 = vector.load %arg13[%c1_295, %c0_296, %c0_297] : memref<15x4x12xf32, #tpu.memory_space<vmem>>, vector<1x4x12xf32>
    %688 = vector.shape_cast %687 : vector<1x4x12xf32> to vector<4x12xf32>
    %689 = vector.extract_strided_slice %665 {offsets = [0, 250], sizes = [12, 6], strides = [1, 1]} : vector<12x256xf32> to vector<12x6xf32>
    %690 = vector.extract_strided_slice %665 {offsets = [0, 0], sizes = [12, 250], strides = [1, 1]} : vector<12x256xf32> to vector<12x250xf32>
    %691 = tpu.concatenate %689, %690 in 1 : vector<12x6xf32>, vector<12x250xf32> -> vector<12x256xf32>
    %cst_298 = arith.constant dense<0.000000e+00> : vector<4x256xf32>
    %692 = tpu.matmul %688, %691, %cst_298 {dimension_numbers = #tpu.dot_dimension_numbers<[1], [0], [0], [1], [0, 0, 1, 1], [], []>} : vector<4x12xf32>, vector<12x256xf32>, vector<4x256xf32> -> vector<4x256xf32>
    %c-6_i32_299 = arith.constant -6 : i32
    %693 = vector.broadcast %c-6_i32_299 : i32 to vector<1x256xi32>
    %694 = arith.addi %2, %693 : vector<1x256xi32>
    %c0_i32_300 = arith.constant 0 : i32
    %695 = vector.broadcast %c0_i32_300 : i32 to vector<1x256xi32>
    %696 = arith.cmpi sge, %694, %695 : vector<1x256xi32>
    %c-6_i32_301 = arith.constant -6 : i32
    %697 = vector.broadcast %c-6_i32_301 : i32 to vector<1x256xi32>
    %698 = arith.addi %2, %697 : vector<1x256xi32>
    %c16_i32_302 = arith.constant 16 : i32
    %699 = vector.broadcast %c16_i32_302 : i32 to vector<1x256xi32>
    %700 = arith.cmpi slt, %698, %699 : vector<1x256xi32>
    %701 = arith.andi %696, %700 : vector<1x256xi1>
    %cst_303 = arith.constant 0.000000e+00 : f32
    %702 = vector.shape_cast %701 : vector<1x256xi1> to vector<1x256xi1>
    %703 = vector.broadcast %702 : vector<1x256xi1> to vector<4x256xi1>
    %704 = vector.broadcast %cst_303 : f32 to vector<4x256xf32>
    %705 = arith.select %703, %692, %704 : vector<4x256xi1>, vector<4x256xf32>
    %706 = arith.addf %686, %705 : vector<4x256xf32>
    %c2_304 = arith.constant 2 : index
    %c0_305 = arith.constant 0 : index
    %c0_306 = arith.constant 0 : index
    %707 = vector.load %arg13[%c2_304, %c0_305, %c0_306] : memref<15x4x12xf32, #tpu.memory_space<vmem>>, vector<1x4x12xf32>
    %708 = vector.shape_cast %707 : vector<1x4x12xf32> to vector<4x12xf32>
    %709 = vector.extract_strided_slice %665 {offsets = [0, 251], sizes = [12, 5], strides = [1, 1]} : vector<12x256xf32> to vector<12x5xf32>
    %710 = vector.extract_strided_slice %665 {offsets = [0, 0], sizes = [12, 251], strides = [1, 1]} : vector<12x256xf32> to vector<12x251xf32>
    %711 = tpu.concatenate %709, %710 in 1 : vector<12x5xf32>, vector<12x251xf32> -> vector<12x256xf32>
    %cst_307 = arith.constant dense<0.000000e+00> : vector<4x256xf32>
    %712 = tpu.matmul %708, %711, %cst_307 {dimension_numbers = #tpu.dot_dimension_numbers<[1], [0], [0], [1], [0, 0, 1, 1], [], []>} : vector<4x12xf32>, vector<12x256xf32>, vector<4x256xf32> -> vector<4x256xf32>
    %c-5_i32_308 = arith.constant -5 : i32
    %713 = vector.broadcast %c-5_i32_308 : i32 to vector<1x256xi32>
    %714 = arith.addi %2, %713 : vector<1x256xi32>
    %c0_i32_309 = arith.constant 0 : i32
    %715 = vector.broadcast %c0_i32_309 : i32 to vector<1x256xi32>
    %716 = arith.cmpi sge, %714, %715 : vector<1x256xi32>
    %c-5_i32_310 = arith.constant -5 : i32
    %717 = vector.broadcast %c-5_i32_310 : i32 to vector<1x256xi32>
    %718 = arith.addi %2, %717 : vector<1x256xi32>
    %c16_i32_311 = arith.constant 16 : i32
    %719 = vector.broadcast %c16_i32_311 : i32 to vector<1x256xi32>
    %720 = arith.cmpi slt, %718, %719 : vector<1x256xi32>
    %721 = arith.andi %716, %720 : vector<1x256xi1>
    %cst_312 = arith.constant 0.000000e+00 : f32
    %722 = vector.shape_cast %721 : vector<1x256xi1> to vector<1x256xi1>
    %723 = vector.broadcast %722 : vector<1x256xi1> to vector<4x256xi1>
    %724 = vector.broadcast %cst_312 : f32 to vector<4x256xf32>
    %725 = arith.select %723, %712, %724 : vector<4x256xi1>, vector<4x256xf32>
    %726 = arith.addf %706, %725 : vector<4x256xf32>
    %c3_313 = arith.constant 3 : index
    %c0_314 = arith.constant 0 : index
    %c0_315 = arith.constant 0 : index
    %727 = vector.load %arg13[%c3_313, %c0_314, %c0_315] : memref<15x4x12xf32, #tpu.memory_space<vmem>>, vector<1x4x12xf32>
    %728 = vector.shape_cast %727 : vector<1x4x12xf32> to vector<4x12xf32>
    %729 = vector.extract_strided_slice %665 {offsets = [0, 252], sizes = [12, 4], strides = [1, 1]} : vector<12x256xf32> to vector<12x4xf32>
    %730 = vector.extract_strided_slice %665 {offsets = [0, 0], sizes = [12, 252], strides = [1, 1]} : vector<12x256xf32> to vector<12x252xf32>
    %731 = tpu.concatenate %729, %730 in 1 : vector<12x4xf32>, vector<12x252xf32> -> vector<12x256xf32>
    %cst_316 = arith.constant dense<0.000000e+00> : vector<4x256xf32>
    %732 = tpu.matmul %728, %731, %cst_316 {dimension_numbers = #tpu.dot_dimension_numbers<[1], [0], [0], [1], [0, 0, 1, 1], [], []>} : vector<4x12xf32>, vector<12x256xf32>, vector<4x256xf32> -> vector<4x256xf32>
    %c-4_i32_317 = arith.constant -4 : i32
    %733 = vector.broadcast %c-4_i32_317 : i32 to vector<1x256xi32>
    %734 = arith.addi %2, %733 : vector<1x256xi32>
    %c0_i32_318 = arith.constant 0 : i32
    %735 = vector.broadcast %c0_i32_318 : i32 to vector<1x256xi32>
    %736 = arith.cmpi sge, %734, %735 : vector<1x256xi32>
    %c-4_i32_319 = arith.constant -4 : i32
    %737 = vector.broadcast %c-4_i32_319 : i32 to vector<1x256xi32>
    %738 = arith.addi %2, %737 : vector<1x256xi32>
    %c16_i32_320 = arith.constant 16 : i32
    %739 = vector.broadcast %c16_i32_320 : i32 to vector<1x256xi32>
    %740 = arith.cmpi slt, %738, %739 : vector<1x256xi32>
    %741 = arith.andi %736, %740 : vector<1x256xi1>
    %cst_321 = arith.constant 0.000000e+00 : f32
    %742 = vector.shape_cast %741 : vector<1x256xi1> to vector<1x256xi1>
    %743 = vector.broadcast %742 : vector<1x256xi1> to vector<4x256xi1>
    %744 = vector.broadcast %cst_321 : f32 to vector<4x256xf32>
    %745 = arith.select %743, %732, %744 : vector<4x256xi1>, vector<4x256xf32>
    %746 = arith.addf %726, %745 : vector<4x256xf32>
    %c4_322 = arith.constant 4 : index
    %c0_323 = arith.constant 0 : index
    %c0_324 = arith.constant 0 : index
    %747 = vector.load %arg13[%c4_322, %c0_323, %c0_324] : memref<15x4x12xf32, #tpu.memory_space<vmem>>, vector<1x4x12xf32>
    %748 = vector.shape_cast %747 : vector<1x4x12xf32> to vector<4x12xf32>
    %749 = vector.extract_strided_slice %665 {offsets = [0, 253], sizes = [12, 3], strides = [1, 1]} : vector<12x256xf32> to vector<12x3xf32>
    %750 = vector.extract_strided_slice %665 {offsets = [0, 0], sizes = [12, 253], strides = [1, 1]} : vector<12x256xf32> to vector<12x253xf32>
    %751 = tpu.concatenate %749, %750 in 1 : vector<12x3xf32>, vector<12x253xf32> -> vector<12x256xf32>
    %cst_325 = arith.constant dense<0.000000e+00> : vector<4x256xf32>
    %752 = tpu.matmul %748, %751, %cst_325 {dimension_numbers = #tpu.dot_dimension_numbers<[1], [0], [0], [1], [0, 0, 1, 1], [], []>} : vector<4x12xf32>, vector<12x256xf32>, vector<4x256xf32> -> vector<4x256xf32>
    %c-3_i32_326 = arith.constant -3 : i32
    %753 = vector.broadcast %c-3_i32_326 : i32 to vector<1x256xi32>
    %754 = arith.addi %2, %753 : vector<1x256xi32>
    %c0_i32_327 = arith.constant 0 : i32
    %755 = vector.broadcast %c0_i32_327 : i32 to vector<1x256xi32>
    %756 = arith.cmpi sge, %754, %755 : vector<1x256xi32>
    %c-3_i32_328 = arith.constant -3 : i32
    %757 = vector.broadcast %c-3_i32_328 : i32 to vector<1x256xi32>
    %758 = arith.addi %2, %757 : vector<1x256xi32>
    %c16_i32_329 = arith.constant 16 : i32
    %759 = vector.broadcast %c16_i32_329 : i32 to vector<1x256xi32>
    %760 = arith.cmpi slt, %758, %759 : vector<1x256xi32>
    %761 = arith.andi %756, %760 : vector<1x256xi1>
    %cst_330 = arith.constant 0.000000e+00 : f32
    %762 = vector.shape_cast %761 : vector<1x256xi1> to vector<1x256xi1>
    %763 = vector.broadcast %762 : vector<1x256xi1> to vector<4x256xi1>
    %764 = vector.broadcast %cst_330 : f32 to vector<4x256xf32>
    %765 = arith.select %763, %752, %764 : vector<4x256xi1>, vector<4x256xf32>
    %766 = arith.addf %746, %765 : vector<4x256xf32>
    %c5_331 = arith.constant 5 : index
    %c0_332 = arith.constant 0 : index
    %c0_333 = arith.constant 0 : index
    %767 = vector.load %arg13[%c5_331, %c0_332, %c0_333] : memref<15x4x12xf32, #tpu.memory_space<vmem>>, vector<1x4x12xf32>
    %768 = vector.shape_cast %767 : vector<1x4x12xf32> to vector<4x12xf32>
    %769 = vector.extract_strided_slice %665 {offsets = [0, 254], sizes = [12, 2], strides = [1, 1]} : vector<12x256xf32> to vector<12x2xf32>
    %770 = vector.extract_strided_slice %665 {offsets = [0, 0], sizes = [12, 254], strides = [1, 1]} : vector<12x256xf32> to vector<12x254xf32>
    %771 = tpu.concatenate %769, %770 in 1 : vector<12x2xf32>, vector<12x254xf32> -> vector<12x256xf32>
    %cst_334 = arith.constant dense<0.000000e+00> : vector<4x256xf32>
    %772 = tpu.matmul %768, %771, %cst_334 {dimension_numbers = #tpu.dot_dimension_numbers<[1], [0], [0], [1], [0, 0, 1, 1], [], []>} : vector<4x12xf32>, vector<12x256xf32>, vector<4x256xf32> -> vector<4x256xf32>
    %c-2_i32_335 = arith.constant -2 : i32
    %773 = vector.broadcast %c-2_i32_335 : i32 to vector<1x256xi32>
    %774 = arith.addi %2, %773 : vector<1x256xi32>
    %c0_i32_336 = arith.constant 0 : i32
    %775 = vector.broadcast %c0_i32_336 : i32 to vector<1x256xi32>
    %776 = arith.cmpi sge, %774, %775 : vector<1x256xi32>
    %c-2_i32_337 = arith.constant -2 : i32
    %777 = vector.broadcast %c-2_i32_337 : i32 to vector<1x256xi32>
    %778 = arith.addi %2, %777 : vector<1x256xi32>
    %c16_i32_338 = arith.constant 16 : i32
    %779 = vector.broadcast %c16_i32_338 : i32 to vector<1x256xi32>
    %780 = arith.cmpi slt, %778, %779 : vector<1x256xi32>
    %781 = arith.andi %776, %780 : vector<1x256xi1>
    %cst_339 = arith.constant 0.000000e+00 : f32
    %782 = vector.shape_cast %781 : vector<1x256xi1> to vector<1x256xi1>
    %783 = vector.broadcast %782 : vector<1x256xi1> to vector<4x256xi1>
    %784 = vector.broadcast %cst_339 : f32 to vector<4x256xf32>
    %785 = arith.select %783, %772, %784 : vector<4x256xi1>, vector<4x256xf32>
    %786 = arith.addf %766, %785 : vector<4x256xf32>
    %c6_340 = arith.constant 6 : index
    %c0_341 = arith.constant 0 : index
    %c0_342 = arith.constant 0 : index
    %787 = vector.load %arg13[%c6_340, %c0_341, %c0_342] : memref<15x4x12xf32, #tpu.memory_space<vmem>>, vector<1x4x12xf32>
    %788 = vector.shape_cast %787 : vector<1x4x12xf32> to vector<4x12xf32>
    %789 = vector.extract_strided_slice %665 {offsets = [0, 255], sizes = [12, 1], strides = [1, 1]} : vector<12x256xf32> to vector<12x1xf32>
    %790 = vector.extract_strided_slice %665 {offsets = [0, 0], sizes = [12, 255], strides = [1, 1]} : vector<12x256xf32> to vector<12x255xf32>
    %791 = tpu.concatenate %789, %790 in 1 : vector<12x1xf32>, vector<12x255xf32> -> vector<12x256xf32>
    %cst_343 = arith.constant dense<0.000000e+00> : vector<4x256xf32>
    %792 = tpu.matmul %788, %791, %cst_343 {dimension_numbers = #tpu.dot_dimension_numbers<[1], [0], [0], [1], [0, 0, 1, 1], [], []>} : vector<4x12xf32>, vector<12x256xf32>, vector<4x256xf32> -> vector<4x256xf32>
    %c-1_i32_344 = arith.constant -1 : i32
    %793 = vector.broadcast %c-1_i32_344 : i32 to vector<1x256xi32>
    %794 = arith.addi %2, %793 : vector<1x256xi32>
    %c0_i32_345 = arith.constant 0 : i32
    %795 = vector.broadcast %c0_i32_345 : i32 to vector<1x256xi32>
    %796 = arith.cmpi sge, %794, %795 : vector<1x256xi32>
    %c-1_i32_346 = arith.constant -1 : i32
    %797 = vector.broadcast %c-1_i32_346 : i32 to vector<1x256xi32>
    %798 = arith.addi %2, %797 : vector<1x256xi32>
    %c16_i32_347 = arith.constant 16 : i32
    %799 = vector.broadcast %c16_i32_347 : i32 to vector<1x256xi32>
    %800 = arith.cmpi slt, %798, %799 : vector<1x256xi32>
    %801 = arith.andi %796, %800 : vector<1x256xi1>
    %cst_348 = arith.constant 0.000000e+00 : f32
    %802 = vector.shape_cast %801 : vector<1x256xi1> to vector<1x256xi1>
    %803 = vector.broadcast %802 : vector<1x256xi1> to vector<4x256xi1>
    %804 = vector.broadcast %cst_348 : f32 to vector<4x256xf32>
    %805 = arith.select %803, %792, %804 : vector<4x256xi1>, vector<4x256xf32>
    %806 = arith.addf %786, %805 : vector<4x256xf32>
    %c7_349 = arith.constant 7 : index
    %c0_350 = arith.constant 0 : index
    %c0_351 = arith.constant 0 : index
    %807 = vector.load %arg13[%c7_349, %c0_350, %c0_351] : memref<15x4x12xf32, #tpu.memory_space<vmem>>, vector<1x4x12xf32>
    %808 = vector.shape_cast %807 : vector<1x4x12xf32> to vector<4x12xf32>
    %cst_352 = arith.constant dense<0.000000e+00> : vector<4x256xf32>
    %809 = tpu.matmul %808, %665, %cst_352 {dimension_numbers = #tpu.dot_dimension_numbers<[1], [0], [0], [1], [0, 0, 1, 1], [], []>} : vector<4x12xf32>, vector<12x256xf32>, vector<4x256xf32> -> vector<4x256xf32>
    %810 = arith.addf %806, %809 : vector<4x256xf32>
    %c8_353 = arith.constant 8 : index
    %c0_354 = arith.constant 0 : index
    %c0_355 = arith.constant 0 : index
    %811 = vector.load %arg13[%c8_353, %c0_354, %c0_355] : memref<15x4x12xf32, #tpu.memory_space<vmem>>, vector<1x4x12xf32>
    %812 = vector.shape_cast %811 : vector<1x4x12xf32> to vector<4x12xf32>
    %813 = vector.extract_strided_slice %665 {offsets = [0, 1], sizes = [12, 255], strides = [1, 1]} : vector<12x256xf32> to vector<12x255xf32>
    %814 = vector.extract_strided_slice %665 {offsets = [0, 0], sizes = [12, 1], strides = [1, 1]} : vector<12x256xf32> to vector<12x1xf32>
    %815 = tpu.concatenate %813, %814 in 1 : vector<12x255xf32>, vector<12x1xf32> -> vector<12x256xf32>
    %cst_356 = arith.constant dense<0.000000e+00> : vector<4x256xf32>
    %816 = tpu.matmul %812, %815, %cst_356 {dimension_numbers = #tpu.dot_dimension_numbers<[1], [0], [0], [1], [0, 0, 1, 1], [], []>} : vector<4x12xf32>, vector<12x256xf32>, vector<4x256xf32> -> vector<4x256xf32>
    %c1_i32_357 = arith.constant 1 : i32
    %817 = vector.broadcast %c1_i32_357 : i32 to vector<1x256xi32>
    %818 = arith.addi %2, %817 : vector<1x256xi32>
    %c0_i32_358 = arith.constant 0 : i32
    %819 = vector.broadcast %c0_i32_358 : i32 to vector<1x256xi32>
    %820 = arith.cmpi sge, %818, %819 : vector<1x256xi32>
    %c1_i32_359 = arith.constant 1 : i32
    %821 = vector.broadcast %c1_i32_359 : i32 to vector<1x256xi32>
    %822 = arith.addi %2, %821 : vector<1x256xi32>
    %c16_i32_360 = arith.constant 16 : i32
    %823 = vector.broadcast %c16_i32_360 : i32 to vector<1x256xi32>
    %824 = arith.cmpi slt, %822, %823 : vector<1x256xi32>
    %825 = arith.andi %820, %824 : vector<1x256xi1>
    %cst_361 = arith.constant 0.000000e+00 : f32
    %826 = vector.shape_cast %825 : vector<1x256xi1> to vector<1x256xi1>
    %827 = vector.broadcast %826 : vector<1x256xi1> to vector<4x256xi1>
    %828 = vector.broadcast %cst_361 : f32 to vector<4x256xf32>
    %829 = arith.select %827, %816, %828 : vector<4x256xi1>, vector<4x256xf32>
    %830 = arith.addf %810, %829 : vector<4x256xf32>
    %c9_362 = arith.constant 9 : index
    %c0_363 = arith.constant 0 : index
    %c0_364 = arith.constant 0 : index
    %831 = vector.load %arg13[%c9_362, %c0_363, %c0_364] : memref<15x4x12xf32, #tpu.memory_space<vmem>>, vector<1x4x12xf32>
    %832 = vector.shape_cast %831 : vector<1x4x12xf32> to vector<4x12xf32>
    %833 = vector.extract_strided_slice %665 {offsets = [0, 2], sizes = [12, 254], strides = [1, 1]} : vector<12x256xf32> to vector<12x254xf32>
    %834 = vector.extract_strided_slice %665 {offsets = [0, 0], sizes = [12, 2], strides = [1, 1]} : vector<12x256xf32> to vector<12x2xf32>
    %835 = tpu.concatenate %833, %834 in 1 : vector<12x254xf32>, vector<12x2xf32> -> vector<12x256xf32>
    %cst_365 = arith.constant dense<0.000000e+00> : vector<4x256xf32>
    %836 = tpu.matmul %832, %835, %cst_365 {dimension_numbers = #tpu.dot_dimension_numbers<[1], [0], [0], [1], [0, 0, 1, 1], [], []>} : vector<4x12xf32>, vector<12x256xf32>, vector<4x256xf32> -> vector<4x256xf32>
    %c2_i32_366 = arith.constant 2 : i32
    %837 = vector.broadcast %c2_i32_366 : i32 to vector<1x256xi32>
    %838 = arith.addi %2, %837 : vector<1x256xi32>
    %c0_i32_367 = arith.constant 0 : i32
    %839 = vector.broadcast %c0_i32_367 : i32 to vector<1x256xi32>
    %840 = arith.cmpi sge, %838, %839 : vector<1x256xi32>
    %c2_i32_368 = arith.constant 2 : i32
    %841 = vector.broadcast %c2_i32_368 : i32 to vector<1x256xi32>
    %842 = arith.addi %2, %841 : vector<1x256xi32>
    %c16_i32_369 = arith.constant 16 : i32
    %843 = vector.broadcast %c16_i32_369 : i32 to vector<1x256xi32>
    %844 = arith.cmpi slt, %842, %843 : vector<1x256xi32>
    %845 = arith.andi %840, %844 : vector<1x256xi1>
    %cst_370 = arith.constant 0.000000e+00 : f32
    %846 = vector.shape_cast %845 : vector<1x256xi1> to vector<1x256xi1>
    %847 = vector.broadcast %846 : vector<1x256xi1> to vector<4x256xi1>
    %848 = vector.broadcast %cst_370 : f32 to vector<4x256xf32>
    %849 = arith.select %847, %836, %848 : vector<4x256xi1>, vector<4x256xf32>
    %850 = arith.addf %830, %849 : vector<4x256xf32>
    %c10_371 = arith.constant 10 : index
    %c0_372 = arith.constant 0 : index
    %c0_373 = arith.constant 0 : index
    %851 = vector.load %arg13[%c10_371, %c0_372, %c0_373] : memref<15x4x12xf32, #tpu.memory_space<vmem>>, vector<1x4x12xf32>
    %852 = vector.shape_cast %851 : vector<1x4x12xf32> to vector<4x12xf32>
    %853 = vector.extract_strided_slice %665 {offsets = [0, 3], sizes = [12, 253], strides = [1, 1]} : vector<12x256xf32> to vector<12x253xf32>
    %854 = vector.extract_strided_slice %665 {offsets = [0, 0], sizes = [12, 3], strides = [1, 1]} : vector<12x256xf32> to vector<12x3xf32>
    %855 = tpu.concatenate %853, %854 in 1 : vector<12x253xf32>, vector<12x3xf32> -> vector<12x256xf32>
    %cst_374 = arith.constant dense<0.000000e+00> : vector<4x256xf32>
    %856 = tpu.matmul %852, %855, %cst_374 {dimension_numbers = #tpu.dot_dimension_numbers<[1], [0], [0], [1], [0, 0, 1, 1], [], []>} : vector<4x12xf32>, vector<12x256xf32>, vector<4x256xf32> -> vector<4x256xf32>
    %c3_i32_375 = arith.constant 3 : i32
    %857 = vector.broadcast %c3_i32_375 : i32 to vector<1x256xi32>
    %858 = arith.addi %2, %857 : vector<1x256xi32>
    %c0_i32_376 = arith.constant 0 : i32
    %859 = vector.broadcast %c0_i32_376 : i32 to vector<1x256xi32>
    %860 = arith.cmpi sge, %858, %859 : vector<1x256xi32>
    %c3_i32_377 = arith.constant 3 : i32
    %861 = vector.broadcast %c3_i32_377 : i32 to vector<1x256xi32>
    %862 = arith.addi %2, %861 : vector<1x256xi32>
    %c16_i32_378 = arith.constant 16 : i32
    %863 = vector.broadcast %c16_i32_378 : i32 to vector<1x256xi32>
    %864 = arith.cmpi slt, %862, %863 : vector<1x256xi32>
    %865 = arith.andi %860, %864 : vector<1x256xi1>
    %cst_379 = arith.constant 0.000000e+00 : f32
    %866 = vector.shape_cast %865 : vector<1x256xi1> to vector<1x256xi1>
    %867 = vector.broadcast %866 : vector<1x256xi1> to vector<4x256xi1>
    %868 = vector.broadcast %cst_379 : f32 to vector<4x256xf32>
    %869 = arith.select %867, %856, %868 : vector<4x256xi1>, vector<4x256xf32>
    %870 = arith.addf %850, %869 : vector<4x256xf32>
    %c11_380 = arith.constant 11 : index
    %c0_381 = arith.constant 0 : index
    %c0_382 = arith.constant 0 : index
    %871 = vector.load %arg13[%c11_380, %c0_381, %c0_382] : memref<15x4x12xf32, #tpu.memory_space<vmem>>, vector<1x4x12xf32>
    %872 = vector.shape_cast %871 : vector<1x4x12xf32> to vector<4x12xf32>
    %873 = vector.extract_strided_slice %665 {offsets = [0, 4], sizes = [12, 252], strides = [1, 1]} : vector<12x256xf32> to vector<12x252xf32>
    %874 = vector.extract_strided_slice %665 {offsets = [0, 0], sizes = [12, 4], strides = [1, 1]} : vector<12x256xf32> to vector<12x4xf32>
    %875 = tpu.concatenate %873, %874 in 1 : vector<12x252xf32>, vector<12x4xf32> -> vector<12x256xf32>
    %cst_383 = arith.constant dense<0.000000e+00> : vector<4x256xf32>
    %876 = tpu.matmul %872, %875, %cst_383 {dimension_numbers = #tpu.dot_dimension_numbers<[1], [0], [0], [1], [0, 0, 1, 1], [], []>} : vector<4x12xf32>, vector<12x256xf32>, vector<4x256xf32> -> vector<4x256xf32>
    %c4_i32_384 = arith.constant 4 : i32
    %877 = vector.broadcast %c4_i32_384 : i32 to vector<1x256xi32>
    %878 = arith.addi %2, %877 : vector<1x256xi32>
    %c0_i32_385 = arith.constant 0 : i32
    %879 = vector.broadcast %c0_i32_385 : i32 to vector<1x256xi32>
    %880 = arith.cmpi sge, %878, %879 : vector<1x256xi32>
    %c4_i32_386 = arith.constant 4 : i32
    %881 = vector.broadcast %c4_i32_386 : i32 to vector<1x256xi32>
    %882 = arith.addi %2, %881 : vector<1x256xi32>
    %c16_i32_387 = arith.constant 16 : i32
    %883 = vector.broadcast %c16_i32_387 : i32 to vector<1x256xi32>
    %884 = arith.cmpi slt, %882, %883 : vector<1x256xi32>
    %885 = arith.andi %880, %884 : vector<1x256xi1>
    %cst_388 = arith.constant 0.000000e+00 : f32
    %886 = vector.shape_cast %885 : vector<1x256xi1> to vector<1x256xi1>
    %887 = vector.broadcast %886 : vector<1x256xi1> to vector<4x256xi1>
    %888 = vector.broadcast %cst_388 : f32 to vector<4x256xf32>
    %889 = arith.select %887, %876, %888 : vector<4x256xi1>, vector<4x256xf32>
    %890 = arith.addf %870, %889 : vector<4x256xf32>
    %c12_389 = arith.constant 12 : index
    %c0_390 = arith.constant 0 : index
    %c0_391 = arith.constant 0 : index
    %891 = vector.load %arg13[%c12_389, %c0_390, %c0_391] : memref<15x4x12xf32, #tpu.memory_space<vmem>>, vector<1x4x12xf32>
    %892 = vector.shape_cast %891 : vector<1x4x12xf32> to vector<4x12xf32>
    %893 = vector.extract_strided_slice %665 {offsets = [0, 5], sizes = [12, 251], strides = [1, 1]} : vector<12x256xf32> to vector<12x251xf32>
    %894 = vector.extract_strided_slice %665 {offsets = [0, 0], sizes = [12, 5], strides = [1, 1]} : vector<12x256xf32> to vector<12x5xf32>
    %895 = tpu.concatenate %893, %894 in 1 : vector<12x251xf32>, vector<12x5xf32> -> vector<12x256xf32>
    %cst_392 = arith.constant dense<0.000000e+00> : vector<4x256xf32>
    %896 = tpu.matmul %892, %895, %cst_392 {dimension_numbers = #tpu.dot_dimension_numbers<[1], [0], [0], [1], [0, 0, 1, 1], [], []>} : vector<4x12xf32>, vector<12x256xf32>, vector<4x256xf32> -> vector<4x256xf32>
    %c5_i32_393 = arith.constant 5 : i32
    %897 = vector.broadcast %c5_i32_393 : i32 to vector<1x256xi32>
    %898 = arith.addi %2, %897 : vector<1x256xi32>
    %c0_i32_394 = arith.constant 0 : i32
    %899 = vector.broadcast %c0_i32_394 : i32 to vector<1x256xi32>
    %900 = arith.cmpi sge, %898, %899 : vector<1x256xi32>
    %c5_i32_395 = arith.constant 5 : i32
    %901 = vector.broadcast %c5_i32_395 : i32 to vector<1x256xi32>
    %902 = arith.addi %2, %901 : vector<1x256xi32>
    %c16_i32_396 = arith.constant 16 : i32
    %903 = vector.broadcast %c16_i32_396 : i32 to vector<1x256xi32>
    %904 = arith.cmpi slt, %902, %903 : vector<1x256xi32>
    %905 = arith.andi %900, %904 : vector<1x256xi1>
    %cst_397 = arith.constant 0.000000e+00 : f32
    %906 = vector.shape_cast %905 : vector<1x256xi1> to vector<1x256xi1>
    %907 = vector.broadcast %906 : vector<1x256xi1> to vector<4x256xi1>
    %908 = vector.broadcast %cst_397 : f32 to vector<4x256xf32>
    %909 = arith.select %907, %896, %908 : vector<4x256xi1>, vector<4x256xf32>
    %910 = arith.addf %890, %909 : vector<4x256xf32>
    %c13_398 = arith.constant 13 : index
    %c0_399 = arith.constant 0 : index
    %c0_400 = arith.constant 0 : index
    %911 = vector.load %arg13[%c13_398, %c0_399, %c0_400] : memref<15x4x12xf32, #tpu.memory_space<vmem>>, vector<1x4x12xf32>
    %912 = vector.shape_cast %911 : vector<1x4x12xf32> to vector<4x12xf32>
    %913 = vector.extract_strided_slice %665 {offsets = [0, 6], sizes = [12, 250], strides = [1, 1]} : vector<12x256xf32> to vector<12x250xf32>
    %914 = vector.extract_strided_slice %665 {offsets = [0, 0], sizes = [12, 6], strides = [1, 1]} : vector<12x256xf32> to vector<12x6xf32>
    %915 = tpu.concatenate %913, %914 in 1 : vector<12x250xf32>, vector<12x6xf32> -> vector<12x256xf32>
    %cst_401 = arith.constant dense<0.000000e+00> : vector<4x256xf32>
    %916 = tpu.matmul %912, %915, %cst_401 {dimension_numbers = #tpu.dot_dimension_numbers<[1], [0], [0], [1], [0, 0, 1, 1], [], []>} : vector<4x12xf32>, vector<12x256xf32>, vector<4x256xf32> -> vector<4x256xf32>
    %c6_i32_402 = arith.constant 6 : i32
    %917 = vector.broadcast %c6_i32_402 : i32 to vector<1x256xi32>
    %918 = arith.addi %2, %917 : vector<1x256xi32>
    %c0_i32_403 = arith.constant 0 : i32
    %919 = vector.broadcast %c0_i32_403 : i32 to vector<1x256xi32>
    %920 = arith.cmpi sge, %918, %919 : vector<1x256xi32>
    %c6_i32_404 = arith.constant 6 : i32
    %921 = vector.broadcast %c6_i32_404 : i32 to vector<1x256xi32>
    %922 = arith.addi %2, %921 : vector<1x256xi32>
    %c16_i32_405 = arith.constant 16 : i32
    %923 = vector.broadcast %c16_i32_405 : i32 to vector<1x256xi32>
    %924 = arith.cmpi slt, %922, %923 : vector<1x256xi32>
    %925 = arith.andi %920, %924 : vector<1x256xi1>
    %cst_406 = arith.constant 0.000000e+00 : f32
    %926 = vector.shape_cast %925 : vector<1x256xi1> to vector<1x256xi1>
    %927 = vector.broadcast %926 : vector<1x256xi1> to vector<4x256xi1>
    %928 = vector.broadcast %cst_406 : f32 to vector<4x256xf32>
    %929 = arith.select %927, %916, %928 : vector<4x256xi1>, vector<4x256xf32>
    %930 = arith.addf %910, %929 : vector<4x256xf32>
    %c14_407 = arith.constant 14 : index
    %c0_408 = arith.constant 0 : index
    %c0_409 = arith.constant 0 : index
    %931 = vector.load %arg13[%c14_407, %c0_408, %c0_409] : memref<15x4x12xf32, #tpu.memory_space<vmem>>, vector<1x4x12xf32>
    %932 = vector.shape_cast %931 : vector<1x4x12xf32> to vector<4x12xf32>
    %933 = vector.extract_strided_slice %665 {offsets = [0, 7], sizes = [12, 249], strides = [1, 1]} : vector<12x256xf32> to vector<12x249xf32>
    %934 = vector.extract_strided_slice %665 {offsets = [0, 0], sizes = [12, 7], strides = [1, 1]} : vector<12x256xf32> to vector<12x7xf32>
    %935 = tpu.concatenate %933, %934 in 1 : vector<12x249xf32>, vector<12x7xf32> -> vector<12x256xf32>
    %cst_410 = arith.constant dense<0.000000e+00> : vector<4x256xf32>
    %936 = tpu.matmul %932, %935, %cst_410 {dimension_numbers = #tpu.dot_dimension_numbers<[1], [0], [0], [1], [0, 0, 1, 1], [], []>} : vector<4x12xf32>, vector<12x256xf32>, vector<4x256xf32> -> vector<4x256xf32>
    %c7_i32_411 = arith.constant 7 : i32
    %937 = vector.broadcast %c7_i32_411 : i32 to vector<1x256xi32>
    %938 = arith.addi %2, %937 : vector<1x256xi32>
    %c0_i32_412 = arith.constant 0 : i32
    %939 = vector.broadcast %c0_i32_412 : i32 to vector<1x256xi32>
    %940 = arith.cmpi sge, %938, %939 : vector<1x256xi32>
    %c7_i32_413 = arith.constant 7 : i32
    %941 = vector.broadcast %c7_i32_413 : i32 to vector<1x256xi32>
    %942 = arith.addi %2, %941 : vector<1x256xi32>
    %c16_i32_414 = arith.constant 16 : i32
    %943 = vector.broadcast %c16_i32_414 : i32 to vector<1x256xi32>
    %944 = arith.cmpi slt, %942, %943 : vector<1x256xi32>
    %945 = arith.andi %940, %944 : vector<1x256xi1>
    %cst_415 = arith.constant 0.000000e+00 : f32
    %946 = vector.shape_cast %945 : vector<1x256xi1> to vector<1x256xi1>
    %947 = vector.broadcast %946 : vector<1x256xi1> to vector<4x256xi1>
    %948 = vector.broadcast %cst_415 : f32 to vector<4x256xf32>
    %949 = arith.select %947, %936, %948 : vector<4x256xi1>, vector<4x256xf32>
    %950 = arith.addf %930, %949 : vector<4x256xf32>
    %951 = vector.broadcast %639 : vector<4x1xf32> to vector<4x256xf32>
    %952 = arith.addf %950, %951 : vector<4x256xf32>
    %c12_416 = arith.constant 12 : index
    %c0_417 = arith.constant 0 : index
    %953 = vector.load %arg15[%c12_416, %c0_417] : memref<16x256xf32, #tpu.memory_space<vmem>>, vector<4x256xf32>
    tpu.vector_store %arg15[%c12_416, %c0_417], %952 {strides = array<i32>} : memref<16x256xf32, #tpu.memory_space<vmem>>, vector<4x256xf32>,
    return
  }
  func.func @transform_0(%arg0: i32) -> (i32, i32) {
    %c0_i32 = arith.constant 0 : i32
    %c0_i32_0 = arith.constant 0 : i32
    %c0_i32_1 = arith.constant 0 : i32
    return %c0_i32, %c0_i32_0 : i32, i32
  }
  func.func @transform_1(%arg0: i32) -> (i32, i32) {
    %c0_i32 = arith.constant 0 : i32
    %c0_i32_0 = arith.constant 0 : i32
    %c0_i32_1 = arith.constant 0 : i32
    return %c0_i32, %c0_i32_0 : i32, i32
  }
  func.func @transform_2(%arg0: i32) -> (i32, i32) {
    %c0_i32 = arith.constant 0 : i32
    %c0_i32_0 = arith.constant 0 : i32
    %c0_i32_1 = arith.constant 0 : i32
    return %c0_i32, %c0_i32_0 : i32, i32
  }
  func.func @transform_3(%arg0: i32) -> (i32, i32) {
    %c0_i32 = arith.constant 0 : i32
    %c0_i32_0 = arith.constant 0 : i32
    %c0_i32_1 = arith.constant 0 : i32
    return %c0_i32, %c0_i32_0 : i32, i32
  }
  func.func @transform_4(%arg0: i32) -> (i32, i32, i32) {
    %c0_i32 = arith.constant 0 : i32
    %c0_i32_0 = arith.constant 0 : i32
    %c0_i32_1 = arith.constant 0 : i32
    %c0_i32_2 = arith.constant 0 : i32
    return %c0_i32, %c0_i32_0, %c0_i32_1 : i32, i32, i32
  }
  func.func @transform_5(%arg0: i32) -> (i32, i32) {
    %c0_i32 = arith.constant 0 : i32
    %c0_i32_0 = arith.constant 0 : i32
    %c0_i32_1 = arith.constant 0 : i32
    return %c0_i32, %c0_i32_0 : i32, i32
  }
  func.func @transform_6(%arg0: i32) -> (i32, i32) {
    %c0_i32 = arith.constant 0 : i32
    %c0_i32_0 = arith.constant 0 : i32
    %c0_i32_1 = arith.constant 0 : i32
    return %c0_i32, %c0_i32_0 : i32, i32
  }
  func.func @transform_7(%arg0: i32) -> (i32, i32) {
    %c0_i32 = arith.constant 0 : i32
    %c0_i32_0 = arith.constant 0 : i32
    %c0_i32_1 = arith.constant 0 : i32
    return %c0_i32, %c0_i32_0 : i32, i32
  }
  func.func @transform_8(%arg0: i32) -> (i32, i32, i32) {
    %c0_i32 = arith.constant 0 : i32
    %c0_i32_0 = arith.constant 0 : i32
    %c0_i32_1 = arith.constant 0 : i32
    %c0_i32_2 = arith.constant 0 : i32
    return %c0_i32, %c0_i32_0, %c0_i32_1 : i32, i32, i32
  }
  func.func @transform_9(%arg0: i32) -> (i32, i32) {
    %c0_i32 = arith.constant 0 : i32
    %c0_i32_0 = arith.constant 0 : i32
    %c0_i32_1 = arith.constant 0 : i32
    return %c0_i32, %c0_i32_0 : i32, i32
  }
  func.func @transform_10(%arg0: i32) -> (i32, i32) {
    %c0_i32 = arith.constant 0 : i32
    %c0_i32_0 = arith.constant 0 : i32
    %c0_i32_1 = arith.constant 0 : i32
    return %c0_i32, %c0_i32_0 : i32, i32
  }
  func.func @transform_11(%arg0: i32) -> (i32, i32) {
    %c0_i32 = arith.constant 0 : i32
    %c0_i32_0 = arith.constant 0 : i32
    %c0_i32_1 = arith.constant 0 : i32
    return %c0_i32, %c0_i32_0 : i32, i32
  }
  func.func @transform_12(%arg0: i32) -> (i32, i32, i32) {
    %c0_i32 = arith.constant 0 : i32
    %c0_i32_0 = arith.constant 0 : i32
    %c0_i32_1 = arith.constant 0 : i32
    %c0_i32_2 = arith.constant 0 : i32
    return %c0_i32, %c0_i32_0, %c0_i32_1 : i32, i32, i32
  }
  func.func @transform_13(%arg0: i32) -> (i32, i32) {
    %c0_i32 = arith.constant 0 : i32
    %c0_i32_0 = arith.constant 0 : i32
    %c0_i32_1 = arith.constant 0 : i32
    return %c0_i32, %c0_i32_0 : i32, i32
  }
  func.func @transform_14(%arg0: i32) -> (i32, i32) {
    %c0_i32 = arith.constant 0 : i32
    %c0_i32_0 = arith.constant 0 : i32
    %c0_i32_1 = arith.constant 0 : i32
    return %c0_i32, %c0_i32_0 : i32, i32
  }
}

</mosaic_0001>

<llo_original>
// kernel: _lambda_.1
$region0: #{_lambda_.1}
  #allocation0 [shape = 'u32[]', space=smem, size = 0x4, offset = 0x4, fixed_abs, tag = 'smem constant byte address 0x4 - core index']
  #allocation1 [shape = 'u32[144,128]{1,0:T(1,128)}', space=vmem, size = 0x12000, scoped, tag = 'internal scratch']
  %s0 = inlined_call_operand.vmem [shape: f32[4,256], index: 0, kind: input, shape index: {}]
  %s1 = inlined_call_operand.vmem [shape: s32[1,256], index: 1, kind: input, shape index: {}]
  %s2 = inlined_call_operand.vmem [shape: f32[4,1], index: 2, kind: input, shape index: {}]
  %s3 = inlined_call_operand.vmem [shape: f32[4,1], index: 3, kind: input, shape index: {}]
  %s4 = inlined_call_operand.vmem [shape: f32[15,4,4], index: 4, kind: input, shape index: {}]
  %s5 = inlined_call_operand.vmem [shape: f32[4,1], index: 5, kind: input, shape index: {}]
  %s6 = inlined_call_operand.vmem [shape: f32[8,1], index: 6, kind: input, shape index: {}]
  %s7 = inlined_call_operand.vmem [shape: f32[8,1], index: 7, kind: input, shape index: {}]
  %s8 = inlined_call_operand.vmem [shape: f32[15,4,8], index: 8, kind: input, shape index: {}]
  %s9 = inlined_call_operand.vmem [shape: f32[4,1], index: 9, kind: input, shape index: {}]
  %s10 = inlined_call_operand.vmem [shape: f32[12,1], index: 10, kind: input, shape index: {}]
  %s11 = inlined_call_operand.vmem [shape: f32[12,1], index: 11, kind: input, shape index: {}]
  %s12 = inlined_call_operand.vmem [shape: f32[15,4,12], index: 12, kind: input, shape index: {}]
  %s13 = inlined_call_operand.vmem [shape: f32[4,1], index: 13, kind: input, shape index: {}]
  %s14 = inlined_call_operand.vmem [shape: f32[16,256], index: 14, kind: output, shape index: {}]
  %s15 = sld [smem:[#allocation0]]
  $region66: #{_lambda_.1} parent=0
    _
  %s17 = ssub.s32 1, %s15
  %s18 = scalar_select 0, %s17, %s15
  // Predicated region
  $region2: #{_lambda_.1} parent=0 // pred_check
    _
  $region3: #{_lambda_.1} parent=0 // pred_check_branch
    %20 = sbr.rel (0) target = $region5
  $region4: #{_lambda_.1} parent=0 // pred_region
    _
  $region5: #{_lambda_.1} parent=0 // pred_fallthru
    _
  // Predicated region
  $region6: #{_lambda_.1} parent=0 // pred_check
    _
  $region7: #{_lambda_.1} parent=0 // pred_check_branch
    %22 = sbr.rel (0) target = $region9
  $region8: #{_lambda_.1} parent=0 // pred_region
    _
  $region9: #{_lambda_.1} parent=0 // pred_fallthru
    _
  // Predicated region
  $region10: #{_lambda_.1} parent=0 // pred_check
    _
  $region11: #{_lambda_.1} parent=0 // pred_check_branch
    %24 = sbr.rel (0) target = $region13
  $region12: #{_lambda_.1} parent=0 // pred_region
    _
  $region13: #{_lambda_.1} parent=0 // pred_fallthru
    _
  // Predicated region
  $region14: #{_lambda_.1} parent=0 // pred_check
    _
  $region15: #{_lambda_.1} parent=0 // pred_check_branch
    %26 = sbr.rel (0) target = $region17
  $region16: #{_lambda_.1} parent=0 // pred_region
    _
  $region17: #{_lambda_.1} parent=0 // pred_fallthru
    _
  // Predicated region
  $region18: #{_lambda_.1} parent=0 // pred_check
    _
  $region19: #{_lambda_.1} parent=0 // pred_check_branch
    %28 = sbr.rel (0) target = $region21
  $region20: #{_lambda_.1} parent=0 // pred_region
    _
  $region21: #{_lambda_.1} parent=0 // pred_fallthru
    _
  // Predicated region
  $region22: #{_lambda_.1} parent=0 // pred_check
    _
  $region23: #{_lambda_.1} parent=0 // pred_check_branch
    %30 = sbr.rel (0) target = $region25
  $region24: #{_lambda_.1} parent=0 // pred_region
    _
  $region25: #{_lambda_.1} parent=0 // pred_fallthru
    _
  // Predicated region
  $region26: #{_lambda_.1} parent=0 // pred_check
    _
  $region27: #{_lambda_.1} parent=0 // pred_check_branch
    %32 = sbr.rel (0) target = $region29
  $region28: #{_lambda_.1} parent=0 // pred_region
    _
  $region29: #{_lambda_.1} parent=0 // pred_fallthru
    _
  // Predicated region
  $region30: #{_lambda_.1} parent=0 // pred_check
    _
  $region31: #{_lambda_.1} parent=0 // pred_check_branch
    %34 = sbr.rel (0) target = $region33
  $region32: #{_lambda_.1} parent=0 // pred_region
    _
  $region33: #{_lambda_.1} parent=0 // pred_fallthru
    _
  // Predicated region
  $region34: #{_lambda_.1} parent=0 // pred_check
    _
  $region35: #{_lambda_.1} parent=0 // pred_check_branch
    %36 = sbr.rel (0) target = $region37
  $region36: #{_lambda_.1} parent=0 // pred_region
    _
  $region37: #{_lambda_.1} parent=0 // pred_fallthru
    _
  // Predicated region
  $region38: #{_lambda_.1} parent=0 // pred_check
    _
  $region39: #{_lambda_.1} parent=0 // pred_check_branch
    %38 = sbr.rel (0) target = $region41
  $region40: #{_lambda_.1} parent=0 // pred_region
    _
  $region41: #{_lambda_.1} parent=0 // pred_fallthru
    _
  // Predicated region
  $region42: #{_lambda_.1} parent=0 // pred_check
    _
  $region43: #{_lambda_.1} parent=0 // pred_check_branch
    %40 = sbr.rel (0) target = $region45
  $region44: #{_lambda_.1} parent=0 // pred_region
    _
  $region45: #{_lambda_.1} parent=0 // pred_fallthru
    _
  // Predicated region
  $region46: #{_lambda_.1} parent=0 // pred_check
    _
  $region47: #{_lambda_.1} parent=0 // pred_check_branch
    %42 = sbr.rel (0) target = $region49
  $region48: #{_lambda_.1} parent=0 // pred_region
    _
  $region49: #{_lambda_.1} parent=0 // pred_fallthru
    _
  // Predicated region
  $region50: #{_lambda_.1} parent=0 // pred_check
    _
  $region51: #{_lambda_.1} parent=0 // pred_check_branch
    %44 = sbr.rel (0) target = $region53
  $region52: #{_lambda_.1} parent=0 // pred_region
    _
  $region53: #{_lambda_.1} parent=0 // pred_fallthru
    _
  // Predicated region
  $region54: #{_lambda_.1} parent=0 // pred_check
    _
  $region55: #{_lambda_.1} parent=0 // pred_check_branch
    %46 = sbr.rel (0) target = $region57
  $region56: #{_lambda_.1} parent=0 // pred_region
    _
  $region57: #{_lambda_.1} parent=0 // pred_fallthru
    _
  %v47 = vld [vmem:[%s0] sm:$0xff]
  %v49 = vcombine.high %v47, %v47
  %51 = vst [vmem:[%s14] sm:$0xf] %v47
  %52 = vst [vmem:[%s14 + $0x8] sm:$0xf] %v49
  %v53 = vld [vmem:[%s1] sm:$0x3]
  %v54 = vld [vmem:[%s2] sm:$0xf]
  %v55 = vld [vmem:[%s3] sm:$0xf]
  %v56 = vld [vmem:[%s5] sm:$0xf]
  %v57 = vld [vmem:[%s14] sm:$0xf]
  %v58 = vld [vmem:[%s14 + $0x8] sm:$0xf]
  %vm59 = vcmask 1043456
  %v60 = vsel %vm59, %v57, 0.0
  %v61 = vsel %vm59, %v58, 0.0
  %v62 = vadd.f32 %v60, %v61
  %63 = vadd.xlane.f32.xlu0 %v62
  %v64 = vpop.xlane.xlu0 %63
  %v65 = vmul.f32 %v57, %v57
  %v66 = vmul.f32 %v58, %v58
  %v67 = vsel %vm59, %v65, 0.0
  %v68 = vsel %vm59, %v66, 0.0
  %v69 = vadd.f32 %v67, %v68
  %70 = vadd.xlane.f32.xlu0 %v69
  %v71 = vpop.xlane.xlu0 %70
  %v72 = vmul.f32 %v64, 0.00390625
  %v73 = vmul.f32 %v71, 0.00390625
  %v74 = vmul.f32 %v72, %v72
  %v75 = vsub.f32 %v73, %v74
  %v76 = vmax.f32 %v75, 0.0
  %v77 = vadd.f32 %v76, 1e-05
  %v78 = vrsqrt.pop %v77
  %v79 = vmul.f32 %v54, %v78
  %v80 = vmul.f32 %v72, %v79
  %v81 = vsub.f32 %v55, %v80
  %83 = vset.pattern.permute.xlu0 0
  %84 = vperm.xlu0 %83, %v79
  %v85 = vpop.permute.xlu0 %84
  %v87 = vmul.f32 %v57, %v85
  %v88 = vmul.f32 %v58, %v85
  %90 = vset.pattern.permute.xlu0 0
  %91 = vperm.xlu0 %90, %v81
  %v92 = vpop.permute.xlu0 %91
  %v94 = vadd.f32 %v87, %v92
  %v95 = vadd.f32 %v88, %v92
  %v96 = vmax.f32 %v94, 0.0
  %v97 = vmax.f32 %v95, 0.0
  %v98 = vld [vmem:[%s4] sm:$0xf]
  %100 = vrot.lane.b32.xlu0 %v97, 7
  %v101 = vpop.permute.xlu0 %100
  %104 = vrot.lane.b32.xlu0 %v96, 7
  %v105 = vpop.permute.xlu0 %104
  %vm106 = vcmask 56320
  %v107 = vsel %vm106, %v105, %v101
  %v109 = vsel %vm106, %v101, %v105
  %vm110 = vcmask 31744
  %v112 = vsel %vm110, %v98, 0
  %v115 = vsel %vm59, %v109, 0
  %v117 = vsel %vm59, %v107, 0
  %119 = vmatprep.subr.mxu0 %v117
  %120 = vmatpush1.msra.mxu0 %v115
  %121 = vmatprep.subr.mxu0 0.0
  %122 = vmatpush1.msra.mxu0 0.0
  %123 = vmatprep.subr.mxu0 0.0
  %124 = vmatpush1.msra.mxu0 0.0
  %125 = vmatprep.subr.mxu0 0.0
  %126 = vmatpush1.msra.mxu0 0.0
  %127 = vmatprep.subr.mxu0 0.0
  %128 = vmatpush1.msra.mxu0 0.0
  %129 = vmatprep.subr.mxu0 0.0
  %130 = vmatpush1.msra.mxu0 0.0
  %131 = vmatprep.subr.mxu0 0.0
  %132 = vmatpush1.msra.mxu0 0.0
  %133 = vmatprep.subr.mxu0 0.0
  %134 = vmatpush1.msra.mxu0 0.0
  %135 = vmatprep.subr.mxu0 0.0
  %136 = vmatpush1.msra.mxu0 0.0
  %137 = vmatprep.subr.mxu0 0.0
  %138 = vmatpush1.msra.mxu0 0.0
  %139 = vmatprep.subr.mxu0 0.0
  %140 = vmatpush1.msra.mxu0 0.0
  %141 = vmatprep.subr.mxu0 0.0
  %142 = vmatpush1.msra.mxu0 0.0
  %143 = vmatprep.subr.mxu0 0.0
  %144 = vmatpush1.msra.mxu0 0.0
  %145 = vmatprep.subr.mxu0 0.0
  %146 = vmatpush1.msra.mxu0 0.0
  %147 = vmatprep.subr.mxu0 0.0
  %148 = vmatpush1.msra.mxu0 0.0
  %149 = vmatprep.subr.mxu0 0.0
  %150 = vmatpush1.msra.mxu0 0.0
  %151 = vmatprep.subr.mxu0 0.0
  %152 = vmatpush1.msra.mxu0 0.0
  %153 = vmatprep.subr.mxu0 0.0
  %154 = vmatpush1.msra.mxu0 0.0
  %155 = vmatprep.subr.mxu0 0.0
  %156 = vmatpush1.msra.mxu0 0.0
  %157 = vmatprep.subr.mxu0 0.0
  %158 = vmatpush1.msra.mxu0 0.0
  %159 = vmatprep.subr.mxu0 0.0
  %160 = vmatpush1.msra.mxu0 0.0
  %161 = vmatprep.subr.mxu0 0.0
  %162 = vmatpush1.msra.mxu0 0.0
  %163 = vmatprep.subr.mxu0 0.0
  %164 = vmatpush1.msra.mxu0 0.0
  %165 = vmatprep.subr.mxu0 0.0
  %166 = vmatpush1.msra.mxu0 0.0
  %167 = vmatprep.subr.mxu0 0.0
  %168 = vmatpush1.msra.mxu0 0.0
  %169 = vmatprep.subr.mxu0 0.0
  %170 = vmatpush1.msra.mxu0 0.0
  %171 = vmatprep.subr.mxu0 0.0
  %172 = vmatpush1.msra.mxu0 0.0
  %173 = vmatprep.subr.mxu0 0.0
  %174 = vmatpush1.msra.mxu0 0.0
  %175 = vmatprep.subr.mxu0 0.0
  %176 = vmatpush1.msra.mxu0 0.0
  %177 = vmatprep.subr.mxu0 0.0
  %178 = vmatpush1.msra.mxu0 0.0
  %179 = vmatprep.subr.mxu0 0.0
  %180 = vmatpush1.msra.mxu0 0.0
  %181 = vmatprep.subr.mxu0 0.0
  %182 = vmatpush1.msra.mxu0 0.0
  %183 = vmatprep.mubr.f32.mxu0 0.0
  %184 = vmatmul.mubr.f32.gmra.mrb[0].mxu0 %v112
  %v185 = vpop.f32.mrb[0].mxu0
  %v186 = vadd.f32 0.0, %v185
  %v187 = vpop.f32.mrb[0].mxu0
  %v188 = vadd.f32 0.0, %v187
  %189 = vdwg.mxu0
  %v190 = vadd.s32 %v53, 4294967289
  %vm191 = vcmp.ge.s32.totalorder %v190, 0
  %vm192 = vcmp.lt.s32.totalorder %v190, 16
  %vm193 = vmand %vm191, %vm192
  %v194 = vsel %vm193, 1, 0
  %v195 = vlaneseq
  %v196 = vshrl.u32 %v195, 7
  %v197 = vsub.s32 0, %v196
  %v198 = vrot.slane %v194, %v197
  %v199 = vlaneseq
  %v200 = vshrl.u32 %v199, 7
  %v201 = vsub.s32 1, %v200
  %v202 = vrot.slane %v194, %v201
  %vm203 = vcmp.eq.s32.totalorder %v198, 1
  %vm204 = vcmp.eq.s32.totalorder %v202, 1
  %v205 = vsel %vm203, %v186, 0.0
  %v206 = vsel %vm204, %v188, 0.0
  %v207 = vadd.f32 %v205, 0.0
  %v208 = vadd.f32 %v206, 0.0
  %s209 = scalar_lea.vmem %s4, 4
  %v210 = vld [vmem:[%s209] sm:$0xf]
  %211 = vrot.lane.b32.xlu0 %v97, 6
  %v212 = vpop.permute.xlu0 %211
  %214 = vrot.lane.b32.xlu0 %v96, 6
  %v215 = vpop.permute.xlu0 %214
  %vm216 = vcmask 48128
  %v217 = vsel %vm216, %v215, %v212
  %v219 = vsel %vm216, %v212, %v215
  %v221 = vsel %vm110, %v210, 0
  %v224 = vsel %vm59, %v219, 0
  %v226 = vsel %vm59, %v217, 0
  %228 = vmatprep.subr.mxu0 %v226
  %229 = vmatpush1.msra.mxu0 %v224
  %230 = vmatprep.subr.mxu0 0.0
  %231 = vmatpush1.msra.mxu0 0.0
  %232 = vmatprep.subr.mxu0 0.0
  %233 = vmatpush1.msra.mxu0 0.0
  %234 = vmatprep.subr.mxu0 0.0
  %235 = vmatpush1.msra.mxu0 0.0
  %236 = vmatprep.subr.mxu0 0.0
  %237 = vmatpush1.msra.mxu0 0.0
  %238 = vmatprep.subr.mxu0 0.0
  %239 = vmatpush1.msra.mxu0 0.0
  %240 = vmatprep.subr.mxu0 0.0
  %241 = vmatpush1.msra.mxu0 0.0
  %242 = vmatprep.subr.mxu0 0.0
  %243 = vmatpush1.msra.mxu0 0.0
  %244 = vmatprep.subr.mxu0 0.0
  %245 = vmatpush1.msra.mxu0 0.0
  %246 = vmatprep.subr.mxu0 0.0
  %247 = vmatpush1.msra.mxu0 0.0
  %248 = vmatprep.subr.mxu0 0.0
  %249 = vmatpush1.msra.mxu0 0.0
  %250 = vmatprep.subr.mxu0 0.0
  %251 = vmatpush1.msra.mxu0 0.0
  %252 = vmatprep.subr.mxu0 0.0
  %253 = vmatpush1.msra.mxu0 0.0
  %254 = vmatprep.subr.mxu0 0.0
  %255 = vmatpush1.msra.mxu0 0.0
  %256 = vmatprep.subr.mxu0 0.0
  %257 = vmatpush1.msra.mxu0 0.0
  %258 = vmatprep.subr.mxu0 0.0
  %259 = vmatpush1.msra.mxu0 0.0
  %260 = vmatprep.subr.mxu0 0.0
  %261 = vmatpush1.msra.mxu0 0.0
  %262 = vmatprep.subr.mxu0 0.0
  %263 = vmatpush1.msra.mxu0 0.0
  %264 = vmatprep.subr.mxu0 0.0
  %265 = vmatpush1.msra.mxu0 0.0
  %266 = vmatprep.subr.mxu0 0.0
  %267 = vmatpush1.msra.mxu0 0.0
  %268 = vmatprep.subr.mxu0 0.0
  %269 = vmatpush1.msra.mxu0 0.0
  %270 = vmatprep.subr.mxu0 0.0
  %271 = vmatpush1.msra.mxu0 0.0
  %272 = vmatprep.subr.mxu0 0.0
  %273 = vmatpush1.msra.mxu0 0.0
  %274 = vmatprep.subr.mxu0 0.0
  %275 = vmatpush1.msra.mxu0 0.0
  %276 = vmatprep.subr.mxu0 0.0
  %277 = vmatpush1.msra.mxu0 0.0
  %278 = vmatprep.subr.mxu0 0.0
  %279 = vmatpush1.msra.mxu0 0.0
  %280 = vmatprep.subr.mxu0 0.0
  %281 = vmatpush1.msra.mxu0 0.0
  %282 = vmatprep.subr.mxu0 0.0
  %283 = vmatpush1.msra.mxu0 0.0
  %284 = vmatprep.subr.mxu0 0.0
  %285 = vmatpush1.msra.mxu0 0.0
  %286 = vmatprep.subr.mxu0 0.0
  %287 = vmatpush1.msra.mxu0 0.0
  %288 = vmatprep.subr.mxu0 0.0
  %289 = vmatpush1.msra.mxu0 0.0
  %290 = vmatprep.subr.mxu0 0.0
  %291 = vmatpush1.msra.mxu0 0.0
  %292 = vmatprep.mubr.f32.mxu0 0.0
  %293 = vmatmul.mubr.f32.gmra.mrb[0].mxu0 %v221
  %v294 = vpop.f32.mrb[0].mxu0
  %v295 = vadd.f32 0.0, %v294
  %v296 = vpop.f32.mrb[0].mxu0
  %v297 = vadd.f32 0.0, %v296
  %298 = vdwg.mxu0
  %v299 = vadd.s32 %v53, 4294967290
  %vm300 = vcmp.ge.s32.totalorder %v299, 0
  %vm301 = vcmp.lt.s32.totalorder %v299, 16
  %vm302 = vmand %vm300, %vm301
  %v303 = vsel %vm302, 1, 0
  %v304 = vlaneseq
  %v305 = vshrl.u32 %v304, 7
  %v306 = vsub.s32 0, %v305
  %v307 = vrot.slane %v303, %v306
  %v308 = vlaneseq
  %v309 = vshrl.u32 %v308, 7
  %v310 = vsub.s32 1, %v309
  %v311 = vrot.slane %v303, %v310
  %vm312 = vcmp.eq.s32.totalorder %v307, 1
  %vm313 = vcmp.eq.s32.totalorder %v311, 1
  %v314 = vsel %vm312, %v295, 0.0
  %v315 = vsel %vm313, %v297, 0.0
  %v316 = vadd.f32 %v207, %v314
  %v317 = vadd.f32 %v208, %v315
  %s318 = scalar_lea.vmem %s4, 8
  %v319 = vld [vmem:[%s318] sm:$0xf]
  %320 = vrot.lane.b32.xlu0 %v97, 5
  %v321 = vpop.permute.xlu0 %320
  %323 = vrot.lane.b32.xlu0 %v96, 5
  %v324 = vpop.permute.xlu0 %323
  %vm325 = vcmask 39936
  %v326 = vsel %vm325, %v324, %v321
  %v328 = vsel %vm325, %v321, %v324
  %v330 = vsel %vm110, %v319, 0
  %v333 = vsel %vm59, %v328, 0
  %v335 = vsel %vm59, %v326, 0
  %337 = vmatprep.subr.mxu0 %v335
  %338 = vmatpush1.msra.mxu0 %v333
  %339 = vmatprep.subr.mxu0 0.0
  %340 = vmatpush1.msra.mxu0 0.0
  %341 = vmatprep.subr.mxu0 0.0
  %342 = vmatpush1.msra.mxu0 0.0
  %343 = vmatprep.subr.mxu0 0.0
  %344 = vmatpush1.msra.mxu0 0.0
  %345 = vmatprep.subr.mxu0 0.0
  %346 = vmatpush1.msra.mxu0 0.0
  %347 = vmatprep.subr.mxu0 0.0
  %348 = vmatpush1.msra.mxu0 0.0
  %349 = vmatprep.subr.mxu0 0.0
  %350 = vmatpush1.msra.mxu0 0.0
  %351 = vmatprep.subr.mxu0 0.0
  %352 = vmatpush1.msra.mxu0 0.0
  %353 = vmatprep.subr.mxu0 0.0
  %354 = vmatpush1.msra.mxu0 0.0
  %355 = vmatprep.subr.mxu0 0.0
  %356 = vmatpush1.msra.mxu0 0.0
  %357 = vmatprep.subr.mxu0 0.0
  %358 = vmatpush1.msra.mxu0 0.0
  %359 = vmatprep.subr.mxu0 0.0
  %360 = vmatpush1.msra.mxu0 0.0
  %361 = vmatprep.subr.mxu0 0.0
  %362 = vmatpush1.msra.mxu0 0.0
  %363 = vmatprep.subr.mxu0 0.0
  %364 = vmatpush1.msra.mxu0 0.0
  %365 = vmatprep.subr.mxu0 0.0
  %366 = vmatpush1.msra.mxu0 0.0
  %367 = vmatprep.subr.mxu0 0.0
  %368 = vmatpush1.msra.mxu0 0.0
  %369 = vmatprep.subr.mxu0 0.0
  %370 = vmatpush1.msra.mxu0 0.0
  %371 = vmatprep.subr.mxu0 0.0
  %372 = vmatpush1.msra.mxu0 0.0
  %373 = vmatprep.subr.mxu0 0.0
  %374 = vmatpush1.msra.mxu0 0.0
  %375 = vmatprep.subr.mxu0 0.0
  %376 = vmatpush1.msra.mxu0 0.0
  %377 = vmatprep.subr.mxu0 0.0
  %378 = vmatpush1.msra.mxu0 0.0
  %379 = vmatprep.subr.mxu0 0.0
  %380 = vmatpush1.msra.mxu0 0.0
  %381 = vmatprep.subr.mxu0 0.0
  %382 = vmatpush1.msra.mxu0 0.0
  %383 = vmatprep.subr.mxu0 0.0
  %384 = vmatpush1.msra.mxu0 0.0
  %385 = vmatprep.subr.mxu0 0.0
  %386 = vmatpush1.msra.mxu0 0.0
  %387 = vmatprep.subr.mxu0 0.0
  %388 = vmatpush1.msra.mxu0 0.0
  %389 = vmatprep.subr.mxu0 0.0
  %390 = vmatpush1.msra.mxu0 0.0
  %391 = vmatprep.subr.mxu0 0.0
  %392 = vmatpush1.msra.mxu0 0.0
  %393 = vmatprep.subr.mxu0 0.0
  %394 = vmatpush1.msra.mxu0 0.0
  %395 = vmatprep.subr.mxu0 0.0
  %396 = vmatpush1.msra.mxu0 0.0
  %397 = vmatprep.subr.mxu0 0.0
  %398 = vmatpush1.msra.mxu0 0.0
  %399 = vmatprep.subr.mxu0 0.0
  %400 = vmatpush1.msra.mxu0 0.0
  %401 = vmatprep.mubr.f32.mxu0 0.0
  %402 = vmatmul.mubr.f32.gmra.mrb[0].mxu0 %v330
  %v403 = vpop.f32.mrb[0].mxu0
  %v404 = vadd.f32 0.0, %v403
  %v405 = vpop.f32.mrb[0].mxu0
  %v406 = vadd.f32 0.0, %v405
  %407 = vdwg.mxu0
  %v408 = vadd.s32 %v53, 4294967291
  %vm409 = vcmp.ge.s32.totalorder %v408, 0
  %vm410 = vcmp.lt.s32.totalorder %v408, 16
  %vm411 = vmand %vm409, %vm410
  %v412 = vsel %vm411, 1, 0
  %v413 = vlaneseq
  %v414 = vshrl.u32 %v413, 7
  %v415 = vsub.s32 0, %v414
  %v416 = vrot.slane %v412, %v415
  %v417 = vlaneseq
  %v418 = vshrl.u32 %v417, 7
  %v419 = vsub.s32 1, %v418
  %v420 = vrot.slane %v412, %v419
  %vm421 = vcmp.eq.s32.totalorder %v416, 1
  %vm422 = vcmp.eq.s32.totalorder %v420, 1
  %v423 = vsel %vm421, %v404, 0.0
  %v424 = vsel %vm422, %v406, 0.0
  %v425 = vadd.f32 %v316, %v423
  %v426 = vadd.f32 %v317, %v424
  %s427 = scalar_lea.vmem %s4, 12
  %v428 = vld [vmem:[%s427] sm:$0xf]
  %429 = vrot.lane.b32.xlu0 %v97, 4
  %v430 = vpop.permute.xlu0 %429
  %432 = vrot.lane.b32.xlu0 %v96, 4
  %v433 = vpop.permute.xlu0 %432
  %v434 = vsel %vm110, %v433, %v430
  %v436 = vsel %vm110, %v430, %v433
  %v438 = vsel %vm110, %v428, 0
  %v441 = vsel %vm59, %v436, 0
  %v443 = vsel %vm59, %v434, 0
  %445 = vmatprep.subr.mxu0 %v443
  %446 = vmatpush1.msra.mxu0 %v441
  %447 = vmatprep.subr.mxu0 0.0
  %448 = vmatpush1.msra.mxu0 0.0
  %449 = vmatprep.subr.mxu0 0.0
  %450 = vmatpush1.msra.mxu0 0.0
  %451 = vmatprep.subr.mxu0 0.0
  %452 = vmatpush1.msra.mxu0 0.0
  %453 = vmatprep.subr.mxu0 0.0
  %454 = vmatpush1.msra.mxu0 0.0
  %455 = vmatprep.subr.mxu0 0.0
  %456 = vmatpush1.msra.mxu0 0.0
  %457 = vmatprep.subr.mxu0 0.0
  %458 = vmatpush1.msra.mxu0 0.0
  %459 = vmatprep.subr.mxu0 0.0
  %460 = vmatpush1.msra.mxu0 0.0
  %461 = vmatprep.subr.mxu0 0.0
  %462 = vmatpush1.msra.mxu0 0.0
  %463 = vmatprep.subr.mxu0 0.0
  %464 = vmatpush1.msra.mxu0 0.0
  %465 = vmatprep.subr.mxu0 0.0
  %466 = vmatpush1.msra.mxu0 0.0
  %467 = vmatprep.subr.mxu0 0.0
  %468 = vmatpush1.msra.mxu0 0.0
  %469 = vmatprep.subr.mxu0 0.0
  %470 = vmatpush1.msra.mxu0 0.0
  %471 = vmatprep.subr.mxu0 0.0
  %472 = vmatpush1.msra.mxu0 0.0
  %473 = vmatprep.subr.mxu0 0.0
  %474 = vmatpush1.msra.mxu0 0.0
  %475 = vmatprep.subr.mxu0 0.0
  %476 = vmatpush1.msra.mxu0 0.0
  %477 = vmatprep.subr.mxu0 0.0
  %478 = vmatpush1.msra.mxu0 0.0
  %479 = vmatprep.subr.mxu0 0.0
  %480 = vmatpush1.msra.mxu0 0.0
  %481 = vmatprep.subr.mxu0 0.0
  %482 = vmatpush1.msra.mxu0 0.0
  %483 = vmatprep.subr.mxu0 0.0
  %484 = vmatpush1.msra.mxu0 0.0
  %485 = vmatprep.subr.mxu0 0.0
  %486 = vmatpush1.msra.mxu0 0.0
  %487 = vmatprep.subr.mxu0 0.0
  %488 = vmatpush1.msra.mxu0 0.0
  %489 = vmatprep.subr.mxu0 0.0
  %490 = vmatpush1.msra.mxu0 0.0
  %491 = vmatprep.subr.mxu0 0.0
  %492 = vmatpush1.msra.mxu0 0.0
  %493 = vmatprep.subr.mxu0 0.0
  %494 = vmatpush1.msra.mxu0 0.0
  %495 = vmatprep.subr.mxu0 0.0
  %496 = vmatpush1.msra.mxu0 0.0
  %497 = vmatprep.subr.mxu0 0.0
  %498 = vmatpush1.msra.mxu0 0.0
  %499 = vmatprep.subr.mxu0 0.0
  %500 = vmatpush1.msra.mxu0 0.0
  %501 = vmatprep.subr.mxu0 0.0
  %502 = vmatpush1.msra.mxu0 0.0
  %503 = vmatprep.subr.mxu0 0.0
  %504 = vmatpush1.msra.mxu0 0.0
  %505 = vmatprep.subr.mxu0 0.0
  %506 = vmatpush1.msra.mxu0 0.0
  %507 = vmatprep.subr.mxu0 0.0
  %508 = vmatpush1.msra.mxu0 0.0
  %509 = vmatprep.mubr.f32.mxu0 0.0
  %510 = vmatmul.mubr.f32.gmra.mrb[0].mxu0 %v438
  %v511 = vpop.f32.mrb[0].mxu0
  %v512 = vadd.f32 0.0, %v511
  %v513 = vpop.f32.mrb[0].mxu0
  %v514 = vadd.f32 0.0, %v513
  %515 = vdwg.mxu0
  %v516 = vadd.s32 %v53, 4294967292
  %vm517 = vcmp.ge.s32.totalorder %v516, 0
  %vm518 = vcmp.lt.s32.totalorder %v516, 16
  %vm519 = vmand %vm517, %vm518
  %v520 = vsel %vm519, 1, 0
  %v521 = vlaneseq
  %v522 = vshrl.u32 %v521, 7
  %v523 = vsub.s32 0, %v522
  %v524 = vrot.slane %v520, %v523
  %v525 = vlaneseq
  %v526 = vshrl.u32 %v525, 7
  %v527 = vsub.s32 1, %v526
  %v528 = vrot.slane %v520, %v527
  %vm529 = vcmp.eq.s32.totalorder %v524, 1
  %vm530 = vcmp.eq.s32.totalorder %v528, 1
  %v531 = vsel %vm529, %v512, 0.0
  %v532 = vsel %vm530, %v514, 0.0
  %v533 = vadd.f32 %v425, %v531
  %v534 = vadd.f32 %v426, %v532
  %s535 = scalar_lea.vmem %s4, 16
  %v536 = vld [vmem:[%s535] sm:$0xf]
  %537 = vrot.lane.b32.xlu0 %v97, 3
  %v538 = vpop.permute.xlu0 %537
  %540 = vrot.lane.b32.xlu0 %v96, 3
  %v541 = vpop.permute.xlu0 %540
  %vm542 = vcmask 23552
  %v543 = vsel %vm542, %v541, %v538
  %v545 = vsel %vm542, %v538, %v541
  %v547 = vsel %vm110, %v536, 0
  %v550 = vsel %vm59, %v545, 0
  %v552 = vsel %vm59, %v543, 0
  %554 = vmatprep.subr.mxu0 %v552
  %555 = vmatpush1.msra.mxu0 %v550
  %556 = vmatprep.subr.mxu0 0.0
  %557 = vmatpush1.msra.mxu0 0.0
  %558 = vmatprep.subr.mxu0 0.0
  %559 = vmatpush1.msra.mxu0 0.0
  %560 = vmatprep.subr.mxu0 0.0
  %561 = vmatpush1.msra.mxu0 0.0
  %562 = vmatprep.subr.mxu0 0.0
  %563 = vmatpush1.msra.mxu0 0.0
  %564 = vmatprep.subr.mxu0 0.0
  %565 = vmatpush1.msra.mxu0 0.0
  %566 = vmatprep.subr.mxu0 0.0
  %567 = vmatpush1.msra.mxu0 0.0
  %568 = vmatprep.subr.mxu0 0.0
  %569 = vmatpush1.msra.mxu0 0.0
  %570 = vmatprep.subr.mxu0 0.0
  %571 = vmatpush1.msra.mxu0 0.0
  %572 = vmatprep.subr.mxu0 0.0
  %573 = vmatpush1.msra.mxu0 0.0
  %574 = vmatprep.subr.mxu0 0.0
  %575 = vmatpush1.msra.mxu0 0.0
  %576 = vmatprep.subr.mxu0 0.0
  %577 = vmatpush1.msra.mxu0 0.0
  %578 = vmatprep.subr.mxu0 0.0
  %579 = vmatpush1.msra.mxu0 0.0
  %580 = vmatprep.subr.mxu0 0.0
  %581 = vmatpush1.msra.mxu0 0.0
  %582 = vmatprep.subr.mxu0 0.0
  %583 = vmatpush1.msra.mxu0 0.0
  %584 = vmatprep.subr.mxu0 0.0
  %585 = vmatpush1.msra.mxu0 0.0
  %586 = vmatprep.subr.mxu0 0.0
  %587 = vmatpush1.msra.mxu0 0.0
  %588 = vmatprep.subr.mxu0 0.0
  %589 = vmatpush1.msra.mxu0 0.0
  %590 = vmatprep.subr.mxu0 0.0
  %591 = vmatpush1.msra.mxu0 0.0
  %592 = vmatprep.subr.mxu0 0.0
  %593 = vmatpush1.msra.mxu0 0.0
  %594 = vmatprep.subr.mxu0 0.0
  %595 = vmatpush1.msra.mxu0 0.0
  %596 = vmatprep.subr.mxu0 0.0
  %597 = vmatpush1.msra.mxu0 0.0
  %598 = vmatprep.subr.mxu0 0.0
  %599 = vmatpush1.msra.mxu0 0.0
  %600 = vmatprep.subr.mxu0 0.0
  %601 = vmatpush1.msra.mxu0 0.0
  %602 = vmatprep.subr.mxu0 0.0
  %603 = vmatpush1.msra.mxu0 0.0
  %604 = vmatprep.subr.mxu0 0.0
  %605 = vmatpush1.msra.mxu0 0.0
  %606 = vmatprep.subr.mxu0 0.0
  %607 = vmatpush1.msra.mxu0 0.0
  %608 = vmatprep.subr.mxu0 0.0
  %609 = vmatpush1.msra.mxu0 0.0
  %610 = vmatprep.subr.mxu0 0.0
  %611 = vmatpush1.msra.mxu0 0.0
  %612 = vmatprep.subr.mxu0 0.0
  %613 = vmatpush1.msra.mxu0 0.0
  %614 = vmatprep.subr.mxu0 0.0
  %615 = vmatpush1.msra.mxu0 0.0
  %616 = vmatprep.subr.mxu0 0.0
  %617 = vmatpush1.msra.mxu0 0.0
  %618 = vmatprep.mubr.f32.mxu0 0.0
  %619 = vmatmul.mubr.f32.gmra.mrb[0].mxu0 %v547
  %v620 = vpop.f32.mrb[0].mxu0
  %v621 = vadd.f32 0.0, %v620
  %v622 = vpop.f32.mrb[0].mxu0
  %v623 = vadd.f32 0.0, %v622
  %624 = vdwg.mxu0
  %v625 = vadd.s32 %v53, 4294967293
  %vm626 = vcmp.ge.s32.totalorder %v625, 0
  %vm627 = vcmp.lt.s32.totalorder %v625, 16
  %vm628 = vmand %vm626, %vm627
  %v629 = vsel %vm628, 1, 0
  %v630 = vlaneseq
  %v631 = vshrl.u32 %v630, 7
  %v632 = vsub.s32 0, %v631
  %v633 = vrot.slane %v629, %v632
  %v634 = vlaneseq
  %v635 = vshrl.u32 %v634, 7
  %v636 = vsub.s32 1, %v635
  %v637 = vrot.slane %v629, %v636
  %vm638 = vcmp.eq.s32.totalorder %v633, 1
  %vm639 = vcmp.eq.s32.totalorder %v637, 1
  %v640 = vsel %vm638, %v621, 0.0
  %v641 = vsel %vm639, %v623, 0.0
  %v642 = vadd.f32 %v533, %v640
  %v643 = vadd.f32 %v534, %v641
  %s644 = scalar_lea.vmem %s4, 20
  %v645 = vld [vmem:[%s644] sm:$0xf]
  %646 = vrot.lane.b32.xlu0 %v97, 2
  %v647 = vpop.permute.xlu0 %646
  %649 = vrot.lane.b32.xlu0 %v96, 2
  %v650 = vpop.permute.xlu0 %649
  %vm651 = vcmask 15360
  %v652 = vsel %vm651, %v650, %v647
  %v654 = vsel %vm651, %v647, %v650
  %v656 = vsel %vm110, %v645, 0
  %v659 = vsel %vm59, %v654, 0
  %v661 = vsel %vm59, %v652, 0
  %663 = vmatprep.subr.mxu0 %v661
  %664 = vmatpush1.msra.mxu0 %v659
  %665 = vmatprep.subr.mxu0 0.0
  %666 = vmatpush1.msra.mxu0 0.0
  %667 = vmatprep.subr.mxu0 0.0
  %668 = vmatpush1.msra.mxu0 0.0
  %669 = vmatprep.subr.mxu0 0.0
  %670 = vmatpush1.msra.mxu0 0.0
  %671 = vmatprep.subr.mxu0 0.0
  %672 = vmatpush1.msra.mxu0 0.0
  %673 = vmatprep.subr.mxu0 0.0
  %674 = vmatpush1.msra.mxu0 0.0
  %675 = vmatprep.subr.mxu0 0.0
  %676 = vmatpush1.msra.mxu0 0.0
  %677 = vmatprep.subr.mxu0 0.0
  %678 = vmatpush1.msra.mxu0 0.0
  %679 = vmatprep.subr.mxu0 0.0
  %680 = vmatpush1.msra.mxu0 0.0
  %681 = vmatprep.subr.mxu0 0.0
  %682 = vmatpush1.msra.mxu0 0.0
  %683 = vmatprep.subr.mxu0 0.0
  %684 = vmatpush1.msra.mxu0 0.0
  %685 = vmatprep.subr.mxu0 0.0
  %686 = vmatpush1.msra.mxu0 0.0
  %687 = vmatprep.subr.mxu0 0.0
  %688 = vmatpush1.msra.mxu0 0.0
  %689 = vmatprep.subr.mxu0 0.0
  %690 = vmatpush1.msra.mxu0 0.0
  %691 = vmatprep.subr.mxu0 0.0
  %692 = vmatpush1.msra.mxu0 0.0
  %693 = vmatprep.subr.mxu0 0.0
  %694 = vmatpush1.msra.mxu0 0.0
  %695 = vmatprep.subr.mxu0 0.0
  %696 = vmatpush1.msra.mxu0 0.0
  %697 = vmatprep.subr.mxu0 0.0
  %698 = vmatpush1.msra.mxu0 0.0
  %699 = vmatprep.subr.mxu0 0.0
  %700 = vmatpush1.msra.mxu0 0.0
  %701 = vmatprep.subr.mxu0 0.0
  %702 = vmatpush1.msra.mxu0 0.0
  %703 = vmatprep.subr.mxu0 0.0
  %704 = vmatpush1.msra.mxu0 0.0
  %705 = vmatprep.subr.mxu0 0.0
  %706 = vmatpush1.msra.mxu0 0.0
  %707 = vmatprep.subr.mxu0 0.0
  %708 = vmatpush1.msra.mxu0 0.0
  %709 = vmatprep.subr.mxu0 0.0
  %710 = vmatpush1.msra.mxu0 0.0
  %711 = vmatprep.subr.mxu0 0.0
  %712 = vmatpush1.msra.mxu0 0.0
  %713 = vmatprep.subr.mxu0 0.0
  %714 = vmatpush1.msra.mxu0 0.0
  %715 = vmatprep.subr.mxu0 0.0
  %716 = vmatpush1.msra.mxu0 0.0
  %717 = vmatprep.subr.mxu0 0.0
  %718 = vmatpush1.msra.mxu0 0.0
  %719 = vmatprep.subr.mxu0 0.0
  %720 = vmatpush1.msra.mxu0 0.0
  %721 = vmatprep.subr.mxu0 0.0
  %722 = vmatpush1.msra.mxu0 0.0
  %723 = vmatprep.subr.mxu0 0.0
  %724 = vmatpush1.msra.mxu0 0.0
  %725 = vmatprep.subr.mxu0 0.0
  %726 = vmatpush1.msra.mxu0 0.0
  %727 = vmatprep.mubr.f32.mxu0 0.0
  %728 = vmatmul.mubr.f32.gmra.mrb[0].mxu0 %v656
  %v729 = vpop.f32.mrb[0].mxu0
  %v730 = vadd.f32 0.0, %v729
  %v731 = vpop.f32.mrb[0].mxu0
  %v732 = vadd.f32 0.0, %v731
  %733 = vdwg.mxu0
  %v734 = vadd.s32 %v53, 4294967294
  %vm735 = vcmp.ge.s32.totalorder %v734, 0
  %vm736 = vcmp.lt.s32.totalorder %v734, 16
  %vm737 = vmand %vm735, %vm736
  %v738 = vsel %vm737, 1, 0
  %v739 = vlaneseq
  %v740 = vshrl.u32 %v739, 7
  %v741 = vsub.s32 0, %v740
  %v742 = vrot.slane %v738, %v741
  %v743 = vlaneseq
  %v744 = vshrl.u32 %v743, 7
  %v745 = vsub.s32 1, %v744
  %v746 = vrot.slane %v738, %v745
  %vm747 = vcmp.eq.s32.totalorder %v742, 1
  %vm748 = vcmp.eq.s32.totalorder %v746, 1
  %v749 = vsel %vm747, %v730, 0.0
  %v750 = vsel %vm748, %v732, 0.0
  %v751 = vadd.f32 %v642, %v749
  %v752 = vadd.f32 %v643, %v750
  %s753 = scalar_lea.vmem %s4, 24
  %v754 = vld [vmem:[%s753] sm:$0xf]
  %755 = vrot.lane.b32.xlu0 %v97, 1
  %v756 = vpop.permute.xlu0 %755
  %758 = vrot.lane.b32.xlu0 %v96, 1
  %v759 = vpop.permute.xlu0 %758
  %vm760 = vcmask 7168
  %v761 = vsel %vm760, %v759, %v756
  %v763 = vsel %vm760, %v756, %v759
  %v765 = vsel %vm110, %v754, 0
  %v768 = vsel %vm59, %v763, 0
  %v770 = vsel %vm59, %v761, 0
  %772 = vmatprep.subr.mxu0 %v770
  %773 = vmatpush1.msra.mxu0 %v768
  %774 = vmatprep.subr.mxu0 0.0
  %775 = vmatpush1.msra.mxu0 0.0
  %776 = vmatprep.subr.mxu0 0.0
  %777 = vmatpush1.msra.mxu0 0.0
  %778 = vmatprep.subr.mxu0 0.0
  %779 = vmatpush1.msra.mxu0 0.0
  %780 = vmatprep.subr.mxu0 0.0
  %781 = vmatpush1.msra.mxu0 0.0
  %782 = vmatprep.subr.mxu0 0.0
  %783 = vmatpush1.msra.mxu0 0.0
  %784 = vmatprep.subr.mxu0 0.0
  %785 = vmatpush1.msra.mxu0 0.0
  %786 = vmatprep.subr.mxu0 0.0
  %787 = vmatpush1.msra.mxu0 0.0
  %788 = vmatprep.subr.mxu0 0.0
  %789 = vmatpush1.msra.mxu0 0.0
  %790 = vmatprep.subr.mxu0 0.0
  %791 = vmatpush1.msra.mxu0 0.0
  %792 = vmatprep.subr.mxu0 0.0
  %793 = vmatpush1.msra.mxu0 0.0
  %794 = vmatprep.subr.mxu0 0.0
  %795 = vmatpush1.msra.mxu0 0.0
  %796 = vmatprep.subr.mxu0 0.0
  %797 = vmatpush1.msra.mxu0 0.0
  %798 = vmatprep.subr.mxu0 0.0
  %799 = vmatpush1.msra.mxu0 0.0
  %800 = vmatprep.subr.mxu0 0.0
  %801 = vmatpush1.msra.mxu0 0.0
  %802 = vmatprep.subr.mxu0 0.0
  %803 = vmatpush1.msra.mxu0 0.0
  %804 = vmatprep.subr.mxu0 0.0
  %805 = vmatpush1.msra.mxu0 0.0
  %806 = vmatprep.subr.mxu0 0.0
  %807 = vmatpush1.msra.mxu0 0.0
  %808 = vmatprep.subr.mxu0 0.0
  %809 = vmatpush1.msra.mxu0 0.0
  %810 = vmatprep.subr.mxu0 0.0
  %811 = vmatpush1.msra.mxu0 0.0
  %812 = vmatprep.subr.mxu0 0.0
  %813 = vmatpush1.msra.mxu0 0.0
  %814 = vmatprep.subr.mxu0 0.0
  %815 = vmatpush1.msra.mxu0 0.0
  %816 = vmatprep.subr.mxu0 0.0
  %817 = vmatpush1.msra.mxu0 0.0
  %818 = vmatprep.subr.mxu0 0.0
  %819 = vmatpush1.msra.mxu0 0.0
  %820 = vmatprep.subr.mxu0 0.0
  %821 = vmatpush1.msra.mxu0 0.0
  %822 = vmatprep.subr.mxu0 0.0
  %823 = vmatpush1.msra.mxu0 0.0
  %824 = vmatprep.subr.mxu0 0.0
  %825 = vmatpush1.msra.mxu0 0.0
  %826 = vmatprep.subr.mxu0 0.0
  %827 = vmatpush1.msra.mxu0 0.0
  %828 = vmatprep.subr.mxu0 0.0
  %829 = vmatpush1.msra.mxu0 0.0
  %830 = vmatprep.subr.mxu0 0.0
  %831 = vmatpush1.msra.mxu0 0.0
  %832 = vmatprep.subr.mxu0 0.0
  %833 = vmatpush1.msra.mxu0 0.0
  %834 = vmatprep.subr.mxu0 0.0
  %835 = vmatpush1.msra.mxu0 0.0
  %836 = vmatprep.mubr.f32.mxu0 0.0
  %837 = vmatmul.mubr.f32.gmra.mrb[0].mxu0 %v765
  %v838 = vpop.f32.mrb[0].mxu0
  %v839 = vadd.f32 0.0, %v838
  %v840 = vpop.f32.mrb[0].mxu0
  %v841 = vadd.f32 0.0, %v840
  %842 = vdwg.mxu0
  %v843 = vadd.s32 %v53, 4294967295
  %vm844 = vcmp.ge.s32.totalorder %v843, 0
  %vm845 = vcmp.lt.s32.totalorder %v843, 16
  %vm846 = vmand %vm844, %vm845
  %v847 = vsel %vm846, 1, 0
  %v848 = vlaneseq
  %v849 = vshrl.u32 %v848, 7
  %v850 = vsub.s32 0, %v849
  %v851 = vrot.slane %v847, %v850
  %v852 = vlaneseq
  %v853 = vshrl.u32 %v852, 7
  %v854 = vsub.s32 1, %v853
  %v855 = vrot.slane %v847, %v854
  %vm856 = vcmp.eq.s32.totalorder %v851, 1
  %vm857 = vcmp.eq.s32.totalorder %v855, 1
  %v858 = vsel %vm856, %v839, 0.0
  %v859 = vsel %vm857, %v841, 0.0
  %v860 = vadd.f32 %v751, %v858
  %v861 = vadd.f32 %v752, %v859
  %s862 = scalar_lea.vmem %s4, 28
  %v863 = vld [vmem:[%s862] sm:$0xf]
  %v865 = vsel %vm110, %v863, 0
  %v867 = vsel %vm59, %v96, 0
  %v869 = vsel %vm59, %v97, 0
  %871 = vmatprep.subr.mxu0 %v869
  %872 = vmatpush1.msra.mxu0 %v867
  %873 = vmatprep.subr.mxu0 0.0
  %874 = vmatpush1.msra.mxu0 0.0
  %875 = vmatprep.subr.mxu0 0.0
  %876 = vmatpush1.msra.mxu0 0.0
  %877 = vmatprep.subr.mxu0 0.0
  %878 = vmatpush1.msra.mxu0 0.0
  %879 = vmatprep.subr.mxu0 0.0
  %880 = vmatpush1.msra.mxu0 0.0
  %881 = vmatprep.subr.mxu0 0.0
  %882 = vmatpush1.msra.mxu0 0.0
  %883 = vmatprep.subr.mxu0 0.0
  %884 = vmatpush1.msra.mxu0 0.0
  %885 = vmatprep.subr.mxu0 0.0
  %886 = vmatpush1.msra.mxu0 0.0
  %887 = vmatprep.subr.mxu0 0.0
  %888 = vmatpush1.msra.mxu0 0.0
  %889 = vmatprep.subr.mxu0 0.0
  %890 = vmatpush1.msra.mxu0 0.0
  %891 = vmatprep.subr.mxu0 0.0
  %892 = vmatpush1.msra.mxu0 0.0
  %893 = vmatprep.subr.mxu0 0.0
  %894 = vmatpush1.msra.mxu0 0.0
  %895 = vmatprep.subr.mxu0 0.0
  %896 = vmatpush1.msra.mxu0 0.0
  %897 = vmatprep.subr.mxu0 0.0
  %898 = vmatpush1.msra.mxu0 0.0
  %899 = vmatprep.subr.mxu0 0.0
  %900 = vmatpush1.msra.mxu0 0.0
  %901 = vmatprep.subr.mxu0 0.0
  %902 = vmatpush1.msra.mxu0 0.0
  %903 = vmatprep.subr.mxu0 0.0
  %904 = vmatpush1.msra.mxu0 0.0
  %905 = vmatprep.subr.mxu0 0.0
  %906 = vmatpush1.msra.mxu0 0.0
  %907 = vmatprep.subr.mxu0 0.0
  %908 = vmatpush1.msra.mxu0 0.0
  %909 = vmatprep.subr.mxu0 0.0
  %910 = vmatpush1.msra.mxu0 0.0
  %911 = vmatprep.subr.mxu0 0.0
  %912 = vmatpush1.msra.mxu0 0.0
  %913 = vmatprep.subr.mxu0 0.0
  %914 = vmatpush1.msra.mxu0 0.0
  %915 = vmatprep.subr.mxu0 0.0
  %916 = vmatpush1.msra.mxu0 0.0
  %917 = vmatprep.subr.mxu0 0.0
  %918 = vmatpush1.msra.mxu0 0.0
  %919 = vmatprep.subr.mxu0 0.0
  %920 = vmatpush1.msra.mxu0 0.0
  %921 = vmatprep.subr.mxu0 0.0
  %922 = vmatpush1.msra.mxu0 0.0
  %923 = vmatprep.subr.mxu0 0.0
  %924 = vmatpush1.msra.mxu0 0.0
  %925 = vmatprep.subr.mxu0 0.0
  %926 = vmatpush1.msra.mxu0 0.0
  %927 = vmatprep.subr.mxu0 0.0
  %928 = vmatpush1.msra.mxu0 0.0
  %929 = vmatprep.subr.mxu0 0.0
  %930 = vmatpush1.msra.mxu0 0.0
  %931 = vmatprep.subr.mxu0 0.0
  %932 = vmatpush1.msra.mxu0 0.0
  %933 = vmatprep.subr.mxu0 0.0
  %934 = vmatpush1.msra.mxu0 0.0
  %935 = vmatprep.mubr.f32.mxu0 0.0
  %936 = vmatmul.mubr.f32.gmra.mrb[0].mxu0 %v865
  %v937 = vpop.f32.mrb[0].mxu0
  %v938 = vadd.f32 0.0, %v937
  %v939 = vpop.f32.mrb[0].mxu0
  %v940 = vadd.f32 0.0, %v939
  %941 = vdwg.mxu0
  %v942 = vadd.f32 %v860, %v938
  %v943 = vadd.f32 %v861, %v940
  %s944 = scalar_lea.vmem %s4, 32
  %v945 = vld [vmem:[%s944] sm:$0xf]
  %946 = vrot.lane.b32.xlu0 %v96, 127
  %v947 = vpop.permute.xlu0 %946
  %948 = vrot.lane.b32.xlu0 %v97, 127
  %v949 = vpop.permute.xlu0 %948
  %vm950 = vcmask 1039360
  %v951 = vsel %vm950, %v947, %v949
  %v954 = vsel %vm950, %v949, %v947
  %v956 = vsel %vm110, %v945, 0
  %v958 = vsel %vm59, %v951, 0
  %v961 = vsel %vm59, %v954, 0
  %963 = vmatprep.subr.mxu0 %v961
  %964 = vmatpush1.msra.mxu0 %v958
  %965 = vmatprep.subr.mxu0 0.0
  %966 = vmatpush1.msra.mxu0 0.0
  %967 = vmatprep.subr.mxu0 0.0
  %968 = vmatpush1.msra.mxu0 0.0
  %969 = vmatprep.subr.mxu0 0.0
  %970 = vmatpush1.msra.mxu0 0.0
  %971 = vmatprep.subr.mxu0 0.0
  %972 = vmatpush1.msra.mxu0 0.0
  %973 = vmatprep.subr.mxu0 0.0
  %974 = vmatpush1.msra.mxu0 0.0
  %975 = vmatprep.subr.mxu0 0.0
  %976 = vmatpush1.msra.mxu0 0.0
  %977 = vmatprep.subr.mxu0 0.0
  %978 = vmatpush1.msra.mxu0 0.0
  %979 = vmatprep.subr.mxu0 0.0
  %980 = vmatpush1.msra.mxu0 0.0
  %981 = vmatprep.subr.mxu0 0.0
  %982 = vmatpush1.msra.mxu0 0.0
  %983 = vmatprep.subr.mxu0 0.0
  %984 = vmatpush1.msra.mxu0 0.0
  %985 = vmatprep.subr.mxu0 0.0
  %986 = vmatpush1.msra.mxu0 0.0
  %987 = vmatprep.subr.mxu0 0.0
  %988 = vmatpush1.msra.mxu0 0.0
  %989 = vmatprep.subr.mxu0 0.0
  %990 = vmatpush1.msra.mxu0 0.0
  %991 = vmatprep.subr.mxu0 0.0
  %992 = vmatpush1.msra.mxu0 0.0
  %993 = vmatprep.subr.mxu0 0.0
  %994 = vmatpush1.msra.mxu0 0.0
  %995 = vmatprep.subr.mxu0 0.0
  %996 = vmatpush1.msra.mxu0 0.0
  %997 = vmatprep.subr.mxu0 0.0
  %998 = vmatpush1.msra.mxu0 0.0
  %999 = vmatprep.subr.mxu0 0.0
  %1000 = vmatpush1.msra.mxu0 0.0
  %1001 = vmatprep.subr.mxu0 0.0
  %1002 = vmatpush1.msra.mxu0 0.0
  %1003 = vmatprep.subr.mxu0 0.0
  %1004 = vmatpush1.msra.mxu0 0.0
  %1005 = vmatprep.subr.mxu0 0.0
  %1006 = vmatpush1.msra.mxu0 0.0
  %1007 = vmatprep.subr.mxu0 0.0
  %1008 = vmatpush1.msra.mxu0 0.0
  %1009 = vmatprep.subr.mxu0 0.0
  %1010 = vmatpush1.msra.mxu0 0.0
  %1011 = vmatprep.subr.mxu0 0.0
  %1012 = vmatpush1.msra.mxu0 0.0
  %1013 = vmatprep.subr.mxu0 0.0
  %1014 = vmatpush1.msra.mxu0 0.0
  %1015 = vmatprep.subr.mxu0 0.0
  %1016 = vmatpush1.msra.mxu0 0.0
  %1017 = vmatprep.subr.mxu0 0.0
  %1018 = vmatpush1.msra.mxu0 0.0
  %1019 = vmatprep.subr.mxu0 0.0
  %1020 = vmatpush1.msra.mxu0 0.0
  %1021 = vmatprep.subr.mxu0 0.0
  %1022 = vmatpush1.msra.mxu0 0.0
  %1023 = vmatprep.subr.mxu0 0.0
  %1024 = vmatpush1.msra.mxu0 0.0
  %1025 = vmatprep.subr.mxu0 0.0
  %1026 = vmatpush1.msra.mxu0 0.0
  %1027 = vmatprep.mubr.f32.mxu0 0.0
  %1028 = vmatmul.mubr.f32.gmra.mrb[0].mxu0 %v956
  %v1029 = vpop.f32.mrb[0].mxu0
  %v1030 = vadd.f32 0.0, %v1029
  %v1031 = vpop.f32.mrb[0].mxu0
  %v1032 = vadd.f32 0.0, %v1031
  %1033 = vdwg.mxu0
  %v1034 = vadd.s32 %v53, 1
  %vm1035 = vcmp.ge.s32.totalorder %v1034, 0
  %vm1036 = vcmp.lt.s32.totalorder %v1034, 16
  %vm1037 = vmand %vm1035, %vm1036
  %v1038 = vsel %vm1037, 1, 0
  %v1039 = vlaneseq
  %v1040 = vshrl.u32 %v1039, 7
  %v1041 = vsub.s32 0, %v1040
  %v1042 = vrot.slane %v1038, %v1041
  %v1043 = vlaneseq
  %v1044 = vshrl.u32 %v1043, 7
  %v1045 = vsub.s32 1, %v1044
  %v1046 = vrot.slane %v1038, %v1045
  %vm1047 = vcmp.eq.s32.totalorder %v1042, 1
  %vm1048 = vcmp.eq.s32.totalorder %v1046, 1
  %v1049 = vsel %vm1047, %v1030, 0.0
  %v1050 = vsel %vm1048, %v1032, 0.0
  %v1051 = vadd.f32 %v942, %v1049
  %v1052 = vadd.f32 %v943, %v1050
  %s1053 = scalar_lea.vmem %s4, 36
  %v1054 = vld [vmem:[%s1053] sm:$0xf]
  %1055 = vrot.lane.b32.xlu0 %v96, 126
  %v1056 = vpop.permute.xlu0 %1055
  %1057 = vrot.lane.b32.xlu0 %v97, 126
  %v1058 = vpop.permute.xlu0 %1057
  %vm1059 = vcmask 1031168
  %v1060 = vsel %vm1059, %v1056, %v1058
  %v1063 = vsel %vm1059, %v1058, %v1056
  %v1065 = vsel %vm110, %v1054, 0
  %v1067 = vsel %vm59, %v1060, 0
  %v1070 = vsel %vm59, %v1063, 0
  %1072 = vmatprep.subr.mxu0 %v1070
  %1073 = vmatpush1.msra.mxu0 %v1067
  %1074 = vmatprep.subr.mxu0 0.0
  %1075 = vmatpush1.msra.mxu0 0.0
  %1076 = vmatprep.subr.mxu0 0.0
  %1077 = vmatpush1.msra.mxu0 0.0
  %1078 = vmatprep.subr.mxu0 0.0
  %1079 = vmatpush1.msra.mxu0 0.0
  %1080 = vmatprep.subr.mxu0 0.0
  %1081 = vmatpush1.msra.mxu0 0.0
  %1082 = vmatprep.subr.mxu0 0.0
  %1083 = vmatpush1.msra.mxu0 0.0
  %1084 = vmatprep.subr.mxu0 0.0
  %1085 = vmatpush1.msra.mxu0 0.0
  %1086 = vmatprep.subr.mxu0 0.0
  %1087 = vmatpush1.msra.mxu0 0.0
  %1088 = vmatprep.subr.mxu0 0.0
  %1089 = vmatpush1.msra.mxu0 0.0
  %1090 = vmatprep.subr.mxu0 0.0
  %1091 = vmatpush1.msra.mxu0 0.0
  %1092 = vmatprep.subr.mxu0 0.0
  %1093 = vmatpush1.msra.mxu0 0.0
  %1094 = vmatprep.subr.mxu0 0.0
  %1095 = vmatpush1.msra.mxu0 0.0
  %1096 = vmatprep.subr.mxu0 0.0
  %1097 = vmatpush1.msra.mxu0 0.0
  %1098 = vmatprep.subr.mxu0 0.0
  %1099 = vmatpush1.msra.mxu0 0.0
  %1100 = vmatprep.subr.mxu0 0.0
  %1101 = vmatpush1.msra.mxu0 0.0
  %1102 = vmatprep.subr.mxu0 0.0
  %1103 = vmatpush1.msra.mxu0 0.0
  %1104 = vmatprep.subr.mxu0 0.0
  %1105 = vmatpush1.msra.mxu0 0.0
  %1106 = vmatprep.subr.mxu0 0.0
  %1107 = vmatpush1.msra.mxu0 0.0
  %1108 = vmatprep.subr.mxu0 0.0
  %1109 = vmatpush1.msra.mxu0 0.0
  %1110 = vmatprep.subr.mxu0 0.0
  %1111 = vmatpush1.msra.mxu0 0.0
  %1112 = vmatprep.subr.mxu0 0.0
  %1113 = vmatpush1.msra.mxu0 0.0
  %1114 = vmatprep.subr.mxu0 0.0
  %1115 = vmatpush1.msra.mxu0 0.0
  %1116 = vmatprep.subr.mxu0 0.0
  %1117 = vmatpush1.msra.mxu0 0.0
  %1118 = vmatprep.subr.mxu0 0.0
  %1119 = vmatpush1.msra.mxu0 0.0
  %1120 = vmatprep.subr.mxu0 0.0
  %1121 = vmatpush1.msra.mxu0 0.0
  %1122 = vmatprep.subr.mxu0 0.0
  %1123 = vmatpush1.msra.mxu0 0.0
  %1124 = vmatprep.subr.mxu0 0.0
  %1125 = vmatpush1.msra.mxu0 0.0
  %1126 = vmatprep.subr.mxu0 0.0
  %1127 = vmatpush1.msra.mxu0 0.0
  %1128 = vmatprep.subr.mxu0 0.0
  %1129 = vmatpush1.msra.mxu0 0.0
  %1130 = vmatprep.subr.mxu0 0.0
  %1131 = vmatpush1.msra.mxu0 0.0
  %1132 = vmatprep.subr.mxu0 0.0
  %1133 = vmatpush1.msra.mxu0 0.0
  %1134 = vmatprep.subr.mxu0 0.0
  %1135 = vmatpush1.msra.mxu0 0.0
  %1136 = vmatprep.mubr.f32.mxu0 0.0
  %1137 = vmatmul.mubr.f32.gmra.mrb[0].mxu0 %v1065
  %v1138 = vpop.f32.mrb[0].mxu0
  %v1139 = vadd.f32 0.0, %v1138
  %v1140 = vpop.f32.mrb[0].mxu0
  %v1141 = vadd.f32 0.0, %v1140
  %1142 = vdwg.mxu0
  %v1143 = vadd.s32 %v53, 2
  %vm1144 = vcmp.ge.s32.totalorder %v1143, 0
  %vm1145 = vcmp.lt.s32.totalorder %v1143, 16
  %vm1146 = vmand %vm1144, %vm1145
  %v1147 = vsel %vm1146, 1, 0
  %v1148 = vlaneseq
  %v1149 = vshrl.u32 %v1148, 7
  %v1150 = vsub.s32 0, %v1149
  %v1151 = vrot.slane %v1147, %v1150
  %v1152 = vlaneseq
  %v1153 = vshrl.u32 %v1152, 7
  %v1154 = vsub.s32 1, %v1153
  %v1155 = vrot.slane %v1147, %v1154
  %vm1156 = vcmp.eq.s32.totalorder %v1151, 1
  %vm1157 = vcmp.eq.s32.totalorder %v1155, 1
  %v1158 = vsel %vm1156, %v1139, 0.0
  %v1159 = vsel %vm1157, %v1141, 0.0
  %v1160 = vadd.f32 %v1051, %v1158
  %v1161 = vadd.f32 %v1052, %v1159
  %s1162 = scalar_lea.vmem %s4, 40
  %v1163 = vld [vmem:[%s1162] sm:$0xf]
  %1164 = vrot.lane.b32.xlu0 %v96, 125
  %v1165 = vpop.permute.xlu0 %1164
  %1166 = vrot.lane.b32.xlu0 %v97, 125
  %v1167 = vpop.permute.xlu0 %1166
  %vm1168 = vcmask 1022976
  %v1169 = vsel %vm1168, %v1165, %v1167
  %v1172 = vsel %vm1168, %v1167, %v1165
  %v1174 = vsel %vm110, %v1163, 0
  %v1176 = vsel %vm59, %v1169, 0
  %v1179 = vsel %vm59, %v1172, 0
  %1181 = vmatprep.subr.mxu0 %v1179
  %1182 = vmatpush1.msra.mxu0 %v1176
  %1183 = vmatprep.subr.mxu0 0.0
  %1184 = vmatpush1.msra.mxu0 0.0
  %1185 = vmatprep.subr.mxu0 0.0
  %1186 = vmatpush1.msra.mxu0 0.0
  %1187 = vmatprep.subr.mxu0 0.0
  %1188 = vmatpush1.msra.mxu0 0.0
  %1189 = vmatprep.subr.mxu0 0.0
  %1190 = vmatpush1.msra.mxu0 0.0
  %1191 = vmatprep.subr.mxu0 0.0
  %1192 = vmatpush1.msra.mxu0 0.0
  %1193 = vmatprep.subr.mxu0 0.0
  %1194 = vmatpush1.msra.mxu0 0.0
  %1195 = vmatprep.subr.mxu0 0.0
  %1196 = vmatpush1.msra.mxu0 0.0
  %1197 = vmatprep.subr.mxu0 0.0
  %1198 = vmatpush1.msra.mxu0 0.0
  %1199 = vmatprep.subr.mxu0 0.0
  %1200 = vmatpush1.msra.mxu0 0.0
  %1201 = vmatprep.subr.mxu0 0.0
  %1202 = vmatpush1.msra.mxu0 0.0
  %1203 = vmatprep.subr.mxu0 0.0
  %1204 = vmatpush1.msra.mxu0 0.0
  %1205 = vmatprep.subr.mxu0 0.0
  %1206 = vmatpush1.msra.mxu0 0.0
  %1207 = vmatprep.subr.mxu0 0.0
  %1208 = vmatpush1.msra.mxu0 0.0
  %1209 = vmatprep.subr.mxu0 0.0
  %1210 = vmatpush1.msra.mxu0 0.0
  %1211 = vmatprep.subr.mxu0 0.0
  %1212 = vmatpush1.msra.mxu0 0.0
  %1213 = vmatprep.subr.mxu0 0.0
  %1214 = vmatpush1.msra.mxu0 0.0
  %1215 = vmatprep.subr.mxu0 0.0
  %1216 = vmatpush1.msra.mxu0 0.0
  %1217 = vmatprep.subr.mxu0 0.0
  %1218 = vmatpush1.msra.mxu0 0.0
  %1219 = vmatprep.subr.mxu0 0.0
  %1220 = vmatpush1.msra.mxu0 0.0
  %1221 = vmatprep.subr.mxu0 0.0
  %1222 = vmatpush1.msra.mxu0 0.0
  %1223 = vmatprep.subr.mxu0 0.0
  %1224 = vmatpush1.msra.mxu0 0.0
  %1225 = vmatprep.subr.mxu0 0.0
  %1226 = vmatpush1.msra.mxu0 0.0
  %1227 = vmatprep.subr.mxu0 0.0
  %1228 = vmatpush1.msra.mxu0 0.0
  %1229 = vmatprep.subr.mxu0 0.0
  %1230 = vmatpush1.msra.mxu0 0.0
  %1231 = vmatprep.subr.mxu0 0.0
  %1232 = vmatpush1.msra.mxu0 0.0
  %1233 = vmatprep.subr.mxu0 0.0
  %1234 = vmatpush1.msra.mxu0 0.0
  %1235 = vmatprep.subr.mxu0 0.0
  %1236 = vmatpush1.msra.mxu0 0.0
  %1237 = vmatprep.subr.mxu0 0.0
  %1238 = vmatpush1.msra.mxu0 0.0
  %1239 = vmatprep.subr.mxu0 0.0
  %1240 = vmatpush1.msra.mxu0 0.0
  %1241 = vmatprep.subr.mxu0 0.0
  %1242 = vmatpush1.msra.mxu0 0.0
  %1243 = vmatprep.subr.mxu0 0.0
  %1244 = vmatpush1.msra.mxu0 0.0
  %1245 = vmatprep.mubr.f32.mxu0 0.0
  %1246 = vmatmul.mubr.f32.gmra.mrb[0].mxu0 %v1174
  %v1247 = vpop.f32.mrb[0].mxu0
  %v1248 = vadd.f32 0.0, %v1247
  %v1249 = vpop.f32.mrb[0].mxu0
  %v1250 = vadd.f32 0.0, %v1249
  %1251 = vdwg.mxu0
  %v1252 = vadd.s32 %v53, 3
  %vm1253 = vcmp.ge.s32.totalorder %v1252, 0
  %vm1254 = vcmp.lt.s32.totalorder %v1252, 16
  %vm1255 = vmand %vm1253, %vm1254
  %v1256 = vsel %vm1255, 1, 0
  %v1257 = vlaneseq
  %v1258 = vshrl.u32 %v1257, 7
  %v1259 = vsub.s32 0, %v1258
  %v1260 = vrot.slane %v1256, %v1259
  %v1261 = vlaneseq
  %v1262 = vshrl.u32 %v1261, 7
  %v1263 = vsub.s32 1, %v1262
  %v1264 = vrot.slane %v1256, %v1263
  %vm1265 = vcmp.eq.s32.totalorder %v1260, 1
  %vm1266 = vcmp.eq.s32.totalorder %v1264, 1
  %v1267 = vsel %vm1265, %v1248, 0.0
  %v1268 = vsel %vm1266, %v1250, 0.0
  %v1269 = vadd.f32 %v1160, %v1267
  %v1270 = vadd.f32 %v1161, %v1268
  %s1271 = scalar_lea.vmem %s4, 44
  %v1272 = vld [vmem:[%s1271] sm:$0xf]
  %1273 = vrot.lane.b32.xlu0 %v96, 124
  %v1274 = vpop.permute.xlu0 %1273
  %1275 = vrot.lane.b32.xlu0 %v97, 124
  %v1276 = vpop.permute.xlu0 %1275
  %vm1277 = vcmask 1014784
  %v1278 = vsel %vm1277, %v1274, %v1276
  %v1281 = vsel %vm1277, %v1276, %v1274
  %v1283 = vsel %vm110, %v1272, 0
  %v1285 = vsel %vm59, %v1278, 0
  %v1288 = vsel %vm59, %v1281, 0
  %1290 = vmatprep.subr.mxu0 %v1288
  %1291 = vmatpush1.msra.mxu0 %v1285
  %1292 = vmatprep.subr.mxu0 0.0
  %1293 = vmatpush1.msra.mxu0 0.0
  %1294 = vmatprep.subr.mxu0 0.0
  %1295 = vmatpush1.msra.mxu0 0.0
  %1296 = vmatprep.subr.mxu0 0.0
  %1297 = vmatpush1.msra.mxu0 0.0
  %1298 = vmatprep.subr.mxu0 0.0
  %1299 = vmatpush1.msra.mxu0 0.0
  %1300 = vmatprep.subr.mxu0 0.0
  %1301 = vmatpush1.msra.mxu0 0.0
  %1302 = vmatprep.subr.mxu0 0.0
  %1303 = vmatpush1.msra.mxu0 0.0
  %1304 = vmatprep.subr.mxu0 0.0
  %1305 = vmatpush1.msra.mxu0 0.0
  %1306 = vmatprep.subr.mxu0 0.0
  %1307 = vmatpush1.msra.mxu0 0.0
  %1308 = vmatprep.subr.mxu0 0.0
  %1309 = vmatpush1.msra.mxu0 0.0
  %1310 = vmatprep.subr.mxu0 0.0
  %1311 = vmatpush1.msra.mxu0 0.0
  %1312 = vmatprep.subr.mxu0 0.0
  %1313 = vmatpush1.msra.mxu0 0.0
  %1314 = vmatprep.subr.mxu0 0.0
  %1315 = vmatpush1.msra.mxu0 0.0
  %1316 = vmatprep.subr.mxu0 0.0
  %1317 = vmatpush1.msra.mxu0 0.0
  %1318 = vmatprep.subr.mxu0 0.0
  %1319 = vmatpush1.msra.mxu0 0.0
  %1320 = vmatprep.subr.mxu0 0.0
  %1321 = vmatpush1.msra.mxu0 0.0
  %1322 = vmatprep.subr.mxu0 0.0
  %1323 = vmatpush1.msra.mxu0 0.0
  %1324 = vmatprep.subr.mxu0 0.0
  %1325 = vmatpush1.msra.mxu0 0.0
  %1326 = vmatprep.subr.mxu0 0.0
  %1327 = vmatpush1.msra.mxu0 0.0
  %1328 = vmatprep.subr.mxu0 0.0
  %1329 = vmatpush1.msra.mxu0 0.0
  %1330 = vmatprep.subr.mxu0 0.0
  %1331 = vmatpush1.msra.mxu0 0.0
  %1332 = vmatprep.subr.mxu0 0.0
  %1333 = vmatpush1.msra.mxu0 0.0
  %1334 = vmatprep.subr.mxu0 0.0
  %1335 = vmatpush1.msra.mxu0 0.0
  %1336 = vmatprep.subr.mxu0 0.0
  %1337 = vmatpush1.msra.mxu0 0.0
  %1338 = vmatprep.subr.mxu0 0.0
  %1339 = vmatpush1.msra.mxu0 0.0
  %1340 = vmatprep.subr.mxu0 0.0
  %1341 = vmatpush1.msra.mxu0 0.0
  %1342 = vmatprep.subr.mxu0 0.0
  %1343 = vmatpush1.msra.mxu0 0.0
  %1344 = vmatprep.subr.mxu0 0.0
  %1345 = vmatpush1.msra.mxu0 0.0
  %1346 = vmatprep.subr.mxu0 0.0
  %1347 = vmatpush1.msra.mxu0 0.0
  %1348 = vmatprep.subr.mxu0 0.0
  %1349 = vmatpush1.msra.mxu0 0.0
  %1350 = vmatprep.subr.mxu0 0.0
  %1351 = vmatpush1.msra.mxu0 0.0
  %1352 = vmatprep.subr.mxu0 0.0
  %1353 = vmatpush1.msra.mxu0 0.0
  %1354 = vmatprep.mubr.f32.mxu0 0.0
  %1355 = vmatmul.mubr.f32.gmra.mrb[0].mxu0 %v1283
  %v1356 = vpop.f32.mrb[0].mxu0
  %v1357 = vadd.f32 0.0, %v1356
  %v1358 = vpop.f32.mrb[0].mxu0
  %v1359 = vadd.f32 0.0, %v1358
  %1360 = vdwg.mxu0
  %v1361 = vadd.s32 %v53, 4
  %vm1362 = vcmp.ge.s32.totalorder %v1361, 0
  %vm1363 = vcmp.lt.s32.totalorder %v1361, 16
  %vm1364 = vmand %vm1362, %vm1363
  %v1365 = vsel %vm1364, 1, 0
  %v1366 = vlaneseq
  %v1367 = vshrl.u32 %v1366, 7
  %v1368 = vsub.s32 0, %v1367
  %v1369 = vrot.slane %v1365, %v1368
  %v1370 = vlaneseq
  %v1371 = vshrl.u32 %v1370, 7
  %v1372 = vsub.s32 1, %v1371
  %v1373 = vrot.slane %v1365, %v1372
  %vm1374 = vcmp.eq.s32.totalorder %v1369, 1
  %vm1375 = vcmp.eq.s32.totalorder %v1373, 1
  %v1376 = vsel %vm1374, %v1357, 0.0
  %v1377 = vsel %vm1375, %v1359, 0.0
  %v1378 = vadd.f32 %v1269, %v1376
  %v1379 = vadd.f32 %v1270, %v1377
  %s1380 = scalar_lea.vmem %s4, 48
  %v1381 = vld [vmem:[%s1380] sm:$0xf]
  %1382 = vrot.lane.b32.xlu0 %v96, 123
  %v1383 = vpop.permute.xlu0 %1382
  %1384 = vrot.lane.b32.xlu0 %v97, 123
  %v1385 = vpop.permute.xlu0 %1384
  %vm1386 = vcmask 1006592
  %v1387 = vsel %vm1386, %v1383, %v1385
  %v1390 = vsel %vm1386, %v1385, %v1383
  %v1392 = vsel %vm110, %v1381, 0
  %v1394 = vsel %vm59, %v1387, 0
  %v1397 = vsel %vm59, %v1390, 0
  %1399 = vmatprep.subr.mxu0 %v1397
  %1400 = vmatpush1.msra.mxu0 %v1394
  %1401 = vmatprep.subr.mxu0 0.0
  %1402 = vmatpush1.msra.mxu0 0.0
  %1403 = vmatprep.subr.mxu0 0.0
  %1404 = vmatpush1.msra.mxu0 0.0
  %1405 = vmatprep.subr.mxu0 0.0
  %1406 = vmatpush1.msra.mxu0 0.0
  %1407 = vmatprep.subr.mxu0 0.0
  %1408 = vmatpush1.msra.mxu0 0.0
  %1409 = vmatprep.subr.mxu0 0.0
  %1410 = vmatpush1.msra.mxu0 0.0
  %1411 = vmatprep.subr.mxu0 0.0
  %1412 = vmatpush1.msra.mxu0 0.0
  %1413 = vmatprep.subr.mxu0 0.0
  %1414 = vmatpush1.msra.mxu0 0.0
  %1415 = vmatprep.subr.mxu0 0.0
  %1416 = vmatpush1.msra.mxu0 0.0
  %1417 = vmatprep.subr.mxu0 0.0
  %1418 = vmatpush1.msra.mxu0 0.0
  %1419 = vmatprep.subr.mxu0 0.0
  %1420 = vmatpush1.msra.mxu0 0.0
  %1421 = vmatprep.subr.mxu0 0.0
  %1422 = vmatpush1.msra.mxu0 0.0
  %1423 = vmatprep.subr.mxu0 0.0
  %1424 = vmatpush1.msra.mxu0 0.0
  %1425 = vmatprep.subr.mxu0 0.0
  %1426 = vmatpush1.msra.mxu0 0.0
  %1427 = vmatprep.subr.mxu0 0.0
  %1428 = vmatpush1.msra.mxu0 0.0
  %1429 = vmatprep.subr.mxu0 0.0
  %1430 = vmatpush1.msra.mxu0 0.0
  %1431 = vmatprep.subr.mxu0 0.0
  %1432 = vmatpush1.msra.mxu0 0.0
  %1433 = vmatprep.subr.mxu0 0.0
  %1434 = vmatpush1.msra.mxu0 0.0
  %1435 = vmatprep.subr.mxu0 0.0
  %1436 = vmatpush1.msra.mxu0 0.0
  %1437 = vmatprep.subr.mxu0 0.0
  %1438 = vmatpush1.msra.mxu0 0.0
  %1439 = vmatprep.subr.mxu0 0.0
  %1440 = vmatpush1.msra.mxu0 0.0
  %1441 = vmatprep.subr.mxu0 0.0
  %1442 = vmatpush1.msra.mxu0 0.0
  %1443 = vmatprep.subr.mxu0 0.0
  %1444 = vmatpush1.msra.mxu0 0.0
  %1445 = vmatprep.subr.mxu0 0.0
  %1446 = vmatpush1.msra.mxu0 0.0
  %1447 = vmatprep.subr.mxu0 0.0
  %1448 = vmatpush1.msra.mxu0 0.0
  %1449 = vmatprep.subr.mxu0 0.0
  %1450 = vmatpush1.msra.mxu0 0.0
  %1451 = vmatprep.subr.mxu0 0.0
  %1452 = vmatpush1.msra.mxu0 0.0
  %1453 = vmatprep.subr.mxu0 0.0
  %1454 = vmatpush1.msra.mxu0 0.0
  %1455 = vmatprep.subr.mxu0 0.0
  %1456 = vmatpush1.msra.mxu0 0.0
  %1457 = vmatprep.subr.mxu0 0.0
  %1458 = vmatpush1.msra.mxu0 0.0
  %1459 = vmatprep.subr.mxu0 0.0
  %1460 = vmatpush1.msra.mxu0 0.0
  %1461 = vmatprep.subr.mxu0 0.0
  %1462 = vmatpush1.msra.mxu0 0.0
  %1463 = vmatprep.mubr.f32.mxu0 0.0
  %1464 = vmatmul.mubr.f32.gmra.mrb[0].mxu0 %v1392
  %v1465 = vpop.f32.mrb[0].mxu0
  %v1466 = vadd.f32 0.0, %v1465
  %v1467 = vpop.f32.mrb[0].mxu0
  %v1468 = vadd.f32 0.0, %v1467
  %1469 = vdwg.mxu0
  %v1470 = vadd.s32 %v53, 5
  %vm1471 = vcmp.ge.s32.totalorder %v1470, 0
  %vm1472 = vcmp.lt.s32.totalorder %v1470, 16
  %vm1473 = vmand %vm1471, %vm1472
  %v1474 = vsel %vm1473, 1, 0
  %v1475 = vlaneseq
  %v1476 = vshrl.u32 %v1475, 7
  %v1477 = vsub.s32 0, %v1476
  %v1478 = vrot.slane %v1474, %v1477
  %v1479 = vlaneseq
  %v1480 = vshrl.u32 %v1479, 7
  %v1481 = vsub.s32 1, %v1480
  %v1482 = vrot.slane %v1474, %v1481
  %vm1483 = vcmp.eq.s32.totalorder %v1478, 1
  %vm1484 = vcmp.eq.s32.totalorder %v1482, 1
  %v1485 = vsel %vm1483, %v1466, 0.0
  %v1486 = vsel %vm1484, %v1468, 0.0
  %v1487 = vadd.f32 %v1378, %v1485
  %v1488 = vadd.f32 %v1379, %v1486
  %s1489 = scalar_lea.vmem %s4, 52
  %v1490 = vld [vmem:[%s1489] sm:$0xf]
  %1491 = vrot.lane.b32.xlu0 %v96, 122
  %v1492 = vpop.permute.xlu0 %1491
  %1493 = vrot.lane.b32.xlu0 %v97, 122
  %v1494 = vpop.permute.xlu0 %1493
  %vm1495 = vcmask 998400
  %v1496 = vsel %vm1495, %v1492, %v1494
  %v1499 = vsel %vm1495, %v1494, %v1492
  %v1501 = vsel %vm110, %v1490, 0
  %v1503 = vsel %vm59, %v1496, 0
  %v1506 = vsel %vm59, %v1499, 0
  %1508 = vmatprep.subr.mxu0 %v1506
  %1509 = vmatpush1.msra.mxu0 %v1503
  %1510 = vmatprep.subr.mxu0 0.0
  %1511 = vmatpush1.msra.mxu0 0.0
  %1512 = vmatprep.subr.mxu0 0.0
  %1513 = vmatpush1.msra.mxu0 0.0
  %1514 = vmatprep.subr.mxu0 0.0
  %1515 = vmatpush1.msra.mxu0 0.0
  %1516 = vmatprep.subr.mxu0 0.0
  %1517 = vmatpush1.msra.mxu0 0.0
  %1518 = vmatprep.subr.mxu0 0.0
  %1519 = vmatpush1.msra.mxu0 0.0
  %1520 = vmatprep.subr.mxu0 0.0
  %1521 = vmatpush1.msra.mxu0 0.0
  %1522 = vmatprep.subr.mxu0 0.0
  %1523 = vmatpush1.msra.mxu0 0.0
  %1524 = vmatprep.subr.mxu0 0.0
  %1525 = vmatpush1.msra.mxu0 0.0
  %1526 = vmatprep.subr.mxu0 0.0
  %1527 = vmatpush1.msra.mxu0 0.0
  %1528 = vmatprep.subr.mxu0 0.0
  %1529 = vmatpush1.msra.mxu0 0.0
  %1530 = vmatprep.subr.mxu0 0.0
  %1531 = vmatpush1.msra.mxu0 0.0
  %1532 = vmatprep.subr.mxu0 0.0
  %1533 = vmatpush1.msra.mxu0 0.0
  %1534 = vmatprep.subr.mxu0 0.0
  %1535 = vmatpush1.msra.mxu0 0.0
  %1536 = vmatprep.subr.mxu0 0.0
  %1537 = vmatpush1.msra.mxu0 0.0
  %1538 = vmatprep.subr.mxu0 0.0
  %1539 = vmatpush1.msra.mxu0 0.0
  %1540 = vmatprep.subr.mxu0 0.0
  %1541 = vmatpush1.msra.mxu0 0.0
  %1542 = vmatprep.subr.mxu0 0.0
  %1543 = vmatpush1.msra.mxu0 0.0
  %1544 = vmatprep.subr.mxu0 0.0
  %1545 = vmatpush1.msra.mxu0 0.0
  %1546 = vmatprep.subr.mxu0 0.0
  %1547 = vmatpush1.msra.mxu0 0.0
  %1548 = vmatprep.subr.mxu0 0.0
  %1549 = vmatpush1.msra.mxu0 0.0
  %1550 = vmatprep.subr.mxu0 0.0
  %1551 = vmatpush1.msra.mxu0 0.0
  %1552 = vmatprep.subr.mxu0 0.0
  %1553 = vmatpush1.msra.mxu0 0.0
  %1554 = vmatprep.subr.mxu0 0.0
  %1555 = vmatpush1.msra.mxu0 0.0
  %1556 = vmatprep.subr.mxu0 0.0
  %1557 = vmatpush1.msra.mxu0 0.0
  %1558 = vmatprep.subr.mxu0 0.0
  %1559 = vmatpush1.msra.mxu0 0.0
  %1560 = vmatprep.subr.mxu0 0.0
  %1561 = vmatpush1.msra.mxu0 0.0
  %1562 = vmatprep.subr.mxu0 0.0
  %1563 = vmatpush1.msra.mxu0 0.0
  %1564 = vmatprep.subr.mxu0 0.0
  %1565 = vmatpush1.msra.mxu0 0.0
  %1566 = vmatprep.subr.mxu0 0.0
  %1567 = vmatpush1.msra.mxu0 0.0
  %1568 = vmatprep.subr.mxu0 0.0
  %1569 = vmatpush1.msra.mxu0 0.0
  %1570 = vmatprep.subr.mxu0 0.0
  %1571 = vmatpush1.msra.mxu0 0.0
  %1572 = vmatprep.mubr.f32.mxu0 0.0
  %1573 = vmatmul.mubr.f32.gmra.mrb[0].mxu0 %v1501
  %v1574 = vpop.f32.mrb[0].mxu0
  %v1575 = vadd.f32 0.0, %v1574
  %v1576 = vpop.f32.mrb[0].mxu0
  %v1577 = vadd.f32 0.0, %v1576
  %1578 = vdwg.mxu0
  %v1579 = vadd.s32 %v53, 6
  %vm1580 = vcmp.ge.s32.totalorder %v1579, 0
  %vm1581 = vcmp.lt.s32.totalorder %v1579, 16
  %vm1582 = vmand %vm1580, %vm1581
  %v1583 = vsel %vm1582, 1, 0
  %v1584 = vlaneseq
  %v1585 = vshrl.u32 %v1584, 7
  %v1586 = vsub.s32 0, %v1585
  %v1587 = vrot.slane %v1583, %v1586
  %v1588 = vlaneseq
  %v1589 = vshrl.u32 %v1588, 7
  %v1590 = vsub.s32 1, %v1589
  %v1591 = vrot.slane %v1583, %v1590
  %vm1592 = vcmp.eq.s32.totalorder %v1587, 1
  %vm1593 = vcmp.eq.s32.totalorder %v1591, 1
  %v1594 = vsel %vm1592, %v1575, 0.0
  %v1595 = vsel %vm1593, %v1577, 0.0
  %v1596 = vadd.f32 %v1487, %v1594
  %v1597 = vadd.f32 %v1488, %v1595
  %s1598 = scalar_lea.vmem %s4, 56
  %v1599 = vld [vmem:[%s1598] sm:$0xf]
  %1600 = vrot.lane.b32.xlu0 %v96, 121
  %v1601 = vpop.permute.xlu0 %1600
  %1602 = vrot.lane.b32.xlu0 %v97, 121
  %v1603 = vpop.permute.xlu0 %1602
  %vm1604 = vcmask 990208
  %v1605 = vsel %vm1604, %v1601, %v1603
  %v1608 = vsel %vm1604, %v1603, %v1601
  %v1610 = vsel %vm110, %v1599, 0
  %v1612 = vsel %vm59, %v1605, 0
  %v1615 = vsel %vm59, %v1608, 0
  %1617 = vmatprep.subr.mxu0 %v1615
  %1618 = vmatpush1.msra.mxu0 %v1612
  %1619 = vmatprep.subr.mxu0 0.0
  %1620 = vmatpush1.msra.mxu0 0.0
  %1621 = vmatprep.subr.mxu0 0.0
  %1622 = vmatpush1.msra.mxu0 0.0
  %1623 = vmatprep.subr.mxu0 0.0
  %1624 = vmatpush1.msra.mxu0 0.0
  %1625 = vmatprep.subr.mxu0 0.0
  %1626 = vmatpush1.msra.mxu0 0.0
  %1627 = vmatprep.subr.mxu0 0.0
  %1628 = vmatpush1.msra.mxu0 0.0
  %1629 = vmatprep.subr.mxu0 0.0
  %1630 = vmatpush1.msra.mxu0 0.0
  %1631 = vmatprep.subr.mxu0 0.0
  %1632 = vmatpush1.msra.mxu0 0.0
  %1633 = vmatprep.subr.mxu0 0.0
  %1634 = vmatpush1.msra.mxu0 0.0
  %1635 = vmatprep.subr.mxu0 0.0
  %1636 = vmatpush1.msra.mxu0 0.0
  %1637 = vmatprep.subr.mxu0 0.0
  %1638 = vmatpush1.msra.mxu0 0.0
  %1639 = vmatprep.subr.mxu0 0.0
  %1640 = vmatpush1.msra.mxu0 0.0
  %1641 = vmatprep.subr.mxu0 0.0
  %1642 = vmatpush1.msra.mxu0 0.0
  %1643 = vmatprep.subr.mxu0 0.0
  %1644 = vmatpush1.msra.mxu0 0.0
  %1645 = vmatprep.subr.mxu0 0.0
  %1646 = vmatpush1.msra.mxu0 0.0
  %1647 = vmatprep.subr.mxu0 0.0
  %1648 = vmatpush1.msra.mxu0 0.0
  %1649 = vmatprep.subr.mxu0 0.0
  %1650 = vmatpush1.msra.mxu0 0.0
  %1651 = vmatprep.subr.mxu0 0.0
  %1652 = vmatpush1.msra.mxu0 0.0
  %1653 = vmatprep.subr.mxu0 0.0
  %1654 = vmatpush1.msra.mxu0 0.0
  %1655 = vmatprep.subr.mxu0 0.0
  %1656 = vmatpush1.msra.mxu0 0.0
  %1657 = vmatprep.subr.mxu0 0.0
  %1658 = vmatpush1.msra.mxu0 0.0
  %1659 = vmatprep.subr.mxu0 0.0
  %1660 = vmatpush1.msra.mxu0 0.0
  %1661 = vmatprep.subr.mxu0 0.0
  %1662 = vmatpush1.msra.mxu0 0.0
  %1663 = vmatprep.subr.mxu0 0.0
  %1664 = vmatpush1.msra.mxu0 0.0
  %1665 = vmatprep.subr.mxu0 0.0
  %1666 = vmatpush1.msra.mxu0 0.0
  %1667 = vmatprep.subr.mxu0 0.0
  %1668 = vmatpush1.msra.mxu0 0.0
  %1669 = vmatprep.subr.mxu0 0.0
  %1670 = vmatpush1.msra.mxu0 0.0
  %1671 = vmatprep.subr.mxu0 0.0
  %1672 = vmatpush1.msra.mxu0 0.0
  %1673 = vmatprep.subr.mxu0 0.0
  %1674 = vmatpush1.msra.mxu0 0.0
  %1675 = vmatprep.subr.mxu0 0.0
  %1676 = vmatpush1.msra.mxu0 0.0
  %1677 = vmatprep.subr.mxu0 0.0
  %1678 = vmatpush1.msra.mxu0 0.0
  %1679 = vmatprep.subr.mxu0 0.0
  %1680 = vmatpush1.msra.mxu0 0.0
  %1681 = vmatprep.mubr.f32.mxu0 0.0
  %1682 = vmatmul.mubr.f32.gmra.mrb[0].mxu0 %v1610
  %v1683 = vpop.f32.mrb[0].mxu0
  %v1684 = vadd.f32 0.0, %v1683
  %v1685 = vpop.f32.mrb[0].mxu0
  %v1686 = vadd.f32 0.0, %v1685
  %1687 = vdwg.mxu0
  %v1688 = vadd.s32 %v53, 7
  %vm1689 = vcmp.ge.s32.totalorder %v1688, 0
  %vm1690 = vcmp.lt.s32.totalorder %v1688, 16
  %vm1691 = vmand %vm1689, %vm1690
  %v1692 = vsel %vm1691, 1, 0
  %v1693 = vlaneseq
  %v1694 = vshrl.u32 %v1693, 7
  %v1695 = vsub.s32 0, %v1694
  %v1696 = vrot.slane %v1692, %v1695
  %v1697 = vlaneseq
  %v1698 = vshrl.u32 %v1697, 7
  %v1699 = vsub.s32 1, %v1698
  %v1700 = vrot.slane %v1692, %v1699
  %vm1701 = vcmp.eq.s32.totalorder %v1696, 1
  %vm1702 = vcmp.eq.s32.totalorder %v1700, 1
  %v1703 = vsel %vm1701, %v1684, 0.0
  %v1704 = vsel %vm1702, %v1686, 0.0
  %v1705 = vadd.f32 %v1596, %v1703
  %v1706 = vadd.f32 %v1597, %v1704
  %1708 = vset.pattern.permute.xlu0 0
  %1709 = vperm.xlu0 %1708, %v56
  %v1710 = vpop.permute.xlu0 %1709
  %v1712 = vadd.f32 %v1705, %v1710
  %v1713 = vadd.f32 %v1706, %v1710
  %v1716 = vrot.slane %v1712, 4
  %v1717 = vrot.slane %v1713, 4
  %1720 = vst [vmem:[%s14] sm:$0xf0] %v1716
  %1721 = vst [vmem:[%s14 + $0x8] sm:$0xf0] %v1717
  %v1722 = vld [vmem:[%s6] sm:$0xff]
  %v1723 = vld [vmem:[%s7] sm:$0xff]
  %v1724 = vld [vmem:[%s9] sm:$0xf]
  %v1725 = vld [vmem:[%s14] sm:$0xff]
  %v1726 = vld [vmem:[%s14 + $0x8] sm:$0xff]
  %v1727 = vadd.f32 %v1725, %v1726
  %1728 = vadd.xlane.f32.xlu0 %v1727
  %v1729 = vpop.xlane.xlu0 %1728
  %v1730 = vmul.f32 %v1725, %v1725
  %v1731 = vmul.f32 %v1726, %v1726
  %v1732 = vadd.f32 %v1730, %v1731
  %1733 = vadd.xlane.f32.xlu0 %v1732
  %v1734 = vpop.xlane.xlu0 %1733
  %v1735 = vmul.f32 %v1729, 0.00390625
  %v1736 = vmul.f32 %v1734, 0.00390625
  %v1737 = vmul.f32 %v1735, %v1735
  %v1738 = vsub.f32 %v1736, %v1737
  %v1739 = vmax.f32 %v1738, 0.0
  %v1740 = vadd.f32 %v1739, 1e-05
  %v1741 = vrsqrt.pop %v1740
  %v1742 = vmul.f32 %v1722, %v1741
  %v1743 = vmul.f32 %v1735, %v1742
  %v1744 = vsub.f32 %v1723, %v1743
  %1746 = vset.pattern.permute.xlu0 0
  %1747 = vperm.xlu0 %1746, %v1742
  %v1748 = vpop.permute.xlu0 %1747
  %v1750 = vmul.f32 %v1725, %v1748
  %v1751 = vmul.f32 %v1726, %v1748
  %1753 = vset.pattern.permute.xlu0 0
  %1754 = vperm.xlu0 %1753, %v1744
  %v1755 = vpop.permute.xlu0 %1754
  %v1757 = vadd.f32 %v1750, %v1755
  %v1758 = vadd.f32 %v1751, %v1755
  %v1759 = vmax.f32 %v1757, 0.0
  %v1760 = vmax.f32 %v1758, 0.0
  %v1761 = vld [vmem:[%s8] sm:$0xf]
  %1763 = vrot.lane.b32.xlu0 %v1760, 7
  %v1764 = vpop.permute.xlu0 %1763
  %1767 = vrot.lane.b32.xlu0 %v1759, 7
  %v1768 = vpop.permute.xlu0 %1767
  %v1769 = vsel %vm106, %v1768, %v1764
  %v1772 = vsel %vm106, %v1764, %v1768
  %vm1773 = vcmask 64512
  %v1775 = vsel %vm1773, %v1761, 0
  %1777 = vmatprep.subr.mxu0 %v1769
  %1778 = vmatpush1.msra.mxu0 %v1772
  %1779 = vmatprep.subr.mxu0 0.0
  %1780 = vmatpush1.msra.mxu0 0.0
  %1781 = vmatprep.subr.mxu0 0.0
  %1782 = vmatpush1.msra.mxu0 0.0
  %1783 = vmatprep.subr.mxu0 0.0
  %1784 = vmatpush1.msra.mxu0 0.0
  %1785 = vmatprep.subr.mxu0 0.0
  %1786 = vmatpush1.msra.mxu0 0.0
  %1787 = vmatprep.subr.mxu0 0.0
  %1788 = vmatpush1.msra.mxu0 0.0
  %1789 = vmatprep.subr.mxu0 0.0
  %1790 = vmatpush1.msra.mxu0 0.0
  %1791 = vmatprep.subr.mxu0 0.0
  %1792 = vmatpush1.msra.mxu0 0.0
  %1793 = vmatprep.subr.mxu0 0.0
  %1794 = vmatpush1.msra.mxu0 0.0
  %1795 = vmatprep.subr.mxu0 0.0
  %1796 = vmatpush1.msra.mxu0 0.0
  %1797 = vmatprep.subr.mxu0 0.0
  %1798 = vmatpush1.msra.mxu0 0.0
  %1799 = vmatprep.subr.mxu0 0.0
  %1800 = vmatpush1.msra.mxu0 0.0
  %1801 = vmatprep.subr.mxu0 0.0
  %1802 = vmatpush1.msra.mxu0 0.0
  %1803 = vmatprep.subr.mxu0 0.0
  %1804 = vmatpush1.msra.mxu0 0.0
  %1805 = vmatprep.subr.mxu0 0.0
  %1806 = vmatpush1.msra.mxu0 0.0
  %1807 = vmatprep.subr.mxu0 0.0
  %1808 = vmatpush1.msra.mxu0 0.0
  %1809 = vmatprep.subr.mxu0 0.0
  %1810 = vmatpush1.msra.mxu0 0.0
  %1811 = vmatprep.subr.mxu0 0.0
  %1812 = vmatpush1.msra.mxu0 0.0
  %1813 = vmatprep.subr.mxu0 0.0
  %1814 = vmatpush1.msra.mxu0 0.0
  %1815 = vmatprep.subr.mxu0 0.0
  %1816 = vmatpush1.msra.mxu0 0.0
  %1817 = vmatprep.subr.mxu0 0.0
  %1818 = vmatpush1.msra.mxu0 0.0
  %1819 = vmatprep.subr.mxu0 0.0
  %1820 = vmatpush1.msra.mxu0 0.0
  %1821 = vmatprep.subr.mxu0 0.0
  %1822 = vmatpush1.msra.mxu0 0.0
  %1823 = vmatprep.subr.mxu0 0.0
  %1824 = vmatpush1.msra.mxu0 0.0
  %1825 = vmatprep.subr.mxu0 0.0
  %1826 = vmatpush1.msra.mxu0 0.0
  %1827 = vmatprep.subr.mxu0 0.0
  %1828 = vmatpush1.msra.mxu0 0.0
  %1829 = vmatprep.subr.mxu0 0.0
  %1830 = vmatpush1.msra.mxu0 0.0
  %1831 = vmatprep.subr.mxu0 0.0
  %1832 = vmatpush1.msra.mxu0 0.0
  %1833 = vmatprep.subr.mxu0 0.0
  %1834 = vmatpush1.msra.mxu0 0.0
  %1835 = vmatprep.subr.mxu0 0.0
  %1836 = vmatpush1.msra.mxu0 0.0
  %1837 = vmatprep.subr.mxu0 0.0
  %1838 = vmatpush1.msra.mxu0 0.0
  %1839 = vmatprep.subr.mxu0 0.0
  %1840 = vmatpush1.msra.mxu0 0.0
  %1841 = vmatprep.mubr.f32.mxu0 0.0
  %1842 = vmatmul.mubr.f32.gmra.mrb[0].mxu0 %v1775
  %v1843 = vpop.f32.mrb[0].mxu0
  %v1844 = vadd.f32 0.0, %v1843
  %v1845 = vpop.f32.mrb[0].mxu0
  %v1846 = vadd.f32 0.0, %v1845
  %1847 = vdwg.mxu0
  %v1848 = vsel %vm203, %v1844, 0.0
  %v1849 = vsel %vm204, %v1846, 0.0
  %v1850 = vadd.f32 %v1848, 0.0
  %v1851 = vadd.f32 %v1849, 0.0
  %s1852 = scalar_lea.vmem %s8, 4
  %v1853 = vld [vmem:[%s1852] sm:$0xf]
  %1854 = vrot.lane.b32.xlu0 %v1760, 6
  %v1855 = vpop.permute.xlu0 %1854
  %1857 = vrot.lane.b32.xlu0 %v1759, 6
  %v1858 = vpop.permute.xlu0 %1857
  %v1859 = vsel %vm216, %v1858, %v1855
  %v1862 = vsel %vm216, %v1855, %v1858
  %v1864 = vsel %vm1773, %v1853, 0
  %1866 = vmatprep.subr.mxu0 %v1859
  %1867 = vmatpush1.msra.mxu0 %v1862
  %1868 = vmatprep.subr.mxu0 0.0
  %1869 = vmatpush1.msra.mxu0 0.0
  %1870 = vmatprep.subr.mxu0 0.0
  %1871 = vmatpush1.msra.mxu0 0.0
  %1872 = vmatprep.subr.mxu0 0.0
  %1873 = vmatpush1.msra.mxu0 0.0
  %1874 = vmatprep.subr.mxu0 0.0
  %1875 = vmatpush1.msra.mxu0 0.0
  %1876 = vmatprep.subr.mxu0 0.0
  %1877 = vmatpush1.msra.mxu0 0.0
  %1878 = vmatprep.subr.mxu0 0.0
  %1879 = vmatpush1.msra.mxu0 0.0
  %1880 = vmatprep.subr.mxu0 0.0
  %1881 = vmatpush1.msra.mxu0 0.0
  %1882 = vmatprep.subr.mxu0 0.0
  %1883 = vmatpush1.msra.mxu0 0.0
  %1884 = vmatprep.subr.mxu0 0.0
  %1885 = vmatpush1.msra.mxu0 0.0
  %1886 = vmatprep.subr.mxu0 0.0
  %1887 = vmatpush1.msra.mxu0 0.0
  %1888 = vmatprep.subr.mxu0 0.0
  %1889 = vmatpush1.msra.mxu0 0.0
  %1890 = vmatprep.subr.mxu0 0.0
  %1891 = vmatpush1.msra.mxu0 0.0
  %1892 = vmatprep.subr.mxu0 0.0
  %1893 = vmatpush1.msra.mxu0 0.0
  %1894 = vmatprep.subr.mxu0 0.0
  %1895 = vmatpush1.msra.mxu0 0.0
  %1896 = vmatprep.subr.mxu0 0.0
  %1897 = vmatpush1.msra.mxu0 0.0
  %1898 = vmatprep.subr.mxu0 0.0
  %1899 = vmatpush1.msra.mxu0 0.0
  %1900 = vmatprep.subr.mxu0 0.0
  %1901 = vmatpush1.msra.mxu0 0.0
  %1902 = vmatprep.subr.mxu0 0.0
  %1903 = vmatpush1.msra.mxu0 0.0
  %1904 = vmatprep.subr.mxu0 0.0
  %1905 = vmatpush1.msra.mxu0 0.0
  %1906 = vmatprep.subr.mxu0 0.0
  %1907 = vmatpush1.msra.mxu0 0.0
  %1908 = vmatprep.subr.mxu0 0.0
  %1909 = vmatpush1.msra.mxu0 0.0
  %1910 = vmatprep.subr.mxu0 0.0
  %1911 = vmatpush1.msra.mxu0 0.0
  %1912 = vmatprep.subr.mxu0 0.0
  %1913 = vmatpush1.msra.mxu0 0.0
  %1914 = vmatprep.subr.mxu0 0.0
  %1915 = vmatpush1.msra.mxu0 0.0
  %1916 = vmatprep.subr.mxu0 0.0
  %1917 = vmatpush1.msra.mxu0 0.0
  %1918 = vmatprep.subr.mxu0 0.0
  %1919 = vmatpush1.msra.mxu0 0.0
  %1920 = vmatprep.subr.mxu0 0.0
  %1921 = vmatpush1.msra.mxu0 0.0
  %1922 = vmatprep.subr.mxu0 0.0
  %1923 = vmatpush1.msra.mxu0 0.0
  %1924 = vmatprep.subr.mxu0 0.0
  %1925 = vmatpush1.msra.mxu0 0.0
  %1926 = vmatprep.subr.mxu0 0.0
  %1927 = vmatpush1.msra.mxu0 0.0
  %1928 = vmatprep.subr.mxu0 0.0
  %1929 = vmatpush1.msra.mxu0 0.0
  %1930 = vmatprep.mubr.f32.mxu0 0.0
  %1931 = vmatmul.mubr.f32.gmra.mrb[0].mxu0 %v1864
  %v1932 = vpop.f32.mrb[0].mxu0
  %v1933 = vadd.f32 0.0, %v1932
  %v1934 = vpop.f32.mrb[0].mxu0
  %v1935 = vadd.f32 0.0, %v1934
  %1936 = vdwg.mxu0
  %v1937 = vsel %vm312, %v1933, 0.0
  %v1938 = vsel %vm313, %v1935, 0.0
  %v1939 = vadd.f32 %v1850, %v1937
  %v1940 = vadd.f32 %v1851, %v1938
  %s1941 = scalar_lea.vmem %s8, 8
  %v1942 = vld [vmem:[%s1941] sm:$0xf]
  %1943 = vrot.lane.b32.xlu0 %v1760, 5
  %v1944 = vpop.permute.xlu0 %1943
  %1946 = vrot.lane.b32.xlu0 %v1759, 5
  %v1947 = vpop.permute.xlu0 %1946
  %v1948 = vsel %vm325, %v1947, %v1944
  %v1951 = vsel %vm325, %v1944, %v1947
  %v1953 = vsel %vm1773, %v1942, 0
  %1955 = vmatprep.subr.mxu0 %v1948
  %1956 = vmatpush1.msra.mxu0 %v1951
  %1957 = vmatprep.subr.mxu0 0.0
  %1958 = vmatpush1.msra.mxu0 0.0
  %1959 = vmatprep.subr.mxu0 0.0
  %1960 = vmatpush1.msra.mxu0 0.0
  %1961 = vmatprep.subr.mxu0 0.0
  %1962 = vmatpush1.msra.mxu0 0.0
  %1963 = vmatprep.subr.mxu0 0.0
  %1964 = vmatpush1.msra.mxu0 0.0
  %1965 = vmatprep.subr.mxu0 0.0
  %1966 = vmatpush1.msra.mxu0 0.0
  %1967 = vmatprep.subr.mxu0 0.0
  %1968 = vmatpush1.msra.mxu0 0.0
  %1969 = vmatprep.subr.mxu0 0.0
  %1970 = vmatpush1.msra.mxu0 0.0
  %1971 = vmatprep.subr.mxu0 0.0
  %1972 = vmatpush1.msra.mxu0 0.0
  %1973 = vmatprep.subr.mxu0 0.0
  %1974 = vmatpush1.msra.mxu0 0.0
  %1975 = vmatprep.subr.mxu0 0.0
  %1976 = vmatpush1.msra.mxu0 0.0
  %1977 = vmatprep.subr.mxu0 0.0
  %1978 = vmatpush1.msra.mxu0 0.0
  %1979 = vmatprep.subr.mxu0 0.0
  %1980 = vmatpush1.msra.mxu0 0.0
  %1981 = vmatprep.subr.mxu0 0.0
  %1982 = vmatpush1.msra.mxu0 0.0
  %1983 = vmatprep.subr.mxu0 0.0
  %1984 = vmatpush1.msra.mxu0 0.0
  %1985 = vmatprep.subr.mxu0 0.0
  %1986 = vmatpush1.msra.mxu0 0.0
  %1987 = vmatprep.subr.mxu0 0.0
  %1988 = vmatpush1.msra.mxu0 0.0
  %1989 = vmatprep.subr.mxu0 0.0
  %1990 = vmatpush1.msra.mxu0 0.0
  %1991 = vmatprep.subr.mxu0 0.0
  %1992 = vmatpush1.msra.mxu0 0.0
  %1993 = vmatprep.subr.mxu0 0.0
  %1994 = vmatpush1.msra.mxu0 0.0
  %1995 = vmatprep.subr.mxu0 0.0
  %1996 = vmatpush1.msra.mxu0 0.0
  %1997 = vmatprep.subr.mxu0 0.0
  %1998 = vmatpush1.msra.mxu0 0.0
  %1999 = vmatprep.subr.mxu0 0.0
  %2000 = vmatpush1.msra.mxu0 0.0
  %2001 = vmatprep.subr.mxu0 0.0
  %2002 = vmatpush1.msra.mxu0 0.0
  %2003 = vmatprep.subr.mxu0 0.0
  %2004 = vmatpush1.msra.mxu0 0.0
  %2005 = vmatprep.subr.mxu0 0.0
  %2006 = vmatpush1.msra.mxu0 0.0
  %2007 = vmatprep.subr.mxu0 0.0
  %2008 = vmatpush1.msra.mxu0 0.0
  %2009 = vmatprep.subr.mxu0 0.0
  %2010 = vmatpush1.msra.mxu0 0.0
  %2011 = vmatprep.subr.mxu0 0.0
  %2012 = vmatpush1.msra.mxu0 0.0
  %2013 = vmatprep.subr.mxu0 0.0
  %2014 = vmatpush1.msra.mxu0 0.0
  %2015 = vmatprep.subr.mxu0 0.0
  %2016 = vmatpush1.msra.mxu0 0.0
  %2017 = vmatprep.subr.mxu0 0.0
  %2018 = vmatpush1.msra.mxu0 0.0
  %2019 = vmatprep.mubr.f32.mxu0 0.0
  %2020 = vmatmul.mubr.f32.gmra.mrb[0].mxu0 %v1953
  %v2021 = vpop.f32.mrb[0].mxu0
  %v2022 = vadd.f32 0.0, %v2021
  %v2023 = vpop.f32.mrb[0].mxu0
  %v2024 = vadd.f32 0.0, %v2023
  %2025 = vdwg.mxu0
  %v2026 = vsel %vm421, %v2022, 0.0
  %v2027 = vsel %vm422, %v2024, 0.0
  %v2028 = vadd.f32 %v1939, %v2026
  %v2029 = vadd.f32 %v1940, %v2027
  %s2030 = scalar_lea.vmem %s8, 12
  %v2031 = vld [vmem:[%s2030] sm:$0xf]
  %2032 = vrot.lane.b32.xlu0 %v1760, 4
  %v2033 = vpop.permute.xlu0 %2032
  %2035 = vrot.lane.b32.xlu0 %v1759, 4
  %v2036 = vpop.permute.xlu0 %2035
  %v2037 = vsel %vm110, %v2036, %v2033
  %v2040 = vsel %vm110, %v2033, %v2036
  %v2042 = vsel %vm1773, %v2031, 0
  %2044 = vmatprep.subr.mxu0 %v2037
  %2045 = vmatpush1.msra.mxu0 %v2040
  %2046 = vmatprep.subr.mxu0 0.0
  %2047 = vmatpush1.msra.mxu0 0.0
  %2048 = vmatprep.subr.mxu0 0.0
  %2049 = vmatpush1.msra.mxu0 0.0
  %2050 = vmatprep.subr.mxu0 0.0
  %2051 = vmatpush1.msra.mxu0 0.0
  %2052 = vmatprep.subr.mxu0 0.0
  %2053 = vmatpush1.msra.mxu0 0.0
  %2054 = vmatprep.subr.mxu0 0.0
  %2055 = vmatpush1.msra.mxu0 0.0
  %2056 = vmatprep.subr.mxu0 0.0
  %2057 = vmatpush1.msra.mxu0 0.0
  %2058 = vmatprep.subr.mxu0 0.0
  %2059 = vmatpush1.msra.mxu0 0.0
  %2060 = vmatprep.subr.mxu0 0.0
  %2061 = vmatpush1.msra.mxu0 0.0
  %2062 = vmatprep.subr.mxu0 0.0
  %2063 = vmatpush1.msra.mxu0 0.0
  %2064 = vmatprep.subr.mxu0 0.0
  %2065 = vmatpush1.msra.mxu0 0.0
  %2066 = vmatprep.subr.mxu0 0.0
  %2067 = vmatpush1.msra.mxu0 0.0
  %2068 = vmatprep.subr.mxu0 0.0
  %2069 = vmatpush1.msra.mxu0 0.0
  %2070 = vmatprep.subr.mxu0 0.0
  %2071 = vmatpush1.msra.mxu0 0.0
  %2072 = vmatprep.subr.mxu0 0.0
  %2073 = vmatpush1.msra.mxu0 0.0
  %2074 = vmatprep.subr.mxu0 0.0
  %2075 = vmatpush1.msra.mxu0 0.0
  %2076 = vmatprep.subr.mxu0 0.0
  %2077 = vmatpush1.msra.mxu0 0.0
  %2078 = vmatprep.subr.mxu0 0.0
  %2079 = vmatpush1.msra.mxu0 0.0
  %2080 = vmatprep.subr.mxu0 0.0
  %2081 = vmatpush1.msra.mxu0 0.0
  %2082 = vmatprep.subr.mxu0 0.0
  %2083 = vmatpush1.msra.mxu0 0.0
  %2084 = vmatprep.subr.mxu0 0.0
  %2085 = vmatpush1.msra.mxu0 0.0
  %2086 = vmatprep.subr.mxu0 0.0
  %2087 = vmatpush1.msra.mxu0 0.0
  %2088 = vmatprep.subr.mxu0 0.0
  %2089 = vmatpush1.msra.mxu0 0.0
  %2090 = vmatprep.subr.mxu0 0.0
  %2091 = vmatpush1.msra.mxu0 0.0
  %2092 = vmatprep.subr.mxu0 0.0
  %2093 = vmatpush1.msra.mxu0 0.0
  %2094 = vmatprep.subr.mxu0 0.0
  %2095 = vmatpush1.msra.mxu0 0.0
  %2096 = vmatprep.subr.mxu0 0.0
  %2097 = vmatpush1.msra.mxu0 0.0
  %2098 = vmatprep.subr.mxu0 0.0
  %2099 = vmatpush1.msra.mxu0 0.0
  %2100 = vmatprep.subr.mxu0 0.0
  %2101 = vmatpush1.msra.mxu0 0.0
  %2102 = vmatprep.subr.mxu0 0.0
  %2103 = vmatpush1.msra.mxu0 0.0
  %2104 = vmatprep.subr.mxu0 0.0
  %2105 = vmatpush1.msra.mxu0 0.0
  %2106 = vmatprep.subr.mxu0 0.0
  %2107 = vmatpush1.msra.mxu0 0.0
  %2108 = vmatprep.mubr.f32.mxu0 0.0
  %2109 = vmatmul.mubr.f32.gmra.mrb[0].mxu0 %v2042
  %v2110 = vpop.f32.mrb[0].mxu0
  %v2111 = vadd.f32 0.0, %v2110
  %v2112 = vpop.f32.mrb[0].mxu0
  %v2113 = vadd.f32 0.0, %v2112
  %2114 = vdwg.mxu0
  %v2115 = vsel %vm529, %v2111, 0.0
  %v2116 = vsel %vm530, %v2113, 0.0
  %v2117 = vadd.f32 %v2028, %v2115
  %v2118 = vadd.f32 %v2029, %v2116
  %s2119 = scalar_lea.vmem %s8, 16
  %v2120 = vld [vmem:[%s2119] sm:$0xf]
  %2121 = vrot.lane.b32.xlu0 %v1760, 3
  %v2122 = vpop.permute.xlu0 %2121
  %2124 = vrot.lane.b32.xlu0 %v1759, 3
  %v2125 = vpop.permute.xlu0 %2124
  %v2126 = vsel %vm542, %v2125, %v2122
  %v2129 = vsel %vm542, %v2122, %v2125
  %v2131 = vsel %vm1773, %v2120, 0
  %2133 = vmatprep.subr.mxu0 %v2126
  %2134 = vmatpush1.msra.mxu0 %v2129
  %2135 = vmatprep.subr.mxu0 0.0
  %2136 = vmatpush1.msra.mxu0 0.0
  %2137 = vmatprep.subr.mxu0 0.0
  %2138 = vmatpush1.msra.mxu0 0.0
  %2139 = vmatprep.subr.mxu0 0.0
  %2140 = vmatpush1.msra.mxu0 0.0
  %2141 = vmatprep.subr.mxu0 0.0
  %2142 = vmatpush1.msra.mxu0 0.0
  %2143 = vmatprep.subr.mxu0 0.0
  %2144 = vmatpush1.msra.mxu0 0.0
  %2145 = vmatprep.subr.mxu0 0.0
  %2146 = vmatpush1.msra.mxu0 0.0
  %2147 = vmatprep.subr.mxu0 0.0
  %2148 = vmatpush1.msra.mxu0 0.0
  %2149 = vmatprep.subr.mxu0 0.0
  %2150 = vmatpush1.msra.mxu0 0.0
  %2151 = vmatprep.subr.mxu0 0.0
  %2152 = vmatpush1.msra.mxu0 0.0
  %2153 = vmatprep.subr.mxu0 0.0
  %2154 = vmatpush1.msra.mxu0 0.0
  %2155 = vmatprep.subr.mxu0 0.0
  %2156 = vmatpush1.msra.mxu0 0.0
  %2157 = vmatprep.subr.mxu0 0.0
  %2158 = vmatpush1.msra.mxu0 0.0
  %2159 = vmatprep.subr.mxu0 0.0
  %2160 = vmatpush1.msra.mxu0 0.0
  %2161 = vmatprep.subr.mxu0 0.0
  %2162 = vmatpush1.msra.mxu0 0.0
  %2163 = vmatprep.subr.mxu0 0.0
  %2164 = vmatpush1.msra.mxu0 0.0
  %2165 = vmatprep.subr.mxu0 0.0
  %2166 = vmatpush1.msra.mxu0 0.0
  %2167 = vmatprep.subr.mxu0 0.0
  %2168 = vmatpush1.msra.mxu0 0.0
  %2169 = vmatprep.subr.mxu0 0.0
  %2170 = vmatpush1.msra.mxu0 0.0
  %2171 = vmatprep.subr.mxu0 0.0
  %2172 = vmatpush1.msra.mxu0 0.0
  %2173 = vmatprep.subr.mxu0 0.0
  %2174 = vmatpush1.msra.mxu0 0.0
  %2175 = vmatprep.subr.mxu0 0.0
  %2176 = vmatpush1.msra.mxu0 0.0
  %2177 = vmatprep.subr.mxu0 0.0
  %2178 = vmatpush1.msra.mxu0 0.0
  %2179 = vmatprep.subr.mxu0 0.0
  %2180 = vmatpush1.msra.mxu0 0.0
  %2181 = vmatprep.subr.mxu0 0.0
  %2182 = vmatpush1.msra.mxu0 0.0
  %2183 = vmatprep.subr.mxu0 0.0
  %2184 = vmatpush1.msra.mxu0 0.0
  %2185 = vmatprep.subr.mxu0 0.0
  %2186 = vmatpush1.msra.mxu0 0.0
  %2187 = vmatprep.subr.mxu0 0.0
  %2188 = vmatpush1.msra.mxu0 0.0
  %2189 = vmatprep.subr.mxu0 0.0
  %2190 = vmatpush1.msra.mxu0 0.0
  %2191 = vmatprep.subr.mxu0 0.0
  %2192 = vmatpush1.msra.mxu0 0.0
  %2193 = vmatprep.subr.mxu0 0.0
  %2194 = vmatpush1.msra.mxu0 0.0
  %2195 = vmatprep.subr.mxu0 0.0
  %2196 = vmatpush1.msra.mxu0 0.0
  %2197 = vmatprep.mubr.f32.mxu0 0.0
  %2198 = vmatmul.mubr.f32.gmra.mrb[0].mxu0 %v2131
  %v2199 = vpop.f32.mrb[0].mxu0
  %v2200 = vadd.f32 0.0, %v2199
  %v2201 = vpop.f32.mrb[0].mxu0
  %v2202 = vadd.f32 0.0, %v2201
  %2203 = vdwg.mxu0
  %v2204 = vsel %vm638, %v2200, 0.0
  %v2205 = vsel %vm639, %v2202, 0.0
  %v2206 = vadd.f32 %v2117, %v2204
  %v2207 = vadd.f32 %v2118, %v2205
  %s2208 = scalar_lea.vmem %s8, 20
  %v2209 = vld [vmem:[%s2208] sm:$0xf]
  %2210 = vrot.lane.b32.xlu0 %v1760, 2
  %v2211 = vpop.permute.xlu0 %2210
  %2213 = vrot.lane.b32.xlu0 %v1759, 2
  %v2214 = vpop.permute.xlu0 %2213
  %v2215 = vsel %vm651, %v2214, %v2211
  %v2218 = vsel %vm651, %v2211, %v2214
  %v2220 = vsel %vm1773, %v2209, 0
  %2222 = vmatprep.subr.mxu0 %v2215
  %2223 = vmatpush1.msra.mxu0 %v2218
  %2224 = vmatprep.subr.mxu0 0.0
  %2225 = vmatpush1.msra.mxu0 0.0
  %2226 = vmatprep.subr.mxu0 0.0
  %2227 = vmatpush1.msra.mxu0 0.0
  %2228 = vmatprep.subr.mxu0 0.0
  %2229 = vmatpush1.msra.mxu0 0.0
  %2230 = vmatprep.subr.mxu0 0.0
  %2231 = vmatpush1.msra.mxu0 0.0
  %2232 = vmatprep.subr.mxu0 0.0
  %2233 = vmatpush1.msra.mxu0 0.0
  %2234 = vmatprep.subr.mxu0 0.0
  %2235 = vmatpush1.msra.mxu0 0.0
  %2236 = vmatprep.subr.mxu0 0.0
  %2237 = vmatpush1.msra.mxu0 0.0
  %2238 = vmatprep.subr.mxu0 0.0
  %2239 = vmatpush1.msra.mxu0 0.0
  %2240 = vmatprep.subr.mxu0 0.0
  %2241 = vmatpush1.msra.mxu0 0.0
  %2242 = vmatprep.subr.mxu0 0.0
  %2243 = vmatpush1.msra.mxu0 0.0
  %2244 = vmatprep.subr.mxu0 0.0
  %2245 = vmatpush1.msra.mxu0 0.0
  %2246 = vmatprep.subr.mxu0 0.0
  %2247 = vmatpush1.msra.mxu0 0.0
  %2248 = vmatprep.subr.mxu0 0.0
  %2249 = vmatpush1.msra.mxu0 0.0
  %2250 = vmatprep.subr.mxu0 0.0
  %2251 = vmatpush1.msra.mxu0 0.0
  %2252 = vmatprep.subr.mxu0 0.0
  %2253 = vmatpush1.msra.mxu0 0.0
  %2254 = vmatprep.subr.mxu0 0.0
  %2255 = vmatpush1.msra.mxu0 0.0
  %2256 = vmatprep.subr.mxu0 0.0
  %2257 = vmatpush1.msra.mxu0 0.0
  %2258 = vmatprep.subr.mxu0 0.0
  %2259 = vmatpush1.msra.mxu0 0.0
  %2260 = vmatprep.subr.mxu0 0.0
  %2261 = vmatpush1.msra.mxu0 0.0
  %2262 = vmatprep.subr.mxu0 0.0
  %2263 = vmatpush1.msra.mxu0 0.0
  %2264 = vmatprep.subr.mxu0 0.0
  %2265 = vmatpush1.msra.mxu0 0.0
  %2266 = vmatprep.subr.mxu0 0.0
  %2267 = vmatpush1.msra.mxu0 0.0
  %2268 = vmatprep.subr.mxu0 0.0
  %2269 = vmatpush1.msra.mxu0 0.0
  %2270 = vmatprep.subr.mxu0 0.0
  %2271 = vmatpush1.msra.mxu0 0.0
  %2272 = vmatprep.subr.mxu0 0.0
  %2273 = vmatpush1.msra.mxu0 0.0
  %2274 = vmatprep.subr.mxu0 0.0
  %2275 = vmatpush1.msra.mxu0 0.0
  %2276 = vmatprep.subr.mxu0 0.0
  %2277 = vmatpush1.msra.mxu0 0.0
  %2278 = vmatprep.subr.mxu0 0.0
  %2279 = vmatpush1.msra.mxu0 0.0
  %2280 = vmatprep.subr.mxu0 0.0
  %2281 = vmatpush1.msra.mxu0 0.0
  %2282 = vmatprep.subr.mxu0 0.0
  %2283 = vmatpush1.msra.mxu0 0.0
  %2284 = vmatprep.subr.mxu0 0.0
  %2285 = vmatpush1.msra.mxu0 0.0
  %2286 = vmatprep.mubr.f32.mxu0 0.0
  %2287 = vmatmul.mubr.f32.gmra.mrb[0].mxu0 %v2220
  %v2288 = vpop.f32.mrb[0].mxu0
  %v2289 = vadd.f32 0.0, %v2288
  %v2290 = vpop.f32.mrb[0].mxu0
  %v2291 = vadd.f32 0.0, %v2290
  %2292 = vdwg.mxu0
  %v2293 = vsel %vm747, %v2289, 0.0
  %v2294 = vsel %vm748, %v2291, 0.0
  %v2295 = vadd.f32 %v2206, %v2293
  %v2296 = vadd.f32 %v2207, %v2294
  %s2297 = scalar_lea.vmem %s8, 24
  %v2298 = vld [vmem:[%s2297] sm:$0xf]
  %2299 = vrot.lane.b32.xlu0 %v1760, 1
  %v2300 = vpop.permute.xlu0 %2299
  %2302 = vrot.lane.b32.xlu0 %v1759, 1
  %v2303 = vpop.permute.xlu0 %2302
  %v2304 = vsel %vm760, %v2303, %v2300
  %v2307 = vsel %vm760, %v2300, %v2303
  %v2309 = vsel %vm1773, %v2298, 0
  %2311 = vmatprep.subr.mxu0 %v2304
  %2312 = vmatpush1.msra.mxu0 %v2307
  %2313 = vmatprep.subr.mxu0 0.0
  %2314 = vmatpush1.msra.mxu0 0.0
  %2315 = vmatprep.subr.mxu0 0.0
  %2316 = vmatpush1.msra.mxu0 0.0
  %2317 = vmatprep.subr.mxu0 0.0
  %2318 = vmatpush1.msra.mxu0 0.0
  %2319 = vmatprep.subr.mxu0 0.0
  %2320 = vmatpush1.msra.mxu0 0.0
  %2321 = vmatprep.subr.mxu0 0.0
  %2322 = vmatpush1.msra.mxu0 0.0
  %2323 = vmatprep.subr.mxu0 0.0
  %2324 = vmatpush1.msra.mxu0 0.0
  %2325 = vmatprep.subr.mxu0 0.0
  %2326 = vmatpush1.msra.mxu0 0.0
  %2327 = vmatprep.subr.mxu0 0.0
  %2328 = vmatpush1.msra.mxu0 0.0
  %2329 = vmatprep.subr.mxu0 0.0
  %2330 = vmatpush1.msra.mxu0 0.0
  %2331 = vmatprep.subr.mxu0 0.0
  %2332 = vmatpush1.msra.mxu0 0.0
  %2333 = vmatprep.subr.mxu0 0.0
  %2334 = vmatpush1.msra.mxu0 0.0
  %2335 = vmatprep.subr.mxu0 0.0
  %2336 = vmatpush1.msra.mxu0 0.0
  %2337 = vmatprep.subr.mxu0 0.0
  %2338 = vmatpush1.msra.mxu0 0.0
  %2339 = vmatprep.subr.mxu0 0.0
  %2340 = vmatpush1.msra.mxu0 0.0
  %2341 = vmatprep.subr.mxu0 0.0
  %2342 = vmatpush1.msra.mxu0 0.0
  %2343 = vmatprep.subr.mxu0 0.0
  %2344 = vmatpush1.msra.mxu0 0.0
  %2345 = vmatprep.subr.mxu0 0.0
  %2346 = vmatpush1.msra.mxu0 0.0
  %2347 = vmatprep.subr.mxu0 0.0
  %2348 = vmatpush1.msra.mxu0 0.0
  %2349 = vmatprep.subr.mxu0 0.0
  %2350 = vmatpush1.msra.mxu0 0.0
  %2351 = vmatprep.subr.mxu0 0.0
  %2352 = vmatpush1.msra.mxu0 0.0
  %2353 = vmatprep.subr.mxu0 0.0
  %2354 = vmatpush1.msra.mxu0 0.0
  %2355 = vmatprep.subr.mxu0 0.0
  %2356 = vmatpush1.msra.mxu0 0.0
  %2357 = vmatprep.subr.mxu0 0.0
  %2358 = vmatpush1.msra.mxu0 0.0
  %2359 = vmatprep.subr.mxu0 0.0
  %2360 = vmatpush1.msra.mxu0 0.0
  %2361 = vmatprep.subr.mxu0 0.0
  %2362 = vmatpush1.msra.mxu0 0.0
  %2363 = vmatprep.subr.mxu0 0.0
  %2364 = vmatpush1.msra.mxu0 0.0
  %2365 = vmatprep.subr.mxu0 0.0
  %2366 = vmatpush1.msra.mxu0 0.0
  %2367 = vmatprep.subr.mxu0 0.0
  %2368 = vmatpush1.msra.mxu0 0.0
  %2369 = vmatprep.subr.mxu0 0.0
  %2370 = vmatpush1.msra.mxu0 0.0
  %2371 = vmatprep.subr.mxu0 0.0
  %2372 = vmatpush1.msra.mxu0 0.0
  %2373 = vmatprep.subr.mxu0 0.0
  %2374 = vmatpush1.msra.mxu0 0.0
  %2375 = vmatprep.mubr.f32.mxu0 0.0
  %2376 = vmatmul.mubr.f32.gmra.mrb[0].mxu0 %v2309
  %v2377 = vpop.f32.mrb[0].mxu0
  %v2378 = vadd.f32 0.0, %v2377
  %v2379 = vpop.f32.mrb[0].mxu0
  %v2380 = vadd.f32 0.0, %v2379
  %2381 = vdwg.mxu0
  %v2382 = vsel %vm856, %v2378, 0.0
  %v2383 = vsel %vm857, %v2380, 0.0
  %v2384 = vadd.f32 %v2295, %v2382
  %v2385 = vadd.f32 %v2296, %v2383
  %s2386 = scalar_lea.vmem %s8, 28
  %v2387 = vld [vmem:[%s2386] sm:$0xf]
  %v2389 = vsel %vm1773, %v2387, 0
  %2391 = vmatprep.subr.mxu0 %v1760
  %2392 = vmatpush1.msra.mxu0 %v1759
  %2393 = vmatprep.subr.mxu0 0.0
  %2394 = vmatpush1.msra.mxu0 0.0
  %2395 = vmatprep.subr.mxu0 0.0
  %2396 = vmatpush1.msra.mxu0 0.0
  %2397 = vmatprep.subr.mxu0 0.0
  %2398 = vmatpush1.msra.mxu0 0.0
  %2399 = vmatprep.subr.mxu0 0.0
  %2400 = vmatpush1.msra.mxu0 0.0
  %2401 = vmatprep.subr.mxu0 0.0
  %2402 = vmatpush1.msra.mxu0 0.0
  %2403 = vmatprep.subr.mxu0 0.0
  %2404 = vmatpush1.msra.mxu0 0.0
  %2405 = vmatprep.subr.mxu0 0.0
  %2406 = vmatpush1.msra.mxu0 0.0
  %2407 = vmatprep.subr.mxu0 0.0
  %2408 = vmatpush1.msra.mxu0 0.0
  %2409 = vmatprep.subr.mxu0 0.0
  %2410 = vmatpush1.msra.mxu0 0.0
  %2411 = vmatprep.subr.mxu0 0.0
  %2412 = vmatpush1.msra.mxu0 0.0
  %2413 = vmatprep.subr.mxu0 0.0
  %2414 = vmatpush1.msra.mxu0 0.0
  %2415 = vmatprep.subr.mxu0 0.0
  %2416 = vmatpush1.msra.mxu0 0.0
  %2417 = vmatprep.subr.mxu0 0.0
  %2418 = vmatpush1.msra.mxu0 0.0
  %2419 = vmatprep.subr.mxu0 0.0
  %2420 = vmatpush1.msra.mxu0 0.0
  %2421 = vmatprep.subr.mxu0 0.0
  %2422 = vmatpush1.msra.mxu0 0.0
  %2423 = vmatprep.subr.mxu0 0.0
  %2424 = vmatpush1.msra.mxu0 0.0
  %2425 = vmatprep.subr.mxu0 0.0
  %2426 = vmatpush1.msra.mxu0 0.0
  %2427 = vmatprep.subr.mxu0 0.0
  %2428 = vmatpush1.msra.mxu0 0.0
  %2429 = vmatprep.subr.mxu0 0.0
  %2430 = vmatpush1.msra.mxu0 0.0
  %2431 = vmatprep.subr.mxu0 0.0
  %2432 = vmatpush1.msra.mxu0 0.0
  %2433 = vmatprep.subr.mxu0 0.0
  %2434 = vmatpush1.msra.mxu0 0.0
  %2435 = vmatprep.subr.mxu0 0.0
  %2436 = vmatpush1.msra.mxu0 0.0
  %2437 = vmatprep.subr.mxu0 0.0
  %2438 = vmatpush1.msra.mxu0 0.0
  %2439 = vmatprep.subr.mxu0 0.0
  %2440 = vmatpush1.msra.mxu0 0.0
  %2441 = vmatprep.subr.mxu0 0.0
  %2442 = vmatpush1.msra.mxu0 0.0
  %2443 = vmatprep.subr.mxu0 0.0
  %2444 = vmatpush1.msra.mxu0 0.0
  %2445 = vmatprep.subr.mxu0 0.0
  %2446 = vmatpush1.msra.mxu0 0.0
  %2447 = vmatprep.subr.mxu0 0.0
  %2448 = vmatpush1.msra.mxu0 0.0
  %2449 = vmatprep.subr.mxu0 0.0
  %2450 = vmatpush1.msra.mxu0 0.0
  %2451 = vmatprep.subr.mxu0 0.0
  %2452 = vmatpush1.msra.mxu0 0.0
  %2453 = vmatprep.subr.mxu0 0.0
  %2454 = vmatpush1.msra.mxu0 0.0
  %2455 = vmatprep.mubr.f32.mxu0 0.0
  %2456 = vmatmul.mubr.f32.gmra.mrb[0].mxu0 %v2389
  %v2457 = vpop.f32.mrb[0].mxu0
  %v2458 = vadd.f32 0.0, %v2457
  %v2459 = vpop.f32.mrb[0].mxu0
  %v2460 = vadd.f32 0.0, %v2459
  %2461 = vdwg.mxu0
  %v2462 = vadd.f32 %v2384, %v2458
  %v2463 = vadd.f32 %v2385, %v2460
  %s2464 = scalar_lea.vmem %s8, 32
  %v2465 = vld [vmem:[%s2464] sm:$0xf]
  %2466 = vrot.lane.b32.xlu0 %v1759, 127
  %v2467 = vpop.permute.xlu0 %2466
  %2468 = vrot.lane.b32.xlu0 %v1760, 127
  %v2469 = vpop.permute.xlu0 %2468
  %v2470 = vsel %vm950, %v2467, %v2469
  %v2474 = vsel %vm950, %v2469, %v2467
  %v2476 = vsel %vm1773, %v2465, 0
  %2478 = vmatprep.subr.mxu0 %v2474
  %2479 = vmatpush1.msra.mxu0 %v2470
  %2480 = vmatprep.subr.mxu0 0.0
  %2481 = vmatpush1.msra.mxu0 0.0
  %2482 = vmatprep.subr.mxu0 0.0
  %2483 = vmatpush1.msra.mxu0 0.0
  %2484 = vmatprep.subr.mxu0 0.0
  %2485 = vmatpush1.msra.mxu0 0.0
  %2486 = vmatprep.subr.mxu0 0.0
  %2487 = vmatpush1.msra.mxu0 0.0
  %2488 = vmatprep.subr.mxu0 0.0
  %2489 = vmatpush1.msra.mxu0 0.0
  %2490 = vmatprep.subr.mxu0 0.0
  %2491 = vmatpush1.msra.mxu0 0.0
  %2492 = vmatprep.subr.mxu0 0.0
  %2493 = vmatpush1.msra.mxu0 0.0
  %2494 = vmatprep.subr.mxu0 0.0
  %2495 = vmatpush1.msra.mxu0 0.0
  %2496 = vmatprep.subr.mxu0 0.0
  %2497 = vmatpush1.msra.mxu0 0.0
  %2498 = vmatprep.subr.mxu0 0.0
  %2499 = vmatpush1.msra.mxu0 0.0
  %2500 = vmatprep.subr.mxu0 0.0
  %2501 = vmatpush1.msra.mxu0 0.0
  %2502 = vmatprep.subr.mxu0 0.0
  %2503 = vmatpush1.msra.mxu0 0.0
  %2504 = vmatprep.subr.mxu0 0.0
  %2505 = vmatpush1.msra.mxu0 0.0
  %2506 = vmatprep.subr.mxu0 0.0
  %2507 = vmatpush1.msra.mxu0 0.0
  %2508 = vmatprep.subr.mxu0 0.0
  %2509 = vmatpush1.msra.mxu0 0.0
  %2510 = vmatprep.subr.mxu0 0.0
  %2511 = vmatpush1.msra.mxu0 0.0
  %2512 = vmatprep.subr.mxu0 0.0
  %2513 = vmatpush1.msra.mxu0 0.0
  %2514 = vmatprep.subr.mxu0 0.0
  %2515 = vmatpush1.msra.mxu0 0.0
  %2516 = vmatprep.subr.mxu0 0.0
  %2517 = vmatpush1.msra.mxu0 0.0
  %2518 = vmatprep.subr.mxu0 0.0
  %2519 = vmatpush1.msra.mxu0 0.0
  %2520 = vmatprep.subr.mxu0 0.0
  %2521 = vmatpush1.msra.mxu0 0.0
  %2522 = vmatprep.subr.mxu0 0.0
  %2523 = vmatpush1.msra.mxu0 0.0
  %2524 = vmatprep.subr.mxu0 0.0
  %2525 = vmatpush1.msra.mxu0 0.0
  %2526 = vmatprep.subr.mxu0 0.0
  %2527 = vmatpush1.msra.mxu0 0.0
  %2528 = vmatprep.subr.mxu0 0.0
  %2529 = vmatpush1.msra.mxu0 0.0
  %2530 = vmatprep.subr.mxu0 0.0
  %2531 = vmatpush1.msra.mxu0 0.0
  %2532 = vmatprep.subr.mxu0 0.0
  %2533 = vmatpush1.msra.mxu0 0.0
  %2534 = vmatprep.subr.mxu0 0.0
  %2535 = vmatpush1.msra.mxu0 0.0
  %2536 = vmatprep.subr.mxu0 0.0
  %2537 = vmatpush1.msra.mxu0 0.0
  %2538 = vmatprep.subr.mxu0 0.0
  %2539 = vmatpush1.msra.mxu0 0.0
  %2540 = vmatprep.subr.mxu0 0.0
  %2541 = vmatpush1.msra.mxu0 0.0
  %2542 = vmatprep.mubr.f32.mxu0 0.0
  %2543 = vmatmul.mubr.f32.gmra.mrb[0].mxu0 %v2476
  %v2544 = vpop.f32.mrb[0].mxu0
  %v2545 = vadd.f32 0.0, %v2544
  %v2546 = vpop.f32.mrb[0].mxu0
  %v2547 = vadd.f32 0.0, %v2546
  %2548 = vdwg.mxu0
  %v2549 = vsel %vm1047, %v2545, 0.0
  %v2550 = vsel %vm1048, %v2547, 0.0
  %v2551 = vadd.f32 %v2462, %v2549
  %v2552 = vadd.f32 %v2463, %v2550
  %s2553 = scalar_lea.vmem %s8, 36
  %v2554 = vld [vmem:[%s2553] sm:$0xf]
  %2555 = vrot.lane.b32.xlu0 %v1759, 126
  %v2556 = vpop.permute.xlu0 %2555
  %2557 = vrot.lane.b32.xlu0 %v1760, 126
  %v2558 = vpop.permute.xlu0 %2557
  %v2559 = vsel %vm1059, %v2556, %v2558
  %v2563 = vsel %vm1059, %v2558, %v2556
  %v2565 = vsel %vm1773, %v2554, 0
  %2567 = vmatprep.subr.mxu0 %v2563
  %2568 = vmatpush1.msra.mxu0 %v2559
  %2569 = vmatprep.subr.mxu0 0.0
  %2570 = vmatpush1.msra.mxu0 0.0
  %2571 = vmatprep.subr.mxu0 0.0
  %2572 = vmatpush1.msra.mxu0 0.0
  %2573 = vmatprep.subr.mxu0 0.0
  %2574 = vmatpush1.msra.mxu0 0.0
  %2575 = vmatprep.subr.mxu0 0.0
  %2576 = vmatpush1.msra.mxu0 0.0
  %2577 = vmatprep.subr.mxu0 0.0
  %2578 = vmatpush1.msra.mxu0 0.0
  %2579 = vmatprep.subr.mxu0 0.0
  %2580 = vmatpush1.msra.mxu0 0.0
  %2581 = vmatprep.subr.mxu0 0.0
  %2582 = vmatpush1.msra.mxu0 0.0
  %2583 = vmatprep.subr.mxu0 0.0
  %2584 = vmatpush1.msra.mxu0 0.0
  %2585 = vmatprep.subr.mxu0 0.0
  %2586 = vmatpush1.msra.mxu0 0.0
  %2587 = vmatprep.subr.mxu0 0.0
  %2588 = vmatpush1.msra.mxu0 0.0
  %2589 = vmatprep.subr.mxu0 0.0
  %2590 = vmatpush1.msra.mxu0 0.0
  %2591 = vmatprep.subr.mxu0 0.0
  %2592 = vmatpush1.msra.mxu0 0.0
  %2593 = vmatprep.subr.mxu0 0.0
  %2594 = vmatpush1.msra.mxu0 0.0
  %2595 = vmatprep.subr.mxu0 0.0
  %2596 = vmatpush1.msra.mxu0 0.0
  %2597 = vmatprep.subr.mxu0 0.0
  %2598 = vmatpush1.msra.mxu0 0.0
  %2599 = vmatprep.subr.mxu0 0.0
  %2600 = vmatpush1.msra.mxu0 0.0
  %2601 = vmatprep.subr.mxu0 0.0
  %2602 = vmatpush1.msra.mxu0 0.0
  %2603 = vmatprep.subr.mxu0 0.0
  %2604 = vmatpush1.msra.mxu0 0.0
  %2605 = vmatprep.subr.mxu0 0.0
  %2606 = vmatpush1.msra.mxu0 0.0
  %2607 = vmatprep.subr.mxu0 0.0
  %2608 = vmatpush1.msra.mxu0 0.0
  %2609 = vmatprep.subr.mxu0 0.0
  %2610 = vmatpush1.msra.mxu0 0.0
  %2611 = vmatprep.subr.mxu0 0.0
  %2612 = vmatpush1.msra.mxu0 0.0
  %2613 = vmatprep.subr.mxu0 0.0
  %2614 = vmatpush1.msra.mxu0 0.0
  %2615 = vmatprep.subr.mxu0 0.0
  %2616 = vmatpush1.msra.mxu0 0.0
  %2617 = vmatprep.subr.mxu0 0.0
  %2618 = vmatpush1.msra.mxu0 0.0
  %2619 = vmatprep.subr.mxu0 0.0
  %2620 = vmatpush1.msra.mxu0 0.0
  %2621 = vmatprep.subr.mxu0 0.0
  %2622 = vmatpush1.msra.mxu0 0.0
  %2623 = vmatprep.subr.mxu0 0.0
  %2624 = vmatpush1.msra.mxu0 0.0
  %2625 = vmatprep.subr.mxu0 0.0
  %2626 = vmatpush1.msra.mxu0 0.0
  %2627 = vmatprep.subr.mxu0 0.0
  %2628 = vmatpush1.msra.mxu0 0.0
  %2629 = vmatprep.subr.mxu0 0.0
  %2630 = vmatpush1.msra.mxu0 0.0
  %2631 = vmatprep.mubr.f32.mxu0 0.0
  %2632 = vmatmul.mubr.f32.gmra.mrb[0].mxu0 %v2565
  %v2633 = vpop.f32.mrb[0].mxu0
  %v2634 = vadd.f32 0.0, %v2633
  %v2635 = vpop.f32.mrb[0].mxu0
  %v2636 = vadd.f32 0.0, %v2635
  %2637 = vdwg.mxu0
  %v2638 = vsel %vm1156, %v2634, 0.0
  %v2639 = vsel %vm1157, %v2636, 0.0
  %v2640 = vadd.f32 %v2551, %v2638
  %v2641 = vadd.f32 %v2552, %v2639
  %s2642 = scalar_lea.vmem %s8, 40
  %v2643 = vld [vmem:[%s2642] sm:$0xf]
  %2644 = vrot.lane.b32.xlu0 %v1759, 125
  %v2645 = vpop.permute.xlu0 %2644
  %2646 = vrot.lane.b32.xlu0 %v1760, 125
  %v2647 = vpop.permute.xlu0 %2646
  %v2648 = vsel %vm1168, %v2645, %v2647
  %v2652 = vsel %vm1168, %v2647, %v2645
  %v2654 = vsel %vm1773, %v2643, 0
  %2656 = vmatprep.subr.mxu0 %v2652
  %2657 = vmatpush1.msra.mxu0 %v2648
  %2658 = vmatprep.subr.mxu0 0.0
  %2659 = vmatpush1.msra.mxu0 0.0
  %2660 = vmatprep.subr.mxu0 0.0
  %2661 = vmatpush1.msra.mxu0 0.0
  %2662 = vmatprep.subr.mxu0 0.0
  %2663 = vmatpush1.msra.mxu0 0.0
  %2664 = vmatprep.subr.mxu0 0.0
  %2665 = vmatpush1.msra.mxu0 0.0
  %2666 = vmatprep.subr.mxu0 0.0
  %2667 = vmatpush1.msra.mxu0 0.0
  %2668 = vmatprep.subr.mxu0 0.0
  %2669 = vmatpush1.msra.mxu0 0.0
  %2670 = vmatprep.subr.mxu0 0.0
  %2671 = vmatpush1.msra.mxu0 0.0
  %2672 = vmatprep.subr.mxu0 0.0
  %2673 = vmatpush1.msra.mxu0 0.0
  %2674 = vmatprep.subr.mxu0 0.0
  %2675 = vmatpush1.msra.mxu0 0.0
  %2676 = vmatprep.subr.mxu0 0.0
  %2677 = vmatpush1.msra.mxu0 0.0
  %2678 = vmatprep.subr.mxu0 0.0
  %2679 = vmatpush1.msra.mxu0 0.0
  %2680 = vmatprep.subr.mxu0 0.0
  %2681 = vmatpush1.msra.mxu0 0.0
  %2682 = vmatprep.subr.mxu0 0.0
  %2683 = vmatpush1.msra.mxu0 0.0
  %2684 = vmatprep.subr.mxu0 0.0
  %2685 = vmatpush1.msra.mxu0 0.0
  %2686 = vmatprep.subr.mxu0 0.0
  %2687 = vmatpush1.msra.mxu0 0.0
  %2688 = vmatprep.subr.mxu0 0.0
  %2689 = vmatpush1.msra.mxu0 0.0
  %2690 = vmatprep.subr.mxu0 0.0
  %2691 = vmatpush1.msra.mxu0 0.0
  %2692 = vmatprep.subr.mxu0 0.0
  %2693 = vmatpush1.msra.mxu0 0.0
  %2694 = vmatprep.subr.mxu0 0.0
  %2695 = vmatpush1.msra.mxu0 0.0
  %2696 = vmatprep.subr.mxu0 0.0
  %2697 = vmatpush1.msra.mxu0 0.0
  %2698 = vmatprep.subr.mxu0 0.0
  %2699 = vmatpush1.msra.mxu0 0.0
  %2700 = vmatprep.subr.mxu0 0.0
  %2701 = vmatpush1.msra.mxu0 0.0
  %2702 = vmatprep.subr.mxu0 0.0
  %2703 = vmatpush1.msra.mxu0 0.0
  %2704 = vmatprep.subr.mxu0 0.0
  %2705 = vmatpush1.msra.mxu0 0.0
  %2706 = vmatprep.subr.mxu0 0.0
  %2707 = vmatpush1.msra.mxu0 0.0
  %2708 = vmatprep.subr.mxu0 0.0
  %2709 = vmatpush1.msra.mxu0 0.0
  %2710 = vmatprep.subr.mxu0 0.0
  %2711 = vmatpush1.msra.mxu0 0.0
  %2712 = vmatprep.subr.mxu0 0.0
  %2713 = vmatpush1.msra.mxu0 0.0
  %2714 = vmatprep.subr.mxu0 0.0
  %2715 = vmatpush1.msra.mxu0 0.0
  %2716 = vmatprep.subr.mxu0 0.0
  %2717 = vmatpush1.msra.mxu0 0.0
  %2718 = vmatprep.subr.mxu0 0.0
  %2719 = vmatpush1.msra.mxu0 0.0
  %2720 = vmatprep.mubr.f32.mxu0 0.0
  %2721 = vmatmul.mubr.f32.gmra.mrb[0].mxu0 %v2654
  %v2722 = vpop.f32.mrb[0].mxu0
  %v2723 = vadd.f32 0.0, %v2722
  %v2724 = vpop.f32.mrb[0].mxu0
  %v2725 = vadd.f32 0.0, %v2724
  %2726 = vdwg.mxu0
  %v2727 = vsel %vm1265, %v2723, 0.0
  %v2728 = vsel %vm1266, %v2725, 0.0
  %v2729 = vadd.f32 %v2640, %v2727
  %v2730 = vadd.f32 %v2641, %v2728
  %s2731 = scalar_lea.vmem %s8, 44
  %v2732 = vld [vmem:[%s2731] sm:$0xf]
  %2733 = vrot.lane.b32.xlu0 %v1759, 124
  %v2734 = vpop.permute.xlu0 %2733
  %2735 = vrot.lane.b32.xlu0 %v1760, 124
  %v2736 = vpop.permute.xlu0 %2735
  %v2737 = vsel %vm1277, %v2734, %v2736
  %v2741 = vsel %vm1277, %v2736, %v2734
  %v2743 = vsel %vm1773, %v2732, 0
  %2745 = vmatprep.subr.mxu0 %v2741
  %2746 = vmatpush1.msra.mxu0 %v2737
  %2747 = vmatprep.subr.mxu0 0.0
  %2748 = vmatpush1.msra.mxu0 0.0
  %2749 = vmatprep.subr.mxu0 0.0
  %2750 = vmatpush1.msra.mxu0 0.0
  %2751 = vmatprep.subr.mxu0 0.0
  %2752 = vmatpush1.msra.mxu0 0.0
  %2753 = vmatprep.subr.mxu0 0.0
  %2754 = vmatpush1.msra.mxu0 0.0
  %2755 = vmatprep.subr.mxu0 0.0
  %2756 = vmatpush1.msra.mxu0 0.0
  %2757 = vmatprep.subr.mxu0 0.0
  %2758 = vmatpush1.msra.mxu0 0.0
  %2759 = vmatprep.subr.mxu0 0.0
  %2760 = vmatpush1.msra.mxu0 0.0
  %2761 = vmatprep.subr.mxu0 0.0
  %2762 = vmatpush1.msra.mxu0 0.0
  %2763 = vmatprep.subr.mxu0 0.0
  %2764 = vmatpush1.msra.mxu0 0.0
  %2765 = vmatprep.subr.mxu0 0.0
  %2766 = vmatpush1.msra.mxu0 0.0
  %2767 = vmatprep.subr.mxu0 0.0
  %2768 = vmatpush1.msra.mxu0 0.0
  %2769 = vmatprep.subr.mxu0 0.0
  %2770 = vmatpush1.msra.mxu0 0.0
  %2771 = vmatprep.subr.mxu0 0.0
  %2772 = vmatpush1.msra.mxu0 0.0
  %2773 = vmatprep.subr.mxu0 0.0
  %2774 = vmatpush1.msra.mxu0 0.0
  %2775 = vmatprep.subr.mxu0 0.0
  %2776 = vmatpush1.msra.mxu0 0.0
  %2777 = vmatprep.subr.mxu0 0.0
  %2778 = vmatpush1.msra.mxu0 0.0
  %2779 = vmatprep.subr.mxu0 0.0
  %2780 = vmatpush1.msra.mxu0 0.0
  %2781 = vmatprep.subr.mxu0 0.0
  %2782 = vmatpush1.msra.mxu0 0.0
  %2783 = vmatprep.subr.mxu0 0.0
  %2784 = vmatpush1.msra.mxu0 0.0
  %2785 = vmatprep.subr.mxu0 0.0
  %2786 = vmatpush1.msra.mxu0 0.0
  %2787 = vmatprep.subr.mxu0 0.0
  %2788 = vmatpush1.msra.mxu0 0.0
  %2789 = vmatprep.subr.mxu0 0.0
  %2790 = vmatpush1.msra.mxu0 0.0
  %2791 = vmatprep.subr.mxu0 0.0
  %2792 = vmatpush1.msra.mxu0 0.0
  %2793 = vmatprep.subr.mxu0 0.0
  %2794 = vmatpush1.msra.mxu0 0.0
  %2795 = vmatprep.subr.mxu0 0.0
  %2796 = vmatpush1.msra.mxu0 0.0
  %2797 = vmatprep.subr.mxu0 0.0
  %2798 = vmatpush1.msra.mxu0 0.0
  %2799 = vmatprep.subr.mxu0 0.0
  %2800 = vmatpush1.msra.mxu0 0.0
  %2801 = vmatprep.subr.mxu0 0.0
  %2802 = vmatpush1.msra.mxu0 0.0
  %2803 = vmatprep.subr.mxu0 0.0
  %2804 = vmatpush1.msra.mxu0 0.0
  %2805 = vmatprep.subr.mxu0 0.0
  %2806 = vmatpush1.msra.mxu0 0.0
  %2807 = vmatprep.subr.mxu0 0.0
  %2808 = vmatpush1.msra.mxu0 0.0
  %2809 = vmatprep.mubr.f32.mxu0 0.0
  %2810 = vmatmul.mubr.f32.gmra.mrb[0].mxu0 %v2743
  %v2811 = vpop.f32.mrb[0].mxu0
  %v2812 = vadd.f32 0.0, %v2811
  %v2813 = vpop.f32.mrb[0].mxu0
  %v2814 = vadd.f32 0.0, %v2813
  %2815 = vdwg.mxu0
  %v2816 = vsel %vm1374, %v2812, 0.0
  %v2817 = vsel %vm1375, %v2814, 0.0
  %v2818 = vadd.f32 %v2729, %v2816
  %v2819 = vadd.f32 %v2730, %v2817
  %s2820 = scalar_lea.vmem %s8, 48
  %v2821 = vld [vmem:[%s2820] sm:$0xf]
  %2822 = vrot.lane.b32.xlu0 %v1759, 123
  %v2823 = vpop.permute.xlu0 %2822
  %2824 = vrot.lane.b32.xlu0 %v1760, 123
  %v2825 = vpop.permute.xlu0 %2824
  %v2826 = vsel %vm1386, %v2823, %v2825
  %v2830 = vsel %vm1386, %v2825, %v2823
  %v2832 = vsel %vm1773, %v2821, 0
  %2834 = vmatprep.subr.mxu0 %v2830
  %2835 = vmatpush1.msra.mxu0 %v2826
  %2836 = vmatprep.subr.mxu0 0.0
  %2837 = vmatpush1.msra.mxu0 0.0
  %2838 = vmatprep.subr.mxu0 0.0
  %2839 = vmatpush1.msra.mxu0 0.0
  %2840 = vmatprep.subr.mxu0 0.0
  %2841 = vmatpush1.msra.mxu0 0.0
  %2842 = vmatprep.subr.mxu0 0.0
  %2843 = vmatpush1.msra.mxu0 0.0
  %2844 = vmatprep.subr.mxu0 0.0
  %2845 = vmatpush1.msra.mxu0 0.0
  %2846 = vmatprep.subr.mxu0 0.0
  %2847 = vmatpush1.msra.mxu0 0.0
  %2848 = vmatprep.subr.mxu0 0.0
  %2849 = vmatpush1.msra.mxu0 0.0
  %2850 = vmatprep.subr.mxu0 0.0
  %2851 = vmatpush1.msra.mxu0 0.0
  %2852 = vmatprep.subr.mxu0 0.0
  %2853 = vmatpush1.msra.mxu0 0.0
  %2854 = vmatprep.subr.mxu0 0.0
  %2855 = vmatpush1.msra.mxu0 0.0
  %2856 = vmatprep.subr.mxu0 0.0
  %2857 = vmatpush1.msra.mxu0 0.0
  %2858 = vmatprep.subr.mxu0 0.0
  %2859 = vmatpush1.msra.mxu0 0.0
  %2860 = vmatprep.subr.mxu0 0.0
  %2861 = vmatpush1.msra.mxu0 0.0
  %2862 = vmatprep.subr.mxu0 0.0
  %2863 = vmatpush1.msra.mxu0 0.0
  %2864 = vmatprep.subr.mxu0 0.0
  %2865 = vmatpush1.msra.mxu0 0.0
  %2866 = vmatprep.subr.mxu0 0.0
  %2867 = vmatpush1.msra.mxu0 0.0
  %2868 = vmatprep.subr.mxu0 0.0
  %2869 = vmatpush1.msra.mxu0 0.0
  %2870 = vmatprep.subr.mxu0 0.0
  %2871 = vmatpush1.msra.mxu0 0.0
  %2872 = vmatprep.subr.mxu0 0.0
  %2873 = vmatpush1.msra.mxu0 0.0
  %2874 = vmatprep.subr.mxu0 0.0
  %2875 = vmatpush1.msra.mxu0 0.0
  %2876 = vmatprep.subr.mxu0 0.0
  %2877 = vmatpush1.msra.mxu0 0.0
  %2878 = vmatprep.subr.mxu0 0.0
  %2879 = vmatpush1.msra.mxu0 0.0
  %2880 = vmatprep.subr.mxu0 0.0
  %2881 = vmatpush1.msra.mxu0 0.0
  %2882 = vmatprep.subr.mxu0 0.0
  %2883 = vmatpush1.msra.mxu0 0.0
  %2884 = vmatprep.subr.mxu0 0.0
  %2885 = vmatpush1.msra.mxu0 0.0
  %2886 = vmatprep.subr.mxu0 0.0
  %2887 = vmatpush1.msra.mxu0 0.0
  %2888 = vmatprep.subr.mxu0 0.0
  %2889 = vmatpush1.msra.mxu0 0.0
  %2890 = vmatprep.subr.mxu0 0.0
  %2891 = vmatpush1.msra.mxu0 0.0
  %2892 = vmatprep.subr.mxu0 0.0
  %2893 = vmatpush1.msra.mxu0 0.0
  %2894 = vmatprep.subr.mxu0 0.0
  %2895 = vmatpush1.msra.mxu0 0.0
  %2896 = vmatprep.subr.mxu0 0.0
  %2897 = vmatpush1.msra.mxu0 0.0
  %2898 = vmatprep.mubr.f32.mxu0 0.0
  %2899 = vmatmul.mubr.f32.gmra.mrb[0].mxu0 %v2832
  %v2900 = vpop.f32.mrb[0].mxu0
  %v2901 = vadd.f32 0.0, %v2900
  %v2902 = vpop.f32.mrb[0].mxu0
  %v2903 = vadd.f32 0.0, %v2902
  %2904 = vdwg.mxu0
  %v2905 = vsel %vm1483, %v2901, 0.0
  %v2906 = vsel %vm1484, %v2903, 0.0
  %v2907 = vadd.f32 %v2818, %v2905
  %v2908 = vadd.f32 %v2819, %v2906
  %s2909 = scalar_lea.vmem %s8, 52
  %v2910 = vld [vmem:[%s2909] sm:$0xf]
  %2911 = vrot.lane.b32.xlu0 %v1759, 122
  %v2912 = vpop.permute.xlu0 %2911
  %2913 = vrot.lane.b32.xlu0 %v1760, 122
  %v2914 = vpop.permute.xlu0 %2913
  %v2915 = vsel %vm1495, %v2912, %v2914
  %v2919 = vsel %vm1495, %v2914, %v2912
  %v2921 = vsel %vm1773, %v2910, 0
  %2923 = vmatprep.subr.mxu0 %v2919
  %2924 = vmatpush1.msra.mxu0 %v2915
  %2925 = vmatprep.subr.mxu0 0.0
  %2926 = vmatpush1.msra.mxu0 0.0
  %2927 = vmatprep.subr.mxu0 0.0
  %2928 = vmatpush1.msra.mxu0 0.0
  %2929 = vmatprep.subr.mxu0 0.0
  %2930 = vmatpush1.msra.mxu0 0.0
  %2931 = vmatprep.subr.mxu0 0.0
  %2932 = vmatpush1.msra.mxu0 0.0
  %2933 = vmatprep.subr.mxu0 0.0
  %2934 = vmatpush1.msra.mxu0 0.0
  %2935 = vmatprep.subr.mxu0 0.0
  %2936 = vmatpush1.msra.mxu0 0.0
  %2937 = vmatprep.subr.mxu0 0.0
  %2938 = vmatpush1.msra.mxu0 0.0
  %2939 = vmatprep.subr.mxu0 0.0
  %2940 = vmatpush1.msra.mxu0 0.0
  %2941 = vmatprep.subr.mxu0 0.0
  %2942 = vmatpush1.msra.mxu0 0.0
  %2943 = vmatprep.subr.mxu0 0.0
  %2944 = vmatpush1.msra.mxu0 0.0
  %2945 = vmatprep.subr.mxu0 0.0
  %2946 = vmatpush1.msra.mxu0 0.0
  %2947 = vmatprep.subr.mxu0 0.0
  %2948 = vmatpush1.msra.mxu0 0.0
  %2949 = vmatprep.subr.mxu0 0.0
  %2950 = vmatpush1.msra.mxu0 0.0
  %2951 = vmatprep.subr.mxu0 0.0
  %2952 = vmatpush1.msra.mxu0 0.0
  %2953 = vmatprep.subr.mxu0 0.0
  %2954 = vmatpush1.msra.mxu0 0.0
  %2955 = vmatprep.subr.mxu0 0.0
  %2956 = vmatpush1.msra.mxu0 0.0
  %2957 = vmatprep.subr.mxu0 0.0
  %2958 = vmatpush1.msra.mxu0 0.0
  %2959 = vmatprep.subr.mxu0 0.0
  %2960 = vmatpush1.msra.mxu0 0.0
  %2961 = vmatprep.subr.mxu0 0.0
  %2962 = vmatpush1.msra.mxu0 0.0
  %2963 = vmatprep.subr.mxu0 0.0
  %2964 = vmatpush1.msra.mxu0 0.0
  %2965 = vmatprep.subr.mxu0 0.0
  %2966 = vmatpush1.msra.mxu0 0.0
  %2967 = vmatprep.subr.mxu0 0.0
  %2968 = vmatpush1.msra.mxu0 0.0
  %2969 = vmatprep.subr.mxu0 0.0
  %2970 = vmatpush1.msra.mxu0 0.0
  %2971 = vmatprep.subr.mxu0 0.0
  %2972 = vmatpush1.msra.mxu0 0.0
  %2973 = vmatprep.subr.mxu0 0.0
  %2974 = vmatpush1.msra.mxu0 0.0
  %2975 = vmatprep.subr.mxu0 0.0
  %2976 = vmatpush1.msra.mxu0 0.0
  %2977 = vmatprep.subr.mxu0 0.0
  %2978 = vmatpush1.msra.mxu0 0.0
  %2979 = vmatprep.subr.mxu0 0.0
  %2980 = vmatpush1.msra.mxu0 0.0
  %2981 = vmatprep.subr.mxu0 0.0
  %2982 = vmatpush1.msra.mxu0 0.0
  %2983 = vmatprep.subr.mxu0 0.0
  %2984 = vmatpush1.msra.mxu0 0.0
  %2985 = vmatprep.subr.mxu0 0.0
  %2986 = vmatpush1.msra.mxu0 0.0
  %2987 = vmatprep.mubr.f32.mxu0 0.0
  %2988 = vmatmul.mubr.f32.gmra.mrb[0].mxu0 %v2921
  %v2989 = vpop.f32.mrb[0].mxu0
  %v2990 = vadd.f32 0.0, %v2989
  %v2991 = vpop.f32.mrb[0].mxu0
  %v2992 = vadd.f32 0.0, %v2991
  %2993 = vdwg.mxu0
  %v2994 = vsel %vm1592, %v2990, 0.0
  %v2995 = vsel %vm1593, %v2992, 0.0
  %v2996 = vadd.f32 %v2907, %v2994
  %v2997 = vadd.f32 %v2908, %v2995
  %s2998 = scalar_lea.vmem %s8, 56
  %v2999 = vld [vmem:[%s2998] sm:$0xf]
  %3000 = vrot.lane.b32.xlu0 %v1759, 121
  %v3001 = vpop.permute.xlu0 %3000
  %3002 = vrot.lane.b32.xlu0 %v1760, 121
  %v3003 = vpop.permute.xlu0 %3002
  %v3004 = vsel %vm1604, %v3001, %v3003
  %v3008 = vsel %vm1604, %v3003, %v3001
  %v3010 = vsel %vm1773, %v2999, 0
  %3012 = vmatprep.subr.mxu0 %v3008
  %3013 = vmatpush1.msra.mxu0 %v3004
  %3014 = vmatprep.subr.mxu0 0.0
  %3015 = vmatpush1.msra.mxu0 0.0
  %3016 = vmatprep.subr.mxu0 0.0
  %3017 = vmatpush1.msra.mxu0 0.0
  %3018 = vmatprep.subr.mxu0 0.0
  %3019 = vmatpush1.msra.mxu0 0.0
  %3020 = vmatprep.subr.mxu0 0.0
  %3021 = vmatpush1.msra.mxu0 0.0
  %3022 = vmatprep.subr.mxu0 0.0
  %3023 = vmatpush1.msra.mxu0 0.0
  %3024 = vmatprep.subr.mxu0 0.0
  %3025 = vmatpush1.msra.mxu0 0.0
  %3026 = vmatprep.subr.mxu0 0.0
  %3027 = vmatpush1.msra.mxu0 0.0
  %3028 = vmatprep.subr.mxu0 0.0
  %3029 = vmatpush1.msra.mxu0 0.0
  %3030 = vmatprep.subr.mxu0 0.0
  %3031 = vmatpush1.msra.mxu0 0.0
  %3032 = vmatprep.subr.mxu0 0.0
  %3033 = vmatpush1.msra.mxu0 0.0
  %3034 = vmatprep.subr.mxu0 0.0
  %3035 = vmatpush1.msra.mxu0 0.0
  %3036 = vmatprep.subr.mxu0 0.0
  %3037 = vmatpush1.msra.mxu0 0.0
  %3038 = vmatprep.subr.mxu0 0.0
  %3039 = vmatpush1.msra.mxu0 0.0
  %3040 = vmatprep.subr.mxu0 0.0
  %3041 = vmatpush1.msra.mxu0 0.0
  %3042 = vmatprep.subr.mxu0 0.0
  %3043 = vmatpush1.msra.mxu0 0.0
  %3044 = vmatprep.subr.mxu0 0.0
  %3045 = vmatpush1.msra.mxu0 0.0
  %3046 = vmatprep.subr.mxu0 0.0
  %3047 = vmatpush1.msra.mxu0 0.0
  %3048 = vmatprep.subr.mxu0 0.0
  %3049 = vmatpush1.msra.mxu0 0.0
  %3050 = vmatprep.subr.mxu0 0.0
  %3051 = vmatpush1.msra.mxu0 0.0
  %3052 = vmatprep.subr.mxu0 0.0
  %3053 = vmatpush1.msra.mxu0 0.0
  %3054 = vmatprep.subr.mxu0 0.0
  %3055 = vmatpush1.msra.mxu0 0.0
  %3056 = vmatprep.subr.mxu0 0.0
  %3057 = vmatpush1.msra.mxu0 0.0
  %3058 = vmatprep.subr.mxu0 0.0
  %3059 = vmatpush1.msra.mxu0 0.0
  %3060 = vmatprep.subr.mxu0 0.0
  %3061 = vmatpush1.msra.mxu0 0.0
  %3062 = vmatprep.subr.mxu0 0.0
  %3063 = vmatpush1.msra.mxu0 0.0
  %3064 = vmatprep.subr.mxu0 0.0
  %3065 = vmatpush1.msra.mxu0 0.0
  %3066 = vmatprep.subr.mxu0 0.0
  %3067 = vmatpush1.msra.mxu0 0.0
  %3068 = vmatprep.subr.mxu0 0.0
  %3069 = vmatpush1.msra.mxu0 0.0
  %3070 = vmatprep.subr.mxu0 0.0
  %3071 = vmatpush1.msra.mxu0 0.0
  %3072 = vmatprep.subr.mxu0 0.0
  %3073 = vmatpush1.msra.mxu0 0.0
  %3074 = vmatprep.subr.mxu0 0.0
  %3075 = vmatpush1.msra.mxu0 0.0
  %3076 = vmatprep.mubr.f32.mxu0 0.0
  %3077 = vmatmul.mubr.f32.gmra.mrb[0].mxu0 %v3010
  %v3078 = vpop.f32.mrb[0].mxu0
  %v3079 = vadd.f32 0.0, %v3078
  %v3080 = vpop.f32.mrb[0].mxu0
  %v3081 = vadd.f32 0.0, %v3080
  %3082 = vdwg.mxu0
  %v3083 = vsel %vm1701, %v3079, 0.0
  %v3084 = vsel %vm1702, %v3081, 0.0
  %v3085 = vadd.f32 %v2996, %v3083
  %v3086 = vadd.f32 %v2997, %v3084
  %3088 = vset.pattern.permute.xlu0 0
  %3089 = vperm.xlu0 %3088, %v1724
  %v3090 = vpop.permute.xlu0 %3089
  %v3092 = vadd.f32 %v3085, %v3090
  %v3093 = vadd.f32 %v3086, %v3090
  %3094 = vst [vmem:[%s14 + $0x10] sm:$0xf] %v3092
  %3095 = vst [vmem:[%s14 + $0x18] sm:$0xf] %v3093
  %v3096 = vld [vmem:[%s10] sm:$0xff]
  %v3097 = vld [vmem:[%s10 + $0x8] sm:$0xf]
  %v3098 = vld [vmem:[%s11] sm:$0xff]
  %v3099 = vld [vmem:[%s11 + $0x8] sm:$0xf]
  %v3100 = vld [vmem:[%s13] sm:$0xf]
  %v3101 = vld [vmem:[%s14] sm:$0xff]
  %v3102 = vld [vmem:[%s14 + $0x8] sm:$0xff]
  %v3103 = vld [vmem:[%s14 + $0x10] sm:$0xf]
  %v3104 = vld [vmem:[%s14 + $0x18] sm:$0xf]
  %v3105 = vadd.f32 %v3101, %v3102
  %3106 = vadd.xlane.f32.xlu0 %v3105
  %v3107 = vpop.xlane.xlu0 %3106
  %v3108 = vsel %vm59, %v3103, 0.0
  %v3109 = vsel %vm59, %v3104, 0.0
  %v3110 = vadd.f32 %v3108, %v3109
  %3111 = vadd.xlane.f32.xlu0 %v3110
  %v3112 = vpop.xlane.xlu0 %3111
  %v3113 = vmul.f32 %v3101, %v3101
  %v3114 = vmul.f32 %v3102, %v3102
  %v3115 = vmul.f32 %v3103, %v3103
  %v3116 = vmul.f32 %v3104, %v3104
  %v3117 = vadd.f32 %v3113, %v3114
  %3118 = vadd.xlane.f32.xlu0 %v3117
  %v3119 = vpop.xlane.xlu0 %3118
  %v3120 = vsel %vm59, %v3115, 0.0
  %v3121 = vsel %vm59, %v3116, 0.0
  %v3122 = vadd.f32 %v3120, %v3121
  %3123 = vadd.xlane.f32.xlu0 %v3122
  %v3124 = vpop.xlane.xlu0 %3123
  %v3125 = vmul.f32 %v3107, 0.00390625
  %v3126 = vmul.f32 %v3112, 0.00390625
  %v3127 = vmul.f32 %v3119, 0.00390625
  %v3128 = vmul.f32 %v3124, 0.00390625
  %v3129 = vmul.f32 %v3125, %v3125
  %v3130 = vmul.f32 %v3126, %v3126
  %v3131 = vsub.f32 %v3127, %v3129
  %v3132 = vsub.f32 %v3128, %v3130
  %v3133 = vmax.f32 %v3131, 0.0
  %v3134 = vmax.f32 %v3132, 0.0
  %v3135 = vadd.f32 %v3133, 1e-05
  %v3136 = vadd.f32 %v3134, 1e-05
  %v3137 = vrsqrt.pop %v3135
  %v3138 = vrsqrt.pop %v3136
  %v3139 = vmul.f32 %v3096, %v3137
  %v3140 = vmul.f32 %v3097, %v3138
  %v3141 = vmul.f32 %v3125, %v3139
  %v3142 = vmul.f32 %v3126, %v3140
  %v3143 = vsub.f32 %v3098, %v3141
  %v3144 = vsub.f32 %v3099, %v3142
  %3146 = vset.pattern.permute.xlu0 0
  %3147 = vperm.xlu0 %3146, %v3139
  %v3148 = vpop.permute.xlu0 %3147
  %3151 = vset.pattern.permute.xlu0 0
  %3152 = vperm.xlu0 %3151, %v3140
  %v3153 = vpop.permute.xlu0 %3152
  %v3155 = vmul.f32 %v3101, %v3148
  %v3156 = vmul.f32 %v3102, %v3148
  %v3157 = vmul.f32 %v3103, %v3153
  %v3158 = vmul.f32 %v3104, %v3153
  %3160 = vset.pattern.permute.xlu0 0
  %3161 = vperm.xlu0 %3160, %v3143
  %v3162 = vpop.permute.xlu0 %3161
  %3165 = vset.pattern.permute.xlu0 0
  %3166 = vperm.xlu0 %3165, %v3144
  %v3167 = vpop.permute.xlu0 %3166
  %v3169 = vadd.f32 %v3155, %v3162
  %v3170 = vadd.f32 %v3156, %v3162
  %v3171 = vadd.f32 %v3157, %v3167
  %v3172 = vadd.f32 %v3158, %v3167
  %v3173 = vmax.f32 %v3169, 0.0
  %v3174 = vmax.f32 %v3170, 0.0
  %v3175 = vmax.f32 %v3171, 0.0
  %v3176 = vmax.f32 %v3172, 0.0
  %v3177 = vld [vmem:[%s12] sm:$0xf]
  %3180 = vrot.lane.b32.xlu0 %v3174, 7
  %v3181 = vpop.permute.xlu0 %3180
  %3182 = vrot.lane.b32.xlu0 %v3176, 7
  %v3183 = vpop.permute.xlu0 %3182
  %3188 = vrot.lane.b32.xlu0 %v3173, 7
  %v3189 = vpop.permute.xlu0 %3188
  %3190 = vrot.lane.b32.xlu0 %v3175, 7
  %v3191 = vpop.permute.xlu0 %3190
  %v3192 = vsel %vm106, %v3189, %v3181
  %v3193 = vsel %vm106, %v3191, %v3183
  %v3197 = vsel %vm106, %v3181, %v3189
  %v3198 = vsel %vm106, %v3183, %v3191
  %vm3199 = vcmask 97280
  %v3201 = vsel %vm3199, %v3177, 0
  %v3204 = vsel %vm59, %v3198, 0
  %v3206 = vsel %vm59, %v3193, 0
  %3208 = vmatprep.subr.mxu0 %v3192
  %3209 = vmatpush1.msra.mxu0 %v3197
  %3210 = vmatprep.subr.mxu0 %v3206
  %3211 = vmatpush1.msra.mxu0 %v3204
  %3212 = vmatprep.subr.mxu0 0.0
  %3213 = vmatpush1.msra.mxu0 0.0
  %3214 = vmatprep.subr.mxu0 0.0
  %3215 = vmatpush1.msra.mxu0 0.0
  %3216 = vmatprep.subr.mxu0 0.0
  %3217 = vmatpush1.msra.mxu0 0.0
  %3218 = vmatprep.subr.mxu0 0.0
  %3219 = vmatpush1.msra.mxu0 0.0
  %3220 = vmatprep.subr.mxu0 0.0
  %3221 = vmatpush1.msra.mxu0 0.0
  %3222 = vmatprep.subr.mxu0 0.0
  %3223 = vmatpush1.msra.mxu0 0.0
  %3224 = vmatprep.subr.mxu0 0.0
  %3225 = vmatpush1.msra.mxu0 0.0
  %3226 = vmatprep.subr.mxu0 0.0
  %3227 = vmatpush1.msra.mxu0 0.0
  %3228 = vmatprep.subr.mxu0 0.0
  %3229 = vmatpush1.msra.mxu0 0.0
  %3230 = vmatprep.subr.mxu0 0.0
  %3231 = vmatpush1.msra.mxu0 0.0
  %3232 = vmatprep.subr.mxu0 0.0
  %3233 = vmatpush1.msra.mxu0 0.0
  %3234 = vmatprep.subr.mxu0 0.0
  %3235 = vmatpush1.msra.mxu0 0.0
  %3236 = vmatprep.subr.mxu0 0.0
  %3237 = vmatpush1.msra.mxu0 0.0
  %3238 = vmatprep.subr.mxu0 0.0
  %3239 = vmatpush1.msra.mxu0 0.0
  %3240 = vmatprep.subr.mxu0 0.0
  %3241 = vmatpush1.msra.mxu0 0.0
  %3242 = vmatprep.subr.mxu0 0.0
  %3243 = vmatpush1.msra.mxu0 0.0
  %3244 = vmatprep.subr.mxu0 0.0
  %3245 = vmatpush1.msra.mxu0 0.0
  %3246 = vmatprep.subr.mxu0 0.0
  %3247 = vmatpush1.msra.mxu0 0.0
  %3248 = vmatprep.subr.mxu0 0.0
  %3249 = vmatpush1.msra.mxu0 0.0
  %3250 = vmatprep.subr.mxu0 0.0
  %3251 = vmatpush1.msra.mxu0 0.0
  %3252 = vmatprep.subr.mxu0 0.0
  %3253 = vmatpush1.msra.mxu0 0.0
  %3254 = vmatprep.subr.mxu0 0.0
  %3255 = vmatpush1.msra.mxu0 0.0
  %3256 = vmatprep.subr.mxu0 0.0
  %3257 = vmatpush1.msra.mxu0 0.0
  %3258 = vmatprep.subr.mxu0 0.0
  %3259 = vmatpush1.msra.mxu0 0.0
  %3260 = vmatprep.subr.mxu0 0.0
  %3261 = vmatpush1.msra.mxu0 0.0
  %3262 = vmatprep.subr.mxu0 0.0
  %3263 = vmatpush1.msra.mxu0 0.0
  %3264 = vmatprep.subr.mxu0 0.0
  %3265 = vmatpush1.msra.mxu0 0.0
  %3266 = vmatprep.subr.mxu0 0.0
  %3267 = vmatpush1.msra.mxu0 0.0
  %3268 = vmatprep.subr.mxu0 0.0
  %3269 = vmatpush1.msra.mxu0 0.0
  %3270 = vmatprep.subr.mxu0 0.0
  %3271 = vmatpush1.msra.mxu0 0.0
  %3272 = vmatprep.mubr.f32.mxu0 0.0
  %3273 = vmatmul.mubr.f32.gmra.mrb[0].mxu0 %v3201
  %v3274 = vpop.f32.mrb[0].mxu0
  %v3275 = vadd.f32 0.0, %v3274
  %v3276 = vpop.f32.mrb[0].mxu0
  %v3277 = vadd.f32 0.0, %v3276
  %3278 = vdwg.mxu0
  %v3279 = vsel %vm203, %v3275, 0.0
  %v3280 = vsel %vm204, %v3277, 0.0
  %v3281 = vadd.f32 %v3279, 0.0
  %v3282 = vadd.f32 %v3280, 0.0
  %s3283 = scalar_lea.vmem %s12, 4
  %v3284 = vld [vmem:[%s3283] sm:$0xf]
  %3285 = vrot.lane.b32.xlu0 %v3174, 6
  %v3286 = vpop.permute.xlu0 %3285
  %3287 = vrot.lane.b32.xlu0 %v3176, 6
  %v3288 = vpop.permute.xlu0 %3287
  %3291 = vrot.lane.b32.xlu0 %v3173, 6
  %v3292 = vpop.permute.xlu0 %3291
  %3293 = vrot.lane.b32.xlu0 %v3175, 6
  %v3294 = vpop.permute.xlu0 %3293
  %v3295 = vsel %vm216, %v3292, %v3286
  %v3296 = vsel %vm216, %v3294, %v3288
  %v3300 = vsel %vm216, %v3286, %v3292
  %v3301 = vsel %vm216, %v3288, %v3294
  %v3303 = vsel %vm3199, %v3284, 0
  %v3306 = vsel %vm59, %v3301, 0
  %v3308 = vsel %vm59, %v3296, 0
  %3310 = vmatprep.subr.mxu0 %v3295
  %3311 = vmatpush1.msra.mxu0 %v3300
  %3312 = vmatprep.subr.mxu0 %v3308
  %3313 = vmatpush1.msra.mxu0 %v3306
  %3314 = vmatprep.subr.mxu0 0.0
  %3315 = vmatpush1.msra.mxu0 0.0
  %3316 = vmatprep.subr.mxu0 0.0
  %3317 = vmatpush1.msra.mxu0 0.0
  %3318 = vmatprep.subr.mxu0 0.0
  %3319 = vmatpush1.msra.mxu0 0.0
  %3320 = vmatprep.subr.mxu0 0.0
  %3321 = vmatpush1.msra.mxu0 0.0
  %3322 = vmatprep.subr.mxu0 0.0
  %3323 = vmatpush1.msra.mxu0 0.0
  %3324 = vmatprep.subr.mxu0 0.0
  %3325 = vmatpush1.msra.mxu0 0.0
  %3326 = vmatprep.subr.mxu0 0.0
  %3327 = vmatpush1.msra.mxu0 0.0
  %3328 = vmatprep.subr.mxu0 0.0
  %3329 = vmatpush1.msra.mxu0 0.0
  %3330 = vmatprep.subr.mxu0 0.0
  %3331 = vmatpush1.msra.mxu0 0.0
  %3332 = vmatprep.subr.mxu0 0.0
  %3333 = vmatpush1.msra.mxu0 0.0
  %3334 = vmatprep.subr.mxu0 0.0
  %3335 = vmatpush1.msra.mxu0 0.0
  %3336 = vmatprep.subr.mxu0 0.0
  %3337 = vmatpush1.msra.mxu0 0.0
  %3338 = vmatprep.subr.mxu0 0.0
  %3339 = vmatpush1.msra.mxu0 0.0
  %3340 = vmatprep.subr.mxu0 0.0
  %3341 = vmatpush1.msra.mxu0 0.0
  %3342 = vmatprep.subr.mxu0 0.0
  %3343 = vmatpush1.msra.mxu0 0.0
  %3344 = vmatprep.subr.mxu0 0.0
  %3345 = vmatpush1.msra.mxu0 0.0
  %3346 = vmatprep.subr.mxu0 0.0
  %3347 = vmatpush1.msra.mxu0 0.0
  %3348 = vmatprep.subr.mxu0 0.0
  %3349 = vmatpush1.msra.mxu0 0.0
  %3350 = vmatprep.subr.mxu0 0.0
  %3351 = vmatpush1.msra.mxu0 0.0
  %3352 = vmatprep.subr.mxu0 0.0
  %3353 = vmatpush1.msra.mxu0 0.0
  %3354 = vmatprep.subr.mxu0 0.0
  %3355 = vmatpush1.msra.mxu0 0.0
  %3356 = vmatprep.subr.mxu0 0.0
  %3357 = vmatpush1.msra.mxu0 0.0
  %3358 = vmatprep.subr.mxu0 0.0
  %3359 = vmatpush1.msra.mxu0 0.0
  %3360 = vmatprep.subr.mxu0 0.0
  %3361 = vmatpush1.msra.mxu0 0.0
  %3362 = vmatprep.subr.mxu0 0.0
  %3363 = vmatpush1.msra.mxu0 0.0
  %3364 = vmatprep.subr.mxu0 0.0
  %3365 = vmatpush1.msra.mxu0 0.0
  %3366 = vmatprep.subr.mxu0 0.0
  %3367 = vmatpush1.msra.mxu0 0.0
  %3368 = vmatprep.subr.mxu0 0.0
  %3369 = vmatpush1.msra.mxu0 0.0
  %3370 = vmatprep.subr.mxu0 0.0
  %3371 = vmatpush1.msra.mxu0 0.0
  %3372 = vmatprep.subr.mxu0 0.0
  %3373 = vmatpush1.msra.mxu0 0.0
  %3374 = vmatprep.mubr.f32.mxu0 0.0
  %3375 = vmatmul.mubr.f32.gmra.mrb[0].mxu0 %v3303
  %v3376 = vpop.f32.mrb[0].mxu0
  %v3377 = vadd.f32 0.0, %v3376
  %v3378 = vpop.f32.mrb[0].mxu0
  %v3379 = vadd.f32 0.0, %v3378
  %3380 = vdwg.mxu0
  %v3381 = vsel %vm312, %v3377, 0.0
  %v3382 = vsel %vm313, %v3379, 0.0
  %v3383 = vadd.f32 %v3281, %v3381
  %v3384 = vadd.f32 %v3282, %v3382
  %s3385 = scalar_lea.vmem %s12, 8
  %v3386 = vld [vmem:[%s3385] sm:$0xf]
  %3387 = vrot.lane.b32.xlu0 %v3174, 5
  %v3388 = vpop.permute.xlu0 %3387
  %3389 = vrot.lane.b32.xlu0 %v3176, 5
  %v3390 = vpop.permute.xlu0 %3389
  %3393 = vrot.lane.b32.xlu0 %v3173, 5
  %v3394 = vpop.permute.xlu0 %3393
  %3395 = vrot.lane.b32.xlu0 %v3175, 5
  %v3396 = vpop.permute.xlu0 %3395
  %v3397 = vsel %vm325, %v3394, %v3388
  %v3398 = vsel %vm325, %v3396, %v3390
  %v3402 = vsel %vm325, %v3388, %v3394
  %v3403 = vsel %vm325, %v3390, %v3396
  %v3405 = vsel %vm3199, %v3386, 0
  %v3408 = vsel %vm59, %v3403, 0
  %v3410 = vsel %vm59, %v3398, 0
  %3412 = vmatprep.subr.mxu0 %v3397
  %3413 = vmatpush1.msra.mxu0 %v3402
  %3414 = vmatprep.subr.mxu0 %v3410
  %3415 = vmatpush1.msra.mxu0 %v3408
  %3416 = vmatprep.subr.mxu0 0.0
  %3417 = vmatpush1.msra.mxu0 0.0
  %3418 = vmatprep.subr.mxu0 0.0
  %3419 = vmatpush1.msra.mxu0 0.0
  %3420 = vmatprep.subr.mxu0 0.0
  %3421 = vmatpush1.msra.mxu0 0.0
  %3422 = vmatprep.subr.mxu0 0.0
  %3423 = vmatpush1.msra.mxu0 0.0
  %3424 = vmatprep.subr.mxu0 0.0
  %3425 = vmatpush1.msra.mxu0 0.0
  %3426 = vmatprep.subr.mxu0 0.0
  %3427 = vmatpush1.msra.mxu0 0.0
  %3428 = vmatprep.subr.mxu0 0.0
  %3429 = vmatpush1.msra.mxu0 0.0
  %3430 = vmatprep.subr.mxu0 0.0
  %3431 = vmatpush1.msra.mxu0 0.0
  %3432 = vmatprep.subr.mxu0 0.0
  %3433 = vmatpush1.msra.mxu0 0.0
  %3434 = vmatprep.subr.mxu0 0.0
  %3435 = vmatpush1.msra.mxu0 0.0
  %3436 = vmatprep.subr.mxu0 0.0
  %3437 = vmatpush1.msra.mxu0 0.0
  %3438 = vmatprep.subr.mxu0 0.0
  %3439 = vmatpush1.msra.mxu0 0.0
  %3440 = vmatprep.subr.mxu0 0.0
  %3441 = vmatpush1.msra.mxu0 0.0
  %3442 = vmatprep.subr.mxu0 0.0
  %3443 = vmatpush1.msra.mxu0 0.0
  %3444 = vmatprep.subr.mxu0 0.0
  %3445 = vmatpush1.msra.mxu0 0.0
  %3446 = vmatprep.subr.mxu0 0.0
  %3447 = vmatpush1.msra.mxu0 0.0
  %3448 = vmatprep.subr.mxu0 0.0
  %3449 = vmatpush1.msra.mxu0 0.0
  %3450 = vmatprep.subr.mxu0 0.0
  %3451 = vmatpush1.msra.mxu0 0.0
  %3452 = vmatprep.subr.mxu0 0.0
  %3453 = vmatpush1.msra.mxu0 0.0
  %3454 = vmatprep.subr.mxu0 0.0
  %3455 = vmatpush1.msra.mxu0 0.0
  %3456 = vmatprep.subr.mxu0 0.0
  %3457 = vmatpush1.msra.mxu0 0.0
  %3458 = vmatprep.subr.mxu0 0.0
  %3459 = vmatpush1.msra.mxu0 0.0
  %3460 = vmatprep.subr.mxu0 0.0
  %3461 = vmatpush1.msra.mxu0 0.0
  %3462 = vmatprep.subr.mxu0 0.0
  %3463 = vmatpush1.msra.mxu0 0.0
  %3464 = vmatprep.subr.mxu0 0.0
  %3465 = vmatpush1.msra.mxu0 0.0
  %3466 = vmatprep.subr.mxu0 0.0
  %3467 = vmatpush1.msra.mxu0 0.0
  %3468 = vmatprep.subr.mxu0 0.0
  %3469 = vmatpush1.msra.mxu0 0.0
  %3470 = vmatprep.subr.mxu0 0.0
  %3471 = vmatpush1.msra.mxu0 0.0
  %3472 = vmatprep.subr.mxu0 0.0
  %3473 = vmatpush1.msra.mxu0 0.0
  %3474 = vmatprep.subr.mxu0 0.0
  %3475 = vmatpush1.msra.mxu0 0.0
  %3476 = vmatprep.mubr.f32.mxu0 0.0
  %3477 = vmatmul.mubr.f32.gmra.mrb[0].mxu0 %v3405
  %v3478 = vpop.f32.mrb[0].mxu0
  %v3479 = vadd.f32 0.0, %v3478
  %v3480 = vpop.f32.mrb[0].mxu0
  %v3481 = vadd.f32 0.0, %v3480
  %3482 = vdwg.mxu0
  %v3483 = vsel %vm421, %v3479, 0.0
  %v3484 = vsel %vm422, %v3481, 0.0
  %v3485 = vadd.f32 %v3383, %v3483
  %v3486 = vadd.f32 %v3384, %v3484
  %s3487 = scalar_lea.vmem %s12, 12
  %v3488 = vld [vmem:[%s3487] sm:$0xf]
  %3489 = vrot.lane.b32.xlu0 %v3174, 4
  %v3490 = vpop.permute.xlu0 %3489
  %3491 = vrot.lane.b32.xlu0 %v3176, 4
  %v3492 = vpop.permute.xlu0 %3491
  %3495 = vrot.lane.b32.xlu0 %v3173, 4
  %v3496 = vpop.permute.xlu0 %3495
  %3497 = vrot.lane.b32.xlu0 %v3175, 4
  %v3498 = vpop.permute.xlu0 %3497
  %v3499 = vsel %vm110, %v3496, %v3490
  %v3500 = vsel %vm110, %v3498, %v3492
  %v3504 = vsel %vm110, %v3490, %v3496
  %v3505 = vsel %vm110, %v3492, %v3498
  %v3507 = vsel %vm3199, %v3488, 0
  %v3510 = vsel %vm59, %v3505, 0
  %v3512 = vsel %vm59, %v3500, 0
  %3514 = vmatprep.subr.mxu0 %v3499
  %3515 = vmatpush1.msra.mxu0 %v3504
  %3516 = vmatprep.subr.mxu0 %v3512
  %3517 = vmatpush1.msra.mxu0 %v3510
  %3518 = vmatprep.subr.mxu0 0.0
  %3519 = vmatpush1.msra.mxu0 0.0
  %3520 = vmatprep.subr.mxu0 0.0
  %3521 = vmatpush1.msra.mxu0 0.0
  %3522 = vmatprep.subr.mxu0 0.0
  %3523 = vmatpush1.msra.mxu0 0.0
  %3524 = vmatprep.subr.mxu0 0.0
  %3525 = vmatpush1.msra.mxu0 0.0
  %3526 = vmatprep.subr.mxu0 0.0
  %3527 = vmatpush1.msra.mxu0 0.0
  %3528 = vmatprep.subr.mxu0 0.0
  %3529 = vmatpush1.msra.mxu0 0.0
  %3530 = vmatprep.subr.mxu0 0.0
  %3531 = vmatpush1.msra.mxu0 0.0
  %3532 = vmatprep.subr.mxu0 0.0
  %3533 = vmatpush1.msra.mxu0 0.0
  %3534 = vmatprep.subr.mxu0 0.0
  %3535 = vmatpush1.msra.mxu0 0.0
  %3536 = vmatprep.subr.mxu0 0.0
  %3537 = vmatpush1.msra.mxu0 0.0
  %3538 = vmatprep.subr.mxu0 0.0
  %3539 = vmatpush1.msra.mxu0 0.0
  %3540 = vmatprep.subr.mxu0 0.0
  %3541 = vmatpush1.msra.mxu0 0.0
  %3542 = vmatprep.subr.mxu0 0.0
  %3543 = vmatpush1.msra.mxu0 0.0
  %3544 = vmatprep.subr.mxu0 0.0
  %3545 = vmatpush1.msra.mxu0 0.0
  %3546 = vmatprep.subr.mxu0 0.0
  %3547 = vmatpush1.msra.mxu0 0.0
  %3548 = vmatprep.subr.mxu0 0.0
  %3549 = vmatpush1.msra.mxu0 0.0
  %3550 = vmatprep.subr.mxu0 0.0
  %3551 = vmatpush1.msra.mxu0 0.0
  %3552 = vmatprep.subr.mxu0 0.0
  %3553 = vmatpush1.msra.mxu0 0.0
  %3554 = vmatprep.subr.mxu0 0.0
  %3555 = vmatpush1.msra.mxu0 0.0
  %3556 = vmatprep.subr.mxu0 0.0
  %3557 = vmatpush1.msra.mxu0 0.0
  %3558 = vmatprep.subr.mxu0 0.0
  %3559 = vmatpush1.msra.mxu0 0.0
  %3560 = vmatprep.subr.mxu0 0.0
  %3561 = vmatpush1.msra.mxu0 0.0
  %3562 = vmatprep.subr.mxu0 0.0
  %3563 = vmatpush1.msra.mxu0 0.0
  %3564 = vmatprep.subr.mxu0 0.0
  %3565 = vmatpush1.msra.mxu0 0.0
  %3566 = vmatprep.subr.mxu0 0.0
  %3567 = vmatpush1.msra.mxu0 0.0
  %3568 = vmatprep.subr.mxu0 0.0
  %3569 = vmatpush1.msra.mxu0 0.0
  %3570 = vmatprep.subr.mxu0 0.0
  %3571 = vmatpush1.msra.mxu0 0.0
  %3572 = vmatprep.subr.mxu0 0.0
  %3573 = vmatpush1.msra.mxu0 0.0
  %3574 = vmatprep.subr.mxu0 0.0
  %3575 = vmatpush1.msra.mxu0 0.0
  %3576 = vmatprep.subr.mxu0 0.0
  %3577 = vmatpush1.msra.mxu0 0.0
  %3578 = vmatprep.mubr.f32.mxu0 0.0
  %3579 = vmatmul.mubr.f32.gmra.mrb[0].mxu0 %v3507
  %v3580 = vpop.f32.mrb[0].mxu0
  %v3581 = vadd.f32 0.0, %v3580
  %v3582 = vpop.f32.mrb[0].mxu0
  %v3583 = vadd.f32 0.0, %v3582
  %3584 = vdwg.mxu0
  %v3585 = vsel %vm529, %v3581, 0.0
  %v3586 = vsel %vm530, %v3583, 0.0
  %v3587 = vadd.f32 %v3485, %v3585
  %v3588 = vadd.f32 %v3486, %v3586
  %s3589 = scalar_lea.vmem %s12, 16
  %v3590 = vld [vmem:[%s3589] sm:$0xf]
  %3591 = vrot.lane.b32.xlu0 %v3174, 3
  %v3592 = vpop.permute.xlu0 %3591
  %3593 = vrot.lane.b32.xlu0 %v3176, 3
  %v3594 = vpop.permute.xlu0 %3593
  %3597 = vrot.lane.b32.xlu0 %v3173, 3
  %v3598 = vpop.permute.xlu0 %3597
  %3599 = vrot.lane.b32.xlu0 %v3175, 3
  %v3600 = vpop.permute.xlu0 %3599
  %v3601 = vsel %vm542, %v3598, %v3592
  %v3602 = vsel %vm542, %v3600, %v3594
  %v3606 = vsel %vm542, %v3592, %v3598
  %v3607 = vsel %vm542, %v3594, %v3600
  %v3609 = vsel %vm3199, %v3590, 0
  %v3612 = vsel %vm59, %v3607, 0
  %v3614 = vsel %vm59, %v3602, 0
  %3616 = vmatprep.subr.mxu0 %v3601
  %3617 = vmatpush1.msra.mxu0 %v3606
  %3618 = vmatprep.subr.mxu0 %v3614
  %3619 = vmatpush1.msra.mxu0 %v3612
  %3620 = vmatprep.subr.mxu0 0.0
  %3621 = vmatpush1.msra.mxu0 0.0
  %3622 = vmatprep.subr.mxu0 0.0
  %3623 = vmatpush1.msra.mxu0 0.0
  %3624 = vmatprep.subr.mxu0 0.0
  %3625 = vmatpush1.msra.mxu0 0.0
  %3626 = vmatprep.subr.mxu0 0.0
  %3627 = vmatpush1.msra.mxu0 0.0
  %3628 = vmatprep.subr.mxu0 0.0
  %3629 = vmatpush1.msra.mxu0 0.0
  %3630 = vmatprep.subr.mxu0 0.0
  %3631 = vmatpush1.msra.mxu0 0.0
  %3632 = vmatprep.subr.mxu0 0.0
  %3633 = vmatpush1.msra.mxu0 0.0
  %3634 = vmatprep.subr.mxu0 0.0
  %3635 = vmatpush1.msra.mxu0 0.0
  %3636 = vmatprep.subr.mxu0 0.0
  %3637 = vmatpush1.msra.mxu0 0.0
  %3638 = vmatprep.subr.mxu0 0.0
  %3639 = vmatpush1.msra.mxu0 0.0
  %3640 = vmatprep.subr.mxu0 0.0
  %3641 = vmatpush1.msra.mxu0 0.0
  %3642 = vmatprep.subr.mxu0 0.0
  %3643 = vmatpush1.msra.mxu0 0.0
  %3644 = vmatprep.subr.mxu0 0.0
  %3645 = vmatpush1.msra.mxu0 0.0
  %3646 = vmatprep.subr.mxu0 0.0
  %3647 = vmatpush1.msra.mxu0 0.0
  %3648 = vmatprep.subr.mxu0 0.0
  %3649 = vmatpush1.msra.mxu0 0.0
  %3650 = vmatprep.subr.mxu0 0.0
  %3651 = vmatpush1.msra.mxu0 0.0
  %3652 = vmatprep.subr.mxu0 0.0
  %3653 = vmatpush1.msra.mxu0 0.0
  %3654 = vmatprep.subr.mxu0 0.0
  %3655 = vmatpush1.msra.mxu0 0.0
  %3656 = vmatprep.subr.mxu0 0.0
  %3657 = vmatpush1.msra.mxu0 0.0
  %3658 = vmatprep.subr.mxu0 0.0
  %3659 = vmatpush1.msra.mxu0 0.0
  %3660 = vmatprep.subr.mxu0 0.0
  %3661 = vmatpush1.msra.mxu0 0.0
  %3662 = vmatprep.subr.mxu0 0.0
  %3663 = vmatpush1.msra.mxu0 0.0
  %3664 = vmatprep.subr.mxu0 0.0
  %3665 = vmatpush1.msra.mxu0 0.0
  %3666 = vmatprep.subr.mxu0 0.0
  %3667 = vmatpush1.msra.mxu0 0.0
  %3668 = vmatprep.subr.mxu0 0.0
  %3669 = vmatpush1.msra.mxu0 0.0
  %3670 = vmatprep.subr.mxu0 0.0
  %3671 = vmatpush1.msra.mxu0 0.0
  %3672 = vmatprep.subr.mxu0 0.0
  %3673 = vmatpush1.msra.mxu0 0.0
  %3674 = vmatprep.subr.mxu0 0.0
  %3675 = vmatpush1.msra.mxu0 0.0
  %3676 = vmatprep.subr.mxu0 0.0
  %3677 = vmatpush1.msra.mxu0 0.0
  %3678 = vmatprep.subr.mxu0 0.0
  %3679 = vmatpush1.msra.mxu0 0.0
  %3680 = vmatprep.mubr.f32.mxu0 0.0
  %3681 = vmatmul.mubr.f32.gmra.mrb[0].mxu0 %v3609
  %v3682 = vpop.f32.mrb[0].mxu0
  %v3683 = vadd.f32 0.0, %v3682
  %v3684 = vpop.f32.mrb[0].mxu0
  %v3685 = vadd.f32 0.0, %v3684
  %3686 = vdwg.mxu0
  %v3687 = vsel %vm638, %v3683, 0.0
  %v3688 = vsel %vm639, %v3685, 0.0
  %v3689 = vadd.f32 %v3587, %v3687
  %v3690 = vadd.f32 %v3588, %v3688
  %s3691 = scalar_lea.vmem %s12, 20
  %v3692 = vld [vmem:[%s3691] sm:$0xf]
  %3693 = vrot.lane.b32.xlu0 %v3174, 2
  %v3694 = vpop.permute.xlu0 %3693
  %3695 = vrot.lane.b32.xlu0 %v3176, 2
  %v3696 = vpop.permute.xlu0 %3695
  %3699 = vrot.lane.b32.xlu0 %v3173, 2
  %v3700 = vpop.permute.xlu0 %3699
  %3701 = vrot.lane.b32.xlu0 %v3175, 2
  %v3702 = vpop.permute.xlu0 %3701
  %v3703 = vsel %vm651, %v3700, %v3694
  %v3704 = vsel %vm651, %v3702, %v3696
  %v3708 = vsel %vm651, %v3694, %v3700
  %v3709 = vsel %vm651, %v3696, %v3702
  %v3711 = vsel %vm3199, %v3692, 0
  %v3714 = vsel %vm59, %v3709, 0
  %v3716 = vsel %vm59, %v3704, 0
  %3718 = vmatprep.subr.mxu0 %v3703
  %3719 = vmatpush1.msra.mxu0 %v3708
  %3720 = vmatprep.subr.mxu0 %v3716
  %3721 = vmatpush1.msra.mxu0 %v3714
  %3722 = vmatprep.subr.mxu0 0.0
  %3723 = vmatpush1.msra.mxu0 0.0
  %3724 = vmatprep.subr.mxu0 0.0
  %3725 = vmatpush1.msra.mxu0 0.0
  %3726 = vmatprep.subr.mxu0 0.0
  %3727 = vmatpush1.msra.mxu0 0.0
  %3728 = vmatprep.subr.mxu0 0.0
  %3729 = vmatpush1.msra.mxu0 0.0
  %3730 = vmatprep.subr.mxu0 0.0
  %3731 = vmatpush1.msra.mxu0 0.0
  %3732 = vmatprep.subr.mxu0 0.0
  %3733 = vmatpush1.msra.mxu0 0.0
  %3734 = vmatprep.subr.mxu0 0.0
  %3735 = vmatpush1.msra.mxu0 0.0
  %3736 = vmatprep.subr.mxu0 0.0
  %3737 = vmatpush1.msra.mxu0 0.0
  %3738 = vmatprep.subr.mxu0 0.0
  %3739 = vmatpush1.msra.mxu0 0.0
  %3740 = vmatprep.subr.mxu0 0.0
  %3741 = vmatpush1.msra.mxu0 0.0
  %3742 = vmatprep.subr.mxu0 0.0
  %3743 = vmatpush1.msra.mxu0 0.0
  %3744 = vmatprep.subr.mxu0 0.0
  %3745 = vmatpush1.msra.mxu0 0.0
  %3746 = vmatprep.subr.mxu0 0.0
  %3747 = vmatpush1.msra.mxu0 0.0
  %3748 = vmatprep.subr.mxu0 0.0
  %3749 = vmatpush1.msra.mxu0 0.0
  %3750 = vmatprep.subr.mxu0 0.0
  %3751 = vmatpush1.msra.mxu0 0.0
  %3752 = vmatprep.subr.mxu0 0.0
  %3753 = vmatpush1.msra.mxu0 0.0
  %3754 = vmatprep.subr.mxu0 0.0
  %3755 = vmatpush1.msra.mxu0 0.0
  %3756 = vmatprep.subr.mxu0 0.0
  %3757 = vmatpush1.msra.mxu0 0.0
  %3758 = vmatprep.subr.mxu0 0.0
  %3759 = vmatpush1.msra.mxu0 0.0
  %3760 = vmatprep.subr.mxu0 0.0
  %3761 = vmatpush1.msra.mxu0 0.0
  %3762 = vmatprep.subr.mxu0 0.0
  %3763 = vmatpush1.msra.mxu0 0.0
  %3764 = vmatprep.subr.mxu0 0.0
  %3765 = vmatpush1.msra.mxu0 0.0
  %3766 = vmatprep.subr.mxu0 0.0
  %3767 = vmatpush1.msra.mxu0 0.0
  %3768 = vmatprep.subr.mxu0 0.0
  %3769 = vmatpush1.msra.mxu0 0.0
  %3770 = vmatprep.subr.mxu0 0.0
  %3771 = vmatpush1.msra.mxu0 0.0
  %3772 = vmatprep.subr.mxu0 0.0
  %3773 = vmatpush1.msra.mxu0 0.0
  %3774 = vmatprep.subr.mxu0 0.0
  %3775 = vmatpush1.msra.mxu0 0.0
  %3776 = vmatprep.subr.mxu0 0.0
  %3777 = vmatpush1.msra.mxu0 0.0
  %3778 = vmatprep.subr.mxu0 0.0
  %3779 = vmatpush1.msra.mxu0 0.0
  %3780 = vmatprep.subr.mxu0 0.0
  %3781 = vmatpush1.msra.mxu0 0.0
  %3782 = vmatprep.mubr.f32.mxu0 0.0
  %3783 = vmatmul.mubr.f32.gmra.mrb[0].mxu0 %v3711
  %v3784 = vpop.f32.mrb[0].mxu0
  %v3785 = vadd.f32 0.0, %v3784
  %v3786 = vpop.f32.mrb[0].mxu0
  %v3787 = vadd.f32 0.0, %v3786
  %3788 = vdwg.mxu0
  %v3789 = vsel %vm747, %v3785, 0.0
  %v3790 = vsel %vm748, %v3787, 0.0
  %v3791 = vadd.f32 %v3689, %v3789
  %v3792 = vadd.f32 %v3690, %v3790
  %s3793 = scalar_lea.vmem %s12, 24
  %v3794 = vld [vmem:[%s3793] sm:$0xf]
  %3795 = vrot.lane.b32.xlu0 %v3174, 1
  %v3796 = vpop.permute.xlu0 %3795
  %3797 = vrot.lane.b32.xlu0 %v3176, 1
  %v3798 = vpop.permute.xlu0 %3797
  %3801 = vrot.lane.b32.xlu0 %v3173, 1
  %v3802 = vpop.permute.xlu0 %3801
  %3803 = vrot.lane.b32.xlu0 %v3175, 1
  %v3804 = vpop.permute.xlu0 %3803
  %v3805 = vsel %vm760, %v3802, %v3796
  %v3806 = vsel %vm760, %v3804, %v3798
  %v3810 = vsel %vm760, %v3796, %v3802
  %v3811 = vsel %vm760, %v3798, %v3804
  %v3813 = vsel %vm3199, %v3794, 0
  %v3816 = vsel %vm59, %v3811, 0
  %v3818 = vsel %vm59, %v3806, 0
  %3820 = vmatprep.subr.mxu0 %v3805
  %3821 = vmatpush1.msra.mxu0 %v3810
  %3822 = vmatprep.subr.mxu0 %v3818
  %3823 = vmatpush1.msra.mxu0 %v3816
  %3824 = vmatprep.subr.mxu0 0.0
  %3825 = vmatpush1.msra.mxu0 0.0
  %3826 = vmatprep.subr.mxu0 0.0
  %3827 = vmatpush1.msra.mxu0 0.0
  %3828 = vmatprep.subr.mxu0 0.0
  %3829 = vmatpush1.msra.mxu0 0.0
  %3830 = vmatprep.subr.mxu0 0.0
  %3831 = vmatpush1.msra.mxu0 0.0
  %3832 = vmatprep.subr.mxu0 0.0
  %3833 = vmatpush1.msra.mxu0 0.0
  %3834 = vmatprep.subr.mxu0 0.0
  %3835 = vmatpush1.msra.mxu0 0.0
  %3836 = vmatprep.subr.mxu0 0.0
  %3837 = vmatpush1.msra.mxu0 0.0
  %3838 = vmatprep.subr.mxu0 0.0
  %3839 = vmatpush1.msra.mxu0 0.0
  %3840 = vmatprep.subr.mxu0 0.0
  %3841 = vmatpush1.msra.mxu0 0.0
  %3842 = vmatprep.subr.mxu0 0.0
  %3843 = vmatpush1.msra.mxu0 0.0
  %3844 = vmatprep.subr.mxu0 0.0
  %3845 = vmatpush1.msra.mxu0 0.0
  %3846 = vmatprep.subr.mxu0 0.0
  %3847 = vmatpush1.msra.mxu0 0.0
  %3848 = vmatprep.subr.mxu0 0.0
  %3849 = vmatpush1.msra.mxu0 0.0
  %3850 = vmatprep.subr.mxu0 0.0
  %3851 = vmatpush1.msra.mxu0 0.0
  %3852 = vmatprep.subr.mxu0 0.0
  %3853 = vmatpush1.msra.mxu0 0.0
  %3854 = vmatprep.subr.mxu0 0.0
  %3855 = vmatpush1.msra.mxu0 0.0
  %3856 = vmatprep.subr.mxu0 0.0
  %3857 = vmatpush1.msra.mxu0 0.0
  %3858 = vmatprep.subr.mxu0 0.0
  %3859 = vmatpush1.msra.mxu0 0.0
  %3860 = vmatprep.subr.mxu0 0.0
  %3861 = vmatpush1.msra.mxu0 0.0
  %3862 = vmatprep.subr.mxu0 0.0
  %3863 = vmatpush1.msra.mxu0 0.0
  %3864 = vmatprep.subr.mxu0 0.0
  %3865 = vmatpush1.msra.mxu0 0.0
  %3866 = vmatprep.subr.mxu0 0.0
  %3867 = vmatpush1.msra.mxu0 0.0
  %3868 = vmatprep.subr.mxu0 0.0
  %3869 = vmatpush1.msra.mxu0 0.0
  %3870 = vmatprep.subr.mxu0 0.0
  %3871 = vmatpush1.msra.mxu0 0.0
  %3872 = vmatprep.subr.mxu0 0.0
  %3873 = vmatpush1.msra.mxu0 0.0
  %3874 = vmatprep.subr.mxu0 0.0
  %3875 = vmatpush1.msra.mxu0 0.0
  %3876 = vmatprep.subr.mxu0 0.0
  %3877 = vmatpush1.msra.mxu0 0.0
  %3878 = vmatprep.subr.mxu0 0.0
  %3879 = vmatpush1.msra.mxu0 0.0
  %3880 = vmatprep.subr.mxu0 0.0
  %3881 = vmatpush1.msra.mxu0 0.0
  %3882 = vmatprep.subr.mxu0 0.0
  %3883 = vmatpush1.msra.mxu0 0.0
  %3884 = vmatprep.mubr.f32.mxu0 0.0
  %3885 = vmatmul.mubr.f32.gmra.mrb[0].mxu0 %v3813
  %v3886 = vpop.f32.mrb[0].mxu0
  %v3887 = vadd.f32 0.0, %v3886
  %v3888 = vpop.f32.mrb[0].mxu0
  %v3889 = vadd.f32 0.0, %v3888
  %3890 = vdwg.mxu0
  %v3891 = vsel %vm856, %v3887, 0.0
  %v3892 = vsel %vm857, %v3889, 0.0
  %v3893 = vadd.f32 %v3791, %v3891
  %v3894 = vadd.f32 %v3792, %v3892
  %s3895 = scalar_lea.vmem %s12, 28
  %v3896 = vld [vmem:[%s3895] sm:$0xf]
  %v3898 = vsel %vm3199, %v3896, 0
  %v3900 = vsel %vm59, %v3175, 0
  %v3902 = vsel %vm59, %v3176, 0
  %3904 = vmatprep.subr.mxu0 %v3174
  %3905 = vmatpush1.msra.mxu0 %v3173
  %3906 = vmatprep.subr.mxu0 %v3902
  %3907 = vmatpush1.msra.mxu0 %v3900
  %3908 = vmatprep.subr.mxu0 0.0
  %3909 = vmatpush1.msra.mxu0 0.0
  %3910 = vmatprep.subr.mxu0 0.0
  %3911 = vmatpush1.msra.mxu0 0.0
  %3912 = vmatprep.subr.mxu0 0.0
  %3913 = vmatpush1.msra.mxu0 0.0
  %3914 = vmatprep.subr.mxu0 0.0
  %3915 = vmatpush1.msra.mxu0 0.0
  %3916 = vmatprep.subr.mxu0 0.0
  %3917 = vmatpush1.msra.mxu0 0.0
  %3918 = vmatprep.subr.mxu0 0.0
  %3919 = vmatpush1.msra.mxu0 0.0
  %3920 = vmatprep.subr.mxu0 0.0
  %3921 = vmatpush1.msra.mxu0 0.0
  %3922 = vmatprep.subr.mxu0 0.0
  %3923 = vmatpush1.msra.mxu0 0.0
  %3924 = vmatprep.subr.mxu0 0.0
  %3925 = vmatpush1.msra.mxu0 0.0
  %3926 = vmatprep.subr.mxu0 0.0
  %3927 = vmatpush1.msra.mxu0 0.0
  %3928 = vmatprep.subr.mxu0 0.0
  %3929 = vmatpush1.msra.mxu0 0.0
  %3930 = vmatprep.subr.mxu0 0.0
  %3931 = vmatpush1.msra.mxu0 0.0
  %3932 = vmatprep.subr.mxu0 0.0
  %3933 = vmatpush1.msra.mxu0 0.0
  %3934 = vmatprep.subr.mxu0 0.0
  %3935 = vmatpush1.msra.mxu0 0.0
  %3936 = vmatprep.subr.mxu0 0.0
  %3937 = vmatpush1.msra.mxu0 0.0
  %3938 = vmatprep.subr.mxu0 0.0
  %3939 = vmatpush1.msra.mxu0 0.0
  %3940 = vmatprep.subr.mxu0 0.0
  %3941 = vmatpush1.msra.mxu0 0.0
  %3942 = vmatprep.subr.mxu0 0.0
  %3943 = vmatpush1.msra.mxu0 0.0
  %3944 = vmatprep.subr.mxu0 0.0
  %3945 = vmatpush1.msra.mxu0 0.0
  %3946 = vmatprep.subr.mxu0 0.0
  %3947 = vmatpush1.msra.mxu0 0.0
  %3948 = vmatprep.subr.mxu0 0.0
  %3949 = vmatpush1.msra.mxu0 0.0
  %3950 = vmatprep.subr.mxu0 0.0
  %3951 = vmatpush1.msra.mxu0 0.0
  %3952 = vmatprep.subr.mxu0 0.0
  %3953 = vmatpush1.msra.mxu0 0.0
  %3954 = vmatprep.subr.mxu0 0.0
  %3955 = vmatpush1.msra.mxu0 0.0
  %3956 = vmatprep.subr.mxu0 0.0
  %3957 = vmatpush1.msra.mxu0 0.0
  %3958 = vmatprep.subr.mxu0 0.0
  %3959 = vmatpush1.msra.mxu0 0.0
  %3960 = vmatprep.subr.mxu0 0.0
  %3961 = vmatpush1.msra.mxu0 0.0
  %3962 = vmatprep.subr.mxu0 0.0
  %3963 = vmatpush1.msra.mxu0 0.0
  %3964 = vmatprep.subr.mxu0 0.0
  %3965 = vmatpush1.msra.mxu0 0.0
  %3966 = vmatprep.subr.mxu0 0.0
  %3967 = vmatpush1.msra.mxu0 0.0
  %3968 = vmatprep.mubr.f32.mxu0 0.0
  %3969 = vmatmul.mubr.f32.gmra.mrb[0].mxu0 %v3898
  %v3970 = vpop.f32.mrb[0].mxu0
  %v3971 = vadd.f32 0.0, %v3970
  %v3972 = vpop.f32.mrb[0].mxu0
  %v3973 = vadd.f32 0.0, %v3972
  %3974 = vdwg.mxu0
  %v3975 = vadd.f32 %v3893, %v3971
  %v3976 = vadd.f32 %v3894, %v3973
  %s3977 = scalar_lea.vmem %s12, 32
  %v3978 = vld [vmem:[%s3977] sm:$0xf]
  %3979 = vrot.lane.b32.xlu0 %v3173, 127
  %v3980 = vpop.permute.xlu0 %3979
  %3981 = vrot.lane.b32.xlu0 %v3174, 127
  %v3982 = vpop.permute.xlu0 %3981
  %3983 = vrot.lane.b32.xlu0 %v3175, 127
  %v3984 = vpop.permute.xlu0 %3983
  %3985 = vrot.lane.b32.xlu0 %v3176, 127
  %v3986 = vpop.permute.xlu0 %3985
  %v3987 = vsel %vm950, %v3980, %v3982
  %v3988 = vsel %vm950, %v3984, %v3986
  %v3994 = vsel %vm950, %v3982, %v3980
  %v3995 = vsel %vm950, %v3986, %v3984
  %v3997 = vsel %vm3199, %v3978, 0
  %v3999 = vsel %vm59, %v3988, 0
  %v4002 = vsel %vm59, %v3995, 0
  %4004 = vmatprep.subr.mxu0 %v3994
  %4005 = vmatpush1.msra.mxu0 %v3987
  %4006 = vmatprep.subr.mxu0 %v4002
  %4007 = vmatpush1.msra.mxu0 %v3999
  %4008 = vmatprep.subr.mxu0 0.0
  %4009 = vmatpush1.msra.mxu0 0.0
  %4010 = vmatprep.subr.mxu0 0.0
  %4011 = vmatpush1.msra.mxu0 0.0
  %4012 = vmatprep.subr.mxu0 0.0
  %4013 = vmatpush1.msra.mxu0 0.0
  %4014 = vmatprep.subr.mxu0 0.0
  %4015 = vmatpush1.msra.mxu0 0.0
  %4016 = vmatprep.subr.mxu0 0.0
  %4017 = vmatpush1.msra.mxu0 0.0
  %4018 = vmatprep.subr.mxu0 0.0
  %4019 = vmatpush1.msra.mxu0 0.0
  %4020 = vmatprep.subr.mxu0 0.0
  %4021 = vmatpush1.msra.mxu0 0.0
  %4022 = vmatprep.subr.mxu0 0.0
  %4023 = vmatpush1.msra.mxu0 0.0
  %4024 = vmatprep.subr.mxu0 0.0
  %4025 = vmatpush1.msra.mxu0 0.0
  %4026 = vmatprep.subr.mxu0 0.0
  %4027 = vmatpush1.msra.mxu0 0.0
  %4028 = vmatprep.subr.mxu0 0.0
  %4029 = vmatpush1.msra.mxu0 0.0
  %4030 = vmatprep.subr.mxu0 0.0
  %4031 = vmatpush1.msra.mxu0 0.0
  %4032 = vmatprep.subr.mxu0 0.0
  %4033 = vmatpush1.msra.mxu0 0.0
  %4034 = vmatprep.subr.mxu0 0.0
  %4035 = vmatpush1.msra.mxu0 0.0
  %4036 = vmatprep.subr.mxu0 0.0
  %4037 = vmatpush1.msra.mxu0 0.0
  %4038 = vmatprep.subr.mxu0 0.0
  %4039 = vmatpush1.msra.mxu0 0.0
  %4040 = vmatprep.subr.mxu0 0.0
  %4041 = vmatpush1.msra.mxu0 0.0
  %4042 = vmatprep.subr.mxu0 0.0
  %4043 = vmatpush1.msra.mxu0 0.0
  %4044 = vmatprep.subr.mxu0 0.0
  %4045 = vmatpush1.msra.mxu0 0.0
  %4046 = vmatprep.subr.mxu0 0.0
  %4047 = vmatpush1.msra.mxu0 0.0
  %4048 = vmatprep.subr.mxu0 0.0
  %4049 = vmatpush1.msra.mxu0 0.0
  %4050 = vmatprep.subr.mxu0 0.0
  %4051 = vmatpush1.msra.mxu0 0.0
  %4052 = vmatprep.subr.mxu0 0.0
  %4053 = vmatpush1.msra.mxu0 0.0
  %4054 = vmatprep.subr.mxu0 0.0
  %4055 = vmatpush1.msra.mxu0 0.0
  %4056 = vmatprep.subr.mxu0 0.0
  %4057 = vmatpush1.msra.mxu0 0.0
  %4058 = vmatprep.subr.mxu0 0.0
  %4059 = vmatpush1.msra.mxu0 0.0
  %4060 = vmatprep.subr.mxu0 0.0
  %4061 = vmatpush1.msra.mxu0 0.0
  %4062 = vmatprep.subr.mxu0 0.0
  %4063 = vmatpush1.msra.mxu0 0.0
  %4064 = vmatprep.subr.mxu0 0.0
  %4065 = vmatpush1.msra.mxu0 0.0
  %4066 = vmatprep.subr.mxu0 0.0
  %4067 = vmatpush1.msra.mxu0 0.0
  %4068 = vmatprep.mubr.f32.mxu0 0.0
  %4069 = vmatmul.mubr.f32.gmra.mrb[0].mxu0 %v3997
  %v4070 = vpop.f32.mrb[0].mxu0
  %v4071 = vadd.f32 0.0, %v4070
  %v4072 = vpop.f32.mrb[0].mxu0
  %v4073 = vadd.f32 0.0, %v4072
  %4074 = vdwg.mxu0
  %v4075 = vsel %vm1047, %v4071, 0.0
  %v4076 = vsel %vm1048, %v4073, 0.0
  %v4077 = vadd.f32 %v3975, %v4075
  %v4078 = vadd.f32 %v3976, %v4076
  %s4079 = scalar_lea.vmem %s12, 36
  %v4080 = vld [vmem:[%s4079] sm:$0xf]
  %4081 = vrot.lane.b32.xlu0 %v3173, 126
  %v4082 = vpop.permute.xlu0 %4081
  %4083 = vrot.lane.b32.xlu0 %v3174, 126
  %v4084 = vpop.permute.xlu0 %4083
  %4085 = vrot.lane.b32.xlu0 %v3175, 126
  %v4086 = vpop.permute.xlu0 %4085
  %4087 = vrot.lane.b32.xlu0 %v3176, 126
  %v4088 = vpop.permute.xlu0 %4087
  %v4089 = vsel %vm1059, %v4082, %v4084
  %v4090 = vsel %vm1059, %v4086, %v4088
  %v4096 = vsel %vm1059, %v4084, %v4082
  %v4097 = vsel %vm1059, %v4088, %v4086
  %v4099 = vsel %vm3199, %v4080, 0
  %v4101 = vsel %vm59, %v4090, 0
  %v4104 = vsel %vm59, %v4097, 0
  %4106 = vmatprep.subr.mxu0 %v4096
  %4107 = vmatpush1.msra.mxu0 %v4089
  %4108 = vmatprep.subr.mxu0 %v4104
  %4109 = vmatpush1.msra.mxu0 %v4101
  %4110 = vmatprep.subr.mxu0 0.0
  %4111 = vmatpush1.msra.mxu0 0.0
  %4112 = vmatprep.subr.mxu0 0.0
  %4113 = vmatpush1.msra.mxu0 0.0
  %4114 = vmatprep.subr.mxu0 0.0
  %4115 = vmatpush1.msra.mxu0 0.0
  %4116 = vmatprep.subr.mxu0 0.0
  %4117 = vmatpush1.msra.mxu0 0.0
  %4118 = vmatprep.subr.mxu0 0.0
  %4119 = vmatpush1.msra.mxu0 0.0
  %4120 = vmatprep.subr.mxu0 0.0
  %4121 = vmatpush1.msra.mxu0 0.0
  %4122 = vmatprep.subr.mxu0 0.0
  %4123 = vmatpush1.msra.mxu0 0.0
  %4124 = vmatprep.subr.mxu0 0.0
  %4125 = vmatpush1.msra.mxu0 0.0
  %4126 = vmatprep.subr.mxu0 0.0
  %4127 = vmatpush1.msra.mxu0 0.0
  %4128 = vmatprep.subr.mxu0 0.0
  %4129 = vmatpush1.msra.mxu0 0.0
  %4130 = vmatprep.subr.mxu0 0.0
  %4131 = vmatpush1.msra.mxu0 0.0
  %4132 = vmatprep.subr.mxu0 0.0
  %4133 = vmatpush1.msra.mxu0 0.0
  %4134 = vmatprep.subr.mxu0 0.0
  %4135 = vmatpush1.msra.mxu0 0.0
  %4136 = vmatprep.subr.mxu0 0.0
  %4137 = vmatpush1.msra.mxu0 0.0
  %4138 = vmatprep.subr.mxu0 0.0
  %4139 = vmatpush1.msra.mxu0 0.0
  %4140 = vmatprep.subr.mxu0 0.0
  %4141 = vmatpush1.msra.mxu0 0.0
  %4142 = vmatprep.subr.mxu0 0.0
  %4143 = vmatpush1.msra.mxu0 0.0
  %4144 = vmatprep.subr.mxu0 0.0
  %4145 = vmatpush1.msra.mxu0 0.0
  %4146 = vmatprep.subr.mxu0 0.0
  %4147 = vmatpush1.msra.mxu0 0.0
  %4148 = vmatprep.subr.mxu0 0.0
  %4149 = vmatpush1.msra.mxu0 0.0
  %4150 = vmatprep.subr.mxu0 0.0
  %4151 = vmatpush1.msra.mxu0 0.0
  %4152 = vmatprep.subr.mxu0 0.0
  %4153 = vmatpush1.msra.mxu0 0.0
  %4154 = vmatprep.subr.mxu0 0.0
  %4155 = vmatpush1.msra.mxu0 0.0
  %4156 = vmatprep.subr.mxu0 0.0
  %4157 = vmatpush1.msra.mxu0 0.0
  %4158 = vmatprep.subr.mxu0 0.0
  %4159 = vmatpush1.msra.mxu0 0.0
  %4160 = vmatprep.subr.mxu0 0.0
  %4161 = vmatpush1.msra.mxu0 0.0
  %4162 = vmatprep.subr.mxu0 0.0
  %4163 = vmatpush1.msra.mxu0 0.0
  %4164 = vmatprep.subr.mxu0 0.0
  %4165 = vmatpush1.msra.mxu0 0.0
  %4166 = vmatprep.subr.mxu0 0.0
  %4167 = vmatpush1.msra.mxu0 0.0
  %4168 = vmatprep.subr.mxu0 0.0
  %4169 = vmatpush1.msra.mxu0 0.0
  %4170 = vmatprep.mubr.f32.mxu0 0.0
  %4171 = vmatmul.mubr.f32.gmra.mrb[0].mxu0 %v4099
  %v4172 = vpop.f32.mrb[0].mxu0
  %v4173 = vadd.f32 0.0, %v4172
  %v4174 = vpop.f32.mrb[0].mxu0
  %v4175 = vadd.f32 0.0, %v4174
  %4176 = vdwg.mxu0
  %v4177 = vsel %vm1156, %v4173, 0.0
  %v4178 = vsel %vm1157, %v4175, 0.0
  %v4179 = vadd.f32 %v4077, %v4177
  %v4180 = vadd.f32 %v4078, %v4178
  %s4181 = scalar_lea.vmem %s12, 40
  %v4182 = vld [vmem:[%s4181] sm:$0xf]
  %4183 = vrot.lane.b32.xlu0 %v3173, 125
  %v4184 = vpop.permute.xlu0 %4183
  %4185 = vrot.lane.b32.xlu0 %v3174, 125
  %v4186 = vpop.permute.xlu0 %4185
  %4187 = vrot.lane.b32.xlu0 %v3175, 125
  %v4188 = vpop.permute.xlu0 %4187
  %4189 = vrot.lane.b32.xlu0 %v3176, 125
  %v4190 = vpop.permute.xlu0 %4189
  %v4191 = vsel %vm1168, %v4184, %v4186
  %v4192 = vsel %vm1168, %v4188, %v4190
  %v4198 = vsel %vm1168, %v4186, %v4184
  %v4199 = vsel %vm1168, %v4190, %v4188
  %v4201 = vsel %vm3199, %v4182, 0
  %v4203 = vsel %vm59, %v4192, 0
  %v4206 = vsel %vm59, %v4199, 0
  %4208 = vmatprep.subr.mxu0 %v4198
  %4209 = vmatpush1.msra.mxu0 %v4191
  %4210 = vmatprep.subr.mxu0 %v4206
  %4211 = vmatpush1.msra.mxu0 %v4203
  %4212 = vmatprep.subr.mxu0 0.0
  %4213 = vmatpush1.msra.mxu0 0.0
  %4214 = vmatprep.subr.mxu0 0.0
  %4215 = vmatpush1.msra.mxu0 0.0
  %4216 = vmatprep.subr.mxu0 0.0
  %4217 = vmatpush1.msra.mxu0 0.0
  %4218 = vmatprep.subr.mxu0 0.0
  %4219 = vmatpush1.msra.mxu0 0.0
  %4220 = vmatprep.subr.mxu0 0.0
  %4221 = vmatpush1.msra.mxu0 0.0
  %4222 = vmatprep.subr.mxu0 0.0
  %4223 = vmatpush1.msra.mxu0 0.0
  %4224 = vmatprep.subr.mxu0 0.0
  %4225 = vmatpush1.msra.mxu0 0.0
  %4226 = vmatprep.subr.mxu0 0.0
  %4227 = vmatpush1.msra.mxu0 0.0
  %4228 = vmatprep.subr.mxu0 0.0
  %4229 = vmatpush1.msra.mxu0 0.0
  %4230 = vmatprep.subr.mxu0 0.0
  %4231 = vmatpush1.msra.mxu0 0.0
  %4232 = vmatprep.subr.mxu0 0.0
  %4233 = vmatpush1.msra.mxu0 0.0
  %4234 = vmatprep.subr.mxu0 0.0
  %4235 = vmatpush1.msra.mxu0 0.0
  %4236 = vmatprep.subr.mxu0 0.0
  %4237 = vmatpush1.msra.mxu0 0.0
  %4238 = vmatprep.subr.mxu0 0.0
  %4239 = vmatpush1.msra.mxu0 0.0
  %4240 = vmatprep.subr.mxu0 0.0
  %4241 = vmatpush1.msra.mxu0 0.0
  %4242 = vmatprep.subr.mxu0 0.0
  %4243 = vmatpush1.msra.mxu0 0.0
  %4244 = vmatprep.subr.mxu0 0.0
  %4245 = vmatpush1.msra.mxu0 0.0
  %4246 = vmatprep.subr.mxu0 0.0
  %4247 = vmatpush1.msra.mxu0 0.0
  %4248 = vmatprep.subr.mxu0 0.0
  %4249 = vmatpush1.msra.mxu0 0.0
  %4250 = vmatprep.subr.mxu0 0.0
  %4251 = vmatpush1.msra.mxu0 0.0
  %4252 = vmatprep.subr.mxu0 0.0
  %4253 = vmatpush1.msra.mxu0 0.0
  %4254 = vmatprep.subr.mxu0 0.0
  %4255 = vmatpush1.msra.mxu0 0.0
  %4256 = vmatprep.subr.mxu0 0.0
  %4257 = vmatpush1.msra.mxu0 0.0
  %4258 = vmatprep.subr.mxu0 0.0
  %4259 = vmatpush1.msra.mxu0 0.0
  %4260 = vmatprep.subr.mxu0 0.0
  %4261 = vmatpush1.msra.mxu0 0.0
  %4262 = vmatprep.subr.mxu0 0.0
  %4263 = vmatpush1.msra.mxu0 0.0
  %4264 = vmatprep.subr.mxu0 0.0
  %4265 = vmatpush1.msra.mxu0 0.0
  %4266 = vmatprep.subr.mxu0 0.0
  %4267 = vmatpush1.msra.mxu0 0.0
  %4268 = vmatprep.subr.mxu0 0.0
  %4269 = vmatpush1.msra.mxu0 0.0
  %4270 = vmatprep.subr.mxu0 0.0
  %4271 = vmatpush1.msra.mxu0 0.0
  %4272 = vmatprep.mubr.f32.mxu0 0.0
  %4273 = vmatmul.mubr.f32.gmra.mrb[0].mxu0 %v4201
  %v4274 = vpop.f32.mrb[0].mxu0
  %v4275 = vadd.f32 0.0, %v4274
  %v4276 = vpop.f32.mrb[0].mxu0
  %v4277 = vadd.f32 0.0, %v4276
  %4278 = vdwg.mxu0
  %v4279 = vsel %vm1265, %v4275, 0.0
  %v4280 = vsel %vm1266, %v4277, 0.0
  %v4281 = vadd.f32 %v4179, %v4279
  %v4282 = vadd.f32 %v4180, %v4280
  %s4283 = scalar_lea.vmem %s12, 44
  %v4284 = vld [vmem:[%s4283] sm:$0xf]
  %4285 = vrot.lane.b32.xlu0 %v3173, 124
  %v4286 = vpop.permute.xlu0 %4285
  %4287 = vrot.lane.b32.xlu0 %v3174, 124
  %v4288 = vpop.permute.xlu0 %4287
  %4289 = vrot.lane.b32.xlu0 %v3175, 124
  %v4290 = vpop.permute.xlu0 %4289
  %4291 = vrot.lane.b32.xlu0 %v3176, 124
  %v4292 = vpop.permute.xlu0 %4291
  %v4293 = vsel %vm1277, %v4286, %v4288
  %v4294 = vsel %vm1277, %v4290, %v4292
  %v4300 = vsel %vm1277, %v4288, %v4286
  %v4301 = vsel %vm1277, %v4292, %v4290
  %v4303 = vsel %vm3199, %v4284, 0
  %v4305 = vsel %vm59, %v4294, 0
  %v4308 = vsel %vm59, %v4301, 0
  %4310 = vmatprep.subr.mxu0 %v4300
  %4311 = vmatpush1.msra.mxu0 %v4293
  %4312 = vmatprep.subr.mxu0 %v4308
  %4313 = vmatpush1.msra.mxu0 %v4305
  %4314 = vmatprep.subr.mxu0 0.0
  %4315 = vmatpush1.msra.mxu0 0.0
  %4316 = vmatprep.subr.mxu0 0.0
  %4317 = vmatpush1.msra.mxu0 0.0
  %4318 = vmatprep.subr.mxu0 0.0
  %4319 = vmatpush1.msra.mxu0 0.0
  %4320 = vmatprep.subr.mxu0 0.0
  %4321 = vmatpush1.msra.mxu0 0.0
  %4322 = vmatprep.subr.mxu0 0.0
  %4323 = vmatpush1.msra.mxu0 0.0
  %4324 = vmatprep.subr.mxu0 0.0
  %4325 = vmatpush1.msra.mxu0 0.0
  %4326 = vmatprep.subr.mxu0 0.0
  %4327 = vmatpush1.msra.mxu0 0.0
  %4328 = vmatprep.subr.mxu0 0.0
  %4329 = vmatpush1.msra.mxu0 0.0
  %4330 = vmatprep.subr.mxu0 0.0
  %4331 = vmatpush1.msra.mxu0 0.0
  %4332 = vmatprep.subr.mxu0 0.0
  %4333 = vmatpush1.msra.mxu0 0.0
  %4334 = vmatprep.subr.mxu0 0.0
  %4335 = vmatpush1.msra.mxu0 0.0
  %4336 = vmatprep.subr.mxu0 0.0
  %4337 = vmatpush1.msra.mxu0 0.0
  %4338 = vmatprep.subr.mxu0 0.0
  %4339 = vmatpush1.msra.mxu0 0.0
  %4340 = vmatprep.subr.mxu0 0.0
  %4341 = vmatpush1.msra.mxu0 0.0
  %4342 = vmatprep.subr.mxu0 0.0
  %4343 = vmatpush1.msra.mxu0 0.0
  %4344 = vmatprep.subr.mxu0 0.0
  %4345 = vmatpush1.msra.mxu0 0.0
  %4346 = vmatprep.subr.mxu0 0.0
  %4347 = vmatpush1.msra.mxu0 0.0
  %4348 = vmatprep.subr.mxu0 0.0
  %4349 = vmatpush1.msra.mxu0 0.0
  %4350 = vmatprep.subr.mxu0 0.0
  %4351 = vmatpush1.msra.mxu0 0.0
  %4352 = vmatprep.subr.mxu0 0.0
  %4353 = vmatpush1.msra.mxu0 0.0
  %4354 = vmatprep.subr.mxu0 0.0
  %4355 = vmatpush1.msra.mxu0 0.0
  %4356 = vmatprep.subr.mxu0 0.0
  %4357 = vmatpush1.msra.mxu0 0.0
  %4358 = vmatprep.subr.mxu0 0.0
  %4359 = vmatpush1.msra.mxu0 0.0
  %4360 = vmatprep.subr.mxu0 0.0
  %4361 = vmatpush1.msra.mxu0 0.0
  %4362 = vmatprep.subr.mxu0 0.0
  %4363 = vmatpush1.msra.mxu0 0.0
  %4364 = vmatprep.subr.mxu0 0.0
  %4365 = vmatpush1.msra.mxu0 0.0
  %4366 = vmatprep.subr.mxu0 0.0
  %4367 = vmatpush1.msra.mxu0 0.0
  %4368 = vmatprep.subr.mxu0 0.0
  %4369 = vmatpush1.msra.mxu0 0.0
  %4370 = vmatprep.subr.mxu0 0.0
  %4371 = vmatpush1.msra.mxu0 0.0
  %4372 = vmatprep.subr.mxu0 0.0
  %4373 = vmatpush1.msra.mxu0 0.0
  %4374 = vmatprep.mubr.f32.mxu0 0.0
  %4375 = vmatmul.mubr.f32.gmra.mrb[0].mxu0 %v4303
  %v4376 = vpop.f32.mrb[0].mxu0
  %v4377 = vadd.f32 0.0, %v4376
  %v4378 = vpop.f32.mrb[0].mxu0
  %v4379 = vadd.f32 0.0, %v4378
  %4380 = vdwg.mxu0
  %v4381 = vsel %vm1374, %v4377, 0.0
  %v4382 = vsel %vm1375, %v4379, 0.0
  %v4383 = vadd.f32 %v4281, %v4381
  %v4384 = vadd.f32 %v4282, %v4382
  %s4385 = scalar_lea.vmem %s12, 48
  %v4386 = vld [vmem:[%s4385] sm:$0xf]
  %4387 = vrot.lane.b32.xlu0 %v3173, 123
  %v4388 = vpop.permute.xlu0 %4387
  %4389 = vrot.lane.b32.xlu0 %v3174, 123
  %v4390 = vpop.permute.xlu0 %4389
  %4391 = vrot.lane.b32.xlu0 %v3175, 123
  %v4392 = vpop.permute.xlu0 %4391
  %4393 = vrot.lane.b32.xlu0 %v3176, 123
  %v4394 = vpop.permute.xlu0 %4393
  %v4395 = vsel %vm1386, %v4388, %v4390
  %v4396 = vsel %vm1386, %v4392, %v4394
  %v4402 = vsel %vm1386, %v4390, %v4388
  %v4403 = vsel %vm1386, %v4394, %v4392
  %v4405 = vsel %vm3199, %v4386, 0
  %v4407 = vsel %vm59, %v4396, 0
  %v4410 = vsel %vm59, %v4403, 0
  %4412 = vmatprep.subr.mxu0 %v4402
  %4413 = vmatpush1.msra.mxu0 %v4395
  %4414 = vmatprep.subr.mxu0 %v4410
  %4415 = vmatpush1.msra.mxu0 %v4407
  %4416 = vmatprep.subr.mxu0 0.0
  %4417 = vmatpush1.msra.mxu0 0.0
  %4418 = vmatprep.subr.mxu0 0.0
  %4419 = vmatpush1.msra.mxu0 0.0
  %4420 = vmatprep.subr.mxu0 0.0
  %4421 = vmatpush1.msra.mxu0 0.0
  %4422 = vmatprep.subr.mxu0 0.0
  %4423 = vmatpush1.msra.mxu0 0.0
  %4424 = vmatprep.subr.mxu0 0.0
  %4425 = vmatpush1.msra.mxu0 0.0
  %4426 = vmatprep.subr.mxu0 0.0
  %4427 = vmatpush1.msra.mxu0 0.0
  %4428 = vmatprep.subr.mxu0 0.0
  %4429 = vmatpush1.msra.mxu0 0.0
  %4430 = vmatprep.subr.mxu0 0.0
  %4431 = vmatpush1.msra.mxu0 0.0
  %4432 = vmatprep.subr.mxu0 0.0
  %4433 = vmatpush1.msra.mxu0 0.0
  %4434 = vmatprep.subr.mxu0 0.0
  %4435 = vmatpush1.msra.mxu0 0.0
  %4436 = vmatprep.subr.mxu0 0.0
  %4437 = vmatpush1.msra.mxu0 0.0
  %4438 = vmatprep.subr.mxu0 0.0
  %4439 = vmatpush1.msra.mxu0 0.0
  %4440 = vmatprep.subr.mxu0 0.0
  %4441 = vmatpush1.msra.mxu0 0.0
  %4442 = vmatprep.subr.mxu0 0.0
  %4443 = vmatpush1.msra.mxu0 0.0
  %4444 = vmatprep.subr.mxu0 0.0
  %4445 = vmatpush1.msra.mxu0 0.0
  %4446 = vmatprep.subr.mxu0 0.0
  %4447 = vmatpush1.msra.mxu0 0.0
  %4448 = vmatprep.subr.mxu0 0.0
  %4449 = vmatpush1.msra.mxu0 0.0
  %4450 = vmatprep.subr.mxu0 0.0
  %4451 = vmatpush1.msra.mxu0 0.0
  %4452 = vmatprep.subr.mxu0 0.0
  %4453 = vmatpush1.msra.mxu0 0.0
  %4454 = vmatprep.subr.mxu0 0.0
  %4455 = vmatpush1.msra.mxu0 0.0
  %4456 = vmatprep.subr.mxu0 0.0
  %4457 = vmatpush1.msra.mxu0 0.0
  %4458 = vmatprep.subr.mxu0 0.0
  %4459 = vmatpush1.msra.mxu0 0.0
  %4460 = vmatprep.subr.mxu0 0.0
  %4461 = vmatpush1.msra.mxu0 0.0
  %4462 = vmatprep.subr.mxu0 0.0
  %4463 = vmatpush1.msra.mxu0 0.0
  %4464 = vmatprep.subr.mxu0 0.0
  %4465 = vmatpush1.msra.mxu0 0.0
  %4466 = vmatprep.subr.mxu0 0.0
  %4467 = vmatpush1.msra.mxu0 0.0
  %4468 = vmatprep.subr.mxu0 0.0
  %4469 = vmatpush1.msra.mxu0 0.0
  %4470 = vmatprep.subr.mxu0 0.0
  %4471 = vmatpush1.msra.mxu0 0.0
  %4472 = vmatprep.subr.mxu0 0.0
  %4473 = vmatpush1.msra.mxu0 0.0
  %4474 = vmatprep.subr.mxu0 0.0
  %4475 = vmatpush1.msra.mxu0 0.0
  %4476 = vmatprep.mubr.f32.mxu0 0.0
  %4477 = vmatmul.mubr.f32.gmra.mrb[0].mxu0 %v4405
  %v4478 = vpop.f32.mrb[0].mxu0
  %v4479 = vadd.f32 0.0, %v4478
  %v4480 = vpop.f32.mrb[0].mxu0
  %v4481 = vadd.f32 0.0, %v4480
  %4482 = vdwg.mxu0
  %v4483 = vsel %vm1483, %v4479, 0.0
  %v4484 = vsel %vm1484, %v4481, 0.0
  %v4485 = vadd.f32 %v4383, %v4483
  %v4486 = vadd.f32 %v4384, %v4484
  %s4487 = scalar_lea.vmem %s12, 52
  %v4488 = vld [vmem:[%s4487] sm:$0xf]
  %4489 = vrot.lane.b32.xlu0 %v3173, 122
  %v4490 = vpop.permute.xlu0 %4489
  %4491 = vrot.lane.b32.xlu0 %v3174, 122
  %v4492 = vpop.permute.xlu0 %4491
  %4493 = vrot.lane.b32.xlu0 %v3175, 122
  %v4494 = vpop.permute.xlu0 %4493
  %4495 = vrot.lane.b32.xlu0 %v3176, 122
  %v4496 = vpop.permute.xlu0 %4495
  %v4497 = vsel %vm1495, %v4490, %v4492
  %v4498 = vsel %vm1495, %v4494, %v4496
  %v4504 = vsel %vm1495, %v4492, %v4490
  %v4505 = vsel %vm1495, %v4496, %v4494
  %v4507 = vsel %vm3199, %v4488, 0
  %v4509 = vsel %vm59, %v4498, 0
  %v4512 = vsel %vm59, %v4505, 0
  %4514 = vmatprep.subr.mxu0 %v4504
  %4515 = vmatpush1.msra.mxu0 %v4497
  %4516 = vmatprep.subr.mxu0 %v4512
  %4517 = vmatpush1.msra.mxu0 %v4509
  %4518 = vmatprep.subr.mxu0 0.0
  %4519 = vmatpush1.msra.mxu0 0.0
  %4520 = vmatprep.subr.mxu0 0.0
  %4521 = vmatpush1.msra.mxu0 0.0
  %4522 = vmatprep.subr.mxu0 0.0
  %4523 = vmatpush1.msra.mxu0 0.0
  %4524 = vmatprep.subr.mxu0 0.0
  %4525 = vmatpush1.msra.mxu0 0.0
  %4526 = vmatprep.subr.mxu0 0.0
  %4527 = vmatpush1.msra.mxu0 0.0
  %4528 = vmatprep.subr.mxu0 0.0
  %4529 = vmatpush1.msra.mxu0 0.0
  %4530 = vmatprep.subr.mxu0 0.0
  %4531 = vmatpush1.msra.mxu0 0.0
  %4532 = vmatprep.subr.mxu0 0.0
  %4533 = vmatpush1.msra.mxu0 0.0
  %4534 = vmatprep.subr.mxu0 0.0
  %4535 = vmatpush1.msra.mxu0 0.0
  %4536 = vmatprep.subr.mxu0 0.0
  %4537 = vmatpush1.msra.mxu0 0.0
  %4538 = vmatprep.subr.mxu0 0.0
  %4539 = vmatpush1.msra.mxu0 0.0
  %4540 = vmatprep.subr.mxu0 0.0
  %4541 = vmatpush1.msra.mxu0 0.0
  %4542 = vmatprep.subr.mxu0 0.0
  %4543 = vmatpush1.msra.mxu0 0.0
  %4544 = vmatprep.subr.mxu0 0.0
  %4545 = vmatpush1.msra.mxu0 0.0
  %4546 = vmatprep.subr.mxu0 0.0
  %4547 = vmatpush1.msra.mxu0 0.0
  %4548 = vmatprep.subr.mxu0 0.0
  %4549 = vmatpush1.msra.mxu0 0.0
  %4550 = vmatprep.subr.mxu0 0.0
  %4551 = vmatpush1.msra.mxu0 0.0
  %4552 = vmatprep.subr.mxu0 0.0
  %4553 = vmatpush1.msra.mxu0 0.0
  %4554 = vmatprep.subr.mxu0 0.0
  %4555 = vmatpush1.msra.mxu0 0.0
  %4556 = vmatprep.subr.mxu0 0.0
  %4557 = vmatpush1.msra.mxu0 0.0
  %4558 = vmatprep.subr.mxu0 0.0
  %4559 = vmatpush1.msra.mxu0 0.0
  %4560 = vmatprep.subr.mxu0 0.0
  %4561 = vmatpush1.msra.mxu0 0.0
  %4562 = vmatprep.subr.mxu0 0.0
  %4563 = vmatpush1.msra.mxu0 0.0
  %4564 = vmatprep.subr.mxu0 0.0
  %4565 = vmatpush1.msra.mxu0 0.0
  %4566 = vmatprep.subr.mxu0 0.0
  %4567 = vmatpush1.msra.mxu0 0.0
  %4568 = vmatprep.subr.mxu0 0.0
  %4569 = vmatpush1.msra.mxu0 0.0
  %4570 = vmatprep.subr.mxu0 0.0
  %4571 = vmatpush1.msra.mxu0 0.0
  %4572 = vmatprep.subr.mxu0 0.0
  %4573 = vmatpush1.msra.mxu0 0.0
  %4574 = vmatprep.subr.mxu0 0.0
  %4575 = vmatpush1.msra.mxu0 0.0
  %4576 = vmatprep.subr.mxu0 0.0
  %4577 = vmatpush1.msra.mxu0 0.0
  %4578 = vmatprep.mubr.f32.mxu0 0.0
  %4579 = vmatmul.mubr.f32.gmra.mrb[0].mxu0 %v4507
  %v4580 = vpop.f32.mrb[0].mxu0
  %v4581 = vadd.f32 0.0, %v4580
  %v4582 = vpop.f32.mrb[0].mxu0
  %v4583 = vadd.f32 0.0, %v4582
  %4584 = vdwg.mxu0
  %v4585 = vsel %vm1592, %v4581, 0.0
  %v4586 = vsel %vm1593, %v4583, 0.0
  %v4587 = vadd.f32 %v4485, %v4585
  %v4588 = vadd.f32 %v4486, %v4586
  %s4589 = scalar_lea.vmem %s12, 56
  %v4590 = vld [vmem:[%s4589] sm:$0xf]
  %4591 = vrot.lane.b32.xlu0 %v3173, 121
  %v4592 = vpop.permute.xlu0 %4591
  %4593 = vrot.lane.b32.xlu0 %v3174, 121
  %v4594 = vpop.permute.xlu0 %4593
  %4595 = vrot.lane.b32.xlu0 %v3175, 121
  %v4596 = vpop.permute.xlu0 %4595
  %4597 = vrot.lane.b32.xlu0 %v3176, 121
  %v4598 = vpop.permute.xlu0 %4597
  %v4599 = vsel %vm1604, %v4592, %v4594
  %v4600 = vsel %vm1604, %v4596, %v4598
  %v4606 = vsel %vm1604, %v4594, %v4592
  %v4607 = vsel %vm1604, %v4598, %v4596
  %v4609 = vsel %vm3199, %v4590, 0
  %v4611 = vsel %vm59, %v4600, 0
  %v4614 = vsel %vm59, %v4607, 0
  %4616 = vmatprep.subr.mxu0 %v4606
  %4617 = vmatpush1.msra.mxu0 %v4599
  %4618 = vmatprep.subr.mxu0 %v4614
  %4619 = vmatpush1.msra.mxu0 %v4611
  %4620 = vmatprep.subr.mxu0 0.0
  %4621 = vmatpush1.msra.mxu0 0.0
  %4622 = vmatprep.subr.mxu0 0.0
  %4623 = vmatpush1.msra.mxu0 0.0
  %4624 = vmatprep.subr.mxu0 0.0
  %4625 = vmatpush1.msra.mxu0 0.0
  %4626 = vmatprep.subr.mxu0 0.0
  %4627 = vmatpush1.msra.mxu0 0.0
  %4628 = vmatprep.subr.mxu0 0.0
  %4629 = vmatpush1.msra.mxu0 0.0
  %4630 = vmatprep.subr.mxu0 0.0
  %4631 = vmatpush1.msra.mxu0 0.0
  %4632 = vmatprep.subr.mxu0 0.0
  %4633 = vmatpush1.msra.mxu0 0.0
  %4634 = vmatprep.subr.mxu0 0.0
  %4635 = vmatpush1.msra.mxu0 0.0
  %4636 = vmatprep.subr.mxu0 0.0
  %4637 = vmatpush1.msra.mxu0 0.0
  %4638 = vmatprep.subr.mxu0 0.0
  %4639 = vmatpush1.msra.mxu0 0.0
  %4640 = vmatprep.subr.mxu0 0.0
  %4641 = vmatpush1.msra.mxu0 0.0
  %4642 = vmatprep.subr.mxu0 0.0
  %4643 = vmatpush1.msra.mxu0 0.0
  %4644 = vmatprep.subr.mxu0 0.0
  %4645 = vmatpush1.msra.mxu0 0.0
  %4646 = vmatprep.subr.mxu0 0.0
  %4647 = vmatpush1.msra.mxu0 0.0
  %4648 = vmatprep.subr.mxu0 0.0
  %4649 = vmatpush1.msra.mxu0 0.0
  %4650 = vmatprep.subr.mxu0 0.0
  %4651 = vmatpush1.msra.mxu0 0.0
  %4652 = vmatprep.subr.mxu0 0.0
  %4653 = vmatpush1.msra.mxu0 0.0
  %4654 = vmatprep.subr.mxu0 0.0
  %4655 = vmatpush1.msra.mxu0 0.0
  %4656 = vmatprep.subr.mxu0 0.0
  %4657 = vmatpush1.msra.mxu0 0.0
  %4658 = vmatprep.subr.mxu0 0.0
  %4659 = vmatpush1.msra.mxu0 0.0
  %4660 = vmatprep.subr.mxu0 0.0
  %4661 = vmatpush1.msra.mxu0 0.0
  %4662 = vmatprep.subr.mxu0 0.0
  %4663 = vmatpush1.msra.mxu0 0.0
  %4664 = vmatprep.subr.mxu0 0.0
  %4665 = vmatpush1.msra.mxu0 0.0
  %4666 = vmatprep.subr.mxu0 0.0
  %4667 = vmatpush1.msra.mxu0 0.0
  %4668 = vmatprep.subr.mxu0 0.0
  %4669 = vmatpush1.msra.mxu0 0.0
  %4670 = vmatprep.subr.mxu0 0.0
  %4671 = vmatpush1.msra.mxu0 0.0
  %4672 = vmatprep.subr.mxu0 0.0
  %4673 = vmatpush1.msra.mxu0 0.0
  %4674 = vmatprep.subr.mxu0 0.0
  %4675 = vmatpush1.msra.mxu0 0.0
  %4676 = vmatprep.subr.mxu0 0.0
  %4677 = vmatpush1.msra.mxu0 0.0
  %4678 = vmatprep.subr.mxu0 0.0
  %4679 = vmatpush1.msra.mxu0 0.0
  %4680 = vmatprep.mubr.f32.mxu0 0.0
  %4681 = vmatmul.mubr.f32.gmra.mrb[0].mxu0 %v4609
  %v4682 = vpop.f32.mrb[0].mxu0
  %v4683 = vadd.f32 0.0, %v4682
  %v4684 = vpop.f32.mrb[0].mxu0
  %v4685 = vadd.f32 0.0, %v4684
  %4686 = vdwg.mxu0
  %v4687 = vsel %vm1701, %v4683, 0.0
  %v4688 = vsel %vm1702, %v4685, 0.0
  %v4689 = vadd.f32 %v4587, %v4687
  %v4690 = vadd.f32 %v4588, %v4688
  %4692 = vset.pattern.permute.xlu0 0
  %4693 = vperm.xlu0 %4692, %v3100
  %v4694 = vpop.permute.xlu0 %4693
  %v4696 = vadd.f32 %v4689, %v4694
  %v4697 = vadd.f32 %v4690, %v4694
  %v4700 = vrot.slane %v4696, 4
  %v4701 = vrot.slane %v4697, 4
  %4704 = vst [vmem:[%s14 + $0x10] sm:$0xf0] %v4700
  %4705 = vst [vmem:[%s14 + $0x18] sm:$0xf0] %v4701
  // Predicated region
  $region58: #{_lambda_.1} parent=0 // pred_check
    _
  $region59: #{_lambda_.1} parent=0 // pred_check_branch
    %4707 = sbr.rel (0) target = $region61
  $region60: #{_lambda_.1} parent=0 // pred_region
    _
  $region61: #{_lambda_.1} parent=0 // pred_fallthru
    _
  // Predicated region
  $region62: #{_lambda_.1} parent=0 // pred_check
    _
  $region63: #{_lambda_.1} parent=0 // pred_check_branch
    %4709 = sbr.rel (0) target = $region65
  $region64: #{_lambda_.1} parent=0 // pred_region
    _
  $region65: #{_lambda_.1} parent=0 // pred_fallthru
    _

</llo_original>
